<compile_context>
chip_gen: v6e
topology: v6e:2x2x1
jax: 0.10.0
libtpu: 0.0.40
codegen_flags: <defaults>
</compile_context>

<pallas_src>
import functools

import numpy as np
import jax
import jax.numpy as jnp
from jax.experimental import pallas as pl
from jax.experimental.pallas import tpu as pltpu

F32 = jnp.float32
_VMEM = pl.BlockSpec(memory_space=pltpu.MemorySpace.VMEM)
_LN_EPS = 1e-5


def _sigmoid(x):
    return 1.0 / (1.0 + jnp.exp(-x))


def _layernorm(x, g_ref, b_ref):
    mu = jnp.mean(x, axis=-1, keepdims=True)
    var = jnp.mean((x - mu) ** 2, axis=-1, keepdims=True)
    return (x - mu) * jax.lax.rsqrt(var + _LN_EPS) * g_ref[...] + b_ref[...]


# ----------------------------- Pallas kernels -----------------------------

def _constants_kernel(emb_ref, tgt_ref,
                      we_ref, wt_ref, b1_ref, w2_ref, b2_ref,
                      w_tl, b_tl, w_tl2, b_tl2, w_vs1t, w_cqt, w_g1t,
                      pcs_ref, vs1_ref, cq_ref, g1_ref):
    # (a) code_selection logits without materializing the (V+1, 2D) concat:
    #       pcs = tanh(emb @ W_e + tgt @ W_t + b1) @ W2 + b2
    # (b) the three constant (1,D) target-embedding projection terms.
    tgt = tgt_ref[...]
    tterm = jnp.dot(tgt, wt_ref[...], preferred_element_type=F32)
    h = jnp.tanh(jnp.dot(emb_ref[...], we_ref[...], preferred_element_type=F32)
                 + tterm + b1_ref[...])
    pcs_ref[...] = jnp.dot(h, w2_ref[...], preferred_element_type=F32) + b2_ref[...]

    tl = jnp.dot(tgt, w_tl[...], preferred_element_type=F32) + b_tl[...]
    tl2 = jnp.dot(tgt, w_tl2[...], preferred_element_type=F32) + b_tl2[...]
    vs1_ref[...] = jnp.dot(tl2, w_vs1t[...], preferred_element_type=F32)
    cq_ref[...] = jnp.dot(tl, w_cqt[...], preferred_element_type=F32)
    g1_ref[...] = jnp.dot(tgt, w_g1t[...], preferred_element_type=F32)


def _prologue_kernel(t_ref, pm_ref, x_ref, tw_ref, tb_ref, wu_ref, bu_ref,
                     sel_ref, te_ref):
    # fused: time_feature -> time_updim -> selected = sum_c(pmask*x) + time_enc
    tf = 1.0 - jnp.tanh((t_ref[...] * tw_ref[...] + tb_ref[...]) ** 2)   # (N,64)
    te = jnp.dot(tf, wu_ref[...], preferred_element_type=F32) + bu_ref[...]
    te_ref[...] = te
    sel_ref[...] = jnp.sum(pm_ref[...][:, :, None] * x_ref[...], axis=1) + te


def _lstm_seq_kernel(x_ref, wi_ref, wh_ref, o_ref, h_sc, c_sc, *, h8):
    # one grid step == one (reverse-time) LSTM step; h/c carried in VMEM scratch
    @pl.when(pl.program_id(0) == 0)
    def _():
        h_sc[...] = jnp.zeros_like(h_sc)
        c_sc[...] = jnp.zeros_like(c_sc)

    x = x_ref[0]                       # (B, D)
    h = h_sc[...]
    c = c_sc[...]
    g = (jnp.dot(x, wi_ref[...], preferred_element_type=F32)
         + jnp.dot(h, wh_ref[...], preferred_element_type=F32))      # (B, 4*h8)
    i_g = _sigmoid(g[:, 0 * h8:1 * h8])
    f_g = _sigmoid(g[:, 1 * h8:2 * h8])
    g_g = jnp.tanh(g[:, 2 * h8:3 * h8])
    o_g = _sigmoid(g[:, 3 * h8:4 * h8])
    c_new = f_g * c + i_g * g_g
    h_new = o_g * jnp.tanh(c_new)
    c_sc[...] = c_new
    h_sc[...] = h_new
    o_ref[0] = h_new


def _visit_loop_kernel(sel_ref, fol_ref, x_ref, pm_ref, te_ref, gn_ref,
                       vs1t_ref, cqt_ref,
                       w_vs1h, w_vs1s, w_vs1f, b_vs1,
                       w_vs2, b_vs2,
                       w_cqh, w_cqf, b_cq,
                       w_fc, b_fc,
                       w_gi, w_gh,
                       w_mem, b_mem, g_mln, b_mln,
                       w_step, b_step, g_sln, b_sln,
                       g_ln2, b_ln2,
                       w_ff1, b_ff1, w_ff2, b_ff2,
                       g_ln, b_ln,
                       hid_ref, vsk_ref, csk_ref,
                       hx_sc, mem_sc,
                       *, d_model, scale, seq_len):
    i = pl.program_id(0)

    @pl.when(i == 0)
    def _():
        hx_sc[...] = jnp.zeros_like(hx_sc)
        mem_sc[...] = jnp.zeros_like(mem_sc)

    hx = hx_sc[...]                    # (B, D)   hidden from step i-1
    sel = sel_ref[0]                   # (B, D)
    fol = fol_ref[0]                   # (B, h8)
    xi = x_ref[0]                      # (B, C, D)
    pm = pm_ref[0]                     # (B, C)
    te = te_ref[0]                     # (B, D)
    gn = gn_ref[0]                     # (B, 2)   gumbel noise for this step

    def mm(a, w_ref_):
        return jnp.dot(a, w_ref_[...], preferred_element_type=F32)

    # ---- visit skip gate (visit_skip1 split over concat inputs + visit_skip2)
    v = jnp.tanh(mm(hx, w_vs1h) + mm(sel, w_vs1s) + mm(fol, w_vs1f)
                 + vs1t_ref[...] + b_vs1[...])
    v = mm(v, w_vs2) + b_vs2[...]                                     # (B, 2)
    pert = v + gn                      # argmax(log_softmax(v)+g) == argmax(v+g)
    keep = (pert[:, 0:1] >= pert[:, 1:2]).astype(F32)                 # (B, 1)
    col = jax.lax.broadcasted_iota(jnp.int32, pert.shape, 1)
    vsk_ref[0] = jnp.where(col == 0, keep, 1.0 - keep)

    # ---- code query + attention over the C codes of this visit (VPU path)
    q = jnp.maximum(mm(hx, w_cqh) + mm(fol, w_cqf) + cqt_ref[...] + b_cq[...],
                    0.0)                                              # (B, D)
    e = jnp.sum(q[:, None, :] * xi, axis=-1) / scale                  # (B, C)
    e = e - jnp.max(e, axis=-1, keepdims=True)
    pe = jnp.exp(e)
    attn = (pe / jnp.sum(pe, axis=-1, keepdims=True)) * pm            # post-softmax
    csk_ref[0] = attn
    z = jnp.sum(attn[:, :, None] * xi, axis=1)                        # (B, D)

    z = mm(z, w_fc) + b_fc[...] + te

    # ---- GRU cell (no bias), stacked gates [r|z|n]
    gx = mm(z, w_gi)                                                  # (B, 3D)
    gh = mm(hx, w_gh)
    r = _sigmoid(gx[:, 0:d_model] + gh[:, 0:d_model])
    u = _sigmoid(gx[:, d_model:2 * d_model] + gh[:, d_model:2 * d_model])
    n = jnp.tanh(gx[:, 2 * d_model:3 * d_model]
                 + r * gh[:, 2 * d_model:3 * d_model])
    gru_hx = (1.0 - u) * n + u * hx
    step_hx = hx * (1.0 - keep) + gru_hx * keep

    # ---- memory attention + residual FFN (result discarded via where at i==0)
    sh = _layernorm(jnp.maximum(mm(step_hx, w_step) + b_step[...], 0.0),
                    g_sln, b_sln)                                     # (B, D)
    mem = mem_sc[...]                                                 # (T, B, D)
    me = jnp.sum(sh[None, :, :] * mem, axis=-1) / scale               # (T, B)
    pos = jax.lax.broadcasted_iota(jnp.int32, (seq_len, 1), 0)        # (T, 1)
    me = jnp.where(pos < i, me, -1e30)                                # mask j >= i
    me = me - jnp.max(me, axis=0, keepdims=True)
    pm_e = jnp.exp(me)
    mattn = pm_e / jnp.sum(pm_e, axis=0, keepdims=True)               # (T, B)
    ctx = jnp.sum(mattn[:, :, None] * mem, axis=0)                    # (B, D)
    h1 = _layernorm(ctx + sh, g_ln2, b_ln2)
    ff = jnp.maximum(mm(h1, w_ff1) + b_ff1[...], 0.0)
    ff = mm(ff, w_ff2) + b_ff2[...]
    h2 = _layernorm(ff + h1, g_ln, b_ln)

    hx_new = jnp.where(i == 0, step_hx, h2)

    hx_sc[...] = hx_new
    hid_ref[0] = hx_new
    # transform the new hidden ONCE and append it to the memory bank (O(T))
    mem_sc[i] = _layernorm(jnp.maximum(mm(hx_new, w_mem) + b_mem[...], 0.0),
                           g_mln, b_mln)


def _global_energy_kernel(hid_ref, t_ref, tw2_ref, tb2_ref, wg1h_ref, wg1t_ref,
                          g1tt_ref, bg1_ref, wg2_ref, bg2_ref, o_ref):
    # fused: time_feature2 + global_att (split over concat inputs) -> energies
    tf2 = 1.0 - jnp.tanh((t_ref[...] * tw2_ref[...] + tb2_ref[...]) ** 2)
    pre = jnp.tanh(jnp.dot(hid_ref[...], wg1h_ref[...], preferred_element_type=F32)
                   + jnp.dot(tf2, wg1t_ref[...], preferred_element_type=F32)
                   + g1tt_ref[...] + bg1_ref[...])
    o_ref[...] = (jnp.dot(pre, wg2_ref[...], preferred_element_type=F32)
                  + bg2_ref[...])


def _global_pool_kernel(ge_ref, lm_ref, hid_ref, w_ref, b_ref, o_ref):
    # masked softmax over T, weighted sum of hiddens, output_mlp
    e = jnp.where(lm_ref[...] > 0, -jnp.inf, ge_ref[...])             # (B, T)
    e = e - jnp.max(e, axis=-1, keepdims=True)
    p = jnp.exp(e)
    ga = p / jnp.sum(p, axis=-1, keepdims=True)
    feat = jnp.sum(ga[:, :, None] * hid_ref[...], axis=1)             # (B, D)
    o_ref[...] = jnp.dot(feat, w_ref[...], preferred_element_type=F32) + b_ref[...]


# ----------------------------- parameters -----------------------------

def init_params(key, vocab_size, d_model):
    h8 = d_model // 8
    keys = iter(jax.random.split(key, 80))

    def unif(shape, bound):
        return jax.random.uniform(next(keys), shape, F32, -bound, bound)

    def lin(i, o):
        bound = 1.0 / np.sqrt(i)
        return unif((i, o), bound), unif((1, o), bound)

    p = {}
    emb = jax.random.normal(next(keys), (vocab_size + 1, d_model), F32)
    p["embedding"] = emb.at[vocab_size].set(0.0)          # padding_idx=-1 row
    p["target_embedding"] = jax.random.normal(next(keys), (1, d_model), F32)

    p["target_linear"] = lin(d_model, d_model)
    p["target_linear2"] = lin(d_model, d_model)

    # code_selection: Linear(2D, D) split into [emb | tgt] blocks, Linear(D, 2)
    b_cs = 1.0 / np.sqrt(2 * d_model)
    p["cs1_we"] = unif((d_model, d_model), b_cs)
    p["cs1_wt"] = unif((d_model, d_model), b_cs)
    p["cs1_b"] = unif((1, d_model), b_cs)
    p["cs2"] = lin(d_model, 2)

    # visit_skip: Linear(3D + h8, D) split into [hx | sel | fol | tgt], Linear(D,2)
    b_vs = 1.0 / np.sqrt(3 * d_model + h8)
    p["vs1_wh"] = unif((d_model, d_model), b_vs)
    p["vs1_ws"] = unif((d_model, d_model), b_vs)
    p["vs1_wf"] = unif((h8, d_model), b_vs)
    p["vs1_wt"] = unif((d_model, d_model), b_vs)
    p["vs1_b"] = unif((1, d_model), b_vs)
    p["vs2"] = lin(d_model, 2)

    # code_query: Linear(2D + h8, D) split into [hx | fol | tgt]
    b_cq = 1.0 / np.sqrt(2 * d_model + h8)
    p["cq_wh"] = unif((d_model, d_model), b_cq)
    p["cq_wf"] = unif((h8, d_model), b_cq)
    p["cq_wt"] = unif((d_model, d_model), b_cq)
    p["cq_b"] = unif((1, d_model), b_cq)

    p["output_mlp"] = lin(d_model, 2)
    p["fc"] = lin(d_model, d_model)
    p["ff1"] = lin(d_model, 4 * d_model)
    p["ff2"] = lin(4 * d_model, d_model)
    p["time_layer"] = lin(1, 64)
    p["time_layer2"] = lin(1, 64)
    p["time_updim"] = lin(64, d_model)
    p["mem_linear"] = lin(d_model, d_model)
    p["step_linear"] = lin(d_model, d_model)

    # global_att: Linear(2D + 64, D) split into [hid | time64 | tgt], Linear(D,1)
    b_g = 1.0 / np.sqrt(2 * d_model + 64)
    p["g1_wh"] = unif((d_model, d_model), b_g)
    p["g1_wt64"] = unif((64, d_model), b_g)
    p["g1_wtgt"] = unif((d_model, d_model), b_g)
    p["g1_b"] = unif((1, d_model), b_g)
    p["g2"] = lin(d_model, 1)

    for nm in ("ln", "ln2", "mem_ln", "step_ln"):
        p[nm + "_g"] = jnp.ones((1, d_model), F32)
        p[nm + "_b"] = jnp.zeros((1, d_model), F32)

    # GRUCell (no bias), stacked gates [r|z|n]
    bg = 1.0 / np.sqrt(d_model)
    p["gru_wi"] = unif((d_model, 3 * d_model), bg)
    p["gru_wh"] = unif((d_model, 3 * d_model), bg)

    # reverse LSTM (no bias), stacked gates [i|f|g|o]
    bl = 1.0 / np.sqrt(h8)
    p["lstm_wi"] = unif((d_model, 4 * h8), bl)
    p["lstm_wh"] = unif((h8, 4 * h8), bl)
    return p


# ----------------------------- forward pass -----------------------------

def _selected_forward_impl(params, input_seqs, lengths, seq_time_step, code_mask,
                           rng_key, vocab_size, d_model):
    B, T, C = input_seqs.shape
    D = d_model
    h8 = D // 8
    N = B * T
    scale = float(np.sqrt(D))
    arb = pltpu.CompilerParams(dimension_semantics=("arbitrary",))

    t = (seq_time_step[:, :, None] / 180.0).astype(F32)               # (B,T,1)

    emb = params["embedding"]
    # embedding gather + relu (gather stays in XLA glue; no Pallas gather needed)
    x = jnp.maximum(emb[input_seqs].astype(F32), 0.0)                 # (B,T,C,D)

    # ---- code-selection logits + constant target-projection terms (one call)
    pcs, vs1_tt, cq_tt, g1_tt = pl.pallas_call(
        _constants_kernel,
        out_shape=(jax.ShapeDtypeStruct((vocab_size + 1, 2), F32),
                   jax.ShapeDtypeStruct((1, D), F32),
                   jax.ShapeDtypeStruct((1, D), F32),
                   jax.ShapeDtypeStruct((1, D), F32)),
        in_specs=[_VMEM] * 14, out_specs=(_VMEM,) * 4,
    )(emb, params["target_embedding"],
      params["cs1_we"], params["cs1_wt"], params["cs1_b"],
      params["cs2"][0], params["cs2"][1],
      params["target_linear"][0], params["target_linear"][1],
      params["target_linear2"][0], params["target_linear2"][1],
      params["vs1_wt"], params["cq_wt"], params["g1_wtgt"])

    # gumbel hard one-hot for code selection (noise/argmax as XLA glue)
    k_sel, k_vs = jax.random.split(rng_key)
    g_noise = jax.random.gumbel(k_sel, pcs.shape, F32)
    idx = jnp.argmax(jax.nn.log_softmax(pcs, axis=-1) + g_noise, axis=-1)
    p_vec = (idx == 0).astype(F32).at[vocab_size].set(0.0)
    p_mask = p_vec[input_seqs]                                        # (B,T,C)

    # ---- fused time feature/updim + code-weighted sum
    selected_flat, te_flat = pl.pallas_call(
        _prologue_kernel,
        out_shape=(jax.ShapeDtypeStruct((N, D), F32),
                   jax.ShapeDtypeStruct((N, D), F32)),
        in_specs=[_VMEM] * 7, out_specs=(_VMEM, _VMEM),
    )(t.reshape(N, 1), p_mask.reshape(N, C), x.reshape(N, C, D),
      params["time_layer"][0], params["time_layer"][1],
      params["time_updim"][0], params["time_updim"][1])
    selected = selected_flat.reshape(B, T, D)
    te = te_flat.reshape(B, T, D)

    # ---- reverse LSTM: one grid=(T,) kernel, weights resident, state in VMEM
    sel_tb = jnp.transpose(selected, (1, 0, 2))                       # (T,B,D)
    flipped = sel_tb[::-1]
    lstm_out = pl.pallas_call(
        functools.partial(_lstm_seq_kernel, h8=h8),
        grid=(T,),
        out_shape=jax.ShapeDtypeStruct((T, B, h8), F32),
        in_specs=[pl.BlockSpec((1, B, D), lambda i: (i, 0, 0)),
                  pl.BlockSpec((D, 4 * h8), lambda i: (0, 0)),
                  pl.BlockSpec((h8, 4 * h8), lambda i: (0, 0))],
        out_specs=pl.BlockSpec((1, B, h8), lambda i: (i, 0, 0)),
        scratch_shapes=[pltpu.VMEM((B, h8), F32), pltpu.VMEM((B, h8), F32)],
        compiler_params=arb,
    )(flipped, params["lstm_wi"], params["lstm_wh"])
    following_tb = lstm_out[::-1]                                     # (T,B,h8)

    # ---- fused per-visit loop: one grid=(T,) kernel
    x_tb = jnp.transpose(x, (1, 0, 2, 3))                             # (T,B,C,D)
    pm_tb = jnp.transpose(p_mask, (1, 0, 2))                          # (T,B,C)
    te_tb = jnp.transpose(te, (1, 0, 2))                              # (T,B,D)
    gn = jax.random.gumbel(k_vs, (T, B, 2), F32)

    def _wspec(shp):
        nd = len(shp)
        return pl.BlockSpec(shp, lambda i: (0,) * nd)

    def _step3(last):
        return pl.BlockSpec((1, B, last), lambda i: (i, 0, 0))

    step4 = pl.BlockSpec((1, B, C, D), lambda i: (i, 0, 0, 0))
    w1d = _wspec((1, D))
    wDD = _wspec((D, D))
    wHD = _wspec((h8, D))

    hid_tb, vsk_tb, csk_tb = pl.pallas_call(
        functools.partial(_visit_loop_kernel, d_model=D, scale=scale, seq_len=T),
        grid=(T,),
        out_shape=(jax.ShapeDtypeStruct((T, B, D), F32),
                   jax.ShapeDtypeStruct((T, B, 2), F32),
                   jax.ShapeDtypeStruct((T, B, C), F32)),
        in_specs=[_step3(D), _step3(h8), step4, _step3(C), _step3(D), _step3(2),
                  w1d, w1d,                                   # target terms
                  wDD, wDD, wHD, w1d,                         # visit_skip1
                  _wspec((D, 2)), _wspec((1, 2)),             # visit_skip2
                  wDD, wHD, w1d,                              # code_query
                  wDD, w1d,                                   # fc
                  _wspec((D, 3 * D)), _wspec((D, 3 * D)),     # GRU
                  wDD, w1d, w1d, w1d,                         # mem_linear + LN
                  wDD, w1d, w1d, w1d,                         # step_linear + LN
                  w1d, w1d,                                   # layer_norm2
                  _wspec((D, 4 * D)), _wspec((1, 4 * D)),     # ff1
                  _wspec((4 * D, D)), w1d,                    # ff2
                  w1d, w1d],                                  # layer_norm
        out_specs=(_step3(D), _step3(2), _step3(C)),
        scratch_shapes=[pltpu.VMEM((B, D), F32),              # hx carry
                        pltpu.VMEM((T, B, D), F32)],          # memory bank
        compiler_params=arb,
    )(sel_tb, following_tb, x_tb, pm_tb, te_tb, gn,
      vs1_tt, cq_tt,
      params["vs1_wh"], params["vs1_ws"], params["vs1_wf"], params["vs1_b"],
      params["vs2"][0], params["vs2"][1],
      params["cq_wh"], params["cq_wf"], params["cq_b"],
      params["fc"][0], params["fc"][1],
      params["gru_wi"], params["gru_wh"],
      params["mem_linear"][0], params["mem_linear"][1],
      params["mem_ln_g"], params["mem_ln_b"],
      params["step_linear"][0], params["step_linear"][1],
      params["step_ln_g"], params["step_ln_b"],
      params["ln2_g"], params["ln2_b"],
      params["ff1"][0], params["ff1"][1], params["ff2"][0], params["ff2"][1],
      params["ln_g"], params["ln_b"])

    hiddens = jnp.transpose(hid_tb, (1, 0, 2))                        # (B,T,D)
    v_skips = jnp.transpose(vsk_tb, (1, 0, 2))                        # (B,T,2)
    c_skips = jnp.transpose(csk_tb, (1, 0, 2))                        # (B,T,C)

    # ---- skip rate (scalar glue)
    one = jnp.ones_like(c_skips)
    c_sk = jnp.where(c_skips > 0, one, c_skips)
    cm = jnp.where(code_mask > 0, 1.0, code_mask.astype(F32))
    skips = v_skips[:, :, 0:1] * c_sk
    skip_rate = 1.0 - jnp.sum(skips) / jnp.sum(1.0 - cm)

    # ---- fused time_feature2 + global attention energies
    ge = pl.pallas_call(
        _global_energy_kernel,
        out_shape=jax.ShapeDtypeStruct((N, 1), F32),
        in_specs=[_VMEM] * 10, out_specs=_VMEM,
    )(hiddens.reshape(N, D), t.reshape(N, 1),
      params["time_layer2"][0], params["time_layer2"][1],
      params["g1_wh"], params["g1_wt64"], g1_tt, params["g1_b"],
      params["g2"][0], params["g2"][1])

    length_mask = (jnp.arange(T)[None, :] >= lengths[:, None]).astype(F32)

    out = pl.pallas_call(
        _global_pool_kernel,
        out_shape=jax.ShapeDtypeStruct((B, 2), F32),
        in_specs=[_VMEM] * 5, out_specs=_VMEM,
    )(ge.reshape(B, T), length_mask, hiddens,
      params["output_mlp"][0], params["output_mlp"][1])

    return out, skip_rate


selected_forward = jax.jit(_selected_forward_impl,
                           static_argnames=("vocab_size", "d_model"))


# ----------------------------- main -----------------------------

if __name__ == "__main__":
    vocab_size = 20
    d_model = 32
    B, T, C = 2, 8, 5

    key = jax.random.PRNGKey(0)
    kp, k1, k2, k3, kg = jax.random.split(key, 5)

    params = init_params(kp, vocab_size, d_model)
    input_seqs = jax.random.randint(k1, (B, T, C), 0, vocab_size + 1)
    lengths = jax.random.randint(k2, (B,), 1, T + 1)
    seq_time_step = jax.random.uniform(k3, (B, T), F32, 0.0, 365.0)
    code_mask = (input_seqs == vocab_size).astype(F32)   # 1 where padding code

    out, skip_rate = selected_forward(params, input_seqs, lengths, seq_time_step,
                                      code_mask, kg,
                                      vocab_size=vocab_size, d_model=d_model)
    jax.block_until_ready((out, skip_rate))
    assert out.shape == (B, 2)
    print("KERNEL_OK")
</pallas_src>

<mosaic_0001>
module attributes {stable_mosaic.version = 11 : i64} {
  func.func @_constants_kernel(%arg0: memref<21x32xf32, #tpu.memory_space<vmem>>, %arg1: memref<1x32xf32, #tpu.memory_space<vmem>>, %arg2: memref<32x32xf32, #tpu.memory_space<vmem>>, %arg3: memref<32x32xf32, #tpu.memory_space<vmem>>, %arg4: memref<1x32xf32, #tpu.memory_space<vmem>>, %arg5: memref<32x2xf32, #tpu.memory_space<vmem>>, %arg6: memref<1x2xf32, #tpu.memory_space<vmem>>, %arg7: memref<32x32xf32, #tpu.memory_space<vmem>>, %arg8: memref<1x32xf32, #tpu.memory_space<vmem>>, %arg9: memref<32x32xf32, #tpu.memory_space<vmem>>, %arg10: memref<1x32xf32, #tpu.memory_space<vmem>>, %arg11: memref<32x32xf32, #tpu.memory_space<vmem>>, %arg12: memref<32x32xf32, #tpu.memory_space<vmem>>, %arg13: memref<32x32xf32, #tpu.memory_space<vmem>>, %arg14: memref<21x2xf32, #tpu.memory_space<vmem>>, %arg15: memref<1x32xf32, #tpu.memory_space<vmem>>, %arg16: memref<1x32xf32, #tpu.memory_space<vmem>>, %arg17: memref<1x32xf32, #tpu.memory_space<vmem>>) attributes {dimension_semantics = [], scalar_prefetch = 0 : i64, scratch_operands = 0 : i64, tpu.core_type = #tpu.core_type<tc>} {
    %c0 = arith.constant 0 : index
    %c0_0 = arith.constant 0 : index
    %0 = vector.load %arg1[%c0, %c0_0] : memref<1x32xf32, #tpu.memory_space<vmem>>, vector<1x32xf32>
    %c0_1 = arith.constant 0 : index
    %c0_2 = arith.constant 0 : index
    %1 = vector.load %arg3[%c0_1, %c0_2] : memref<32x32xf32, #tpu.memory_space<vmem>>, vector<32x32xf32>
    %cst = arith.constant dense<0.000000e+00> : vector<1x32xf32>
    %2 = tpu.matmul %0, %1, %cst {dimension_numbers = #tpu.dot_dimension_numbers<[1], [0], [0], [1], [0, 0, 1, 1], [], []>} : vector<1x32xf32>, vector<32x32xf32>, vector<1x32xf32> -> vector<1x32xf32>
    %c0_3 = arith.constant 0 : index
    %c0_4 = arith.constant 0 : index
    %3 = vector.load %arg0[%c0_3, %c0_4] : memref<21x32xf32, #tpu.memory_space<vmem>>, vector<21x32xf32>
    %c0_5 = arith.constant 0 : index
    %c0_6 = arith.constant 0 : index
    %4 = vector.load %arg2[%c0_5, %c0_6] : memref<32x32xf32, #tpu.memory_space<vmem>>, vector<32x32xf32>
    %cst_7 = arith.constant dense<0.000000e+00> : vector<21x32xf32>
    %5 = tpu.matmul %3, %4, %cst_7 {dimension_numbers = #tpu.dot_dimension_numbers<[1], [0], [0], [1], [0, 0, 1, 1], [], []>} : vector<21x32xf32>, vector<32x32xf32>, vector<21x32xf32> -> vector<21x32xf32>
    %6 = vector.broadcast %2 : vector<1x32xf32> to vector<21x32xf32>
    %7 = arith.addf %5, %6 : vector<21x32xf32>
    %c0_8 = arith.constant 0 : index
    %c0_9 = arith.constant 0 : index
    %8 = vector.load %arg4[%c0_8, %c0_9] : memref<1x32xf32, #tpu.memory_space<vmem>>, vector<1x32xf32>
    %9 = vector.broadcast %8 : vector<1x32xf32> to vector<21x32xf32>
    %10 = arith.addf %7, %9 : vector<21x32xf32>
    %11 = math.tanh %10 : vector<21x32xf32>
    %c0_10 = arith.constant 0 : index
    %c0_11 = arith.constant 0 : index
    %12 = vector.load %arg5[%c0_10, %c0_11] : memref<32x2xf32, #tpu.memory_space<vmem>>, vector<32x2xf32>
    %cst_12 = arith.constant dense<0.000000e+00> : vector<21x2xf32>
    %13 = tpu.matmul %11, %12, %cst_12 {dimension_numbers = #tpu.dot_dimension_numbers<[1], [0], [0], [1], [0, 0, 1, 1], [], []>} : vector<21x32xf32>, vector<32x2xf32>, vector<21x2xf32> -> vector<21x2xf32>
    %c0_13 = arith.constant 0 : index
    %c0_14 = arith.constant 0 : index
    %14 = vector.load %arg6[%c0_13, %c0_14] : memref<1x2xf32, #tpu.memory_space<vmem>>, vector<1x2xf32>
    %15 = vector.broadcast %14 : vector<1x2xf32> to vector<21x2xf32>
    %16 = arith.addf %13, %15 : vector<21x2xf32>
    %c0_15 = arith.constant 0 : index
    %c0_16 = arith.constant 0 : index
    %17 = vector.load %arg14[%c0_15, %c0_16] : memref<21x2xf32, #tpu.memory_space<vmem>>, vector<21x2xf32>
    tpu.vector_store %arg14[%c0_15, %c0_16], %16 {strides = array<i32>} : memref<21x2xf32, #tpu.memory_space<vmem>>, vector<21x2xf32>,
    %c0_17 = arith.constant 0 : index
    %c0_18 = arith.constant 0 : index
    %18 = vector.load %arg7[%c0_17, %c0_18] : memref<32x32xf32, #tpu.memory_space<vmem>>, vector<32x32xf32>
    %cst_19 = arith.constant dense<0.000000e+00> : vector<1x32xf32>
    %19 = tpu.matmul %0, %18, %cst_19 {dimension_numbers = #tpu.dot_dimension_numbers<[1], [0], [0], [1], [0, 0, 1, 1], [], []>} : vector<1x32xf32>, vector<32x32xf32>, vector<1x32xf32> -> vector<1x32xf32>
    %c0_20 = arith.constant 0 : index
    %c0_21 = arith.constant 0 : index
    %20 = vector.load %arg8[%c0_20, %c0_21] : memref<1x32xf32, #tpu.memory_space<vmem>>, vector<1x32xf32>
    %21 = arith.addf %19, %20 : vector<1x32xf32>
    %c0_22 = arith.constant 0 : index
    %c0_23 = arith.constant 0 : index
    %22 = vector.load %arg9[%c0_22, %c0_23] : memref<32x32xf32, #tpu.memory_space<vmem>>, vector<32x32xf32>
    %cst_24 = arith.constant dense<0.000000e+00> : vector<1x32xf32>
    %23 = tpu.matmul %0, %22, %cst_24 {dimension_numbers = #tpu.dot_dimension_numbers<[1], [0], [0], [1], [0, 0, 1, 1], [], []>} : vector<1x32xf32>, vector<32x32xf32>, vector<1x32xf32> -> vector<1x32xf32>
    %c0_25 = arith.constant 0 : index
    %c0_26 = arith.constant 0 : index
    %24 = vector.load %arg10[%c0_25, %c0_26] : memref<1x32xf32, #tpu.memory_space<vmem>>, vector<1x32xf32>
    %25 = arith.addf %23, %24 : vector<1x32xf32>
    %c0_27 = arith.constant 0 : index
    %c0_28 = arith.constant 0 : index
    %26 = vector.load %arg11[%c0_27, %c0_28] : memref<32x32xf32, #tpu.memory_space<vmem>>, vector<32x32xf32>
    %cst_29 = arith.constant dense<0.000000e+00> : vector<1x32xf32>
    %27 = tpu.matmul %25, %26, %cst_29 {dimension_numbers = #tpu.dot_dimension_numbers<[1], [0], [0], [1], [0, 0, 1, 1], [], []>} : vector<1x32xf32>, vector<32x32xf32>, vector<1x32xf32> -> vector<1x32xf32>
    %c0_30 = arith.constant 0 : index
    %c0_31 = arith.constant 0 : index
    %28 = vector.load %arg15[%c0_30, %c0_31] : memref<1x32xf32, #tpu.memory_space<vmem>>, vector<1x32xf32>
    tpu.vector_store %arg15[%c0_30, %c0_31], %27 {strides = array<i32>} : memref<1x32xf32, #tpu.memory_space<vmem>>, vector<1x32xf32>,
    %c0_32 = arith.constant 0 : index
    %c0_33 = arith.constant 0 : index
    %29 = vector.load %arg12[%c0_32, %c0_33] : memref<32x32xf32, #tpu.memory_space<vmem>>, vector<32x32xf32>
    %cst_34 = arith.constant dense<0.000000e+00> : vector<1x32xf32>
    %30 = tpu.matmul %21, %29, %cst_34 {dimension_numbers = #tpu.dot_dimension_numbers<[1], [0], [0], [1], [0, 0, 1, 1], [], []>} : vector<1x32xf32>, vector<32x32xf32>, vector<1x32xf32> -> vector<1x32xf32>
    %c0_35 = arith.constant 0 : index
    %c0_36 = arith.constant 0 : index
    %31 = vector.load %arg16[%c0_35, %c0_36] : memref<1x32xf32, #tpu.memory_space<vmem>>, vector<1x32xf32>
    tpu.vector_store %arg16[%c0_35, %c0_36], %30 {strides = array<i32>} : memref<1x32xf32, #tpu.memory_space<vmem>>, vector<1x32xf32>,
    %c0_37 = arith.constant 0 : index
    %c0_38 = arith.constant 0 : index
    %32 = vector.load %arg13[%c0_37, %c0_38] : memref<32x32xf32, #tpu.memory_space<vmem>>, vector<32x32xf32>
    %cst_39 = arith.constant dense<0.000000e+00> : vector<1x32xf32>
    %33 = tpu.matmul %0, %32, %cst_39 {dimension_numbers = #tpu.dot_dimension_numbers<[1], [0], [0], [1], [0, 0, 1, 1], [], []>} : vector<1x32xf32>, vector<32x32xf32>, vector<1x32xf32> -> vector<1x32xf32>
    %c0_40 = arith.constant 0 : index
    %c0_41 = arith.constant 0 : index
    %34 = vector.load %arg17[%c0_40, %c0_41] : memref<1x32xf32, #tpu.memory_space<vmem>>, vector<1x32xf32>
    tpu.vector_store %arg17[%c0_40, %c0_41], %33 {strides = array<i32>} : memref<1x32xf32, #tpu.memory_space<vmem>>, vector<1x32xf32>,
    return
  }
}

module attributes {stable_mosaic.version = 11 : i64} {
  func.func @_prologue_kernel(%arg0: memref<16x1xf32, #tpu.memory_space<vmem>>, %arg1: memref<16x5xf32, #tpu.memory_space<vmem>>, %arg2: memref<16x5x32xf32, #tpu.memory_space<vmem>>, %arg3: memref<1x64xf32, #tpu.memory_space<vmem>>, %arg4: memref<1x64xf32, #tpu.memory_space<vmem>>, %arg5: memref<64x32xf32, #tpu.memory_space<vmem>>, %arg6: memref<1x32xf32, #tpu.memory_space<vmem>>, %arg7: memref<16x32xf32, #tpu.memory_space<vmem>>, %arg8: memref<16x32xf32, #tpu.memory_space<vmem>>) attributes {dimension_semantics = [], scalar_prefetch = 0 : i64, scratch_operands = 0 : i64, tpu.core_type = #tpu.core_type<tc>} {
    %c0 = arith.constant 0 : index
    %c0_0 = arith.constant 0 : index
    %0 = vector.load %arg0[%c0, %c0_0] : memref<16x1xf32, #tpu.memory_space<vmem>>, vector<16x1xf32>
    %c0_1 = arith.constant 0 : index
    %c0_2 = arith.constant 0 : index
    %1 = vector.load %arg3[%c0_1, %c0_2] : memref<1x64xf32, #tpu.memory_space<vmem>>, vector<1x64xf32>
    %2 = vector.broadcast %0 : vector<16x1xf32> to vector<16x64xf32>
    %3 = vector.broadcast %1 : vector<1x64xf32> to vector<16x64xf32>
    %4 = arith.mulf %2, %3 : vector<16x64xf32>
    %c0_3 = arith.constant 0 : index
    %c0_4 = arith.constant 0 : index
    %5 = vector.load %arg4[%c0_3, %c0_4] : memref<1x64xf32, #tpu.memory_space<vmem>>, vector<1x64xf32>
    %6 = vector.broadcast %5 : vector<1x64xf32> to vector<16x64xf32>
    %7 = arith.addf %4, %6 : vector<16x64xf32>
    %8 = arith.mulf %7, %7 : vector<16x64xf32>
    %9 = math.tanh %8 : vector<16x64xf32>
    %cst = arith.constant 1.000000e+00 : f32
    %10 = vector.broadcast %cst : f32 to vector<16x64xf32>
    %11 = arith.subf %10, %9 : vector<16x64xf32>
    %c0_5 = arith.constant 0 : index
    %c0_6 = arith.constant 0 : index
    %12 = vector.load %arg5[%c0_5, %c0_6] : memref<64x32xf32, #tpu.memory_space<vmem>>, vector<64x32xf32>
    %cst_7 = arith.constant dense<0.000000e+00> : vector<16x32xf32>
    %13 = tpu.matmul %11, %12, %cst_7 {dimension_numbers = #tpu.dot_dimension_numbers<[1], [0], [0], [1], [0, 0, 1, 1], [], []>} : vector<16x64xf32>, vector<64x32xf32>, vector<16x32xf32> -> vector<16x32xf32>
    %c0_8 = arith.constant 0 : index
    %c0_9 = arith.constant 0 : index
    %14 = vector.load %arg6[%c0_8, %c0_9] : memref<1x32xf32, #tpu.memory_space<vmem>>, vector<1x32xf32>
    %15 = vector.broadcast %14 : vector<1x32xf32> to vector<16x32xf32>
    %16 = arith.addf %13, %15 : vector<16x32xf32>
    %c0_10 = arith.constant 0 : index
    %c0_11 = arith.constant 0 : index
    %17 = vector.load %arg8[%c0_10, %c0_11] : memref<16x32xf32, #tpu.memory_space<vmem>>, vector<16x32xf32>
    tpu.vector_store %arg8[%c0_10, %c0_11], %16 {strides = array<i32>} : memref<16x32xf32, #tpu.memory_space<vmem>>, vector<16x32xf32>,
    %c0_12 = arith.constant 0 : index
    %c0_13 = arith.constant 0 : index
    %18 = vector.load %arg1[%c0_12, %c0_13] : memref<16x5xf32, #tpu.memory_space<vmem>>, vector<16x5xf32>
    %19 = vector.shape_cast %18 : vector<16x5xf32> to vector<16x5x1xf32>
    %c0_14 = arith.constant 0 : index
    %c0_15 = arith.constant 0 : index
    %c0_16 = arith.constant 0 : index
    %20 = vector.load %arg2[%c0_14, %c0_15, %c0_16] : memref<16x5x32xf32, #tpu.memory_space<vmem>>, vector<16x5x32xf32>
    %21 = vector.broadcast %19 : vector<16x5x1xf32> to vector<16x5x32xf32>
    %22 = arith.mulf %21, %20 : vector<16x5x32xf32>
    %cst_17 = arith.constant dense<0.000000e+00> : vector<16x32xf32>
    %23 = vector.multi_reduction <add>, %22, %cst_17 [1] : vector<16x5x32xf32> to vector<16x32xf32>
    %24 = arith.addf %23, %16 : vector<16x32xf32>
    %c0_18 = arith.constant 0 : index
    %c0_19 = arith.constant 0 : index
    %25 = vector.load %arg7[%c0_18, %c0_19] : memref<16x32xf32, #tpu.memory_space<vmem>>, vector<16x32xf32>
    tpu.vector_store %arg7[%c0_18, %c0_19], %24 {strides = array<i32>} : memref<16x32xf32, #tpu.memory_space<vmem>>, vector<16x32xf32>,
    return
  }
}

module attributes {stable_mosaic.version = 11 : i64} {
  func.func @_lstm_seq_kernel(%arg0: i32, %arg1: memref<1x2x32xf32, #tpu.memory_space<vmem>>, %arg2: memref<32x16xf32, #tpu.memory_space<vmem>>, %arg3: memref<4x16xf32, #tpu.memory_space<vmem>>, %arg4: memref<1x2x4xf32, #tpu.memory_space<vmem>>, %arg5: memref<2x4xf32, #tpu.memory_space<vmem>>, %arg6: memref<2x4xf32, #tpu.memory_space<vmem>>) attributes {dimension_semantics = [#tpu.dimension_semantics<arbitrary>], iteration_bounds = array<i64: 8>, scalar_prefetch = 0 : i64, scratch_operands = 2 : i64, tpu.core_type = #tpu.core_type<tc>, window_params = [{transform_indices = @transform_0, window_bounds = array<i64: 1, 2, 32>}, {pipeline_mode = #tpu.pipeline_mode<synchronous>, transform_indices = @transform_1, window_bounds = array<i64: 32, 16>}, {pipeline_mode = #tpu.pipeline_mode<synchronous>, transform_indices = @transform_2, window_bounds = array<i64: 4, 16>}, {transform_indices = @transform_3, window_bounds = array<i64: 1, 2, 4>}]} {
    %c0_i32 = arith.constant 0 : i32
    %0 = arith.cmpi eq, %arg0, %c0_i32 : i32
    %1 = arith.extui %0 : i1 to i32
    %c0_i32_0 = arith.constant 0 : i32
    %2 = arith.cmpi ne, %1, %c0_i32_0 : i32
    scf.if %2 {
      %cst_28 = arith.constant 0.000000e+00 : f32
      %48 = vector.broadcast %cst_28 : f32 to vector<2x4xf32>
      %c0_29 = arith.constant 0 : index
      %c0_30 = arith.constant 0 : index
      %49 = vector.load %arg5[%c0_29, %c0_30] : memref<2x4xf32, #tpu.memory_space<vmem>>, vector<2x4xf32>
      tpu.vector_store %arg5[%c0_29, %c0_30], %48 {strides = array<i32>} : memref<2x4xf32, #tpu.memory_space<vmem>>, vector<2x4xf32>,
      %cst_31 = arith.constant 0.000000e+00 : f32
      %50 = vector.broadcast %cst_31 : f32 to vector<2x4xf32>
      %c0_32 = arith.constant 0 : index
      %c0_33 = arith.constant 0 : index
      %51 = vector.load %arg6[%c0_32, %c0_33] : memref<2x4xf32, #tpu.memory_space<vmem>>, vector<2x4xf32>
      tpu.vector_store %arg6[%c0_32, %c0_33], %50 {strides = array<i32>} : memref<2x4xf32, #tpu.memory_space<vmem>>, vector<2x4xf32>,
    } else {
    }
    %c0 = arith.constant 0 : index
    %c0_1 = arith.constant 0 : index
    %c0_2 = arith.constant 0 : index
    %3 = vector.load %arg1[%c0, %c0_1, %c0_2] : memref<1x2x32xf32, #tpu.memory_space<vmem>>, vector<1x2x32xf32>
    %4 = vector.shape_cast %3 : vector<1x2x32xf32> to vector<2x32xf32>
    %c0_3 = arith.constant 0 : index
    %c0_4 = arith.constant 0 : index
    %5 = vector.load %arg5[%c0_3, %c0_4] : memref<2x4xf32, #tpu.memory_space<vmem>>, vector<2x4xf32>
    %c0_5 = arith.constant 0 : index
    %c0_6 = arith.constant 0 : index
    %6 = vector.load %arg6[%c0_5, %c0_6] : memref<2x4xf32, #tpu.memory_space<vmem>>, vector<2x4xf32>
    %c0_7 = arith.constant 0 : index
    %c0_8 = arith.constant 0 : index
    %7 = vector.load %arg2[%c0_7, %c0_8] : memref<32x16xf32, #tpu.memory_space<vmem>>, vector<32x16xf32>
    %cst = arith.constant dense<0.000000e+00> : vector<2x16xf32>
    %8 = tpu.matmul %4, %7, %cst {dimension_numbers = #tpu.dot_dimension_numbers<[1], [0], [0], [1], [0, 0, 1, 1], [], []>} : vector<2x32xf32>, vector<32x16xf32>, vector<2x16xf32> -> vector<2x16xf32>
    %c0_9 = arith.constant 0 : index
    %c0_10 = arith.constant 0 : index
    %9 = vector.load %arg3[%c0_9, %c0_10] : memref<4x16xf32, #tpu.memory_space<vmem>>, vector<4x16xf32>
    %cst_11 = arith.constant dense<0.000000e+00> : vector<2x16xf32>
    %10 = tpu.matmul %5, %9, %cst_11 {dimension_numbers = #tpu.dot_dimension_numbers<[1], [0], [0], [1], [0, 0, 1, 1], [], []>} : vector<2x4xf32>, vector<4x16xf32>, vector<2x16xf32> -> vector<2x16xf32>
    %11 = arith.addf %8, %10 : vector<2x16xf32>
    %12 = vector.extract_strided_slice %11 {offsets = [0, 0], sizes = [2, 4], strides = [1, 1]} : vector<2x16xf32> to vector<2x4xf32>
    %cst_12 = arith.constant 0.000000e+00 : f32
    %13 = vector.broadcast %cst_12 : f32 to vector<2x4xf32>
    %14 = arith.subf %13, %12 : vector<2x4xf32>
    %15 = math.exp %14 : vector<2x4xf32>
    %cst_13 = arith.constant 1.000000e+00 : f32
    %16 = vector.broadcast %cst_13 : f32 to vector<2x4xf32>
    %17 = arith.addf %16, %15 : vector<2x4xf32>
    %cst_14 = arith.constant 1.000000e+00 : f32
    %18 = vector.broadcast %cst_14 : f32 to vector<2x4xf32>
    %19 = arith.divf %18, %17 : vector<2x4xf32>
    %20 = vector.extract_strided_slice %11 {offsets = [0, 4], sizes = [2, 4], strides = [1, 1]} : vector<2x16xf32> to vector<2x4xf32>
    %cst_15 = arith.constant 0.000000e+00 : f32
    %21 = vector.broadcast %cst_15 : f32 to vector<2x4xf32>
    %22 = arith.subf %21, %20 : vector<2x4xf32>
    %23 = math.exp %22 : vector<2x4xf32>
    %cst_16 = arith.constant 1.000000e+00 : f32
    %24 = vector.broadcast %cst_16 : f32 to vector<2x4xf32>
    %25 = arith.addf %24, %23 : vector<2x4xf32>
    %cst_17 = arith.constant 1.000000e+00 : f32
    %26 = vector.broadcast %cst_17 : f32 to vector<2x4xf32>
    %27 = arith.divf %26, %25 : vector<2x4xf32>
    %28 = vector.extract_strided_slice %11 {offsets = [0, 8], sizes = [2, 4], strides = [1, 1]} : vector<2x16xf32> to vector<2x4xf32>
    %29 = math.tanh %28 : vector<2x4xf32>
    %30 = vector.extract_strided_slice %11 {offsets = [0, 12], sizes = [2, 4], strides = [1, 1]} : vector<2x16xf32> to vector<2x4xf32>
    %cst_18 = arith.constant 0.000000e+00 : f32
    %31 = vector.broadcast %cst_18 : f32 to vector<2x4xf32>
    %32 = arith.subf %31, %30 : vector<2x4xf32>
    %33 = math.exp %32 : vector<2x4xf32>
    %cst_19 = arith.constant 1.000000e+00 : f32
    %34 = vector.broadcast %cst_19 : f32 to vector<2x4xf32>
    %35 = arith.addf %34, %33 : vector<2x4xf32>
    %cst_20 = arith.constant 1.000000e+00 : f32
    %36 = vector.broadcast %cst_20 : f32 to vector<2x4xf32>
    %37 = arith.divf %36, %35 : vector<2x4xf32>
    %38 = arith.mulf %27, %6 : vector<2x4xf32>
    %39 = arith.mulf %19, %29 : vector<2x4xf32>
    %40 = arith.addf %38, %39 : vector<2x4xf32>
    %41 = math.tanh %40 : vector<2x4xf32>
    %42 = arith.mulf %37, %41 : vector<2x4xf32>
    %c0_21 = arith.constant 0 : index
    %c0_22 = arith.constant 0 : index
    %43 = vector.load %arg6[%c0_21, %c0_22] : memref<2x4xf32, #tpu.memory_space<vmem>>, vector<2x4xf32>
    tpu.vector_store %arg6[%c0_21, %c0_22], %40 {strides = array<i32>} : memref<2x4xf32, #tpu.memory_space<vmem>>, vector<2x4xf32>,
    %c0_23 = arith.constant 0 : index
    %c0_24 = arith.constant 0 : index
    %44 = vector.load %arg5[%c0_23, %c0_24] : memref<2x4xf32, #tpu.memory_space<vmem>>, vector<2x4xf32>
    tpu.vector_store %arg5[%c0_23, %c0_24], %42 {strides = array<i32>} : memref<2x4xf32, #tpu.memory_space<vmem>>, vector<2x4xf32>,
    %c0_25 = arith.constant 0 : index
    %c0_26 = arith.constant 0 : index
    %c0_27 = arith.constant 0 : index
    %45 = vector.load %arg4[%c0_25, %c0_26, %c0_27] : memref<1x2x4xf32, #tpu.memory_space<vmem>>, vector<1x2x4xf32>
    %46 = vector.shape_cast %45 : vector<1x2x4xf32> to vector<2x4xf32>
    %47 = vector.shape_cast %42 : vector<2x4xf32> to vector<1x2x4xf32>
    tpu.vector_store %arg4[%c0_25, %c0_26, %c0_27], %47 {strides = array<i32>} : memref<1x2x4xf32, #tpu.memory_space<vmem>>, vector<1x2x4xf32>,
    return
  }
  func.func @transform_0(%arg0: i32) -> (i32, i32, i32) {
    %c0_i32 = arith.constant 0 : i32
    %c0_i32_0 = arith.constant 0 : i32
    %c0_i32_1 = arith.constant 0 : i32
    return %arg0, %c0_i32, %c0_i32_0 : i32, i32, i32
  }
  func.func @transform_1(%arg0: i32) -> (i32, i32) {
    %c0_i32 = arith.constant 0 : i32
    %c0_i32_0 = arith.constant 0 : i32
    %c0_i32_1 = arith.constant 0 : i32
    return %c0_i32, %c0_i32_0 : i32, i32
  }
  func.func @transform_2(%arg0: i32) -> (i32, i32) {
    %c0_i32 = arith.constant 0 : i32
    %c0_i32_0 = arith.constant 0 : i32
    %c0_i32_1 = arith.constant 0 : i32
    return %c0_i32, %c0_i32_0 : i32, i32
  }
  func.func @transform_3(%arg0: i32) -> (i32, i32, i32) {
    %c0_i32 = arith.constant 0 : i32
    %c0_i32_0 = arith.constant 0 : i32
    %c0_i32_1 = arith.constant 0 : i32
    return %arg0, %c0_i32, %c0_i32_0 : i32, i32, i32
  }
}

module attributes {stable_mosaic.version = 11 : i64} {
  func.func @_global_energy_kernel(%arg0: memref<16x32xf32, #tpu.memory_space<vmem>>, %arg1: memref<16x1xf32, #tpu.memory_space<vmem>>, %arg2: memref<1x64xf32, #tpu.memory_space<vmem>>, %arg3: memref<1x64xf32, #tpu.memory_space<vmem>>, %arg4: memref<32x32xf32, #tpu.memory_space<vmem>>, %arg5: memref<64x32xf32, #tpu.memory_space<vmem>>, %arg6: memref<1x32xf32, #tpu.memory_space<vmem>>, %arg7: memref<1x32xf32, #tpu.memory_space<vmem>>, %arg8: memref<32x1xf32, #tpu.memory_space<vmem>>, %arg9: memref<1x1xf32, #tpu.memory_space<vmem>>, %arg10: memref<16x1xf32, #tpu.memory_space<vmem>>) attributes {dimension_semantics = [], scalar_prefetch = 0 : i64, scratch_operands = 0 : i64, tpu.core_type = #tpu.core_type<tc>} {
    %c0 = arith.constant 0 : index
    %c0_0 = arith.constant 0 : index
    %0 = vector.load %arg1[%c0, %c0_0] : memref<16x1xf32, #tpu.memory_space<vmem>>, vector<16x1xf32>
    %c0_1 = arith.constant 0 : index
    %c0_2 = arith.constant 0 : index
    %1 = vector.load %arg2[%c0_1, %c0_2] : memref<1x64xf32, #tpu.memory_space<vmem>>, vector<1x64xf32>
    %2 = vector.broadcast %0 : vector<16x1xf32> to vector<16x64xf32>
    %3 = vector.broadcast %1 : vector<1x64xf32> to vector<16x64xf32>
    %4 = arith.mulf %2, %3 : vector<16x64xf32>
    %c0_3 = arith.constant 0 : index
    %c0_4 = arith.constant 0 : index
    %5 = vector.load %arg3[%c0_3, %c0_4] : memref<1x64xf32, #tpu.memory_space<vmem>>, vector<1x64xf32>
    %6 = vector.broadcast %5 : vector<1x64xf32> to vector<16x64xf32>
    %7 = arith.addf %4, %6 : vector<16x64xf32>
    %8 = arith.mulf %7, %7 : vector<16x64xf32>
    %9 = math.tanh %8 : vector<16x64xf32>
    %cst = arith.constant 1.000000e+00 : f32
    %10 = vector.broadcast %cst : f32 to vector<16x64xf32>
    %11 = arith.subf %10, %9 : vector<16x64xf32>
    %c0_5 = arith.constant 0 : index
    %c0_6 = arith.constant 0 : index
    %12 = vector.load %arg0[%c0_5, %c0_6] : memref<16x32xf32, #tpu.memory_space<vmem>>, vector<16x32xf32>
    %c0_7 = arith.constant 0 : index
    %c0_8 = arith.constant 0 : index
    %13 = vector.load %arg4[%c0_7, %c0_8] : memref<32x32xf32, #tpu.memory_space<vmem>>, vector<32x32xf32>
    %cst_9 = arith.constant dense<0.000000e+00> : vector<16x32xf32>
    %14 = tpu.matmul %12, %13, %cst_9 {dimension_numbers = #tpu.dot_dimension_numbers<[1], [0], [0], [1], [0, 0, 1, 1], [], []>} : vector<16x32xf32>, vector<32x32xf32>, vector<16x32xf32> -> vector<16x32xf32>
    %c0_10 = arith.constant 0 : index
    %c0_11 = arith.constant 0 : index
    %15 = vector.load %arg5[%c0_10, %c0_11] : memref<64x32xf32, #tpu.memory_space<vmem>>, vector<64x32xf32>
    %cst_12 = arith.constant dense<0.000000e+00> : vector<16x32xf32>
    %16 = tpu.matmul %11, %15, %cst_12 {dimension_numbers = #tpu.dot_dimension_numbers<[1], [0], [0], [1], [0, 0, 1, 1], [], []>} : vector<16x64xf32>, vector<64x32xf32>, vector<16x32xf32> -> vector<16x32xf32>
    %17 = arith.addf %14, %16 : vector<16x32xf32>
    %c0_13 = arith.constant 0 : index
    %c0_14 = arith.constant 0 : index
    %18 = vector.load %arg6[%c0_13, %c0_14] : memref<1x32xf32, #tpu.memory_space<vmem>>, vector<1x32xf32>
    %19 = vector.broadcast %18 : vector<1x32xf32> to vector<16x32xf32>
    %20 = arith.addf %17, %19 : vector<16x32xf32>
    %c0_15 = arith.constant 0 : index
    %c0_16 = arith.constant 0 : index
    %21 = vector.load %arg7[%c0_15, %c0_16] : memref<1x32xf32, #tpu.memory_space<vmem>>, vector<1x32xf32>
    %22 = vector.broadcast %21 : vector<1x32xf32> to vector<16x32xf32>
    %23 = arith.addf %20, %22 : vector<16x32xf32>
    %24 = math.tanh %23 : vector<16x32xf32>
    %c0_17 = arith.constant 0 : index
    %c0_18 = arith.constant 0 : index
    %25 = vector.load %arg8[%c0_17, %c0_18] : memref<32x1xf32, #tpu.memory_space<vmem>>, vector<32x1xf32>
    %cst_19 = arith.constant dense<0.000000e+00> : vector<16x1xf32>
    %26 = tpu.matmul %24, %25, %cst_19 {dimension_numbers = #tpu.dot_dimension_numbers<[1], [0], [0], [1], [0, 0, 1, 1], [], []>} : vector<16x32xf32>, vector<32x1xf32>, vector<16x1xf32> -> vector<16x1xf32>
    %c0_20 = arith.constant 0 : index
    %c0_21 = arith.constant 0 : index
    %27 = vector.load %arg9[%c0_20, %c0_21] : memref<1x1xf32, #tpu.memory_space<vmem>>, vector<1x1xf32>
    %28 = vector.broadcast %27 : vector<1x1xf32> to vector<16x1xf32>
    %29 = arith.addf %26, %28 : vector<16x1xf32>
    %c0_22 = arith.constant 0 : index
    %c0_23 = arith.constant 0 : index
    %30 = vector.load %arg10[%c0_22, %c0_23] : memref<16x1xf32, #tpu.memory_space<vmem>>, vector<16x1xf32>
    tpu.vector_store %arg10[%c0_22, %c0_23], %29 {strides = array<i32>} : memref<16x1xf32, #tpu.memory_space<vmem>>, vector<16x1xf32>,
    return
  }
}

module attributes {stable_mosaic.version = 11 : i64} {
  func.func @_global_pool_kernel(%arg0: memref<2x8xf32, #tpu.memory_space<vmem>>, %arg1: memref<2x8xf32, #tpu.memory_space<vmem>>, %arg2: memref<2x8x32xf32, #tpu.memory_space<vmem>>, %arg3: memref<32x2xf32, #tpu.memory_space<vmem>>, %arg4: memref<1x2xf32, #tpu.memory_space<vmem>>, %arg5: memref<2x2xf32, #tpu.memory_space<vmem>>) attributes {dimension_semantics = [], scalar_prefetch = 0 : i64, scratch_operands = 0 : i64, tpu.core_type = #tpu.core_type<tc>} {
    %c0 = arith.constant 0 : index
    %c0_0 = arith.constant 0 : index
    %0 = vector.load %arg1[%c0, %c0_0] : memref<2x8xf32, #tpu.memory_space<vmem>>, vector<2x8xf32>
    %cst = arith.constant 0.000000e+00 : f32
    %1 = vector.broadcast %cst : f32 to vector<2x8xf32>
    %2 = arith.cmpf ogt, %0, %1 : vector<2x8xf32>
    %c0_1 = arith.constant 0 : index
    %c0_2 = arith.constant 0 : index
    %3 = vector.load %arg0[%c0_1, %c0_2] : memref<2x8xf32, #tpu.memory_space<vmem>>, vector<2x8xf32>
    %cst_3 = arith.constant 0xFF800000 : f32
    %4 = vector.broadcast %cst_3 : f32 to vector<2x8xf32>
    %5 = arith.select %2, %4, %3 : vector<2x8xi1>, vector<2x8xf32>
    %cst_4 = arith.constant dense<0xFF800000> : vector<2xf32>
    %6 = vector.multi_reduction <maximumf>, %5, %cst_4 [1] : vector<2x8xf32> to vector<2xf32>
    %7 = vector.shape_cast %6 : vector<2xf32> to vector<2x1xf32>
    %8 = vector.broadcast %7 : vector<2x1xf32> to vector<2x8xf32>
    %9 = arith.subf %5, %8 : vector<2x8xf32>
    %10 = math.exp %9 : vector<2x8xf32>
    %cst_5 = arith.constant dense<0.000000e+00> : vector<2xf32>
    %11 = vector.multi_reduction <add>, %10, %cst_5 [1] : vector<2x8xf32> to vector<2xf32>
    %12 = vector.shape_cast %11 : vector<2xf32> to vector<2x1xf32>
    %13 = vector.broadcast %12 : vector<2x1xf32> to vector<2x8xf32>
    %14 = arith.divf %10, %13 : vector<2x8xf32>
    %15 = vector.shape_cast %14 : vector<2x8xf32> to vector<2x8x1xf32>
    %c0_6 = arith.constant 0 : index
    %c0_7 = arith.constant 0 : index
    %c0_8 = arith.constant 0 : index
    %16 = vector.load %arg2[%c0_6, %c0_7, %c0_8] : memref<2x8x32xf32, #tpu.memory_space<vmem>>, vector<2x8x32xf32>
    %17 = vector.broadcast %15 : vector<2x8x1xf32> to vector<2x8x32xf32>
    %18 = arith.mulf %17, %16 : vector<2x8x32xf32>
    %cst_9 = arith.constant dense<0.000000e+00> : vector<2x32xf32>
    %19 = vector.multi_reduction <add>, %18, %cst_9 [1] : vector<2x8x32xf32> to vector<2x32xf32>
    %c0_10 = arith.constant 0 : index
    %c0_11 = arith.constant 0 : index
    %20 = vector.load %arg3[%c0_10, %c0_11] : memref<32x2xf32, #tpu.memory_space<vmem>>, vector<32x2xf32>
    %cst_12 = arith.constant dense<0.000000e+00> : vector<2x2xf32>
    %21 = tpu.matmul %19, %20, %cst_12 {dimension_numbers = #tpu.dot_dimension_numbers<[1], [0], [0], [1], [0, 0, 1, 1], [], []>} : vector<2x32xf32>, vector<32x2xf32>, vector<2x2xf32> -> vector<2x2xf32>
    %c0_13 = arith.constant 0 : index
    %c0_14 = arith.constant 0 : index
    %22 = vector.load %arg4[%c0_13, %c0_14] : memref<1x2xf32, #tpu.memory_space<vmem>>, vector<1x2xf32>
    %23 = vector.broadcast %22 : vector<1x2xf32> to vector<2x2xf32>
    %24 = arith.addf %21, %23 : vector<2x2xf32>
    %c0_15 = arith.constant 0 : index
    %c0_16 = arith.constant 0 : index
    %25 = vector.load %arg5[%c0_15, %c0_16] : memref<2x2xf32, #tpu.memory_space<vmem>>, vector<2x2xf32>
    tpu.vector_store %arg5[%c0_15, %c0_16], %24 {strides = array<i32>} : memref<2x2xf32, #tpu.memory_space<vmem>>, vector<2x2xf32>,
    return
  }
}

module attributes {stable_mosaic.version = 11 : i64} {
  func.func @_visit_loop_kernel(%arg0: i32, %arg1: memref<1x2x32xf32, #tpu.memory_space<vmem>>, %arg2: memref<1x2x4xf32, #tpu.memory_space<vmem>>, %arg3: memref<1x2x5x32xf32, #tpu.memory_space<vmem>>, %arg4: memref<1x2x5xf32, #tpu.memory_space<vmem>>, %arg5: memref<1x2x32xf32, #tpu.memory_space<vmem>>, %arg6: memref<1x2x2xf32, #tpu.memory_space<vmem>>, %arg7: memref<1x32xf32, #tpu.memory_space<vmem>>, %arg8: memref<1x32xf32, #tpu.memory_space<vmem>>, %arg9: memref<32x32xf32, #tpu.memory_space<vmem>>, %arg10: memref<32x32xf32, #tpu.memory_space<vmem>>, %arg11: memref<4x32xf32, #tpu.memory_space<vmem>>, %arg12: memref<1x32xf32, #tpu.memory_space<vmem>>, %arg13: memref<32x2xf32, #tpu.memory_space<vmem>>, %arg14: memref<1x2xf32, #tpu.memory_space<vmem>>, %arg15: memref<32x32xf32, #tpu.memory_space<vmem>>, %arg16: memref<4x32xf32, #tpu.memory_space<vmem>>, %arg17: memref<1x32xf32, #tpu.memory_space<vmem>>, %arg18: memref<32x32xf32, #tpu.memory_space<vmem>>, %arg19: memref<1x32xf32, #tpu.memory_space<vmem>>, %arg20: memref<32x96xf32, #tpu.memory_space<vmem>>, %arg21: memref<32x96xf32, #tpu.memory_space<vmem>>, %arg22: memref<32x32xf32, #tpu.memory_space<vmem>>, %arg23: memref<1x32xf32, #tpu.memory_space<vmem>>, %arg24: memref<1x32xf32, #tpu.memory_space<vmem>>, %arg25: memref<1x32xf32, #tpu.memory_space<vmem>>, %arg26: memref<32x32xf32, #tpu.memory_space<vmem>>, %arg27: memref<1x32xf32, #tpu.memory_space<vmem>>, %arg28: memref<1x32xf32, #tpu.memory_space<vmem>>, %arg29: memref<1x32xf32, #tpu.memory_space<vmem>>, %arg30: memref<1x32xf32, #tpu.memory_space<vmem>>, %arg31: memref<1x32xf32, #tpu.memory_space<vmem>>, %arg32: memref<32x128xf32, #tpu.memory_space<vmem>>, %arg33: memref<1x128xf32, #tpu.memory_space<vmem>>, %arg34: memref<128x32xf32, #tpu.memory_space<vmem>>, %arg35: memref<1x32xf32, #tpu.memory_space<vmem>>, %arg36: memref<1x32xf32, #tpu.memory_space<vmem>>, %arg37: memref<1x32xf32, #tpu.memory_space<vmem>>, %arg38: memref<1x2x32xf32, #tpu.memory_space<vmem>>, %arg39: memref<1x2x2xf32, #tpu.memory_space<vmem>>, %arg40: memref<1x2x5xf32, #tpu.memory_space<vmem>>, %arg41: memref<2x32xf32, #tpu.memory_space<vmem>>, %arg42: memref<8x2x32xf32, #tpu.memory_space<vmem>>) attributes {dimension_semantics = [#tpu.dimension_semantics<arbitrary>], iteration_bounds = array<i64: 8>, scalar_prefetch = 0 : i64, scratch_operands = 2 : i64, tpu.core_type = #tpu.core_type<tc>, window_params = [{transform_indices = @transform_0, window_bounds = array<i64: 1, 2, 32>}, {transform_indices = @transform_1, window_bounds = array<i64: 1, 2, 4>}, {transform_indices = @transform_2, window_bounds = array<i64: 1, 2, 5, 32>}, {transform_indices = @transform_3, window_bounds = array<i64: 1, 2, 5>}, {transform_indices = @transform_4, window_bounds = array<i64: 1, 2, 32>}, {transform_indices = @transform_5, window_bounds = array<i64: 1, 2, 2>}, {pipeline_mode = #tpu.pipeline_mode<synchronous>, transform_indices = @transform_6, window_bounds = array<i64: 1, 32>}, {pipeline_mode = #tpu.pipeline_mode<synchronous>, transform_indices = @transform_7, window_bounds = array<i64: 1, 32>}, {pipeline_mode = #tpu.pipeline_mode<synchronous>, transform_indices = @transform_8, window_bounds = array<i64: 32, 32>}, {pipeline_mode = #tpu.pipeline_mode<synchronous>, transform_indices = @transform_9, window_bounds = array<i64: 32, 32>}, {pipeline_mode = #tpu.pipeline_mode<synchronous>, transform_indices = @transform_10, window_bounds = array<i64: 4, 32>}, {pipeline_mode = #tpu.pipeline_mode<synchronous>, transform_indices = @transform_11, window_bounds = array<i64: 1, 32>}, {pipeline_mode = #tpu.pipeline_mode<synchronous>, transform_indices = @transform_12, window_bounds = array<i64: 32, 2>}, {pipeline_mode = #tpu.pipeline_mode<synchronous>, transform_indices = @transform_13, window_bounds = array<i64: 1, 2>}, {pipeline_mode = #tpu.pipeline_mode<synchronous>, transform_indices = @transform_14, window_bounds = array<i64: 32, 32>}, {pipeline_mode = #tpu.pipeline_mode<synchronous>, transform_indices = @transform_15, window_bounds = array<i64: 4, 32>}, {pipeline_mode = #tpu.pipeline_mode<synchronous>, transform_indices = @transform_16, window_bounds = array<i64: 1, 32>}, {pipeline_mode = #tpu.pipeline_mode<synchronous>, transform_indices = @transform_17, window_bounds = array<i64: 32, 32>}, {pipeline_mode = #tpu.pipeline_mode<synchronous>, transform_indices = @transform_18, window_bounds = array<i64: 1, 32>}, {pipeline_mode = #tpu.pipeline_mode<synchronous>, transform_indices = @transform_19, window_bounds = array<i64: 32, 96>}, {pipeline_mode = #tpu.pipeline_mode<synchronous>, transform_indices = @transform_20, window_bounds = array<i64: 32, 96>}, {pipeline_mode = #tpu.pipeline_mode<synchronous>, transform_indices = @transform_21, window_bounds = array<i64: 32, 32>}, {pipeline_mode = #tpu.pipeline_mode<synchronous>, transform_indices = @transform_22, window_bounds = array<i64: 1, 32>}, {pipeline_mode = #tpu.pipeline_mode<synchronous>, transform_indices = @transform_23, window_bounds = array<i64: 1, 32>}, {pipeline_mode = #tpu.pipeline_mode<synchronous>, transform_indices = @transform_24, window_bounds = array<i64: 1, 32>}, {pipeline_mode = #tpu.pipeline_mode<synchronous>, transform_indices = @transform_25, window_bounds = array<i64: 32, 32>}, {pipeline_mode = #tpu.pipeline_mode<synchronous>, transform_indices = @transform_26, window_bounds = array<i64: 1, 32>}, {pipeline_mode = #tpu.pipeline_mode<synchronous>, transform_indices = @transform_27, window_bounds = array<i64: 1, 32>}, {pipeline_mode = #tpu.pipeline_mode<synchronous>, transform_indices = @transform_28, window_bounds = array<i64: 1, 32>}, {pipeline_mode = #tpu.pipeline_mode<synchronous>, transform_indices = @transform_29, window_bounds = array<i64: 1, 32>}, {pipeline_mode = #tpu.pipeline_mode<synchronous>, transform_indices = @transform_30, window_bounds = array<i64: 1, 32>}, {pipeline_mode = #tpu.pipeline_mode<synchronous>, transform_indices = @transform_31, window_bounds = array<i64: 32, 128>}, {pipeline_mode = #tpu.pipeline_mode<synchronous>, transform_indices = @transform_32, window_bounds = array<i64: 1, 128>}, {pipeline_mode = #tpu.pipeline_mode<synchronous>, transform_indices = @transform_33, window_bounds = array<i64: 128, 32>}, {pipeline_mode = #tpu.pipeline_mode<synchronous>, transform_indices = @transform_34, window_bounds = array<i64: 1, 32>}, {pipeline_mode = #tpu.pipeline_mode<synchronous>, transform_indices = @transform_35, window_bounds = array<i64: 1, 32>}, {pipeline_mode = #tpu.pipeline_mode<synchronous>, transform_indices = @transform_36, window_bounds = array<i64: 1, 32>}, {transform_indices = @transform_37, window_bounds = array<i64: 1, 2, 32>}, {transform_indices = @transform_38, window_bounds = array<i64: 1, 2, 2>}, {transform_indices = @transform_39, window_bounds = array<i64: 1, 2, 5>}]} {
    %c0_i32 = arith.constant 0 : i32
    %0 = arith.cmpi eq, %arg0, %c0_i32 : i32
    %1 = arith.extui %0 : i1 to i32
    %c0_i32_0 = arith.constant 0 : i32
    %2 = arith.cmpi ne, %1, %c0_i32_0 : i32
    scf.if %2 {
      %cst_157 = arith.constant 0.000000e+00 : f32
      %299 = vector.broadcast %cst_157 : f32 to vector<2x32xf32>
      %c0_158 = arith.constant 0 : index
      %c0_159 = arith.constant 0 : index
      %300 = vector.load %arg41[%c0_158, %c0_159] : memref<2x32xf32, #tpu.memory_space<vmem>>, vector<2x32xf32>
      tpu.vector_store %arg41[%c0_158, %c0_159], %299 {strides = array<i32>} : memref<2x32xf32, #tpu.memory_space<vmem>>, vector<2x32xf32>,
      %cst_160 = arith.constant 0.000000e+00 : f32
      %301 = vector.broadcast %cst_160 : f32 to vector<8x2x32xf32>
      %c0_161 = arith.constant 0 : index
      %c0_162 = arith.constant 0 : index
      %c0_163 = arith.constant 0 : index
      %302 = vector.load %arg42[%c0_161, %c0_162, %c0_163] : memref<8x2x32xf32, #tpu.memory_space<vmem>>, vector<8x2x32xf32>
      tpu.vector_store %arg42[%c0_161, %c0_162, %c0_163], %301 {strides = array<i32>} : memref<8x2x32xf32, #tpu.memory_space<vmem>>, vector<8x2x32xf32>,
    } else {
    }
    %c0 = arith.constant 0 : index
    %c0_1 = arith.constant 0 : index
    %3 = vector.load %arg41[%c0, %c0_1] : memref<2x32xf32, #tpu.memory_space<vmem>>, vector<2x32xf32>
    %c0_2 = arith.constant 0 : index
    %c0_3 = arith.constant 0 : index
    %c0_4 = arith.constant 0 : index
    %4 = vector.load %arg1[%c0_2, %c0_3, %c0_4] : memref<1x2x32xf32, #tpu.memory_space<vmem>>, vector<1x2x32xf32>
    %5 = vector.shape_cast %4 : vector<1x2x32xf32> to vector<2x32xf32>
    %c0_5 = arith.constant 0 : index
    %c0_6 = arith.constant 0 : index
    %c0_7 = arith.constant 0 : index
    %6 = vector.load %arg2[%c0_5, %c0_6, %c0_7] : memref<1x2x4xf32, #tpu.memory_space<vmem>>, vector<1x2x4xf32>
    %7 = vector.shape_cast %6 : vector<1x2x4xf32> to vector<2x4xf32>
    %c0_8 = arith.constant 0 : index
    %c0_9 = arith.constant 0 : index
    %c0_10 = arith.constant 0 : index
    %c0_11 = arith.constant 0 : index
    %8 = vector.load %arg3[%c0_8, %c0_9, %c0_10, %c0_11] : memref<1x2x5x32xf32, #tpu.memory_space<vmem>>, vector<1x2x5x32xf32>
    %9 = vector.shape_cast %8 : vector<1x2x5x32xf32> to vector<2x5x32xf32>
    %c0_12 = arith.constant 0 : index
    %c0_13 = arith.constant 0 : index
    %c0_14 = arith.constant 0 : index
    %10 = vector.load %arg4[%c0_12, %c0_13, %c0_14] : memref<1x2x5xf32, #tpu.memory_space<vmem>>, vector<1x2x5xf32>
    %11 = vector.shape_cast %10 : vector<1x2x5xf32> to vector<2x5xf32>
    %c0_15 = arith.constant 0 : index
    %c0_16 = arith.constant 0 : index
    %c0_17 = arith.constant 0 : index
    %12 = vector.load %arg5[%c0_15, %c0_16, %c0_17] : memref<1x2x32xf32, #tpu.memory_space<vmem>>, vector<1x2x32xf32>
    %13 = vector.shape_cast %12 : vector<1x2x32xf32> to vector<2x32xf32>
    %c0_18 = arith.constant 0 : index
    %c0_19 = arith.constant 0 : index
    %c0_20 = arith.constant 0 : index
    %14 = vector.load %arg6[%c0_18, %c0_19, %c0_20] : memref<1x2x2xf32, #tpu.memory_space<vmem>>, vector<1x2x2xf32>
    %15 = vector.shape_cast %14 : vector<1x2x2xf32> to vector<2x2xf32>
    %c0_21 = arith.constant 0 : index
    %c0_22 = arith.constant 0 : index
    %16 = vector.load %arg9[%c0_21, %c0_22] : memref<32x32xf32, #tpu.memory_space<vmem>>, vector<32x32xf32>
    %cst = arith.constant dense<0.000000e+00> : vector<2x32xf32>
    %17 = tpu.matmul %3, %16, %cst {dimension_numbers = #tpu.dot_dimension_numbers<[1], [0], [0], [1], [0, 0, 1, 1], [], []>} : vector<2x32xf32>, vector<32x32xf32>, vector<2x32xf32> -> vector<2x32xf32>
    %c0_23 = arith.constant 0 : index
    %c0_24 = arith.constant 0 : index
    %18 = vector.load %arg10[%c0_23, %c0_24] : memref<32x32xf32, #tpu.memory_space<vmem>>, vector<32x32xf32>
    %cst_25 = arith.constant dense<0.000000e+00> : vector<2x32xf32>
    %19 = tpu.matmul %5, %18, %cst_25 {dimension_numbers = #tpu.dot_dimension_numbers<[1], [0], [0], [1], [0, 0, 1, 1], [], []>} : vector<2x32xf32>, vector<32x32xf32>, vector<2x32xf32> -> vector<2x32xf32>
    %20 = arith.addf %17, %19 : vector<2x32xf32>
    %c0_26 = arith.constant 0 : index
    %c0_27 = arith.constant 0 : index
    %21 = vector.load %arg11[%c0_26, %c0_27] : memref<4x32xf32, #tpu.memory_space<vmem>>, vector<4x32xf32>
    %cst_28 = arith.constant dense<0.000000e+00> : vector<2x32xf32>
    %22 = tpu.matmul %7, %21, %cst_28 {dimension_numbers = #tpu.dot_dimension_numbers<[1], [0], [0], [1], [0, 0, 1, 1], [], []>} : vector<2x4xf32>, vector<4x32xf32>, vector<2x32xf32> -> vector<2x32xf32>
    %23 = arith.addf %20, %22 : vector<2x32xf32>
    %c0_29 = arith.constant 0 : index
    %c0_30 = arith.constant 0 : index
    %24 = vector.load %arg7[%c0_29, %c0_30] : memref<1x32xf32, #tpu.memory_space<vmem>>, vector<1x32xf32>
    %25 = vector.broadcast %24 : vector<1x32xf32> to vector<2x32xf32>
    %26 = arith.addf %23, %25 : vector<2x32xf32>
    %c0_31 = arith.constant 0 : index
    %c0_32 = arith.constant 0 : index
    %27 = vector.load %arg12[%c0_31, %c0_32] : memref<1x32xf32, #tpu.memory_space<vmem>>, vector<1x32xf32>
    %28 = vector.broadcast %27 : vector<1x32xf32> to vector<2x32xf32>
    %29 = arith.addf %26, %28 : vector<2x32xf32>
    %30 = math.tanh %29 : vector<2x32xf32>
    %c0_33 = arith.constant 0 : index
    %c0_34 = arith.constant 0 : index
    %31 = vector.load %arg13[%c0_33, %c0_34] : memref<32x2xf32, #tpu.memory_space<vmem>>, vector<32x2xf32>
    %cst_35 = arith.constant dense<0.000000e+00> : vector<2x2xf32>
    %32 = tpu.matmul %30, %31, %cst_35 {dimension_numbers = #tpu.dot_dimension_numbers<[1], [0], [0], [1], [0, 0, 1, 1], [], []>} : vector<2x32xf32>, vector<32x2xf32>, vector<2x2xf32> -> vector<2x2xf32>
    %c0_36 = arith.constant 0 : index
    %c0_37 = arith.constant 0 : index
    %33 = vector.load %arg14[%c0_36, %c0_37] : memref<1x2xf32, #tpu.memory_space<vmem>>, vector<1x2xf32>
    %34 = vector.broadcast %33 : vector<1x2xf32> to vector<2x2xf32>
    %35 = arith.addf %32, %34 : vector<2x2xf32>
    %36 = arith.addf %35, %15 : vector<2x2xf32>
    %37 = vector.extract_strided_slice %36 {offsets = [0, 0], sizes = [2, 1], strides = [1, 1]} : vector<2x2xf32> to vector<2x1xf32>
    %38 = vector.extract_strided_slice %36 {offsets = [0, 1], sizes = [2, 1], strides = [1, 1]} : vector<2x2xf32> to vector<2x1xf32>
    %39 = arith.cmpf oge, %37, %38 : vector<2x1xf32>
    %40 = arith.extui %39 : vector<2x1xi1> to vector<2x1xi32>
    %41 = arith.sitofp %40 : vector<2x1xi32> to vector<2x1xf32>
    %42 = tpu.iota {dimensions = array<i32: 1>} : vector<2x2xi32>
    %c0_i32_38 = arith.constant 0 : i32
    %43 = vector.broadcast %c0_i32_38 : i32 to vector<2x2xi32>
    %44 = arith.cmpi eq, %42, %43 : vector<2x2xi32>
    %cst_39 = arith.constant 1.000000e+00 : f32
    %45 = vector.broadcast %cst_39 : f32 to vector<2x1xf32>
    %46 = arith.subf %45, %41 : vector<2x1xf32>
    %47 = vector.shape_cast %41 : vector<2x1xf32> to vector<2x1xf32>
    %48 = vector.broadcast %47 : vector<2x1xf32> to vector<2x2xf32>
    %49 = vector.shape_cast %46 : vector<2x1xf32> to vector<2x1xf32>
    %50 = vector.broadcast %49 : vector<2x1xf32> to vector<2x2xf32>
    %51 = arith.select %44, %48, %50 : vector<2x2xi1>, vector<2x2xf32>
    %c0_40 = arith.constant 0 : index
    %c0_41 = arith.constant 0 : index
    %c0_42 = arith.constant 0 : index
    %52 = vector.load %arg39[%c0_40, %c0_41, %c0_42] : memref<1x2x2xf32, #tpu.memory_space<vmem>>, vector<1x2x2xf32>
    %53 = vector.shape_cast %52 : vector<1x2x2xf32> to vector<2x2xf32>
    %54 = vector.shape_cast %51 : vector<2x2xf32> to vector<1x2x2xf32>
    tpu.vector_store %arg39[%c0_40, %c0_41, %c0_42], %54 {strides = array<i32>} : memref<1x2x2xf32, #tpu.memory_space<vmem>>, vector<1x2x2xf32>,
    %c0_43 = arith.constant 0 : index
    %c0_44 = arith.constant 0 : index
    %55 = vector.load %arg15[%c0_43, %c0_44] : memref<32x32xf32, #tpu.memory_space<vmem>>, vector<32x32xf32>
    %cst_45 = arith.constant dense<0.000000e+00> : vector<2x32xf32>
    %56 = tpu.matmul %3, %55, %cst_45 {dimension_numbers = #tpu.dot_dimension_numbers<[1], [0], [0], [1], [0, 0, 1, 1], [], []>} : vector<2x32xf32>, vector<32x32xf32>, vector<2x32xf32> -> vector<2x32xf32>
    %c0_46 = arith.constant 0 : index
    %c0_47 = arith.constant 0 : index
    %57 = vector.load %arg16[%c0_46, %c0_47] : memref<4x32xf32, #tpu.memory_space<vmem>>, vector<4x32xf32>
    %cst_48 = arith.constant dense<0.000000e+00> : vector<2x32xf32>
    %58 = tpu.matmul %7, %57, %cst_48 {dimension_numbers = #tpu.dot_dimension_numbers<[1], [0], [0], [1], [0, 0, 1, 1], [], []>} : vector<2x4xf32>, vector<4x32xf32>, vector<2x32xf32> -> vector<2x32xf32>
    %59 = arith.addf %56, %58 : vector<2x32xf32>
    %c0_49 = arith.constant 0 : index
    %c0_50 = arith.constant 0 : index
    %60 = vector.load %arg8[%c0_49, %c0_50] : memref<1x32xf32, #tpu.memory_space<vmem>>, vector<1x32xf32>
    %61 = vector.broadcast %60 : vector<1x32xf32> to vector<2x32xf32>
    %62 = arith.addf %59, %61 : vector<2x32xf32>
    %c0_51 = arith.constant 0 : index
    %c0_52 = arith.constant 0 : index
    %63 = vector.load %arg17[%c0_51, %c0_52] : memref<1x32xf32, #tpu.memory_space<vmem>>, vector<1x32xf32>
    %64 = vector.broadcast %63 : vector<1x32xf32> to vector<2x32xf32>
    %65 = arith.addf %62, %64 : vector<2x32xf32>
    %cst_53 = arith.constant 0.000000e+00 : f32
    %66 = vector.broadcast %cst_53 : f32 to vector<2x32xf32>
    %67 = arith.maximumf %65, %66 : vector<2x32xf32>
    %68 = vector.shape_cast %67 : vector<2x32xf32> to vector<2x1x32xf32>
    %69 = vector.broadcast %68 : vector<2x1x32xf32> to vector<2x5x32xf32>
    %70 = arith.mulf %69, %9 : vector<2x5x32xf32>
    %cst_54 = arith.constant dense<0.000000e+00> : vector<2x5xf32>
    %71 = vector.multi_reduction <add>, %70, %cst_54 [2] : vector<2x5x32xf32> to vector<2x5xf32>
    %cst_55 = arith.constant 5.65685415 : f32
    %72 = vector.broadcast %cst_55 : f32 to vector<2x5xf32>
    %73 = arith.divf %71, %72 : vector<2x5xf32>
    %cst_56 = arith.constant dense<0xFF800000> : vector<2xf32>
    %74 = vector.multi_reduction <maximumf>, %73, %cst_56 [1] : vector<2x5xf32> to vector<2xf32>
    %75 = vector.shape_cast %74 : vector<2xf32> to vector<2x1xf32>
    %76 = vector.broadcast %75 : vector<2x1xf32> to vector<2x5xf32>
    %77 = arith.subf %73, %76 : vector<2x5xf32>
    %78 = math.exp %77 : vector<2x5xf32>
    %cst_57 = arith.constant dense<0.000000e+00> : vector<2xf32>
    %79 = vector.multi_reduction <add>, %78, %cst_57 [1] : vector<2x5xf32> to vector<2xf32>
    %80 = vector.shape_cast %79 : vector<2xf32> to vector<2x1xf32>
    %81 = vector.broadcast %80 : vector<2x1xf32> to vector<2x5xf32>
    %82 = arith.divf %78, %81 : vector<2x5xf32>
    %83 = arith.mulf %82, %11 : vector<2x5xf32>
    %c0_58 = arith.constant 0 : index
    %c0_59 = arith.constant 0 : index
    %c0_60 = arith.constant 0 : index
    %84 = vector.load %arg40[%c0_58, %c0_59, %c0_60] : memref<1x2x5xf32, #tpu.memory_space<vmem>>, vector<1x2x5xf32>
    %85 = vector.shape_cast %84 : vector<1x2x5xf32> to vector<2x5xf32>
    %86 = vector.shape_cast %83 : vector<2x5xf32> to vector<1x2x5xf32>
    tpu.vector_store %arg40[%c0_58, %c0_59, %c0_60], %86 {strides = array<i32>} : memref<1x2x5xf32, #tpu.memory_space<vmem>>, vector<1x2x5xf32>,
    %87 = vector.shape_cast %83 : vector<2x5xf32> to vector<2x5x1xf32>
    %88 = vector.broadcast %87 : vector<2x5x1xf32> to vector<2x5x32xf32>
    %89 = arith.mulf %88, %9 : vector<2x5x32xf32>
    %cst_61 = arith.constant dense<0.000000e+00> : vector<2x32xf32>
    %90 = vector.multi_reduction <add>, %89, %cst_61 [1] : vector<2x5x32xf32> to vector<2x32xf32>
    %c0_62 = arith.constant 0 : index
    %c0_63 = arith.constant 0 : index
    %91 = vector.load %arg18[%c0_62, %c0_63] : memref<32x32xf32, #tpu.memory_space<vmem>>, vector<32x32xf32>
    %cst_64 = arith.constant dense<0.000000e+00> : vector<2x32xf32>
    %92 = tpu.matmul %90, %91, %cst_64 {dimension_numbers = #tpu.dot_dimension_numbers<[1], [0], [0], [1], [0, 0, 1, 1], [], []>} : vector<2x32xf32>, vector<32x32xf32>, vector<2x32xf32> -> vector<2x32xf32>
    %c0_65 = arith.constant 0 : index
    %c0_66 = arith.constant 0 : index
    %93 = vector.load %arg19[%c0_65, %c0_66] : memref<1x32xf32, #tpu.memory_space<vmem>>, vector<1x32xf32>
    %94 = vector.broadcast %93 : vector<1x32xf32> to vector<2x32xf32>
    %95 = arith.addf %92, %94 : vector<2x32xf32>
    %96 = arith.addf %95, %13 : vector<2x32xf32>
    %c0_67 = arith.constant 0 : index
    %c0_68 = arith.constant 0 : index
    %97 = vector.load %arg20[%c0_67, %c0_68] : memref<32x96xf32, #tpu.memory_space<vmem>>, vector<32x96xf32>
    %cst_69 = arith.constant dense<0.000000e+00> : vector<2x96xf32>
    %98 = tpu.matmul %96, %97, %cst_69 {dimension_numbers = #tpu.dot_dimension_numbers<[1], [0], [0], [1], [0, 0, 1, 1], [], []>} : vector<2x32xf32>, vector<32x96xf32>, vector<2x96xf32> -> vector<2x96xf32>
    %c0_70 = arith.constant 0 : index
    %c0_71 = arith.constant 0 : index
    %99 = vector.load %arg21[%c0_70, %c0_71] : memref<32x96xf32, #tpu.memory_space<vmem>>, vector<32x96xf32>
    %cst_72 = arith.constant dense<0.000000e+00> : vector<2x96xf32>
    %100 = tpu.matmul %3, %99, %cst_72 {dimension_numbers = #tpu.dot_dimension_numbers<[1], [0], [0], [1], [0, 0, 1, 1], [], []>} : vector<2x32xf32>, vector<32x96xf32>, vector<2x96xf32> -> vector<2x96xf32>
    %101 = vector.extract_strided_slice %98 {offsets = [0, 0], sizes = [2, 32], strides = [1, 1]} : vector<2x96xf32> to vector<2x32xf32>
    %102 = vector.extract_strided_slice %100 {offsets = [0, 0], sizes = [2, 32], strides = [1, 1]} : vector<2x96xf32> to vector<2x32xf32>
    %103 = arith.addf %101, %102 : vector<2x32xf32>
    %cst_73 = arith.constant 0.000000e+00 : f32
    %104 = vector.broadcast %cst_73 : f32 to vector<2x32xf32>
    %105 = arith.subf %104, %103 : vector<2x32xf32>
    %106 = math.exp %105 : vector<2x32xf32>
    %cst_74 = arith.constant 1.000000e+00 : f32
    %107 = vector.broadcast %cst_74 : f32 to vector<2x32xf32>
    %108 = arith.addf %107, %106 : vector<2x32xf32>
    %cst_75 = arith.constant 1.000000e+00 : f32
    %109 = vector.broadcast %cst_75 : f32 to vector<2x32xf32>
    %110 = arith.divf %109, %108 : vector<2x32xf32>
    %111 = vector.extract_strided_slice %98 {offsets = [0, 32], sizes = [2, 32], strides = [1, 1]} : vector<2x96xf32> to vector<2x32xf32>
    %112 = vector.extract_strided_slice %100 {offsets = [0, 32], sizes = [2, 32], strides = [1, 1]} : vector<2x96xf32> to vector<2x32xf32>
    %113 = arith.addf %111, %112 : vector<2x32xf32>
    %cst_76 = arith.constant 0.000000e+00 : f32
    %114 = vector.broadcast %cst_76 : f32 to vector<2x32xf32>
    %115 = arith.subf %114, %113 : vector<2x32xf32>
    %116 = math.exp %115 : vector<2x32xf32>
    %cst_77 = arith.constant 1.000000e+00 : f32
    %117 = vector.broadcast %cst_77 : f32 to vector<2x32xf32>
    %118 = arith.addf %117, %116 : vector<2x32xf32>
    %cst_78 = arith.constant 1.000000e+00 : f32
    %119 = vector.broadcast %cst_78 : f32 to vector<2x32xf32>
    %120 = arith.divf %119, %118 : vector<2x32xf32>
    %121 = vector.extract_strided_slice %98 {offsets = [0, 64], sizes = [2, 32], strides = [1, 1]} : vector<2x96xf32> to vector<2x32xf32>
    %122 = vector.extract_strided_slice %100 {offsets = [0, 64], sizes = [2, 32], strides = [1, 1]} : vector<2x96xf32> to vector<2x32xf32>
    %123 = arith.mulf %110, %122 : vector<2x32xf32>
    %124 = arith.addf %121, %123 : vector<2x32xf32>
    %125 = math.tanh %124 : vector<2x32xf32>
    %cst_79 = arith.constant 1.000000e+00 : f32
    %126 = vector.broadcast %cst_79 : f32 to vector<2x32xf32>
    %127 = arith.subf %126, %120 : vector<2x32xf32>
    %128 = arith.mulf %127, %125 : vector<2x32xf32>
    %129 = arith.mulf %120, %3 : vector<2x32xf32>
    %130 = arith.addf %128, %129 : vector<2x32xf32>
    %cst_80 = arith.constant 1.000000e+00 : f32
    %131 = vector.broadcast %cst_80 : f32 to vector<2x1xf32>
    %132 = arith.subf %131, %41 : vector<2x1xf32>
    %133 = vector.broadcast %132 : vector<2x1xf32> to vector<2x32xf32>
    %134 = arith.mulf %3, %133 : vector<2x32xf32>
    %135 = vector.broadcast %41 : vector<2x1xf32> to vector<2x32xf32>
    %136 = arith.mulf %130, %135 : vector<2x32xf32>
    %137 = arith.addf %134, %136 : vector<2x32xf32>
    %c0_81 = arith.constant 0 : index
    %c0_82 = arith.constant 0 : index
    %138 = vector.load %arg26[%c0_81, %c0_82] : memref<32x32xf32, #tpu.memory_space<vmem>>, vector<32x32xf32>
    %cst_83 = arith.constant dense<0.000000e+00> : vector<2x32xf32>
    %139 = tpu.matmul %137, %138, %cst_83 {dimension_numbers = #tpu.dot_dimension_numbers<[1], [0], [0], [1], [0, 0, 1, 1], [], []>} : vector<2x32xf32>, vector<32x32xf32>, vector<2x32xf32> -> vector<2x32xf32>
    %c0_84 = arith.constant 0 : index
    %c0_85 = arith.constant 0 : index
    %140 = vector.load %arg27[%c0_84, %c0_85] : memref<1x32xf32, #tpu.memory_space<vmem>>, vector<1x32xf32>
    %141 = vector.broadcast %140 : vector<1x32xf32> to vector<2x32xf32>
    %142 = arith.addf %139, %141 : vector<2x32xf32>
    %cst_86 = arith.constant 0.000000e+00 : f32
    %143 = vector.broadcast %cst_86 : f32 to vector<2x32xf32>
    %144 = arith.maximumf %142, %143 : vector<2x32xf32>
    %cst_87 = arith.constant dense<0.000000e+00> : vector<2xf32>
    %145 = vector.multi_reduction <add>, %144, %cst_87 [1] : vector<2x32xf32> to vector<2xf32>
    %146 = vector.shape_cast %145 : vector<2xf32> to vector<2x1xf32>
    %cst_88 = arith.constant 3.200000e+01 : f32
    %147 = vector.broadcast %cst_88 : f32 to vector<2x1xf32>
    %148 = arith.divf %146, %147 : vector<2x1xf32>
    %149 = vector.broadcast %148 : vector<2x1xf32> to vector<2x32xf32>
    %150 = arith.subf %144, %149 : vector<2x32xf32>
    %151 = arith.mulf %150, %150 : vector<2x32xf32>
    %cst_89 = arith.constant dense<0.000000e+00> : vector<2xf32>
    %152 = vector.multi_reduction <add>, %151, %cst_89 [1] : vector<2x32xf32> to vector<2xf32>
    %153 = vector.shape_cast %152 : vector<2xf32> to vector<2x1xf32>
    %cst_90 = arith.constant 3.200000e+01 : f32
    %154 = vector.broadcast %cst_90 : f32 to vector<2x1xf32>
    %155 = arith.divf %153, %154 : vector<2x1xf32>
    %156 = vector.broadcast %148 : vector<2x1xf32> to vector<2x32xf32>
    %157 = arith.subf %144, %156 : vector<2x32xf32>
    %cst_91 = arith.constant 9.99999974E-6 : f32
    %158 = vector.broadcast %cst_91 : f32 to vector<2x1xf32>
    %159 = arith.addf %155, %158 : vector<2x1xf32>
    %160 = math.rsqrt %159 : vector<2x1xf32>
    %161 = vector.broadcast %160 : vector<2x1xf32> to vector<2x32xf32>
    %162 = arith.mulf %157, %161 : vector<2x32xf32>
    %c0_92 = arith.constant 0 : index
    %c0_93 = arith.constant 0 : index
    %163 = vector.load %arg28[%c0_92, %c0_93] : memref<1x32xf32, #tpu.memory_space<vmem>>, vector<1x32xf32>
    %164 = vector.broadcast %163 : vector<1x32xf32> to vector<2x32xf32>
    %165 = arith.mulf %162, %164 : vector<2x32xf32>
    %c0_94 = arith.constant 0 : index
    %c0_95 = arith.constant 0 : index
    %166 = vector.load %arg29[%c0_94, %c0_95] : memref<1x32xf32, #tpu.memory_space<vmem>>, vector<1x32xf32>
    %167 = vector.broadcast %166 : vector<1x32xf32> to vector<2x32xf32>
    %168 = arith.addf %165, %167 : vector<2x32xf32>
    %c0_96 = arith.constant 0 : index
    %c0_97 = arith.constant 0 : index
    %c0_98 = arith.constant 0 : index
    %169 = vector.load %arg42[%c0_96, %c0_97, %c0_98] : memref<8x2x32xf32, #tpu.memory_space<vmem>>, vector<8x2x32xf32>
    %170 = vector.shape_cast %168 : vector<2x32xf32> to vector<1x2x32xf32>
    %171 = vector.broadcast %170 : vector<1x2x32xf32> to vector<8x2x32xf32>
    %172 = arith.mulf %171, %169 : vector<8x2x32xf32>
    %cst_99 = arith.constant dense<0.000000e+00> : vector<8x2xf32>
    %173 = vector.multi_reduction <add>, %172, %cst_99 [2] : vector<8x2x32xf32> to vector<8x2xf32>
    %cst_100 = arith.constant 5.65685415 : f32
    %174 = vector.broadcast %cst_100 : f32 to vector<8x2xf32>
    %175 = arith.divf %173, %174 : vector<8x2xf32>
    %176 = tpu.iota {dimensions = array<i32: 0>} : vector<8x1xi32>
    %177 = vector.broadcast %arg0 : i32 to vector<8x1xi32>
    %178 = arith.cmpi slt, %176, %177 : vector<8x1xi32>
    %cst_101 = arith.constant -1.000000e+30 : f32
    %179 = vector.shape_cast %178 : vector<8x1xi1> to vector<8x1xi1>
    %180 = vector.broadcast %179 : vector<8x1xi1> to vector<8x2xi1>
    %181 = vector.broadcast %cst_101 : f32 to vector<8x2xf32>
    %182 = arith.select %180, %175, %181 : vector<8x2xi1>, vector<8x2xf32>
    %cst_102 = arith.constant dense<0xFF800000> : vector<2xf32>
    %183 = vector.multi_reduction <maximumf>, %182, %cst_102 [0] : vector<8x2xf32> to vector<2xf32>
    %184 = vector.shape_cast %183 : vector<2xf32> to vector<1x2xf32>
    %185 = vector.broadcast %184 : vector<1x2xf32> to vector<8x2xf32>
    %186 = arith.subf %182, %185 : vector<8x2xf32>
    %187 = math.exp %186 : vector<8x2xf32>
    %cst_103 = arith.constant dense<0.000000e+00> : vector<2xf32>
    %188 = vector.multi_reduction <add>, %187, %cst_103 [0] : vector<8x2xf32> to vector<2xf32>
    %189 = vector.shape_cast %188 : vector<2xf32> to vector<1x2xf32>
    %190 = vector.broadcast %189 : vector<1x2xf32> to vector<8x2xf32>
    %191 = arith.divf %187, %190 : vector<8x2xf32>
    %192 = vector.shape_cast %191 : vector<8x2xf32> to vector<8x2x1xf32>
    %193 = vector.broadcast %192 : vector<8x2x1xf32> to vector<8x2x32xf32>
    %194 = arith.mulf %193, %169 : vector<8x2x32xf32>
    %cst_104 = arith.constant dense<0.000000e+00> : vector<2x32xf32>
    %195 = vector.multi_reduction <add>, %194, %cst_104 [0] : vector<8x2x32xf32> to vector<2x32xf32>
    %196 = arith.addf %195, %168 : vector<2x32xf32>
    %cst_105 = arith.constant dense<0.000000e+00> : vector<2xf32>
    %197 = vector.multi_reduction <add>, %196, %cst_105 [1] : vector<2x32xf32> to vector<2xf32>
    %198 = vector.shape_cast %197 : vector<2xf32> to vector<2x1xf32>
    %cst_106 = arith.constant 3.200000e+01 : f32
    %199 = vector.broadcast %cst_106 : f32 to vector<2x1xf32>
    %200 = arith.divf %198, %199 : vector<2x1xf32>
    %201 = vector.broadcast %200 : vector<2x1xf32> to vector<2x32xf32>
    %202 = arith.subf %196, %201 : vector<2x32xf32>
    %203 = arith.mulf %202, %202 : vector<2x32xf32>
    %cst_107 = arith.constant dense<0.000000e+00> : vector<2xf32>
    %204 = vector.multi_reduction <add>, %203, %cst_107 [1] : vector<2x32xf32> to vector<2xf32>
    %205 = vector.shape_cast %204 : vector<2xf32> to vector<2x1xf32>
    %cst_108 = arith.constant 3.200000e+01 : f32
    %206 = vector.broadcast %cst_108 : f32 to vector<2x1xf32>
    %207 = arith.divf %205, %206 : vector<2x1xf32>
    %208 = vector.broadcast %200 : vector<2x1xf32> to vector<2x32xf32>
    %209 = arith.subf %196, %208 : vector<2x32xf32>
    %cst_109 = arith.constant 9.99999974E-6 : f32
    %210 = vector.broadcast %cst_109 : f32 to vector<2x1xf32>
    %211 = arith.addf %207, %210 : vector<2x1xf32>
    %212 = math.rsqrt %211 : vector<2x1xf32>
    %213 = vector.broadcast %212 : vector<2x1xf32> to vector<2x32xf32>
    %214 = arith.mulf %209, %213 : vector<2x32xf32>
    %c0_110 = arith.constant 0 : index
    %c0_111 = arith.constant 0 : index
    %215 = vector.load %arg30[%c0_110, %c0_111] : memref<1x32xf32, #tpu.memory_space<vmem>>, vector<1x32xf32>
    %216 = vector.broadcast %215 : vector<1x32xf32> to vector<2x32xf32>
    %217 = arith.mulf %214, %216 : vector<2x32xf32>
    %c0_112 = arith.constant 0 : index
    %c0_113 = arith.constant 0 : index
    %218 = vector.load %arg31[%c0_112, %c0_113] : memref<1x32xf32, #tpu.memory_space<vmem>>, vector<1x32xf32>
    %219 = vector.broadcast %218 : vector<1x32xf32> to vector<2x32xf32>
    %220 = arith.addf %217, %219 : vector<2x32xf32>
    %c0_114 = arith.constant 0 : index
    %c0_115 = arith.constant 0 : index
    %221 = vector.load %arg32[%c0_114, %c0_115] : memref<32x128xf32, #tpu.memory_space<vmem>>, vector<32x128xf32>
    %cst_116 = arith.constant dense<0.000000e+00> : vector<2x128xf32>
    %222 = tpu.matmul %220, %221, %cst_116 {dimension_numbers = #tpu.dot_dimension_numbers<[1], [0], [0], [1], [0, 0, 1, 1], [], []>} : vector<2x32xf32>, vector<32x128xf32>, vector<2x128xf32> -> vector<2x128xf32>
    %c0_117 = arith.constant 0 : index
    %c0_118 = arith.constant 0 : index
    %223 = vector.load %arg33[%c0_117, %c0_118] : memref<1x128xf32, #tpu.memory_space<vmem>>, vector<1x128xf32>
    %224 = vector.broadcast %223 : vector<1x128xf32> to vector<2x128xf32>
    %225 = arith.addf %222, %224 : vector<2x128xf32>
    %cst_119 = arith.constant 0.000000e+00 : f32
    %226 = vector.broadcast %cst_119 : f32 to vector<2x128xf32>
    %227 = arith.maximumf %225, %226 : vector<2x128xf32>
    %c0_120 = arith.constant 0 : index
    %c0_121 = arith.constant 0 : index
    %228 = vector.load %arg34[%c0_120, %c0_121] : memref<128x32xf32, #tpu.memory_space<vmem>>, vector<128x32xf32>
    %cst_122 = arith.constant dense<0.000000e+00> : vector<2x32xf32>
    %229 = tpu.matmul %227, %228, %cst_122 {dimension_numbers = #tpu.dot_dimension_numbers<[1], [0], [0], [1], [0, 0, 1, 1], [], []>} : vector<2x128xf32>, vector<128x32xf32>, vector<2x32xf32> -> vector<2x32xf32>
    %c0_123 = arith.constant 0 : index
    %c0_124 = arith.constant 0 : index
    %230 = vector.load %arg35[%c0_123, %c0_124] : memref<1x32xf32, #tpu.memory_space<vmem>>, vector<1x32xf32>
    %231 = vector.broadcast %230 : vector<1x32xf32> to vector<2x32xf32>
    %232 = arith.addf %229, %231 : vector<2x32xf32>
    %233 = arith.addf %232, %220 : vector<2x32xf32>
    %cst_125 = arith.constant dense<0.000000e+00> : vector<2xf32>
    %234 = vector.multi_reduction <add>, %233, %cst_125 [1] : vector<2x32xf32> to vector<2xf32>
    %235 = vector.shape_cast %234 : vector<2xf32> to vector<2x1xf32>
    %cst_126 = arith.constant 3.200000e+01 : f32
    %236 = vector.broadcast %cst_126 : f32 to vector<2x1xf32>
    %237 = arith.divf %235, %236 : vector<2x1xf32>
    %238 = vector.broadcast %237 : vector<2x1xf32> to vector<2x32xf32>
    %239 = arith.subf %233, %238 : vector<2x32xf32>
    %240 = arith.mulf %239, %239 : vector<2x32xf32>
    %cst_127 = arith.constant dense<0.000000e+00> : vector<2xf32>
    %241 = vector.multi_reduction <add>, %240, %cst_127 [1] : vector<2x32xf32> to vector<2xf32>
    %242 = vector.shape_cast %241 : vector<2xf32> to vector<2x1xf32>
    %cst_128 = arith.constant 3.200000e+01 : f32
    %243 = vector.broadcast %cst_128 : f32 to vector<2x1xf32>
    %244 = arith.divf %242, %243 : vector<2x1xf32>
    %245 = vector.broadcast %237 : vector<2x1xf32> to vector<2x32xf32>
    %246 = arith.subf %233, %245 : vector<2x32xf32>
    %cst_129 = arith.constant 9.99999974E-6 : f32
    %247 = vector.broadcast %cst_129 : f32 to vector<2x1xf32>
    %248 = arith.addf %244, %247 : vector<2x1xf32>
    %249 = math.rsqrt %248 : vector<2x1xf32>
    %250 = vector.broadcast %249 : vector<2x1xf32> to vector<2x32xf32>
    %251 = arith.mulf %246, %250 : vector<2x32xf32>
    %c0_130 = arith.constant 0 : index
    %c0_131 = arith.constant 0 : index
    %252 = vector.load %arg36[%c0_130, %c0_131] : memref<1x32xf32, #tpu.memory_space<vmem>>, vector<1x32xf32>
    %253 = vector.broadcast %252 : vector<1x32xf32> to vector<2x32xf32>
    %254 = arith.mulf %251, %253 : vector<2x32xf32>
    %c0_132 = arith.constant 0 : index
    %c0_133 = arith.constant 0 : index
    %255 = vector.load %arg37[%c0_132, %c0_133] : memref<1x32xf32, #tpu.memory_space<vmem>>, vector<1x32xf32>
    %256 = vector.broadcast %255 : vector<1x32xf32> to vector<2x32xf32>
    %257 = arith.addf %254, %256 : vector<2x32xf32>
    %c0_i32_134 = arith.constant 0 : i32
    %258 = arith.cmpi eq, %arg0, %c0_i32_134 : i32
    %259 = arith.select %258, %137, %257 : vector<2x32xf32>
    %c0_135 = arith.constant 0 : index
    %c0_136 = arith.constant 0 : index
    %260 = vector.load %arg41[%c0_135, %c0_136] : memref<2x32xf32, #tpu.memory_space<vmem>>, vector<2x32xf32>
    tpu.vector_store %arg41[%c0_135, %c0_136], %259 {strides = array<i32>} : memref<2x32xf32, #tpu.memory_space<vmem>>, vector<2x32xf32>,
    %c0_137 = arith.constant 0 : index
    %c0_138 = arith.constant 0 : index
    %c0_139 = arith.constant 0 : index
    %261 = vector.load %arg38[%c0_137, %c0_138, %c0_139] : memref<1x2x32xf32, #tpu.memory_space<vmem>>, vector<1x2x32xf32>
    %262 = vector.shape_cast %261 : vector<1x2x32xf32> to vector<2x32xf32>
    %263 = vector.shape_cast %259 : vector<2x32xf32> to vector<1x2x32xf32>
    tpu.vector_store %arg38[%c0_137, %c0_138, %c0_139], %263 {strides = array<i32>} : memref<1x2x32xf32, #tpu.memory_space<vmem>>, vector<1x2x32xf32>,
    %c0_140 = arith.constant 0 : index
    %c0_141 = arith.constant 0 : index
    %264 = vector.load %arg22[%c0_140, %c0_141] : memref<32x32xf32, #tpu.memory_space<vmem>>, vector<32x32xf32>
    %cst_142 = arith.constant dense<0.000000e+00> : vector<2x32xf32>
    %265 = tpu.matmul %259, %264, %cst_142 {dimension_numbers = #tpu.dot_dimension_numbers<[1], [0], [0], [1], [0, 0, 1, 1], [], []>} : vector<2x32xf32>, vector<32x32xf32>, vector<2x32xf32> -> vector<2x32xf32>
    %c0_143 = arith.constant 0 : index
    %c0_144 = arith.constant 0 : index
    %266 = vector.load %arg23[%c0_143, %c0_144] : memref<1x32xf32, #tpu.memory_space<vmem>>, vector<1x32xf32>
    %267 = vector.broadcast %266 : vector<1x32xf32> to vector<2x32xf32>
    %268 = arith.addf %265, %267 : vector<2x32xf32>
    %cst_145 = arith.constant 0.000000e+00 : f32
    %269 = vector.broadcast %cst_145 : f32 to vector<2x32xf32>
    %270 = arith.maximumf %268, %269 : vector<2x32xf32>
    %cst_146 = arith.constant dense<0.000000e+00> : vector<2xf32>
    %271 = vector.multi_reduction <add>, %270, %cst_146 [1] : vector<2x32xf32> to vector<2xf32>
    %272 = vector.shape_cast %271 : vector<2xf32> to vector<2x1xf32>
    %cst_147 = arith.constant 3.200000e+01 : f32
    %273 = vector.broadcast %cst_147 : f32 to vector<2x1xf32>
    %274 = arith.divf %272, %273 : vector<2x1xf32>
    %275 = vector.broadcast %274 : vector<2x1xf32> to vector<2x32xf32>
    %276 = arith.subf %270, %275 : vector<2x32xf32>
    %277 = arith.mulf %276, %276 : vector<2x32xf32>
    %cst_148 = arith.constant dense<0.000000e+00> : vector<2xf32>
    %278 = vector.multi_reduction <add>, %277, %cst_148 [1] : vector<2x32xf32> to vector<2xf32>
    %279 = vector.shape_cast %278 : vector<2xf32> to vector<2x1xf32>
    %cst_149 = arith.constant 3.200000e+01 : f32
    %280 = vector.broadcast %cst_149 : f32 to vector<2x1xf32>
    %281 = arith.divf %279, %280 : vector<2x1xf32>
    %282 = vector.broadcast %274 : vector<2x1xf32> to vector<2x32xf32>
    %283 = arith.subf %270, %282 : vector<2x32xf32>
    %cst_150 = arith.constant 9.99999974E-6 : f32
    %284 = vector.broadcast %cst_150 : f32 to vector<2x1xf32>
    %285 = arith.addf %281, %284 : vector<2x1xf32>
    %286 = math.rsqrt %285 : vector<2x1xf32>
    %287 = vector.broadcast %286 : vector<2x1xf32> to vector<2x32xf32>
    %288 = arith.mulf %283, %287 : vector<2x32xf32>
    %c0_151 = arith.constant 0 : index
    %c0_152 = arith.constant 0 : index
    %289 = vector.load %arg24[%c0_151, %c0_152] : memref<1x32xf32, #tpu.memory_space<vmem>>, vector<1x32xf32>
    %290 = vector.broadcast %289 : vector<1x32xf32> to vector<2x32xf32>
    %291 = arith.mulf %288, %290 : vector<2x32xf32>
    %c0_153 = arith.constant 0 : index
    %c0_154 = arith.constant 0 : index
    %292 = vector.load %arg25[%c0_153, %c0_154] : memref<1x32xf32, #tpu.memory_space<vmem>>, vector<1x32xf32>
    %293 = vector.broadcast %292 : vector<1x32xf32> to vector<2x32xf32>
    %294 = arith.addf %291, %293 : vector<2x32xf32>
    %295 = arith.index_cast %arg0 : i32 to index
    %c0_155 = arith.constant 0 : index
    %c0_156 = arith.constant 0 : index
    %296 = vector.load %arg42[%295, %c0_155, %c0_156] : memref<8x2x32xf32, #tpu.memory_space<vmem>>, vector<1x2x32xf32>
    %297 = vector.shape_cast %296 : vector<1x2x32xf32> to vector<2x32xf32>
    %298 = vector.shape_cast %294 : vector<2x32xf32> to vector<1x2x32xf32>
    tpu.vector_store %arg42[%295, %c0_155, %c0_156], %298 {strides = array<i32>} : memref<8x2x32xf32, #tpu.memory_space<vmem>>, vector<1x2x32xf32>,
    return
  }
  func.func @transform_0(%arg0: i32) -> (i32, i32, i32) {
    %c0_i32 = arith.constant 0 : i32
    %c0_i32_0 = arith.constant 0 : i32
    %c0_i32_1 = arith.constant 0 : i32
    return %arg0, %c0_i32, %c0_i32_0 : i32, i32, i32
  }
  func.func @transform_1(%arg0: i32) -> (i32, i32, i32) {
    %c0_i32 = arith.constant 0 : i32
    %c0_i32_0 = arith.constant 0 : i32
    %c0_i32_1 = arith.constant 0 : i32
    return %arg0, %c0_i32, %c0_i32_0 : i32, i32, i32
  }
  func.func @transform_2(%arg0: i32) -> (i32, i32, i32, i32) {
    %c0_i32 = arith.constant 0 : i32
    %c0_i32_0 = arith.constant 0 : i32
    %c0_i32_1 = arith.constant 0 : i32
    %c0_i32_2 = arith.constant 0 : i32
    return %arg0, %c0_i32, %c0_i32_0, %c0_i32_1 : i32, i32, i32, i32
  }
  func.func @transform_3(%arg0: i32) -> (i32, i32, i32) {
    %c0_i32 = arith.constant 0 : i32
    %c0_i32_0 = arith.constant 0 : i32
    %c0_i32_1 = arith.constant 0 : i32
    return %arg0, %c0_i32, %c0_i32_0 : i32, i32, i32
  }
  func.func @transform_4(%arg0: i32) -> (i32, i32, i32) {
    %c0_i32 = arith.constant 0 : i32
    %c0_i32_0 = arith.constant 0 : i32
    %c0_i32_1 = arith.constant 0 : i32
    return %arg0, %c0_i32, %c0_i32_0 : i32, i32, i32
  }
  func.func @transform_5(%arg0: i32) -> (i32, i32, i32) {
    %c0_i32 = arith.constant 0 : i32
    %c0_i32_0 = arith.constant 0 : i32
    %c0_i32_1 = arith.constant 0 : i32
    return %arg0, %c0_i32, %c0_i32_0 : i32, i32, i32
  }
  func.func @transform_6(%arg0: i32) -> (i32, i32) {
    %c0_i32 = arith.constant 0 : i32
    %c0_i32_0 = arith.constant 0 : i32
    %c0_i32_1 = arith.constant 0 : i32
    return %c0_i32, %c0_i32_0 : i32, i32
  }
  func.func @transform_7(%arg0: i32) -> (i32, i32) {
    %c0_i32 = arith.constant 0 : i32
    %c0_i32_0 = arith.constant 0 : i32
    %c0_i32_1 = arith.constant 0 : i32
    return %c0_i32, %c0_i32_0 : i32, i32
  }
  func.func @transform_8(%arg0: i32) -> (i32, i32) {
    %c0_i32 = arith.constant 0 : i32
    %c0_i32_0 = arith.constant 0 : i32
    %c0_i32_1 = arith.constant 0 : i32
    return %c0_i32, %c0_i32_0 : i32, i32
  }
  func.func @transform_9(%arg0: i32) -> (i32, i32) {
    %c0_i32 = arith.constant 0 : i32
    %c0_i32_0 = arith.constant 0 : i32
    %c0_i32_1 = arith.constant 0 : i32
    return %c0_i32, %c0_i32_0 : i32, i32
  }
  func.func @transform_10(%arg0: i32) -> (i32, i32) {
    %c0_i32 = arith.constant 0 : i32
    %c0_i32_0 = arith.constant 0 : i32
    %c0_i32_1 = arith.constant 0 : i32
    return %c0_i32, %c0_i32_0 : i32, i32
  }
  func.func @transform_11(%arg0: i32) -> (i32, i32) {
    %c0_i32 = arith.constant 0 : i32
    %c0_i32_0 = arith.constant 0 : i32
    %c0_i32_1 = arith.constant 0 : i32
    return %c0_i32, %c0_i32_0 : i32, i32
  }
  func.func @transform_12(%arg0: i32) -> (i32, i32) {
    %c0_i32 = arith.constant 0 : i32
    %c0_i32_0 = arith.constant 0 : i32
    %c0_i32_1 = arith.constant 0 : i32
    return %c0_i32, %c0_i32_0 : i32, i32
  }
  func.func @transform_13(%arg0: i32) -> (i32, i32) {
    %c0_i32 = arith.constant 0 : i32
    %c0_i32_0 = arith.constant 0 : i32
    %c0_i32_1 = arith.constant 0 : i32
    return %c0_i32, %c0_i32_0 : i32, i32
  }
  func.func @transform_14(%arg0: i32) -> (i32, i32) {
    %c0_i32 = arith.constant 0 : i32
    %c0_i32_0 = arith.constant 0 : i32
    %c0_i32_1 = arith.constant 0 : i32
    return %c0_i32, %c0_i32_0 : i32, i32
  }
  func.func @transform_15(%arg0: i32) -> (i32, i32) {
    %c0_i32 = arith.constant 0 : i32
    %c0_i32_0 = arith.constant 0 : i32
    %c0_i32_1 = arith.constant 0 : i32
    return %c0_i32, %c0_i32_0 : i32, i32
  }
  func.func @transform_16(%arg0: i32) -> (i32, i32) {
    %c0_i32 = arith.constant 0 : i32
    %c0_i32_0 = arith.constant 0 : i32
    %c0_i32_1 = arith.constant 0 : i32
    return %c0_i32, %c0_i32_0 : i32, i32
  }
  func.func @transform_17(%arg0: i32) -> (i32, i32) {
    %c0_i32 = arith.constant 0 : i32
    %c0_i32_0 = arith.constant 0 : i32
    %c0_i32_1 = arith.constant 0 : i32
    return %c0_i32, %c0_i32_0 : i32, i32
  }
  func.func @transform_18(%arg0: i32) -> (i32, i32) {
    %c0_i32 = arith.constant 0 : i32
    %c0_i32_0 = arith.constant 0 : i32
    %c0_i32_1 = arith.constant 0 : i32
    return %c0_i32, %c0_i32_0 : i32, i32
  }
  func.func @transform_19(%arg0: i32) -> (i32, i32) {
    %c0_i32 = arith.constant 0 : i32
    %c0_i32_0 = arith.constant 0 : i32
    %c0_i32_1 = arith.constant 0 : i32
    return %c0_i32, %c0_i32_0 : i32, i32
  }
  func.func @transform_20(%arg0: i32) -> (i32, i32) {
    %c0_i32 = arith.constant 0 : i32
    %c0_i32_0 = arith.constant 0 : i32
    %c0_i32_1 = arith.constant 0 : i32
    return %c0_i32, %c0_i32_0 : i32, i32
  }
  func.func @transform_21(%arg0: i32) -> (i32, i32) {
    %c0_i32 = arith.constant 0 : i32
    %c0_i32_0 = arith.constant 0 : i32
    %c0_i32_1 = arith.constant 0 : i32
    return %c0_i32, %c0_i32_0 : i32, i32
  }
  func.func @transform_22(%arg0: i32) -> (i32, i32) {
    %c0_i32 = arith.constant 0 : i32
    %c0_i32_0 = arith.constant 0 : i32
    %c0_i32_1 = arith.constant 0 : i32
    return %c0_i32, %c0_i32_0 : i32, i32
  }
  func.func @transform_23(%arg0: i32) -> (i32, i32) {
    %c0_i32 = arith.constant 0 : i32
    %c0_i32_0 = arith.constant 0 : i32
    %c0_i32_1 = arith.constant 0 : i32
    return %c0_i32, %c0_i32_0 : i32, i32
  }
  func.func @transform_24(%arg0: i32) -> (i32, i32) {
    %c0_i32 = arith.constant 0 : i32
    %c0_i32_0 = arith.constant 0 : i32
    %c0_i32_1 = arith.constant 0 : i32
    return %c0_i32, %c0_i32_0 : i32, i32
  }
  func.func @transform_25(%arg0: i32) -> (i32, i32) {
    %c0_i32 = arith.constant 0 : i32
    %c0_i32_0 = arith.constant 0 : i32
    %c0_i32_1 = arith.constant 0 : i32
    return %c0_i32, %c0_i32_0 : i32, i32
  }
  func.func @transform_26(%arg0: i32) -> (i32, i32) {
    %c0_i32 = arith.constant 0 : i32
    %c0_i32_0 = arith.constant 0 : i32
    %c0_i32_1 = arith.constant 0 : i32
    return %c0_i32, %c0_i32_0 : i32, i32
  }
  func.func @transform_27(%arg0: i32) -> (i32, i32) {
    %c0_i32 = arith.constant 0 : i32
    %c0_i32_0 = arith.constant 0 : i32
    %c0_i32_1 = arith.constant 0 : i32
    return %c0_i32, %c0_i32_0 : i32, i32
  }
  func.func @transform_28(%arg0: i32) -> (i32, i32) {
    %c0_i32 = arith.constant 0 : i32
    %c0_i32_0 = arith.constant 0 : i32
    %c0_i32_1 = arith.constant 0 : i32
    return %c0_i32, %c0_i32_0 : i32, i32
  }
  func.func @transform_29(%arg0: i32) -> (i32, i32) {
    %c0_i32 = arith.constant 0 : i32
    %c0_i32_0 = arith.constant 0 : i32
    %c0_i32_1 = arith.constant 0 : i32
    return %c0_i32, %c0_i32_0 : i32, i32
  }
  func.func @transform_30(%arg0: i32) -> (i32, i32) {
    %c0_i32 = arith.constant 0 : i32
    %c0_i32_0 = arith.constant 0 : i32
    %c0_i32_1 = arith.constant 0 : i32
    return %c0_i32, %c0_i32_0 : i32, i32
  }
  func.func @transform_31(%arg0: i32) -> (i32, i32) {
    %c0_i32 = arith.constant 0 : i32
    %c0_i32_0 = arith.constant 0 : i32
    %c0_i32_1 = arith.constant 0 : i32
    return %c0_i32, %c0_i32_0 : i32, i32
  }
  func.func @transform_32(%arg0: i32) -> (i32, i32) {
    %c0_i32 = arith.constant 0 : i32
    %c0_i32_0 = arith.constant 0 : i32
    %c0_i32_1 = arith.constant 0 : i32
    return %c0_i32, %c0_i32_0 : i32, i32
  }
  func.func @transform_33(%arg0: i32) -> (i32, i32) {
    %c0_i32 = arith.constant 0 : i32
    %c0_i32_0 = arith.constant 0 : i32
    %c0_i32_1 = arith.constant 0 : i32
    return %c0_i32, %c0_i32_0 : i32, i32
  }
  func.func @transform_34(%arg0: i32) -> (i32, i32) {
    %c0_i32 = arith.constant 0 : i32
    %c0_i32_0 = arith.constant 0 : i32
    %c0_i32_1 = arith.constant 0 : i32
    return %c0_i32, %c0_i32_0 : i32, i32
  }
  func.func @transform_35(%arg0: i32) -> (i32, i32) {
    %c0_i32 = arith.constant 0 : i32
    %c0_i32_0 = arith.constant 0 : i32
    %c0_i32_1 = arith.constant 0 : i32
    return %c0_i32, %c0_i32_0 : i32, i32
  }
  func.func @transform_36(%arg0: i32) -> (i32, i32) {
    %c0_i32 = arith.constant 0 : i32
    %c0_i32_0 = arith.constant 0 : i32
    %c0_i32_1 = arith.constant 0 : i32
    return %c0_i32, %c0_i32_0 : i32, i32
  }
  func.func @transform_37(%arg0: i32) -> (i32, i32, i32) {
    %c0_i32 = arith.constant 0 : i32
    %c0_i32_0 = arith.constant 0 : i32
    %c0_i32_1 = arith.constant 0 : i32
    return %arg0, %c0_i32, %c0_i32_0 : i32, i32, i32
  }
  func.func @transform_38(%arg0: i32) -> (i32, i32, i32) {
    %c0_i32 = arith.constant 0 : i32
    %c0_i32_0 = arith.constant 0 : i32
    %c0_i32_1 = arith.constant 0 : i32
    return %arg0, %c0_i32, %c0_i32_0 : i32, i32, i32
  }
  func.func @transform_39(%arg0: i32) -> (i32, i32, i32) {
    %c0_i32 = arith.constant 0 : i32
    %c0_i32_0 = arith.constant 0 : i32
    %c0_i32_1 = arith.constant 0 : i32
    return %arg0, %c0_i32, %c0_i32_0 : i32, i32, i32
  }
}

</mosaic_0001>

<llo_original>
// kernel: _selected_forward_impl.6
$region0: #{_selected_forward_impl.6}
  #allocation0 [shape = 'u32[]', space=smem, size = 0x4, offset = 0x4, fixed_abs, tag = 'smem constant byte address 0x4 - core index']
  #allocation1 [shape = 'u32[144,128]{1,0:T(1,128)}', space=vmem, size = 0x12000, scoped, tag = 'internal scratch']
  %s0 = inlined_call_operand.vmem [shape: f32[21,32], index: 0, kind: input, shape index: {}]
  %s1 = inlined_call_operand.vmem [shape: f32[1,32], index: 1, kind: input, shape index: {}]
  %s2 = inlined_call_operand.vmem [shape: f32[32,32], index: 2, kind: input, shape index: {}]
  %s3 = inlined_call_operand.vmem [shape: f32[32,32], index: 3, kind: input, shape index: {}]
  %s4 = inlined_call_operand.vmem [shape: f32[1,32], index: 4, kind: input, shape index: {}]
  %s5 = inlined_call_operand.vmem [shape: f32[32,2], index: 5, kind: input, shape index: {}]
  %s6 = inlined_call_operand.vmem [shape: f32[1,2], index: 6, kind: input, shape index: {}]
  %s7 = inlined_call_operand.vmem [shape: f32[32,32], index: 7, kind: input, shape index: {}]
  %s8 = inlined_call_operand.hbm [shape: f32[1,32], index: 8, kind: input, shape index: {}]
  %s9 = inlined_call_operand.vmem [shape: f32[32,32], index: 9, kind: input, shape index: {}]
  %s10 = inlined_call_operand.hbm [shape: f32[1,32], index: 10, kind: input, shape index: {}]
  %s11 = inlined_call_operand.hbm [shape: f32[32,32], index: 11, kind: input, shape index: {}]
  %s12 = inlined_call_operand.vmem [shape: f32[32,32], index: 12, kind: input, shape index: {}]
  %s13 = inlined_call_operand.hbm [shape: f32[32,32], index: 13, kind: input, shape index: {}]
  %s14 = inlined_call_operand.vmem [shape: f32[21,2], index: 14, kind: output, shape index: {0}]
  %s15 = inlined_call_operand.vmem [shape: f32[1,32], index: 15, kind: output, shape index: {1}]
  %s16 = inlined_call_operand.vmem [shape: f32[1,32], index: 16, kind: output, shape index: {2}]
  %s17 = inlined_call_operand.vmem [shape: f32[1,32], index: 17, kind: output, shape index: {3}]
  %18 = xla_tuple %s14, %s15, %s16, %s17
  %s19 = sld [smem:[#allocation0]]
  $region106: #{_selected_forward_impl.6} parent=0
    _
  %s21 = ssub.s32 1, %s19
  %s22 = scalar_select 0, %s21, %s19
  $region1: #{_selected_forward_impl.6} parent=0
    #allocation2 [shape = 'u8[512]{0}', space=vmem, size = 0x400, scoped, tag = 'input window, operand 8, single buffered']
    #allocation3 [shape = 's32[1]{0}', space=sflag, size = 0x4, scoped, tag = 'scoped memory for _selected_forward_impl.6']
    #allocation4 [shape = 'u8[512]{0}', space=vmem, size = 0x400, scoped, tag = 'input window, operand 10, single buffered']
    #allocation5 [shape = 's32[1]{0}', space=sflag, size = 0x4, scoped, tag = 'scoped memory for _selected_forward_impl.6']
    #allocation6 [shape = 'u8[16384]{0}', space=vmem, size = 0x4000, scoped, tag = 'input window, operand 11, single buffered']
    #allocation7 [shape = 'u8[16384]{0}', space=vmem, size = 0x4000, scoped, tag = 'input window, operand 13, single buffered']
    #allocation8 [shape = 's32[1]{0}', space=sflag, size = 0x4, scoped, tag = 'scoped memory for _selected_forward_impl.6']
    %23 = vsyncpa [#allocation3], 0
    %24 = vsyncpa [#allocation5], 0
    %25 = vsyncpa [#allocation8], 0
    // Predicated region
    $region2: #{_selected_forward_impl.6} parent=1 // pred_check
      _
    $region3: #{_selected_forward_impl.6} parent=1 // pred_check_branch
      %27 = sbr.rel (0) target = $region5
    $region4: #{_selected_forward_impl.6} parent=1 // pred_region
      _
    $region5: #{_selected_forward_impl.6} parent=1 // pred_fallthru
      _
    // Predicated region
    $region6: #{_selected_forward_impl.6} parent=1 // pred_check
      _
    $region7: #{_selected_forward_impl.6} parent=1 // pred_check_branch
      %29 = sbr.rel (0) target = $region9
    $region8: #{_selected_forward_impl.6} parent=1 // pred_region
      _
    $region9: #{_selected_forward_impl.6} parent=1 // pred_fallthru
      _
    // Predicated region
    $region10: #{_selected_forward_impl.6} parent=1 // pred_check
      _
    $region11: #{_selected_forward_impl.6} parent=1 // pred_check_branch
      %31 = sbr.rel (0) target = $region13
    $region12: #{_selected_forward_impl.6} parent=1 // pred_region
      _
    $region13: #{_selected_forward_impl.6} parent=1 // pred_fallthru
      _
    // Predicated region
    $region14: #{_selected_forward_impl.6} parent=1 // pred_check
      _
    $region15: #{_selected_forward_impl.6} parent=1 // pred_check_branch
      %33 = sbr.rel (0) target = $region17
    $region16: #{_selected_forward_impl.6} parent=1 // pred_region
      _
    $region17: #{_selected_forward_impl.6} parent=1 // pred_fallthru
      _
    // Predicated region
    $region18: #{_selected_forward_impl.6} parent=1 // pred_check
      _
    $region19: #{_selected_forward_impl.6} parent=1 // pred_check_branch
      %35 = sbr.rel (0) target = $region21
    $region20: #{_selected_forward_impl.6} parent=1 // pred_region
      _
    $region21: #{_selected_forward_impl.6} parent=1 // pred_fallthru
      _
    // Predicated region
    $region22: #{_selected_forward_impl.6} parent=1 // pred_check
      _
    $region23: #{_selected_forward_impl.6} parent=1 // pred_check_branch
      %37 = sbr.rel (0) target = $region25
    $region24: #{_selected_forward_impl.6} parent=1 // pred_region
      _
    $region25: #{_selected_forward_impl.6} parent=1 // pred_fallthru
      _
    // Predicated region
    $region26: #{_selected_forward_impl.6} parent=1 // pred_check
      _
    $region27: #{_selected_forward_impl.6} parent=1 // pred_check_branch
      %39 = sbr.rel (0) target = $region29
    $region28: #{_selected_forward_impl.6} parent=1 // pred_region
      _
    $region29: #{_selected_forward_impl.6} parent=1 // pred_fallthru
      _
    // Predicated region
    $region30: #{_selected_forward_impl.6} parent=1 // pred_check
      _
    $region31: #{_selected_forward_impl.6} parent=1 // pred_check_branch
      %41 = sbr.rel (0) target = $region33
    $region32: #{_selected_forward_impl.6} parent=1 // pred_region
      _
    $region33: #{_selected_forward_impl.6} parent=1 // pred_fallthru
      _
    // Predicated region
    $region34: #{_selected_forward_impl.6} parent=1 // pred_check
      _
    $region35: #{_selected_forward_impl.6} parent=1 // pred_check_branch
      %43 = sbr.rel (0) target = $region37
    $region36: #{_selected_forward_impl.6} parent=1 // pred_region
      %s45 = ssub.s32 16, 16
      %46 = vsyncadd [#allocation3], %s45
      %s48 = sshll.u32 [#allocation2], 4
      %s49 = int_to_ptr.vmem [resolvable:$true] %s48
      %51 = dma.hbm_to_vmem [thread:$0]  %s8, 16, %s49, [#allocation3]
    $region37: #{_selected_forward_impl.6} parent=1 // pred_fallthru
      _
    // Predicated region
    $region38: #{_selected_forward_impl.6} parent=1 // pred_check
      _
    $region39: #{_selected_forward_impl.6} parent=1 // pred_check_branch
      %53 = sbr.rel (0) target = $region41
    $region40: #{_selected_forward_impl.6} parent=1 // pred_region
      _
    $region41: #{_selected_forward_impl.6} parent=1 // pred_fallthru
      _
    // Predicated region
    $region42: #{_selected_forward_impl.6} parent=1 // pred_check
      _
    $region43: #{_selected_forward_impl.6} parent=1 // pred_check_branch
      %55 = sbr.rel (0) target = $region45
    $region44: #{_selected_forward_impl.6} parent=1 // pred_region
      %s57 = ssub.s32 16, 16
      %58 = vsyncadd [#allocation5], %s57
      %s60 = sshll.u32 [#allocation4], 4
      %s61 = int_to_ptr.vmem [resolvable:$true] %s60
      %63 = dma.hbm_to_vmem [thread:$0]  %s10, 16, %s61, [#allocation5]
    $region45: #{_selected_forward_impl.6} parent=1 // pred_fallthru
      _
    // Predicated region
    $region46: #{_selected_forward_impl.6} parent=1 // pred_check
      _
    $region47: #{_selected_forward_impl.6} parent=1 // pred_check_branch
      %65 = sbr.rel (0) target = $region49
    $region48: #{_selected_forward_impl.6} parent=1 // pred_region
      %s67 = ssub.s32 512, 512
      %68 = vsyncadd [#allocation5], %s67
      %s69 = sshll.u32 [#allocation6], 4
      %s70 = int_to_ptr.vmem [resolvable:$true] %s69
      %75 = dma.hbm_to_vmem [thread:$0]  %s11, 512, %s70, [#allocation5], 128, 128, 8
    $region49: #{_selected_forward_impl.6} parent=1 // pred_fallthru
      _
    // Predicated region
    $region50: #{_selected_forward_impl.6} parent=1 // pred_check
      _
    $region51: #{_selected_forward_impl.6} parent=1 // pred_check_branch
      %77 = sbr.rel (0) target = $region53
    $region52: #{_selected_forward_impl.6} parent=1 // pred_region
      _
    $region53: #{_selected_forward_impl.6} parent=1 // pred_fallthru
      _
    // Predicated region
    $region54: #{_selected_forward_impl.6} parent=1 // pred_check
      _
    $region55: #{_selected_forward_impl.6} parent=1 // pred_check_branch
      %79 = sbr.rel (0) target = $region57
    $region56: #{_selected_forward_impl.6} parent=1 // pred_region
      %s81 = ssub.s32 512, 512
      %82 = vsyncadd [#allocation8], %s81
      %s83 = sshll.u32 [#allocation7], 4
      %s84 = int_to_ptr.vmem [resolvable:$true] %s83
      %89 = dma.hbm_to_vmem [thread:$0]  %s13, 512, %s84, [#allocation8], 128, 128, 8
    $region57: #{_selected_forward_impl.6} parent=1 // pred_fallthru
      _
    // Predicated region
    $region58: #{_selected_forward_impl.6} parent=1 // pred_check
      _
    $region59: #{_selected_forward_impl.6} parent=1 // pred_check_branch
      %91 = sbr.rel (0) target = $region61
    $region60: #{_selected_forward_impl.6} parent=1 // pred_region
      %92 = dma.done [#allocation3], 16
    $region61: #{_selected_forward_impl.6} parent=1 // pred_fallthru
      _
    // Predicated region
    $region62: #{_selected_forward_impl.6} parent=1 // pred_check
      _
    $region63: #{_selected_forward_impl.6} parent=1 // pred_check_branch
      %94 = sbr.rel (0) target = $region65
    $region64: #{_selected_forward_impl.6} parent=1 // pred_region
      %95 = dma.done [#allocation5], 16
    $region65: #{_selected_forward_impl.6} parent=1 // pred_fallthru
      _
    // Predicated region
    $region66: #{_selected_forward_impl.6} parent=1 // pred_check
      _
    $region67: #{_selected_forward_impl.6} parent=1 // pred_check_branch
      %97 = sbr.rel (0) target = $region69
    $region68: #{_selected_forward_impl.6} parent=1 // pred_region
      %98 = dma.done [#allocation5], 512
    $region69: #{_selected_forward_impl.6} parent=1 // pred_fallthru
      _
    // Predicated region
    $region70: #{_selected_forward_impl.6} parent=1 // pred_check
      _
    $region71: #{_selected_forward_impl.6} parent=1 // pred_check_branch
      %100 = sbr.rel (0) target = $region73
    $region72: #{_selected_forward_impl.6} parent=1 // pred_region
      %101 = dma.done [#allocation8], 512
    $region73: #{_selected_forward_impl.6} parent=1 // pred_fallthru
      _
    %v102 = vld [vmem:[%s1] sm:$0x1]
    %v103 = vld [vmem:[%s3] sm:$0xff]
    %v104 = vld [vmem:[%s3 + $0x8] sm:$0xff]
    %v105 = vld [vmem:[%s3 + $0x10] sm:$0xff]
    %v106 = vld [vmem:[%s3 + $0x18] sm:$0xff]
    %vm107 = vcmask 261120
    %v109 = vsel %vm107, %v102, 0
    %111 = vmatprep.subr.mxu0 0.0
    %112 = vmatpush1.msra.mxu0 0.0
    %113 = vmatprep.subr.mxu0 0.0
    %114 = vmatpush1.msra.mxu0 0.0
    %115 = vmatprep.subr.mxu0 0.0
    %116 = vmatpush1.msra.mxu0 0.0
    %117 = vmatprep.subr.mxu0 0.0
    %118 = vmatpush1.msra.mxu0 0.0
    %119 = vmatprep.subr.mxu0 0.0
    %120 = vmatpush1.msra.mxu0 0.0
    %121 = vmatprep.subr.mxu0 0.0
    %122 = vmatpush1.msra.mxu0 0.0
    %123 = vmatprep.subr.mxu0 0.0
    %124 = vmatpush1.msra.mxu0 0.0
    %125 = vmatprep.subr.mxu0 0.0
    %126 = vmatpush1.msra.mxu0 0.0
    %127 = vmatprep.subr.mxu0 0.0
    %128 = vmatpush1.msra.mxu0 0.0
    %129 = vmatprep.subr.mxu0 0.0
    %130 = vmatpush1.msra.mxu0 0.0
    %131 = vmatprep.subr.mxu0 0.0
    %132 = vmatpush1.msra.mxu0 0.0
    %133 = vmatprep.subr.mxu0 0.0
    %134 = vmatpush1.msra.mxu0 0.0
    %135 = vmatprep.subr.mxu0 0.0
    %136 = vmatpush1.msra.mxu0 %v106
    %137 = vmatprep.subr.mxu0 0.0
    %138 = vmatpush1.msra.mxu0 %v105
    %139 = vmatprep.subr.mxu0 0.0
    %140 = vmatpush1.msra.mxu0 %v104
    %141 = vmatprep.subr.mxu0 0.0
    %142 = vmatpush1.msra.mxu0 %v103
    %143 = vmatprep.subr.mxu0 0.0
    %144 = vmatpush2.msra.mxu0 0.0
    %145 = vmatprep.subr.mxu0 0.0
    %146 = vmatpush2.msra.mxu0 0.0
    %147 = vmatprep.subr.mxu0 0.0
    %148 = vmatpush2.msra.mxu0 0.0
    %149 = vmatprep.subr.mxu0 0.0
    %150 = vmatpush2.msra.mxu0 0.0
    %151 = vmatprep.subr.mxu0 0.0
    %152 = vmatpush2.msra.mxu0 0.0
    %153 = vmatprep.subr.mxu0 0.0
    %154 = vmatpush2.msra.mxu0 0.0
    %155 = vmatprep.subr.mxu0 0.0
    %156 = vmatpush2.msra.mxu0 0.0
    %157 = vmatprep.subr.mxu0 0.0
    %158 = vmatpush2.msra.mxu0 0.0
    %159 = vmatprep.subr.mxu0 0.0
    %160 = vmatpush2.msra.mxu0 0.0
    %161 = vmatprep.subr.mxu0 0.0
    %162 = vmatpush2.msra.mxu0 0.0
    %163 = vmatprep.subr.mxu0 0.0
    %164 = vmatpush2.msra.mxu0 0.0
    %165 = vmatprep.subr.mxu0 0.0
    %166 = vmatpush2.msra.mxu0 0.0
    %167 = vmatprep.subr.mxu0 0.0
    %168 = vmatpush2.msra.mxu0 0.0
    %169 = vmatprep.subr.mxu0 0.0
    %170 = vmatpush2.msra.mxu0 0.0
    %171 = vmatprep.subr.mxu0 0.0
    %172 = vmatpush2.msra.mxu0 0.0
    %173 = vmatprep.subr.mxu0 0.0
    %174 = vmatpush2.msra.mxu0 0.0
    %175 = vmatprep.mubr.f32.mxu0 0.0
    %176 = vmatmul.mubr.f32.gmra.mxu0 %v109
    %v177 = vpop.f32.mrf.mxu0
    %v178 = vadd.f32 0.0, %v177
    %v179 = vpop.f32.mrf.mxu0
    %180 = vdwg.mxu0
    %v181 = vld [vmem:[%s0] sm:$0xff]
    %v182 = vld [vmem:[%s0 + $0x8] sm:$0xff]
    %v183 = vld [vmem:[%s0 + $0x10] sm:$0x1f]
    %v184 = vld [vmem:[%s2] sm:$0xff]
    %v185 = vld [vmem:[%s2 + $0x8] sm:$0xff]
    %v186 = vld [vmem:[%s2 + $0x10] sm:$0xff]
    %v187 = vld [vmem:[%s2 + $0x18] sm:$0xff]
    %v188 = vlaneseq
    %v189 = vshrl.u32 %v188, 7
    %v190 = vsub.s32 0, %v189
    %v191 = vrot.slane %v178, %v190
    %v193 = vsel %vm107, %v181, 0
    %v196 = vsel %vm107, %v182, 0
    %v199 = vsel %vm107, %v183, 0
    %201 = vmatprep.subr.mxu0 0.0
    %202 = vmatpush1.msra.mxu0 0.0
    %203 = vmatprep.subr.mxu0 0.0
    %204 = vmatpush1.msra.mxu0 0.0
    %205 = vmatprep.subr.mxu0 0.0
    %206 = vmatpush1.msra.mxu0 0.0
    %207 = vmatprep.subr.mxu0 0.0
    %208 = vmatpush1.msra.mxu0 0.0
    %209 = vmatprep.subr.mxu0 0.0
    %210 = vmatpush1.msra.mxu0 0.0
    %211 = vmatprep.subr.mxu0 0.0
    %212 = vmatpush1.msra.mxu0 0.0
    %213 = vmatprep.subr.mxu0 0.0
    %214 = vmatpush1.msra.mxu0 0.0
    %215 = vmatprep.subr.mxu0 0.0
    %216 = vmatpush1.msra.mxu0 0.0
    %217 = vmatprep.subr.mxu0 0.0
    %218 = vmatpush1.msra.mxu0 0.0
    %219 = vmatprep.subr.mxu0 0.0
    %220 = vmatpush1.msra.mxu0 0.0
    %221 = vmatprep.subr.mxu0 0.0
    %222 = vmatpush1.msra.mxu0 0.0
    %223 = vmatprep.subr.mxu0 0.0
    %224 = vmatpush1.msra.mxu0 0.0
    %225 = vmatprep.subr.mxu0 0.0
    %226 = vmatpush1.msra.mxu0 %v187
    %227 = vmatprep.subr.mxu0 0.0
    %228 = vmatpush1.msra.mxu0 %v186
    %229 = vmatprep.subr.mxu0 0.0
    %230 = vmatpush1.msra.mxu0 %v185
    %231 = vmatprep.subr.mxu0 0.0
    %232 = vmatpush1.msra.mxu0 %v184
    %233 = vmatprep.subr.mxu0 0.0
    %234 = vmatpush2.msra.mxu0 0.0
    %235 = vmatprep.subr.mxu0 0.0
    %236 = vmatpush2.msra.mxu0 0.0
    %237 = vmatprep.subr.mxu0 0.0
    %238 = vmatpush2.msra.mxu0 0.0
    %239 = vmatprep.subr.mxu0 0.0
    %240 = vmatpush2.msra.mxu0 0.0
    %241 = vmatprep.subr.mxu0 0.0
    %242 = vmatpush2.msra.mxu0 0.0
    %243 = vmatprep.subr.mxu0 0.0
    %244 = vmatpush2.msra.mxu0 0.0
    %245 = vmatprep.subr.mxu0 0.0
    %246 = vmatpush2.msra.mxu0 0.0
    %247 = vmatprep.subr.mxu0 0.0
    %248 = vmatpush2.msra.mxu0 0.0
    %249 = vmatprep.subr.mxu0 0.0
    %250 = vmatpush2.msra.mxu0 0.0
    %251 = vmatprep.subr.mxu0 0.0
    %252 = vmatpush2.msra.mxu0 0.0
    %253 = vmatprep.subr.mxu0 0.0
    %254 = vmatpush2.msra.mxu0 0.0
    %255 = vmatprep.subr.mxu0 0.0
    %256 = vmatpush2.msra.mxu0 0.0
    %257 = vmatprep.subr.mxu0 0.0
    %258 = vmatpush2.msra.mxu0 0.0
    %259 = vmatprep.subr.mxu0 0.0
    %260 = vmatpush2.msra.mxu0 0.0
    %261 = vmatprep.subr.mxu0 0.0
    %262 = vmatpush2.msra.mxu0 0.0
    %263 = vmatprep.subr.mxu0 0.0
    %264 = vmatpush2.msra.mxu0 0.0
    %265 = vmatprep.mubr.f32.mxu0 0.0
    %266 = vmatmul.mubr.f32.gmra.mxu0 %v193
    %v267 = vpop.f32.mrf.mxu0
    %v268 = vadd.f32 %v191, %v267
    %v269 = vpop.f32.mrf.mxu0
    %270 = vmatprep.mubr.f32.mxu0 0.0
    %271 = vmatmul.mubr.f32.gmra.mxu0 %v196
    %v272 = vpop.f32.mrf.mxu0
    %v273 = vadd.f32 %v191, %v272
    %v274 = vpop.f32.mrf.mxu0
    %275 = vmatprep.mubr.f32.mxu0 0.0
    %276 = vmatmul.mubr.f32.gmra.mxu0 %v199
    %v277 = vpop.f32.mrf.mxu0
    %v278 = vadd.f32 %v191, %v277
    %v279 = vpop.f32.mrf.mxu0
    %280 = vdwg.mxu0
    %v281 = vld [vmem:[%s4] sm:$0x1]
    %v283 = vlaneseq
    %v284 = vshrl.u32 %v283, 7
    %v285 = vsub.s32 0, %v284
    %v286 = vrot.slane %v281, %v285
    %v288 = vadd.f32 %v268, %v286
    %v289 = vadd.f32 %v273, %v286
    %v290 = vadd.f32 %v278, %v286
    %v291 = vtanh.pop %v288
    %v292 = vtanh.pop %v289
    %v293 = vtanh.pop %v290
    %v294 = vld [vmem:[%s5] sm:$0xff]
    %v295 = vld [vmem:[%s5 + $0x8] sm:$0xff]
    %v296 = vld [vmem:[%s5 + $0x10] sm:$0xff]
    %v297 = vld [vmem:[%s5 + $0x18] sm:$0xff]
    %v298 = vld [vmem:[%s6] sm:$0x1]
    %v300 = vlaneseq
    %v301 = vshrl.u32 %v300, 7
    %v302 = vsub.s32 0, %v301
    %v303 = vrot.slane %v298, %v302
    %v306 = vsel %vm107, %v291, 0
    %v309 = vsel %vm107, %v292, 0
    %v312 = vsel %vm107, %v293, 0
    %314 = vmatprep.subr.mxu0 0.0
    %315 = vmatpush1.msra.mxu0 0.0
    %316 = vmatprep.subr.mxu0 0.0
    %317 = vmatpush1.msra.mxu0 0.0
    %318 = vmatprep.subr.mxu0 0.0
    %319 = vmatpush1.msra.mxu0 0.0
    %320 = vmatprep.subr.mxu0 0.0
    %321 = vmatpush1.msra.mxu0 0.0
    %322 = vmatprep.subr.mxu0 0.0
    %323 = vmatpush1.msra.mxu0 0.0
    %324 = vmatprep.subr.mxu0 0.0
    %325 = vmatpush1.msra.mxu0 0.0
    %326 = vmatprep.subr.mxu0 0.0
    %327 = vmatpush1.msra.mxu0 0.0
    %328 = vmatprep.subr.mxu0 0.0
    %329 = vmatpush1.msra.mxu0 0.0
    %330 = vmatprep.subr.mxu0 0.0
    %331 = vmatpush1.msra.mxu0 0.0
    %332 = vmatprep.subr.mxu0 0.0
    %333 = vmatpush1.msra.mxu0 0.0
    %334 = vmatprep.subr.mxu0 0.0
    %335 = vmatpush1.msra.mxu0 0.0
    %336 = vmatprep.subr.mxu0 0.0
    %337 = vmatpush1.msra.mxu0 0.0
    %338 = vmatprep.subr.mxu0 0.0
    %339 = vmatpush1.msra.mxu0 %v297
    %340 = vmatprep.subr.mxu0 0.0
    %341 = vmatpush1.msra.mxu0 %v296
    %342 = vmatprep.subr.mxu0 0.0
    %343 = vmatpush1.msra.mxu0 %v295
    %344 = vmatprep.subr.mxu0 0.0
    %345 = vmatpush1.msra.mxu0 %v294
    %346 = vmatprep.subr.mxu0 0.0
    %347 = vmatpush2.msra.mxu0 0.0
    %348 = vmatprep.subr.mxu0 0.0
    %349 = vmatpush2.msra.mxu0 0.0
    %350 = vmatprep.subr.mxu0 0.0
    %351 = vmatpush2.msra.mxu0 0.0
    %352 = vmatprep.subr.mxu0 0.0
    %353 = vmatpush2.msra.mxu0 0.0
    %354 = vmatprep.subr.mxu0 0.0
    %355 = vmatpush2.msra.mxu0 0.0
    %356 = vmatprep.subr.mxu0 0.0
    %357 = vmatpush2.msra.mxu0 0.0
    %358 = vmatprep.subr.mxu0 0.0
    %359 = vmatpush2.msra.mxu0 0.0
    %360 = vmatprep.subr.mxu0 0.0
    %361 = vmatpush2.msra.mxu0 0.0
    %362 = vmatprep.subr.mxu0 0.0
    %363 = vmatpush2.msra.mxu0 0.0
    %364 = vmatprep.subr.mxu0 0.0
    %365 = vmatpush2.msra.mxu0 0.0
    %366 = vmatprep.subr.mxu0 0.0
    %367 = vmatpush2.msra.mxu0 0.0
    %368 = vmatprep.subr.mxu0 0.0
    %369 = vmatpush2.msra.mxu0 0.0
    %370 = vmatprep.subr.mxu0 0.0
    %371 = vmatpush2.msra.mxu0 0.0
    %372 = vmatprep.subr.mxu0 0.0
    %373 = vmatpush2.msra.mxu0 0.0
    %374 = vmatprep.subr.mxu0 0.0
    %375 = vmatpush2.msra.mxu0 0.0
    %376 = vmatprep.subr.mxu0 0.0
    %377 = vmatpush2.msra.mxu0 0.0
    %378 = vmatprep.mubr.f32.mxu0 0.0
    %379 = vmatmul.mubr.f32.gmra.mxu0 %v306
    %v380 = vpop.f32.mrf.mxu0
    %v381 = vadd.f32 %v303, %v380
    %v382 = vpop.f32.mrf.mxu0
    %383 = vmatprep.mubr.f32.mxu0 0.0
    %384 = vmatmul.mubr.f32.gmra.mxu0 %v309
    %v385 = vpop.f32.mrf.mxu0
    %v386 = vadd.f32 %v303, %v385
    %v387 = vpop.f32.mrf.mxu0
    %388 = vmatprep.mubr.f32.mxu0 0.0
    %389 = vmatmul.mubr.f32.gmra.mxu0 %v312
    %v390 = vpop.f32.mrf.mxu0
    %v391 = vadd.f32 %v303, %v390
    %v392 = vpop.f32.mrf.mxu0
    %393 = vdwg.mxu0
    %vm394 = vcmask 15360
    %395 = vst.msk [vmem:[%s14] sm:$0xff] %vm394, %v381
    %396 = vst.msk [vmem:[%s14 + $0x8] sm:$0xff] %vm394, %v386
    %vm397 = vcmask 12288
    %398 = vst.msk [vmem:[%s14 + $0x10] sm:$0x1f] %vm397, %v391
    %v399 = vld [vmem:[%s7] sm:$0xff]
    %v400 = vld [vmem:[%s7 + $0x8] sm:$0xff]
    %v401 = vld [vmem:[%s7 + $0x10] sm:$0xff]
    %v402 = vld [vmem:[%s7 + $0x18] sm:$0xff]
    %v403 = vld [vmem:[#allocation2] sm:$0x1]
    %404 = vmatprep.subr.mxu0 0.0
    %405 = vmatpush1.msra.mxu0 0.0
    %406 = vmatprep.subr.mxu0 0.0
    %407 = vmatpush1.msra.mxu0 0.0
    %408 = vmatprep.subr.mxu0 0.0
    %409 = vmatpush1.msra.mxu0 0.0
    %410 = vmatprep.subr.mxu0 0.0
    %411 = vmatpush1.msra.mxu0 0.0
    %412 = vmatprep.subr.mxu0 0.0
    %413 = vmatpush1.msra.mxu0 0.0
    %414 = vmatprep.subr.mxu0 0.0
    %415 = vmatpush1.msra.mxu0 0.0
    %416 = vmatprep.subr.mxu0 0.0
    %417 = vmatpush1.msra.mxu0 0.0
    %418 = vmatprep.subr.mxu0 0.0
    %419 = vmatpush1.msra.mxu0 0.0
    %420 = vmatprep.subr.mxu0 0.0
    %421 = vmatpush1.msra.mxu0 0.0
    %422 = vmatprep.subr.mxu0 0.0
    %423 = vmatpush1.msra.mxu0 0.0
    %424 = vmatprep.subr.mxu0 0.0
    %425 = vmatpush1.msra.mxu0 0.0
    %426 = vmatprep.subr.mxu0 0.0
    %427 = vmatpush1.msra.mxu0 0.0
    %428 = vmatprep.subr.mxu0 0.0
    %429 = vmatpush1.msra.mxu0 %v402
    %430 = vmatprep.subr.mxu0 0.0
    %431 = vmatpush1.msra.mxu0 %v401
    %432 = vmatprep.subr.mxu0 0.0
    %433 = vmatpush1.msra.mxu0 %v400
    %434 = vmatprep.subr.mxu0 0.0
    %435 = vmatpush1.msra.mxu0 %v399
    %436 = vmatprep.subr.mxu0 0.0
    %437 = vmatpush2.msra.mxu0 0.0
    %438 = vmatprep.subr.mxu0 0.0
    %439 = vmatpush2.msra.mxu0 0.0
    %440 = vmatprep.subr.mxu0 0.0
    %441 = vmatpush2.msra.mxu0 0.0
    %442 = vmatprep.subr.mxu0 0.0
    %443 = vmatpush2.msra.mxu0 0.0
    %444 = vmatprep.subr.mxu0 0.0
    %445 = vmatpush2.msra.mxu0 0.0
    %446 = vmatprep.subr.mxu0 0.0
    %447 = vmatpush2.msra.mxu0 0.0
    %448 = vmatprep.subr.mxu0 0.0
    %449 = vmatpush2.msra.mxu0 0.0
    %450 = vmatprep.subr.mxu0 0.0
    %451 = vmatpush2.msra.mxu0 0.0
    %452 = vmatprep.subr.mxu0 0.0
    %453 = vmatpush2.msra.mxu0 0.0
    %454 = vmatprep.subr.mxu0 0.0
    %455 = vmatpush2.msra.mxu0 0.0
    %456 = vmatprep.subr.mxu0 0.0
    %457 = vmatpush2.msra.mxu0 0.0
    %458 = vmatprep.subr.mxu0 0.0
    %459 = vmatpush2.msra.mxu0 0.0
    %460 = vmatprep.subr.mxu0 0.0
    %461 = vmatpush2.msra.mxu0 0.0
    %462 = vmatprep.subr.mxu0 0.0
    %463 = vmatpush2.msra.mxu0 0.0
    %464 = vmatprep.subr.mxu0 0.0
    %465 = vmatpush2.msra.mxu0 0.0
    %466 = vmatprep.subr.mxu0 0.0
    %467 = vmatpush2.msra.mxu0 0.0
    %468 = vmatprep.mubr.f32.mxu0 0.0
    %469 = vmatmul.mubr.f32.gmra.mxu0 %v109
    %v470 = vpop.f32.mrf.mxu0
    %v471 = vadd.f32 %v403, %v470
    %v472 = vpop.f32.mrf.mxu0
    %473 = vdwg.mxu0
    %v474 = vld [vmem:[%s9] sm:$0xff]
    %v475 = vld [vmem:[%s9 + $0x8] sm:$0xff]
    %v476 = vld [vmem:[%s9 + $0x10] sm:$0xff]
    %v477 = vld [vmem:[%s9 + $0x18] sm:$0xff]
    %v478 = vld [vmem:[#allocation4] sm:$0x1]
    %479 = vmatprep.subr.mxu0 0.0
    %480 = vmatpush1.msra.mxu0 0.0
    %481 = vmatprep.subr.mxu0 0.0
    %482 = vmatpush1.msra.mxu0 0.0
    %483 = vmatprep.subr.mxu0 0.0
    %484 = vmatpush1.msra.mxu0 0.0
    %485 = vmatprep.subr.mxu0 0.0
    %486 = vmatpush1.msra.mxu0 0.0
    %487 = vmatprep.subr.mxu0 0.0
    %488 = vmatpush1.msra.mxu0 0.0
    %489 = vmatprep.subr.mxu0 0.0
    %490 = vmatpush1.msra.mxu0 0.0
    %491 = vmatprep.subr.mxu0 0.0
    %492 = vmatpush1.msra.mxu0 0.0
    %493 = vmatprep.subr.mxu0 0.0
    %494 = vmatpush1.msra.mxu0 0.0
    %495 = vmatprep.subr.mxu0 0.0
    %496 = vmatpush1.msra.mxu0 0.0
    %497 = vmatprep.subr.mxu0 0.0
    %498 = vmatpush1.msra.mxu0 0.0
    %499 = vmatprep.subr.mxu0 0.0
    %500 = vmatpush1.msra.mxu0 0.0
    %501 = vmatprep.subr.mxu0 0.0
    %502 = vmatpush1.msra.mxu0 0.0
    %503 = vmatprep.subr.mxu0 0.0
    %504 = vmatpush1.msra.mxu0 %v477
    %505 = vmatprep.subr.mxu0 0.0
    %506 = vmatpush1.msra.mxu0 %v476
    %507 = vmatprep.subr.mxu0 0.0
    %508 = vmatpush1.msra.mxu0 %v475
    %509 = vmatprep.subr.mxu0 0.0
    %510 = vmatpush1.msra.mxu0 %v474
    %511 = vmatprep.subr.mxu0 0.0
    %512 = vmatpush2.msra.mxu0 0.0
    %513 = vmatprep.subr.mxu0 0.0
    %514 = vmatpush2.msra.mxu0 0.0
    %515 = vmatprep.subr.mxu0 0.0
    %516 = vmatpush2.msra.mxu0 0.0
    %517 = vmatprep.subr.mxu0 0.0
    %518 = vmatpush2.msra.mxu0 0.0
    %519 = vmatprep.subr.mxu0 0.0
    %520 = vmatpush2.msra.mxu0 0.0
    %521 = vmatprep.subr.mxu0 0.0
    %522 = vmatpush2.msra.mxu0 0.0
    %523 = vmatprep.subr.mxu0 0.0
    %524 = vmatpush2.msra.mxu0 0.0
    %525 = vmatprep.subr.mxu0 0.0
    %526 = vmatpush2.msra.mxu0 0.0
    %527 = vmatprep.subr.mxu0 0.0
    %528 = vmatpush2.msra.mxu0 0.0
    %529 = vmatprep.subr.mxu0 0.0
    %530 = vmatpush2.msra.mxu0 0.0
    %531 = vmatprep.subr.mxu0 0.0
    %532 = vmatpush2.msra.mxu0 0.0
    %533 = vmatprep.subr.mxu0 0.0
    %534 = vmatpush2.msra.mxu0 0.0
    %535 = vmatprep.subr.mxu0 0.0
    %536 = vmatpush2.msra.mxu0 0.0
    %537 = vmatprep.subr.mxu0 0.0
    %538 = vmatpush2.msra.mxu0 0.0
    %539 = vmatprep.subr.mxu0 0.0
    %540 = vmatpush2.msra.mxu0 0.0
    %541 = vmatprep.subr.mxu0 0.0
    %542 = vmatpush2.msra.mxu0 0.0
    %543 = vmatprep.mubr.f32.mxu0 0.0
    %544 = vmatmul.mubr.f32.gmra.mxu0 %v109
    %v545 = vpop.f32.mrf.mxu0
    %v546 = vadd.f32 %v478, %v545
    %v547 = vpop.f32.mrf.mxu0
    %548 = vdwg.mxu0
    %v549 = vld [vmem:[#allocation6] sm:$0xff]
    %v550 = vld [vmem:[#allocation6 + $0x8] sm:$0xff]
    %v551 = vld [vmem:[#allocation6 + $0x10] sm:$0xff]
    %v552 = vld [vmem:[#allocation6 + $0x18] sm:$0xff]
    %v554 = vsel %vm107, %v546, 0
    %556 = vmatprep.subr.mxu0 0.0
    %557 = vmatpush1.msra.mxu0 0.0
    %558 = vmatprep.subr.mxu0 0.0
    %559 = vmatpush1.msra.mxu0 0.0
    %560 = vmatprep.subr.mxu0 0.0
    %561 = vmatpush1.msra.mxu0 0.0
    %562 = vmatprep.subr.mxu0 0.0
    %563 = vmatpush1.msra.mxu0 0.0
    %564 = vmatprep.subr.mxu0 0.0
    %565 = vmatpush1.msra.mxu0 0.0
    %566 = vmatprep.subr.mxu0 0.0
    %567 = vmatpush1.msra.mxu0 0.0
    %568 = vmatprep.subr.mxu0 0.0
    %569 = vmatpush1.msra.mxu0 0.0
    %570 = vmatprep.subr.mxu0 0.0
    %571 = vmatpush1.msra.mxu0 0.0
    %572 = vmatprep.subr.mxu0 0.0
    %573 = vmatpush1.msra.mxu0 0.0
    %574 = vmatprep.subr.mxu0 0.0
    %575 = vmatpush1.msra.mxu0 0.0
    %576 = vmatprep.subr.mxu0 0.0
    %577 = vmatpush1.msra.mxu0 0.0
    %578 = vmatprep.subr.mxu0 0.0
    %579 = vmatpush1.msra.mxu0 0.0
    %580 = vmatprep.subr.mxu0 0.0
    %581 = vmatpush1.msra.mxu0 %v552
    %582 = vmatprep.subr.mxu0 0.0
    %583 = vmatpush1.msra.mxu0 %v551
    %584 = vmatprep.subr.mxu0 0.0
    %585 = vmatpush1.msra.mxu0 %v550
    %586 = vmatprep.subr.mxu0 0.0
    %587 = vmatpush1.msra.mxu0 %v549
    %588 = vmatprep.subr.mxu0 0.0
    %589 = vmatpush2.msra.mxu0 0.0
    %590 = vmatprep.subr.mxu0 0.0
    %591 = vmatpush2.msra.mxu0 0.0
    %592 = vmatprep.subr.mxu0 0.0
    %593 = vmatpush2.msra.mxu0 0.0
    %594 = vmatprep.subr.mxu0 0.0
    %595 = vmatpush2.msra.mxu0 0.0
    %596 = vmatprep.subr.mxu0 0.0
    %597 = vmatpush2.msra.mxu0 0.0
    %598 = vmatprep.subr.mxu0 0.0
    %599 = vmatpush2.msra.mxu0 0.0
    %600 = vmatprep.subr.mxu0 0.0
    %601 = vmatpush2.msra.mxu0 0.0
    %602 = vmatprep.subr.mxu0 0.0
    %603 = vmatpush2.msra.mxu0 0.0
    %604 = vmatprep.subr.mxu0 0.0
    %605 = vmatpush2.msra.mxu0 0.0
    %606 = vmatprep.subr.mxu0 0.0
    %607 = vmatpush2.msra.mxu0 0.0
    %608 = vmatprep.subr.mxu0 0.0
    %609 = vmatpush2.msra.mxu0 0.0
    %610 = vmatprep.subr.mxu0 0.0
    %611 = vmatpush2.msra.mxu0 0.0
    %612 = vmatprep.subr.mxu0 0.0
    %613 = vmatpush2.msra.mxu0 0.0
    %614 = vmatprep.subr.mxu0 0.0
    %615 = vmatpush2.msra.mxu0 0.0
    %616 = vmatprep.subr.mxu0 0.0
    %617 = vmatpush2.msra.mxu0 0.0
    %618 = vmatprep.subr.mxu0 0.0
    %619 = vmatpush2.msra.mxu0 0.0
    %620 = vmatprep.mubr.f32.mxu0 0.0
    %621 = vmatmul.mubr.f32.gmra.mxu0 %v554
    %v622 = vpop.f32.mrf.mxu0
    %v623 = vadd.f32 0.0, %v622
    %v624 = vpop.f32.mrf.mxu0
    %625 = vdwg.mxu0
    %vm626 = vcmask 253952
    %627 = vst.msk [vmem:[%s15] sm:$0x1] %vm626, %v623
    %v628 = vld [vmem:[%s12] sm:$0xff]
    %v629 = vld [vmem:[%s12 + $0x8] sm:$0xff]
    %v630 = vld [vmem:[%s12 + $0x10] sm:$0xff]
    %v631 = vld [vmem:[%s12 + $0x18] sm:$0xff]
    %v633 = vsel %vm107, %v471, 0
    %635 = vmatprep.subr.mxu0 0.0
    %636 = vmatpush1.msra.mxu0 0.0
    %637 = vmatprep.subr.mxu0 0.0
    %638 = vmatpush1.msra.mxu0 0.0
    %639 = vmatprep.subr.mxu0 0.0
    %640 = vmatpush1.msra.mxu0 0.0
    %641 = vmatprep.subr.mxu0 0.0
    %642 = vmatpush1.msra.mxu0 0.0
    %643 = vmatprep.subr.mxu0 0.0
    %644 = vmatpush1.msra.mxu0 0.0
    %645 = vmatprep.subr.mxu0 0.0
    %646 = vmatpush1.msra.mxu0 0.0
    %647 = vmatprep.subr.mxu0 0.0
    %648 = vmatpush1.msra.mxu0 0.0
    %649 = vmatprep.subr.mxu0 0.0
    %650 = vmatpush1.msra.mxu0 0.0
    %651 = vmatprep.subr.mxu0 0.0
    %652 = vmatpush1.msra.mxu0 0.0
    %653 = vmatprep.subr.mxu0 0.0
    %654 = vmatpush1.msra.mxu0 0.0
    %655 = vmatprep.subr.mxu0 0.0
    %656 = vmatpush1.msra.mxu0 0.0
    %657 = vmatprep.subr.mxu0 0.0
    %658 = vmatpush1.msra.mxu0 0.0
    %659 = vmatprep.subr.mxu0 0.0
    %660 = vmatpush1.msra.mxu0 %v631
    %661 = vmatprep.subr.mxu0 0.0
    %662 = vmatpush1.msra.mxu0 %v630
    %663 = vmatprep.subr.mxu0 0.0
    %664 = vmatpush1.msra.mxu0 %v629
    %665 = vmatprep.subr.mxu0 0.0
    %666 = vmatpush1.msra.mxu0 %v628
    %667 = vmatprep.subr.mxu0 0.0
    %668 = vmatpush2.msra.mxu0 0.0
    %669 = vmatprep.subr.mxu0 0.0
    %670 = vmatpush2.msra.mxu0 0.0
    %671 = vmatprep.subr.mxu0 0.0
    %672 = vmatpush2.msra.mxu0 0.0
    %673 = vmatprep.subr.mxu0 0.0
    %674 = vmatpush2.msra.mxu0 0.0
    %675 = vmatprep.subr.mxu0 0.0
    %676 = vmatpush2.msra.mxu0 0.0
    %677 = vmatprep.subr.mxu0 0.0
    %678 = vmatpush2.msra.mxu0 0.0
    %679 = vmatprep.subr.mxu0 0.0
    %680 = vmatpush2.msra.mxu0 0.0
    %681 = vmatprep.subr.mxu0 0.0
    %682 = vmatpush2.msra.mxu0 0.0
    %683 = vmatprep.subr.mxu0 0.0
    %684 = vmatpush2.msra.mxu0 0.0
    %685 = vmatprep.subr.mxu0 0.0
    %686 = vmatpush2.msra.mxu0 0.0
    %687 = vmatprep.subr.mxu0 0.0
    %688 = vmatpush2.msra.mxu0 0.0
    %689 = vmatprep.subr.mxu0 0.0
    %690 = vmatpush2.msra.mxu0 0.0
    %691 = vmatprep.subr.mxu0 0.0
    %692 = vmatpush2.msra.mxu0 0.0
    %693 = vmatprep.subr.mxu0 0.0
    %694 = vmatpush2.msra.mxu0 0.0
    %695 = vmatprep.subr.mxu0 0.0
    %696 = vmatpush2.msra.mxu0 0.0
    %697 = vmatprep.subr.mxu0 0.0
    %698 = vmatpush2.msra.mxu0 0.0
    %699 = vmatprep.mubr.f32.mxu0 0.0
    %700 = vmatmul.mubr.f32.gmra.mxu0 %v633
    %v701 = vpop.f32.mrf.mxu0
    %v702 = vadd.f32 0.0, %v701
    %v703 = vpop.f32.mrf.mxu0
    %704 = vdwg.mxu0
    %705 = vst.msk [vmem:[%s16] sm:$0x1] %vm626, %v702
    %v706 = vld [vmem:[#allocation7] sm:$0xff]
    %v707 = vld [vmem:[#allocation7 + $0x8] sm:$0xff]
    %v708 = vld [vmem:[#allocation7 + $0x10] sm:$0xff]
    %v709 = vld [vmem:[#allocation7 + $0x18] sm:$0xff]
    %710 = vmatprep.subr.mxu0 0.0
    %711 = vmatpush1.msra.mxu0 0.0
    %712 = vmatprep.subr.mxu0 0.0
    %713 = vmatpush1.msra.mxu0 0.0
    %714 = vmatprep.subr.mxu0 0.0
    %715 = vmatpush1.msra.mxu0 0.0
    %716 = vmatprep.subr.mxu0 0.0
    %717 = vmatpush1.msra.mxu0 0.0
    %718 = vmatprep.subr.mxu0 0.0
    %719 = vmatpush1.msra.mxu0 0.0
    %720 = vmatprep.subr.mxu0 0.0
    %721 = vmatpush1.msra.mxu0 0.0
    %722 = vmatprep.subr.mxu0 0.0
    %723 = vmatpush1.msra.mxu0 0.0
    %724 = vmatprep.subr.mxu0 0.0
    %725 = vmatpush1.msra.mxu0 0.0
    %726 = vmatprep.subr.mxu0 0.0
    %727 = vmatpush1.msra.mxu0 0.0
    %728 = vmatprep.subr.mxu0 0.0
    %729 = vmatpush1.msra.mxu0 0.0
    %730 = vmatprep.subr.mxu0 0.0
    %731 = vmatpush1.msra.mxu0 0.0
    %732 = vmatprep.subr.mxu0 0.0
    %733 = vmatpush1.msra.mxu0 0.0
    %734 = vmatprep.subr.mxu0 0.0
    %735 = vmatpush1.msra.mxu0 %v709
    %736 = vmatprep.subr.mxu0 0.0
    %737 = vmatpush1.msra.mxu0 %v708
    %738 = vmatprep.subr.mxu0 0.0
    %739 = vmatpush1.msra.mxu0 %v707
    %740 = vmatprep.subr.mxu0 0.0
    %741 = vmatpush1.msra.mxu0 %v706
    %742 = vmatprep.subr.mxu0 0.0
    %743 = vmatpush2.msra.mxu0 0.0
    %744 = vmatprep.subr.mxu0 0.0
    %745 = vmatpush2.msra.mxu0 0.0
    %746 = vmatprep.subr.mxu0 0.0
    %747 = vmatpush2.msra.mxu0 0.0
    %748 = vmatprep.subr.mxu0 0.0
    %749 = vmatpush2.msra.mxu0 0.0
    %750 = vmatprep.subr.mxu0 0.0
    %751 = vmatpush2.msra.mxu0 0.0
    %752 = vmatprep.subr.mxu0 0.0
    %753 = vmatpush2.msra.mxu0 0.0
    %754 = vmatprep.subr.mxu0 0.0
    %755 = vmatpush2.msra.mxu0 0.0
    %756 = vmatprep.subr.mxu0 0.0
    %757 = vmatpush2.msra.mxu0 0.0
    %758 = vmatprep.subr.mxu0 0.0
    %759 = vmatpush2.msra.mxu0 0.0
    %760 = vmatprep.subr.mxu0 0.0
    %761 = vmatpush2.msra.mxu0 0.0
    %762 = vmatprep.subr.mxu0 0.0
    %763 = vmatpush2.msra.mxu0 0.0
    %764 = vmatprep.subr.mxu0 0.0
    %765 = vmatpush2.msra.mxu0 0.0
    %766 = vmatprep.subr.mxu0 0.0
    %767 = vmatpush2.msra.mxu0 0.0
    %768 = vmatprep.subr.mxu0 0.0
    %769 = vmatpush2.msra.mxu0 0.0
    %770 = vmatprep.subr.mxu0 0.0
    %771 = vmatpush2.msra.mxu0 0.0
    %772 = vmatprep.subr.mxu0 0.0
    %773 = vmatpush2.msra.mxu0 0.0
    %774 = vmatprep.mubr.f32.mxu0 0.0
    %775 = vmatmul.mubr.f32.gmra.mxu0 %v109
    %v776 = vpop.f32.mrf.mxu0
    %v777 = vadd.f32 0.0, %v776
    %v778 = vpop.f32.mrf.mxu0
    %779 = vdwg.mxu0
    %780 = vst.msk [vmem:[%s17] sm:$0x1] %vm626, %v777
    // Predicated region
    $region74: #{_selected_forward_impl.6} parent=1 // pred_check
      _
    $region75: #{_selected_forward_impl.6} parent=1 // pred_check_branch
      %782 = sbr.rel (0) target = $region77
    $region76: #{_selected_forward_impl.6} parent=1 // pred_region
      _
    $region77: #{_selected_forward_impl.6} parent=1 // pred_fallthru
      _
    // Predicated region
    $region78: #{_selected_forward_impl.6} parent=1 // pred_check
      _
    $region79: #{_selected_forward_impl.6} parent=1 // pred_check_branch
      %784 = sbr.rel (0) target = $region81
    $region80: #{_selected_forward_impl.6} parent=1 // pred_region
      _
    $region81: #{_selected_forward_impl.6} parent=1 // pred_fallthru
      _
    // Predicated region
    $region82: #{_selected_forward_impl.6} parent=1 // pred_check
      _
    $region83: #{_selected_forward_impl.6} parent=1 // pred_check_branch
      %786 = sbr.rel (0) target = $region85
    $region84: #{_selected_forward_impl.6} parent=1 // pred_region
      _
    $region85: #{_selected_forward_impl.6} parent=1 // pred_fallthru
      _
    // Predicated region
    $region86: #{_selected_forward_impl.6} parent=1 // pred_check
      _
    $region87: #{_selected_forward_impl.6} parent=1 // pred_check_branch
      %788 = sbr.rel (0) target = $region89
    $region88: #{_selected_forward_impl.6} parent=1 // pred_region
      _
    $region89: #{_selected_forward_impl.6} parent=1 // pred_fallthru
      _
    // Predicated region
    $region90: #{_selected_forward_impl.6} parent=1 // pred_check
      _
    $region91: #{_selected_forward_impl.6} parent=1 // pred_check_branch
      %790 = sbr.rel (0) target = $region93
    $region92: #{_selected_forward_impl.6} parent=1 // pred_region
      _
    $region93: #{_selected_forward_impl.6} parent=1 // pred_fallthru
      _
    // Predicated region
    $region94: #{_selected_forward_impl.6} parent=1 // pred_check
      _
    $region95: #{_selected_forward_impl.6} parent=1 // pred_check_branch
      %792 = sbr.rel (0) target = $region97
    $region96: #{_selected_forward_impl.6} parent=1 // pred_region
      _
    $region97: #{_selected_forward_impl.6} parent=1 // pred_fallthru
      _
    // Predicated region
    $region98: #{_selected_forward_impl.6} parent=1 // pred_check
      _
    $region99: #{_selected_forward_impl.6} parent=1 // pred_check_branch
      %794 = sbr.rel (0) target = $region101
    $region100: #{_selected_forward_impl.6} parent=1 // pred_region
      _
    $region101: #{_selected_forward_impl.6} parent=1 // pred_fallthru
      _
    // Predicated region
    $region102: #{_selected_forward_impl.6} parent=1 // pred_check
      _
    $region103: #{_selected_forward_impl.6} parent=1 // pred_check_branch
      %796 = sbr.rel (0) target = $region105
    $region104: #{_selected_forward_impl.6} parent=1 // pred_region
      _
    $region105: #{_selected_forward_impl.6} parent=1 // pred_fallthru
      _
    %797 = vsyncpa [#allocation3], 1
    %798 = vsyncpa [#allocation5], 1
    %799 = vsyncpa [#allocation8], 1

// kernel: _selected_forward_impl.7
$region0: #{_selected_forward_impl.7}
  #allocation0 [shape = 'u32[]', space=smem, size = 0x4, offset = 0x4, fixed_abs, tag = 'smem constant byte address 0x4 - core index']
  #allocation1 [shape = 'u32[144,128]{1,0:T(1,128)}', space=vmem, size = 0x12000, scoped, tag = 'internal scratch']
  %s0 = inlined_call_operand.vmem [shape: f32[16,1], index: 0, kind: input, shape index: {}]
  %s1 = inlined_call_operand.vmem [shape: f32[16,5], index: 1, kind: input, shape index: {}]
  %s2 = inlined_call_operand.vmem [shape: f32[16,5,32], index: 2, kind: input, shape index: {}]
  %s3 = inlined_call_operand.vmem [shape: f32[1,64], index: 3, kind: input, shape index: {}]
  %s4 = inlined_call_operand.vmem [shape: f32[1,64], index: 4, kind: input, shape index: {}]
  %s5 = inlined_call_operand.vmem [shape: f32[64,32], index: 5, kind: input, shape index: {}]
  %s6 = inlined_call_operand.vmem [shape: f32[1,32], index: 6, kind: input, shape index: {}]
  %s7 = inlined_call_operand.vmem [shape: f32[16,32], index: 7, kind: output, shape index: {0}]
  %s8 = inlined_call_operand.vmem [shape: f32[16,32], index: 8, kind: output, shape index: {1}]
  %9 = xla_tuple %s7, %s8
  %s10 = sld [smem:[#allocation0]]
  $region46: #{_selected_forward_impl.7} parent=0
    _
  %s12 = ssub.s32 1, %s10
  %s13 = scalar_select 0, %s12, %s10
  // Predicated region
  $region2: #{_selected_forward_impl.7} parent=0 // pred_check
    _
  $region3: #{_selected_forward_impl.7} parent=0 // pred_check_branch
    %15 = sbr.rel (0) target = $region5
  $region4: #{_selected_forward_impl.7} parent=0 // pred_region
    _
  $region5: #{_selected_forward_impl.7} parent=0 // pred_fallthru
    _
  // Predicated region
  $region6: #{_selected_forward_impl.7} parent=0 // pred_check
    _
  $region7: #{_selected_forward_impl.7} parent=0 // pred_check_branch
    %17 = sbr.rel (0) target = $region9
  $region8: #{_selected_forward_impl.7} parent=0 // pred_region
    _
  $region9: #{_selected_forward_impl.7} parent=0 // pred_fallthru
    _
  // Predicated region
  $region10: #{_selected_forward_impl.7} parent=0 // pred_check
    _
  $region11: #{_selected_forward_impl.7} parent=0 // pred_check_branch
    %19 = sbr.rel (0) target = $region13
  $region12: #{_selected_forward_impl.7} parent=0 // pred_region
    _
  $region13: #{_selected_forward_impl.7} parent=0 // pred_fallthru
    _
  // Predicated region
  $region14: #{_selected_forward_impl.7} parent=0 // pred_check
    _
  $region15: #{_selected_forward_impl.7} parent=0 // pred_check_branch
    %21 = sbr.rel (0) target = $region17
  $region16: #{_selected_forward_impl.7} parent=0 // pred_region
    _
  $region17: #{_selected_forward_impl.7} parent=0 // pred_fallthru
    _
  // Predicated region
  $region18: #{_selected_forward_impl.7} parent=0 // pred_check
    _
  $region19: #{_selected_forward_impl.7} parent=0 // pred_check_branch
    %23 = sbr.rel (0) target = $region21
  $region20: #{_selected_forward_impl.7} parent=0 // pred_region
    _
  $region21: #{_selected_forward_impl.7} parent=0 // pred_fallthru
    _
  // Predicated region
  $region22: #{_selected_forward_impl.7} parent=0 // pred_check
    _
  $region23: #{_selected_forward_impl.7} parent=0 // pred_check_branch
    %25 = sbr.rel (0) target = $region25
  $region24: #{_selected_forward_impl.7} parent=0 // pred_region
    _
  $region25: #{_selected_forward_impl.7} parent=0 // pred_fallthru
    _
  // Predicated region
  $region26: #{_selected_forward_impl.7} parent=0 // pred_check
    _
  $region27: #{_selected_forward_impl.7} parent=0 // pred_check_branch
    %27 = sbr.rel (0) target = $region29
  $region28: #{_selected_forward_impl.7} parent=0 // pred_region
    _
  $region29: #{_selected_forward_impl.7} parent=0 // pred_fallthru
    _
  %v28 = vld [vmem:[%s0] sm:$0xff]
  %v29 = vld [vmem:[%s0 + $0x8] sm:$0xff]
  %v30 = vld [vmem:[%s3] sm:$0x1]
  %32 = vset.pattern.permute.xlu0 0
  %33 = vperm.xlu0 %32, %v28
  %v34 = vpop.permute.xlu0 %33
  %37 = vset.pattern.permute.xlu0 0
  %38 = vperm.xlu0 %37, %v29
  %v39 = vpop.permute.xlu0 %38
  %v42 = vlaneseq
  %v43 = vshrl.u32 %v42, 7
  %v44 = vsub.s32 0, %v43
  %v45 = vrot.slane %v30, %v44
  %v47 = vmul.f32 %v34, %v45
  %v48 = vmul.f32 %v39, %v45
  %v49 = vld [vmem:[%s4] sm:$0x1]
  %v51 = vlaneseq
  %v52 = vshrl.u32 %v51, 7
  %v53 = vsub.s32 0, %v52
  %v54 = vrot.slane %v49, %v53
  %v56 = vadd.f32 %v47, %v54
  %v57 = vadd.f32 %v48, %v54
  %v58 = vmul.f32 %v56, %v56
  %v59 = vmul.f32 %v57, %v57
  %v60 = vtanh.pop %v58
  %v61 = vtanh.pop %v59
  %v62 = vsub.f32 1.0, %v60
  %v63 = vsub.f32 1.0, %v61
  %v64 = vld [vmem:[%s5] sm:$0xff]
  %v65 = vld [vmem:[%s5 + $0x8] sm:$0xff]
  %v66 = vld [vmem:[%s5 + $0x10] sm:$0xff]
  %v67 = vld [vmem:[%s5 + $0x18] sm:$0xff]
  %v68 = vld [vmem:[%s5 + $0x20] sm:$0xff]
  %v69 = vld [vmem:[%s5 + $0x28] sm:$0xff]
  %v70 = vld [vmem:[%s5 + $0x30] sm:$0xff]
  %v71 = vld [vmem:[%s5 + $0x38] sm:$0xff]
  %v72 = vld [vmem:[%s6] sm:$0x1]
  %v74 = vlaneseq
  %v75 = vshrl.u32 %v74, 7
  %v76 = vsub.s32 0, %v75
  %v77 = vrot.slane %v72, %v76
  %vm79 = vcmask 523264
  %v81 = vsel %vm79, %v62, 0
  %v84 = vsel %vm79, %v63, 0
  %86 = vmatprep.subr.mxu0 0.0
  %87 = vmatpush1.msra.mxu0 0.0
  %88 = vmatprep.subr.mxu0 0.0
  %89 = vmatpush1.msra.mxu0 0.0
  %90 = vmatprep.subr.mxu0 0.0
  %91 = vmatpush1.msra.mxu0 0.0
  %92 = vmatprep.subr.mxu0 0.0
  %93 = vmatpush1.msra.mxu0 0.0
  %94 = vmatprep.subr.mxu0 0.0
  %95 = vmatpush1.msra.mxu0 0.0
  %96 = vmatprep.subr.mxu0 0.0
  %97 = vmatpush1.msra.mxu0 0.0
  %98 = vmatprep.subr.mxu0 0.0
  %99 = vmatpush1.msra.mxu0 0.0
  %100 = vmatprep.subr.mxu0 0.0
  %101 = vmatpush1.msra.mxu0 0.0
  %102 = vmatprep.subr.mxu0 0.0
  %103 = vmatpush1.msra.mxu0 %v71
  %104 = vmatprep.subr.mxu0 0.0
  %105 = vmatpush1.msra.mxu0 %v70
  %106 = vmatprep.subr.mxu0 0.0
  %107 = vmatpush1.msra.mxu0 %v69
  %108 = vmatprep.subr.mxu0 0.0
  %109 = vmatpush1.msra.mxu0 %v68
  %110 = vmatprep.subr.mxu0 0.0
  %111 = vmatpush1.msra.mxu0 %v67
  %112 = vmatprep.subr.mxu0 0.0
  %113 = vmatpush1.msra.mxu0 %v66
  %114 = vmatprep.subr.mxu0 0.0
  %115 = vmatpush1.msra.mxu0 %v65
  %116 = vmatprep.subr.mxu0 0.0
  %117 = vmatpush1.msra.mxu0 %v64
  %118 = vmatprep.subr.mxu0 0.0
  %119 = vmatpush2.msra.mxu0 0.0
  %120 = vmatprep.subr.mxu0 0.0
  %121 = vmatpush2.msra.mxu0 0.0
  %122 = vmatprep.subr.mxu0 0.0
  %123 = vmatpush2.msra.mxu0 0.0
  %124 = vmatprep.subr.mxu0 0.0
  %125 = vmatpush2.msra.mxu0 0.0
  %126 = vmatprep.subr.mxu0 0.0
  %127 = vmatpush2.msra.mxu0 0.0
  %128 = vmatprep.subr.mxu0 0.0
  %129 = vmatpush2.msra.mxu0 0.0
  %130 = vmatprep.subr.mxu0 0.0
  %131 = vmatpush2.msra.mxu0 0.0
  %132 = vmatprep.subr.mxu0 0.0
  %133 = vmatpush2.msra.mxu0 0.0
  %134 = vmatprep.subr.mxu0 0.0
  %135 = vmatpush2.msra.mxu0 0.0
  %136 = vmatprep.subr.mxu0 0.0
  %137 = vmatpush2.msra.mxu0 0.0
  %138 = vmatprep.subr.mxu0 0.0
  %139 = vmatpush2.msra.mxu0 0.0
  %140 = vmatprep.subr.mxu0 0.0
  %141 = vmatpush2.msra.mxu0 0.0
  %142 = vmatprep.subr.mxu0 0.0
  %143 = vmatpush2.msra.mxu0 0.0
  %144 = vmatprep.subr.mxu0 0.0
  %145 = vmatpush2.msra.mxu0 0.0
  %146 = vmatprep.subr.mxu0 0.0
  %147 = vmatpush2.msra.mxu0 0.0
  %148 = vmatprep.subr.mxu0 0.0
  %149 = vmatpush2.msra.mxu0 0.0
  %150 = vmatprep.mubr.f32.mxu0 0.0
  %151 = vmatmul.mubr.f32.gmra.mxu0 %v81
  %v152 = vpop.f32.mrf.mxu0
  %v153 = vadd.f32 %v77, %v152
  %v154 = vpop.f32.mrf.mxu0
  %155 = vmatprep.mubr.f32.mxu0 0.0
  %156 = vmatmul.mubr.f32.gmra.mxu0 %v84
  %v157 = vpop.f32.mrf.mxu0
  %v158 = vadd.f32 %v77, %v157
  %v159 = vpop.f32.mrf.mxu0
  %160 = vdwg.mxu0
  %vm161 = vcmask 261120
  %162 = vst.msk [vmem:[%s8] sm:$0xff] %vm161, %v153
  %163 = vst.msk [vmem:[%s8 + $0x8] sm:$0xff] %vm161, %v158
  %v164 = vld [vmem:[%s1] sm:$0xff]
  %v165 = vld [vmem:[%s1 + $0x8] sm:$0xff]
  %v166 = vlaneseq
  %v167 = vshrl.u32 %v166, 7
  %v168 = vsub.s32 0, %v167
  %v169 = vrot.slane %v164, %v168
  %171 = vbcast.lane.b32.xlu0 %v169, 256
  %v172 = vpop.permute.xlu0 %171
  %v173 = vlaneseq
  %v174 = vshrl.u32 %v173, 7
  %v175 = vsub.s32 1, %v174
  %v176 = vrot.slane %v164, %v175
  %178 = vbcast.lane.b32.xlu0 %v176, 256
  %v179 = vpop.permute.xlu0 %178
  %v180 = vlaneseq
  %v181 = vshrl.u32 %v180, 7
  %v182 = vsub.s32 2, %v181
  %v183 = vrot.slane %v164, %v182
  %185 = vbcast.lane.b32.xlu0 %v183, 256
  %v186 = vpop.permute.xlu0 %185
  %v187 = vlaneseq
  %v188 = vshrl.u32 %v187, 7
  %v189 = vsub.s32 3, %v188
  %v190 = vrot.slane %v164, %v189
  %192 = vbcast.lane.b32.xlu0 %v190, 256
  %v193 = vpop.permute.xlu0 %192
  %v194 = vlaneseq
  %v195 = vshrl.u32 %v194, 7
  %v196 = vsub.s32 4, %v195
  %v197 = vrot.slane %v164, %v196
  %199 = vbcast.lane.b32.xlu0 %v197, 256
  %v200 = vpop.permute.xlu0 %199
  %v201 = vlaneseq
  %v202 = vshrl.u32 %v201, 7
  %v203 = vsub.s32 5, %v202
  %v204 = vrot.slane %v164, %v203
  %206 = vbcast.lane.b32.xlu0 %v204, 256
  %v207 = vpop.permute.xlu0 %206
  %v208 = vlaneseq
  %v209 = vshrl.u32 %v208, 7
  %v210 = vsub.s32 6, %v209
  %v211 = vrot.slane %v164, %v210
  %213 = vbcast.lane.b32.xlu0 %v211, 256
  %v214 = vpop.permute.xlu0 %213
  %v215 = vlaneseq
  %v216 = vshrl.u32 %v215, 7
  %v217 = vsub.s32 7, %v216
  %v218 = vrot.slane %v164, %v217
  %220 = vbcast.lane.b32.xlu0 %v218, 256
  %v221 = vpop.permute.xlu0 %220
  %v222 = vlaneseq
  %v223 = vshrl.u32 %v222, 7
  %v224 = vsub.s32 0, %v223
  %v225 = vrot.slane %v165, %v224
  %227 = vbcast.lane.b32.xlu0 %v225, 256
  %v228 = vpop.permute.xlu0 %227
  %v229 = vlaneseq
  %v230 = vshrl.u32 %v229, 7
  %v231 = vsub.s32 1, %v230
  %v232 = vrot.slane %v165, %v231
  %234 = vbcast.lane.b32.xlu0 %v232, 256
  %v235 = vpop.permute.xlu0 %234
  %v236 = vlaneseq
  %v237 = vshrl.u32 %v236, 7
  %v238 = vsub.s32 2, %v237
  %v239 = vrot.slane %v165, %v238
  %241 = vbcast.lane.b32.xlu0 %v239, 256
  %v242 = vpop.permute.xlu0 %241
  %v243 = vlaneseq
  %v244 = vshrl.u32 %v243, 7
  %v245 = vsub.s32 3, %v244
  %v246 = vrot.slane %v165, %v245
  %248 = vbcast.lane.b32.xlu0 %v246, 256
  %v249 = vpop.permute.xlu0 %248
  %v250 = vlaneseq
  %v251 = vshrl.u32 %v250, 7
  %v252 = vsub.s32 4, %v251
  %v253 = vrot.slane %v165, %v252
  %255 = vbcast.lane.b32.xlu0 %v253, 256
  %v256 = vpop.permute.xlu0 %255
  %v257 = vlaneseq
  %v258 = vshrl.u32 %v257, 7
  %v259 = vsub.s32 5, %v258
  %v260 = vrot.slane %v165, %v259
  %262 = vbcast.lane.b32.xlu0 %v260, 256
  %v263 = vpop.permute.xlu0 %262
  %v264 = vlaneseq
  %v265 = vshrl.u32 %v264, 7
  %v266 = vsub.s32 6, %v265
  %v267 = vrot.slane %v165, %v266
  %269 = vbcast.lane.b32.xlu0 %v267, 256
  %v270 = vpop.permute.xlu0 %269
  %v271 = vlaneseq
  %v272 = vshrl.u32 %v271, 7
  %v273 = vsub.s32 7, %v272
  %v274 = vrot.slane %v165, %v273
  %276 = vbcast.lane.b32.xlu0 %v274, 256
  %v277 = vpop.permute.xlu0 %276
  %v278 = vld [vmem:[%s2] sm:$0x1f]
  %v279 = vld [vmem:[%s2 + $0x8] sm:$0x1f]
  %v280 = vld [vmem:[%s2 + $0x10] sm:$0x1f]
  %v281 = vld [vmem:[%s2 + $0x18] sm:$0x1f]
  %v282 = vld [vmem:[%s2 + $0x20] sm:$0x1f]
  %v283 = vld [vmem:[%s2 + $0x28] sm:$0x1f]
  %v284 = vld [vmem:[%s2 + $0x30] sm:$0x1f]
  %v285 = vld [vmem:[%s2 + $0x38] sm:$0x1f]
  %v286 = vld [vmem:[%s2 + $0x40] sm:$0x1f]
  %v287 = vld [vmem:[%s2 + $0x48] sm:$0x1f]
  %v288 = vld [vmem:[%s2 + $0x50] sm:$0x1f]
  %v289 = vld [vmem:[%s2 + $0x58] sm:$0x1f]
  %v290 = vld [vmem:[%s2 + $0x60] sm:$0x1f]
  %v291 = vld [vmem:[%s2 + $0x68] sm:$0x1f]
  %v292 = vld [vmem:[%s2 + $0x70] sm:$0x1f]
  %v293 = vld [vmem:[%s2 + $0x78] sm:$0x1f]
  %v294 = vmul.f32 %v172, %v278
  %v295 = vmul.f32 %v179, %v279
  %v296 = vmul.f32 %v186, %v280
  %v297 = vmul.f32 %v193, %v281
  %v298 = vmul.f32 %v200, %v282
  %v299 = vmul.f32 %v207, %v283
  %v300 = vmul.f32 %v214, %v284
  %v301 = vmul.f32 %v221, %v285
  %v302 = vmul.f32 %v228, %v286
  %v303 = vmul.f32 %v235, %v287
  %v304 = vmul.f32 %v242, %v288
  %v305 = vmul.f32 %v249, %v289
  %v306 = vmul.f32 %v256, %v290
  %v307 = vmul.f32 %v263, %v291
  %v308 = vmul.f32 %v270, %v292
  %v309 = vmul.f32 %v277, %v293
  %vm310 = vcmask 258048
  %v311 = vsel %vm310, %v294, 0.0
  %v312 = vrot.slane %v311, 4
  %v313 = vadd.f32 %v311, %v312
  %v314 = vrot.slane %v313, 2
  %v315 = vadd.f32 %v313, %v314
  %v316 = vrot.slane %v315, 1
  %v317 = vadd.f32 %v315, %v316
  %v318 = vsel %vm310, %v295, 0.0
  %v319 = vrot.slane %v318, 4
  %v320 = vadd.f32 %v318, %v319
  %v321 = vrot.slane %v320, 2
  %v322 = vadd.f32 %v320, %v321
  %v323 = vrot.slane %v322, 1
  %v324 = vadd.f32 %v322, %v323
  %v325 = vsel %vm310, %v296, 0.0
  %v326 = vrot.slane %v325, 4
  %v327 = vadd.f32 %v325, %v326
  %v328 = vrot.slane %v327, 2
  %v329 = vadd.f32 %v327, %v328
  %v330 = vrot.slane %v329, 1
  %v331 = vadd.f32 %v329, %v330
  %v332 = vsel %vm310, %v297, 0.0
  %v333 = vrot.slane %v332, 4
  %v334 = vadd.f32 %v332, %v333
  %v335 = vrot.slane %v334, 2
  %v336 = vadd.f32 %v334, %v335
  %v337 = vrot.slane %v336, 1
  %v338 = vadd.f32 %v336, %v337
  %v339 = vsel %vm310, %v298, 0.0
  %v340 = vrot.slane %v339, 4
  %v341 = vadd.f32 %v339, %v340
  %v342 = vrot.slane %v341, 2
  %v343 = vadd.f32 %v341, %v342
  %v344 = vrot.slane %v343, 1
  %v345 = vadd.f32 %v343, %v344
  %v346 = vsel %vm310, %v299, 0.0
  %v347 = vrot.slane %v346, 4
  %v348 = vadd.f32 %v346, %v347
  %v349 = vrot.slane %v348, 2
  %v350 = vadd.f32 %v348, %v349
  %v351 = vrot.slane %v350, 1
  %v352 = vadd.f32 %v350, %v351
  %v353 = vsel %vm310, %v300, 0.0
  %v354 = vrot.slane %v353, 4
  %v355 = vadd.f32 %v353, %v354
  %v356 = vrot.slane %v355, 2
  %v357 = vadd.f32 %v355, %v356
  %v358 = vrot.slane %v357, 1
  %v359 = vadd.f32 %v357, %v358
  %v360 = vsel %vm310, %v301, 0.0
  %v361 = vrot.slane %v360, 4
  %v362 = vadd.f32 %v360, %v361
  %v363 = vrot.slane %v362, 2
  %v364 = vadd.f32 %v362, %v363
  %v365 = vrot.slane %v364, 1
  %v366 = vadd.f32 %v364, %v365
  %v367 = vsel %vm310, %v302, 0.0
  %v368 = vrot.slane %v367, 4
  %v369 = vadd.f32 %v367, %v368
  %v370 = vrot.slane %v369, 2
  %v371 = vadd.f32 %v369, %v370
  %v372 = vrot.slane %v371, 1
  %v373 = vadd.f32 %v371, %v372
  %v374 = vsel %vm310, %v303, 0.0
  %v375 = vrot.slane %v374, 4
  %v376 = vadd.f32 %v374, %v375
  %v377 = vrot.slane %v376, 2
  %v378 = vadd.f32 %v376, %v377
  %v379 = vrot.slane %v378, 1
  %v380 = vadd.f32 %v378, %v379
  %v381 = vsel %vm310, %v304, 0.0
  %v382 = vrot.slane %v381, 4
  %v383 = vadd.f32 %v381, %v382
  %v384 = vrot.slane %v383, 2
  %v385 = vadd.f32 %v383, %v384
  %v386 = vrot.slane %v385, 1
  %v387 = vadd.f32 %v385, %v386
  %v388 = vsel %vm310, %v305, 0.0
  %v389 = vrot.slane %v388, 4
  %v390 = vadd.f32 %v388, %v389
  %v391 = vrot.slane %v390, 2
  %v392 = vadd.f32 %v390, %v391
  %v393 = vrot.slane %v392, 1
  %v394 = vadd.f32 %v392, %v393
  %v395 = vsel %vm310, %v306, 0.0
  %v396 = vrot.slane %v395, 4
  %v397 = vadd.f32 %v395, %v396
  %v398 = vrot.slane %v397, 2
  %v399 = vadd.f32 %v397, %v398
  %v400 = vrot.slane %v399, 1
  %v401 = vadd.f32 %v399, %v400
  %v402 = vsel %vm310, %v307, 0.0
  %v403 = vrot.slane %v402, 4
  %v404 = vadd.f32 %v402, %v403
  %v405 = vrot.slane %v404, 2
  %v406 = vadd.f32 %v404, %v405
  %v407 = vrot.slane %v406, 1
  %v408 = vadd.f32 %v406, %v407
  %v409 = vsel %vm310, %v308, 0.0
  %v410 = vrot.slane %v409, 4
  %v411 = vadd.f32 %v409, %v410
  %v412 = vrot.slane %v411, 2
  %v413 = vadd.f32 %v411, %v412
  %v414 = vrot.slane %v413, 1
  %v415 = vadd.f32 %v413, %v414
  %v416 = vsel %vm310, %v309, 0.0
  %v417 = vrot.slane %v416, 4
  %v418 = vadd.f32 %v416, %v417
  %v419 = vrot.slane %v418, 2
  %v420 = vadd.f32 %v418, %v419
  %v421 = vrot.slane %v420, 1
  %v422 = vadd.f32 %v420, %v421
  %v425 = vrot.slane %v153, 1
  %v426 = vrot.slane %v153, 2
  %v427 = vrot.slane %v153, 3
  %v428 = vrot.slane %v153, 4
  %v429 = vrot.slane %v153, 5
  %v430 = vrot.slane %v153, 6
  %v431 = vrot.slane %v153, 7
  %v432 = vrot.slane %v158, 1
  %v433 = vrot.slane %v158, 2
  %v434 = vrot.slane %v158, 3
  %v435 = vrot.slane %v158, 4
  %v436 = vrot.slane %v158, 5
  %v437 = vrot.slane %v158, 6
  %v438 = vrot.slane %v158, 7
  %v455 = vadd.f32 %v317, %v153
  %v456 = vadd.f32 %v324, %v425
  %v457 = vadd.f32 %v331, %v426
  %v458 = vadd.f32 %v338, %v427
  %v459 = vadd.f32 %v345, %v428
  %v460 = vadd.f32 %v352, %v429
  %v461 = vadd.f32 %v359, %v430
  %v462 = vadd.f32 %v366, %v431
  %v463 = vadd.f32 %v373, %v158
  %v464 = vadd.f32 %v380, %v432
  %v465 = vadd.f32 %v387, %v433
  %v466 = vadd.f32 %v394, %v434
  %v467 = vadd.f32 %v401, %v435
  %v468 = vadd.f32 %v408, %v436
  %v469 = vadd.f32 %v415, %v437
  %v470 = vadd.f32 %v422, %v438
  %v487 = vrot.slane %v456, 7
  %vm488 = vcmask 1041409
  %v489 = vsel %vm488, %v487, %v455
  %v490 = vrot.slane %v457, 6
  %vm491 = vcmask 1042434
  %v492 = vsel %vm491, %v490, %v489
  %v493 = vrot.slane %v458, 5
  %vm494 = vcmask 1043459
  %v495 = vsel %vm494, %v493, %v492
  %v496 = vrot.slane %v459, 4
  %vm497 = vcmask 1044484
  %v498 = vsel %vm497, %v496, %v495
  %v499 = vrot.slane %v460, 3
  %vm500 = vcmask 1045509
  %v501 = vsel %vm500, %v499, %v498
  %v502 = vrot.slane %v461, 2
  %vm503 = vcmask 1046534
  %v504 = vsel %vm503, %v502, %v501
  %v505 = vrot.slane %v462, 1
  %vm506 = vcmask 1047559
  %v507 = vsel %vm506, %v505, %v504
  %v508 = vrot.slane %v464, 7
  %v509 = vsel %vm488, %v508, %v463
  %v510 = vrot.slane %v465, 6
  %v511 = vsel %vm491, %v510, %v509
  %v512 = vrot.slane %v466, 5
  %v513 = vsel %vm494, %v512, %v511
  %v514 = vrot.slane %v467, 4
  %v515 = vsel %vm497, %v514, %v513
  %v516 = vrot.slane %v468, 3
  %v517 = vsel %vm500, %v516, %v515
  %v518 = vrot.slane %v469, 2
  %v519 = vsel %vm503, %v518, %v517
  %v520 = vrot.slane %v470, 1
  %v521 = vsel %vm506, %v520, %v519
  %524 = vst.msk [vmem:[%s7] sm:$0xff] %vm161, %v507
  %525 = vst.msk [vmem:[%s7 + $0x8] sm:$0xff] %vm161, %v521
  // Predicated region
  $region30: #{_selected_forward_impl.7} parent=0 // pred_check
    _
  $region31: #{_selected_forward_impl.7} parent=0 // pred_check_branch
    %527 = sbr.rel (0) target = $region33
  $region32: #{_selected_forward_impl.7} parent=0 // pred_region
    _
  $region33: #{_selected_forward_impl.7} parent=0 // pred_fallthru
    _
  // Predicated region
  $region34: #{_selected_forward_impl.7} parent=0 // pred_check
    _
  $region35: #{_selected_forward_impl.7} parent=0 // pred_check_branch
    %529 = sbr.rel (0) target = $region37
  $region36: #{_selected_forward_impl.7} parent=0 // pred_region
    _
  $region37: #{_selected_forward_impl.7} parent=0 // pred_fallthru
    _
  // Predicated region
  $region38: #{_selected_forward_impl.7} parent=0 // pred_check
    _
  $region39: #{_selected_forward_impl.7} parent=0 // pred_check_branch
    %531 = sbr.rel (0) target = $region41
  $region40: #{_selected_forward_impl.7} parent=0 // pred_region
    _
  $region41: #{_selected_forward_impl.7} parent=0 // pred_fallthru
    _
  // Predicated region
  $region42: #{_selected_forward_impl.7} parent=0 // pred_check
    _
  $region43: #{_selected_forward_impl.7} parent=0 // pred_check_branch
    %533 = sbr.rel (0) target = $region45
  $region44: #{_selected_forward_impl.7} parent=0 // pred_region
    _
  $region45: #{_selected_forward_impl.7} parent=0 // pred_fallthru
    _

// kernel: _selected_forward_impl.8
$region0: #{_selected_forward_impl.8}
  #allocation0 [shape = 'u32[]', space=smem, size = 0x4, offset = 0x4, fixed_abs, tag = 'smem constant byte address 0x4 - core index']
  #allocation1 [shape = 'u32[144,128]{1,0:T(1,128)}', space=vmem, size = 0x12000, scoped, tag = 'internal scratch']
  #allocation2 [shape = 'f32[2,4]{1,0:T(2,128)}', space=vmem, size = 0x400, scoped, tag = 'scratch operand']
  #allocation3 [shape = 'f32[2,4]{1,0:T(2,128)}', space=vmem, size = 0x400, scoped, tag = 'scratch operand']
  %s0 = inlined_call_operand.vmem [shape: f32[8,2,32], index: 0, kind: input, shape index: {}]
  %s1 = inlined_call_operand.vmem [shape: f32[32,16], index: 1, kind: input, shape index: {}]
  %s2 = inlined_call_operand.vmem [shape: f32[4,16], index: 2, kind: input, shape index: {}]
  %s3 = inlined_call_operand.vmem [shape: f32[8,2,4], index: 3, kind: output, shape index: {}]
  %s4 = sld [smem:[#allocation0]]
  $region49: #{_selected_forward_impl.8} parent=0
    _
  %s6 = ssub.s32 1, %s4
  %s7 = scalar_select 0, %s6, %s4
  loop: start=0, step=1, limit=10
  $region2: #{_selected_forward_impl.8} parent=0 // loop_pre_header
    _
  $region3: #{_selected_forward_impl.8} parent=0 // loop_header
    %s9 = sphi 0, %s13
    %p10 = scmp.ge.s32.totalorder %s9, 10
    %s19 = sphi 0, %s21
    %s22 = sphi 0, %s19
    %s23 = sphi 0, %s22
    %s39 = sphi 0, %s23
    %s43 = sphi 0, %s43
    %s45 = sphi 0, %s43
    %s46 = sphi 0, %s45
    %s60 = sphi 0, %s46
    %s64 = sphi 0, %s64
    %s66 = sphi 0, %s64
    %s67 = sphi 0, %s66
    %s81 = sphi 0, %s67
    %s87 = sphi 0, %s89
    %s90 = sphi 0, %s87
    %s91 = sphi 0, %s90
    %s107 = sphi 0, %s91
  $region4: #{_selected_forward_impl.8} parent=0 // loop_header_branch
    %12 = sbr.rel (%p10) target = $region8
  $region5: #{_selected_forward_impl.8} parent=0 // loop_body
    %s14 = ssub.s32 %s9, 1
    %s15 = ssub.s32 %s9, 2
    %s16 = sadd.s32 %s9, 1
    %s17 = ssub.s32 %s9, %s16
    %p18 = scmp.eq.s32.totalorder %s17, 0
    %s20 = sadd.s32 %s19, 1
    %s21 = scalar_select %p18, %s19, %s20
    %p24 = pneg %p18
    %p25 = scmp.eq.s32.totalorder %s9, 7
    %p26 = por %p24, %p25
    %p27 = scmp.ne.s32.totalorder %s19, %s22
    %p28 = scmp.eq.s32.totalorder %s9, 0
    %p29 = por %p27, %p28
    %p30 = scmp.ne.s32.totalorder %s19, %s22
    %p31 = scmp.eq.s32.totalorder %s14, 7
    %p32 = por %p30, %p31
    %p33 = scmp.ne.s32.totalorder %s22, %s23
    %p34 = scmp.eq.s32.totalorder %s14, 0
    %p35 = por %p33, %p34
    %p36 = scmp.ne.s32.totalorder %s22, %s23
    %p37 = scmp.eq.s32.totalorder %s15, 7
    %p38 = por %p36, %p37
    %p40 = scmp.ne.s32.totalorder %s23, %s39
    %p41 = scmp.eq.s32.totalorder %s15, 0
    %p42 = por %p40, %p41
    %s44 = sadd.s32 %s43, 1
    %p47 = scmp.eq.s32.totalorder %s9, 7
    %p48 = scmp.ne.s32.totalorder %s43, %s45
    %p49 = scmp.eq.s32.totalorder %s9, 0
    %p50 = por %p48, %p49
    %p51 = scmp.ne.s32.totalorder %s43, %s45
    %p52 = scmp.eq.s32.totalorder %s14, 7
    %p53 = por %p51, %p52
    %p54 = scmp.ne.s32.totalorder %s45, %s46
    %p55 = scmp.eq.s32.totalorder %s14, 0
    %p56 = por %p54, %p55
    %p57 = scmp.ne.s32.totalorder %s45, %s46
    %p58 = scmp.eq.s32.totalorder %s15, 7
    %p59 = por %p57, %p58
    %p61 = scmp.ne.s32.totalorder %s46, %s60
    %p62 = scmp.eq.s32.totalorder %s15, 0
    %p63 = por %p61, %p62
    %s65 = sadd.s32 %s64, 1
    %p68 = scmp.eq.s32.totalorder %s9, 7
    %p69 = scmp.ne.s32.totalorder %s64, %s66
    %p70 = scmp.eq.s32.totalorder %s9, 0
    %p71 = por %p69, %p70
    %p72 = scmp.ne.s32.totalorder %s64, %s66
    %p73 = scmp.eq.s32.totalorder %s14, 7
    %p74 = por %p72, %p73
    %p75 = scmp.ne.s32.totalorder %s66, %s67
    %p76 = scmp.eq.s32.totalorder %s14, 0
    %p77 = por %p75, %p76
    %p78 = scmp.ne.s32.totalorder %s66, %s67
    %p79 = scmp.eq.s32.totalorder %s15, 7
    %p80 = por %p78, %p79
    %p82 = scmp.ne.s32.totalorder %s67, %s81
    %p83 = scmp.eq.s32.totalorder %s15, 0
    %p84 = por %p82, %p83
    %s85 = ssub.s32 %s9, %s16
    %p86 = scmp.eq.s32.totalorder %s85, 0
    %s88 = sadd.s32 %s87, 1
    %s89 = scalar_select %p86, %s87, %s88
    %p92 = pneg %p86
    %p93 = scmp.eq.s32.totalorder %s9, 7
    %p94 = por %p92, %p93
    %p95 = scmp.ne.s32.totalorder %s87, %s90
    %p96 = scmp.eq.s32.totalorder %s9, 0
    %p97 = por %p95, %p96
    %p98 = scmp.ne.s32.totalorder %s87, %s90
    %p99 = scmp.eq.s32.totalorder %s14, 7
    %p100 = por %p98, %p99
    %p101 = scmp.ne.s32.totalorder %s90, %s91
    %p102 = scmp.eq.s32.totalorder %s14, 0
    %p103 = por %p101, %p102
    %p104 = scmp.ne.s32.totalorder %s90, %s91
    %p105 = scmp.eq.s32.totalorder %s15, 7
    %p106 = por %p104, %p105
    %p108 = scmp.ne.s32.totalorder %s91, %s107
    %p109 = scmp.eq.s32.totalorder %s15, 0
    %p110 = por %p108, %p109
    %p111 = scmp.le.s32.totalorder 1, %s9
    %p112 = scmp.lt.s32.totalorder %s9, 9
    %p113 = pnand %p111, %p112
    %p114 = pneg %p113
    // Predicated region
    $region9: #{_selected_forward_impl.8} parent=5 // pred_check
      _
    $region10: #{_selected_forward_impl.8} parent=5 // pred_check_branch
      %116 = sbr.rel (%p113) target = $region12
    $region11: #{_selected_forward_impl.8} parent=5 // pred_region
      %s117 = ssub.s32 %s9, 1
      // Predicated region
      $region13: #{_selected_forward_impl.8} parent=11 // pred_check
        %p118 = pneg %p56
      $region14: #{_selected_forward_impl.8} parent=11 // pred_check_branch
        %120 = sbr.rel (%p118) target = $region16
      $region15: #{_selected_forward_impl.8} parent=11 // pred_region
        _
      $region16: #{_selected_forward_impl.8} parent=11 // pred_fallthru
        _
      // Predicated region
      $region17: #{_selected_forward_impl.8} parent=11 // pred_check
        %p121 = pneg %p77
      $region18: #{_selected_forward_impl.8} parent=11 // pred_check_branch
        %123 = sbr.rel (%p121) target = $region20
      $region19: #{_selected_forward_impl.8} parent=11 // pred_region
        _
      $region20: #{_selected_forward_impl.8} parent=11 // pred_fallthru
        _
    $region12: #{_selected_forward_impl.8} parent=5 // pred_fallthru
      _
    %p124 = scmp.lt.s32.totalorder %s9, 8
    // Predicated region
    $region21: #{_selected_forward_impl.8} parent=5 // pred_check
      %p125 = pneg %p124
    $region22: #{_selected_forward_impl.8} parent=5 // pred_check_branch
      %127 = sbr.rel (%p125) target = $region24
    $region23: #{_selected_forward_impl.8} parent=5 // pred_region
      // Predicated region
      $region25: #{_selected_forward_impl.8} parent=23 // pred_check
        %p128 = pneg %p29
      $region26: #{_selected_forward_impl.8} parent=23 // pred_check_branch
        %130 = sbr.rel (%p128) target = $region28
      $region27: #{_selected_forward_impl.8} parent=23 // pred_region
        %p131 = scmp.lt.s32.totalorder %s9, 7
        %s132 = scalar_select %p131, %s9, 7
        %s133 = smul.addr %s132, 2
        %s134 = scalar_lea.vmem %s0, %s133
      $region28: #{_selected_forward_impl.8} parent=23 // pred_fallthru
        _
    $region24: #{_selected_forward_impl.8} parent=5 // pred_fallthru
      _
    %p135 = scmp.le.s32.totalorder 1, %s9
    %p136 = scmp.lt.s32.totalorder %s9, 9
    %p137 = pnand %p135, %p136
    %p138 = pneg %p137
    // Predicated region
    $region29: #{_selected_forward_impl.8} parent=5 // pred_check
      _
    $region30: #{_selected_forward_impl.8} parent=5 // pred_check_branch
      %140 = sbr.rel (%p137) target = $region32
    $region31: #{_selected_forward_impl.8} parent=5 // pred_region
      %s141 = ssub.s32 %s9, 1
      %p142 = scmp.lt.s32.totalorder %s14, 7
      %s143 = scalar_select %p142, %s14, 7
      %s144 = smul.addr %s143, 2
      %s145 = scalar_lea.vmem %s0, %s144
      %p146 = pneg %p35
      %p147 = pneg %p32
      %p148 = pneg %p56
      %p149 = pneg %p53
      %p150 = pneg %p77
      %p151 = pneg %p74
      %p152 = pneg %p103
      %p153 = pneg %p100
      %p154 = scmp.lt.s32.totalorder %s14, 7
      %s155 = scalar_select %p154, %s14, 7
      %s156 = smul.addr %s155, 2
      %s157 = scalar_lea.vmem %s3, %s156
      %p158 = scmp.lt.s32.totalorder %s14, 7
      %s159 = scalar_select %p158, %s14, 7
      %s160 = smul.addr %s159, 2
      %s161 = scalar_lea.vmem %s0, %s160
      %p162 = scmp.lt.s32.totalorder %s14, 7
      %s163 = scalar_select %p162, %s14, 7
      %s164 = smul.addr %s163, 2
      %s165 = scalar_lea.vmem %s3, %s164
      %p166 = scmp.eq.s32.totalorder %s14, 0
      // Predicated region
      $region33: #{_selected_forward_impl.8} parent=31 // pred_check
        %p167 = pneg %p166
      $region34: #{_selected_forward_impl.8} parent=31 // pred_check_branch
        %169 = sbr.rel (%p167) target = $region36
      $region35: #{_selected_forward_impl.8} parent=31 // pred_region
        %vm170 = vcmask 25600
        %171 = vst.msk [vmem:[#allocation2] sm:$0x3] %vm170, 0.0
        %172 = vst.msk [vmem:[#allocation3] sm:$0x3] %vm170, 0.0
      $region36: #{_selected_forward_impl.8} parent=31 // pred_fallthru
        _
      %v173 = vld [vmem:[%s161] sm:$0x3]
      %v174 = vld [vmem:[#allocation2] sm:$0x3]
      %v175 = vld [vmem:[#allocation3] sm:$0x3]
      %v176 = vld [vmem:[%s1] sm:$0xff]
      %v177 = vld [vmem:[%s1 + $0x8] sm:$0xff]
      %v178 = vld [vmem:[%s1 + $0x10] sm:$0xff]
      %v179 = vld [vmem:[%s1 + $0x18] sm:$0xff]
      %v180 = vld [vmem:[%s2] sm:$0xf]
      %vm181 = vcmask 31744
      %v183 = vsel %vm181, %v174, 0
      %vm185 = vcmask 1043456
      %v187 = vsel %vm185, %v180, 0
      %189 = vmatprep.subr.mxu0 0.0
      %190 = vmatpush1.msra.mxu0 0.0
      %191 = vmatprep.subr.mxu0 0.0
      %192 = vmatpush1.msra.mxu0 0.0
      %193 = vmatprep.subr.mxu0 0.0
      %194 = vmatpush1.msra.mxu0 0.0
      %195 = vmatprep.subr.mxu0 0.0
      %196 = vmatpush1.msra.mxu0 0.0
      %197 = vmatprep.subr.mxu0 0.0
      %198 = vmatpush1.msra.mxu0 0.0
      %199 = vmatprep.subr.mxu0 0.0
      %200 = vmatpush1.msra.mxu0 0.0
      %201 = vmatprep.subr.mxu0 0.0
      %202 = vmatpush1.msra.mxu0 0.0
      %203 = vmatprep.subr.mxu0 0.0
      %204 = vmatpush1.msra.mxu0 0.0
      %205 = vmatprep.subr.mxu0 0.0
      %206 = vmatpush1.msra.mxu0 0.0
      %207 = vmatprep.subr.mxu0 0.0
      %208 = vmatpush1.msra.mxu0 0.0
      %209 = vmatprep.subr.mxu0 0.0
      %210 = vmatpush1.msra.mxu0 0.0
      %211 = vmatprep.subr.mxu0 0.0
      %212 = vmatpush1.msra.mxu0 0.0
      %213 = vmatprep.subr.mxu0 0.0
      %214 = vmatpush1.msra.mxu0 0.0
      %215 = vmatprep.subr.mxu0 0.0
      %216 = vmatpush1.msra.mxu0 0.0
      %217 = vmatprep.subr.mxu0 0.0
      %218 = vmatpush1.msra.mxu0 0.0
      %219 = vmatprep.subr.mxu0 0.0
      %220 = vmatpush1.msra.mxu0 %v187
      %221 = vmatprep.subr.mxu0 0.0
      %222 = vmatpush2.msra.mxu0 0.0
      %223 = vmatprep.subr.mxu0 0.0
      %224 = vmatpush2.msra.mxu0 0.0
      %225 = vmatprep.subr.mxu0 0.0
      %226 = vmatpush2.msra.mxu0 0.0
      %227 = vmatprep.subr.mxu0 0.0
      %228 = vmatpush2.msra.mxu0 0.0
      %229 = vmatprep.subr.mxu0 0.0
      %230 = vmatpush2.msra.mxu0 0.0
      %231 = vmatprep.subr.mxu0 0.0
      %232 = vmatpush2.msra.mxu0 0.0
      %233 = vmatprep.subr.mxu0 0.0
      %234 = vmatpush2.msra.mxu0 0.0
      %235 = vmatprep.subr.mxu0 0.0
      %236 = vmatpush2.msra.mxu0 0.0
      %237 = vmatprep.subr.mxu0 0.0
      %238 = vmatpush2.msra.mxu0 0.0
      %239 = vmatprep.subr.mxu0 0.0
      %240 = vmatpush2.msra.mxu0 0.0
      %241 = vmatprep.subr.mxu0 0.0
      %242 = vmatpush2.msra.mxu0 0.0
      %243 = vmatprep.subr.mxu0 0.0
      %244 = vmatpush2.msra.mxu0 0.0
      %245 = vmatprep.subr.mxu0 0.0
      %246 = vmatpush2.msra.mxu0 0.0
      %247 = vmatprep.subr.mxu0 0.0
      %248 = vmatpush2.msra.mxu0 0.0
      %249 = vmatprep.subr.mxu0 0.0
      %250 = vmatpush2.msra.mxu0 0.0
      %251 = vmatprep.subr.mxu0 0.0
      %252 = vmatpush2.msra.mxu0 0.0
      %253 = vmatprep.mubr.f32.mxu0 0.0
      %254 = vmatmul.mubr.f32.gmra.mxu0 %v183
      %v255 = vpop.f32.mrf.mxu0
      %v256 = vadd.f32 0.0, %v255
      %v257 = vpop.f32.mrf.mxu0
      %258 = vdwg.mxu0
      %vm259 = vcmask 261120
      %v261 = vsel %vm259, %v173, 0
      %263 = vmatprep.subr.mxu0 0.0
      %264 = vmatpush1.msra.mxu0 0.0
      %265 = vmatprep.subr.mxu0 0.0
      %266 = vmatpush1.msra.mxu0 0.0
      %267 = vmatprep.subr.mxu0 0.0
      %268 = vmatpush1.msra.mxu0 0.0
      %269 = vmatprep.subr.mxu0 0.0
      %270 = vmatpush1.msra.mxu0 0.0
      %271 = vmatprep.subr.mxu0 0.0
      %272 = vmatpush1.msra.mxu0 0.0
      %273 = vmatprep.subr.mxu0 0.0
      %274 = vmatpush1.msra.mxu0 0.0
      %275 = vmatprep.subr.mxu0 0.0
      %276 = vmatpush1.msra.mxu0 0.0
      %277 = vmatprep.subr.mxu0 0.0
      %278 = vmatpush1.msra.mxu0 0.0
      %279 = vmatprep.subr.mxu0 0.0
      %280 = vmatpush1.msra.mxu0 0.0
      %281 = vmatprep.subr.mxu0 0.0
      %282 = vmatpush1.msra.mxu0 0.0
      %283 = vmatprep.subr.mxu0 0.0
      %284 = vmatpush1.msra.mxu0 0.0
      %285 = vmatprep.subr.mxu0 0.0
      %286 = vmatpush1.msra.mxu0 0.0
      %287 = vmatprep.subr.mxu0 0.0
      %288 = vmatpush1.msra.mxu0 %v179
      %289 = vmatprep.subr.mxu0 0.0
      %290 = vmatpush1.msra.mxu0 %v178
      %291 = vmatprep.subr.mxu0 0.0
      %292 = vmatpush1.msra.mxu0 %v177
      %293 = vmatprep.subr.mxu0 0.0
      %294 = vmatpush1.msra.mxu0 %v176
      %295 = vmatprep.subr.mxu0 0.0
      %296 = vmatpush2.msra.mxu0 0.0
      %297 = vmatprep.subr.mxu0 0.0
      %298 = vmatpush2.msra.mxu0 0.0
      %299 = vmatprep.subr.mxu0 0.0
      %300 = vmatpush2.msra.mxu0 0.0
      %301 = vmatprep.subr.mxu0 0.0
      %302 = vmatpush2.msra.mxu0 0.0
      %303 = vmatprep.subr.mxu0 0.0
      %304 = vmatpush2.msra.mxu0 0.0
      %305 = vmatprep.subr.mxu0 0.0
      %306 = vmatpush2.msra.mxu0 0.0
      %307 = vmatprep.subr.mxu0 0.0
      %308 = vmatpush2.msra.mxu0 0.0
      %309 = vmatprep.subr.mxu0 0.0
      %310 = vmatpush2.msra.mxu0 0.0
      %311 = vmatprep.subr.mxu0 0.0
      %312 = vmatpush2.msra.mxu0 0.0
      %313 = vmatprep.subr.mxu0 0.0
      %314 = vmatpush2.msra.mxu0 0.0
      %315 = vmatprep.subr.mxu0 0.0
      %316 = vmatpush2.msra.mxu0 0.0
      %317 = vmatprep.subr.mxu0 0.0
      %318 = vmatpush2.msra.mxu0 0.0
      %319 = vmatprep.subr.mxu0 0.0
      %320 = vmatpush2.msra.mxu0 0.0
      %321 = vmatprep.subr.mxu0 0.0
      %322 = vmatpush2.msra.mxu0 0.0
      %323 = vmatprep.subr.mxu0 0.0
      %324 = vmatpush2.msra.mxu0 0.0
      %325 = vmatprep.subr.mxu0 0.0
      %326 = vmatpush2.msra.mxu0 0.0
      %327 = vmatprep.mubr.f32.mxu0 0.0
      %328 = vmatmul.mubr.f32.gmra.mxu0 %v261
      %v329 = vpop.f32.mrf.mxu0
      %v330 = vadd.f32 %v256, %v329
      %v331 = vpop.f32.mrf.mxu0
      %332 = vdwg.mxu0
      %v333 = vsub.f32 0.0, %v330
      %v334 = vmul.f32 %v333, 1.442695
      %v335 = vpow.pop %v334
      %v336 = vadd.f32 %v335, 1.0
      %v337 = vrcp.pop %v336
      %v338 = vmul.f32 1.0, %v337
      %v339 = vtanh.pop %v330
      %341 = vrot.lane.b32.xlu0 %v175, 4
      %v342 = vpop.permute.xlu0 %341
      %v344 = vmul.f32 %v338, %v342
      %346 = vrot.lane.b32.xlu0 %v339, 120
      %v347 = vpop.permute.xlu0 %346
      %v349 = vmul.f32 %v338, %v347
      %351 = vrot.lane.b32.xlu0 %v349, 4
      %v352 = vpop.permute.xlu0 %351
      %v354 = vadd.f32 %v344, %v352
      %v355 = vtanh.pop %v354
      %357 = vrot.lane.b32.xlu0 %v355, 8
      %v358 = vpop.permute.xlu0 %357
      %v360 = vmul.f32 %v338, %v358
      %362 = vrot.lane.b32.xlu0 %v354, 124
      %v363 = vpop.permute.xlu0 %362
      %vm365 = vcmask 25600
      %366 = vst.msk [vmem:[#allocation3] sm:$0x3] %vm365, %v363
      %368 = vrot.lane.b32.xlu0 %v360, 116
      %v369 = vpop.permute.xlu0 %368
      %371 = vst.msk [vmem:[#allocation2] sm:$0x3] %vm365, %v369
      %372 = vst.msk [vmem:[%s165] sm:$0x3] %vm365, %v369
      %p373 = scmp.lt.s32.totalorder %s14, 7
      %s374 = scalar_select %p373, %s14, 7
      %s375 = smul.addr %s374, 2
      %s376 = scalar_lea.vmem %s3, %s375
      // Predicated region
      $region37: #{_selected_forward_impl.8} parent=31 // pred_check
        %p377 = pneg %p100
      $region38: #{_selected_forward_impl.8} parent=31 // pred_check_branch
        %379 = sbr.rel (%p377) target = $region40
      $region39: #{_selected_forward_impl.8} parent=31 // pred_region
        _
      $region40: #{_selected_forward_impl.8} parent=31 // pred_fallthru
        _
    $region32: #{_selected_forward_impl.8} parent=5 // pred_fallthru
      _
    %p380 = scmp.le.s32.totalorder 2, %s9
    // Predicated region
    $region41: #{_selected_forward_impl.8} parent=5 // pred_check
      %p381 = pneg %p380
    $region42: #{_selected_forward_impl.8} parent=5 // pred_check_branch
      %383 = sbr.rel (%p381) target = $region44
    $region43: #{_selected_forward_impl.8} parent=5 // pred_region
      %s384 = ssub.s32 %s9, 2
      // Predicated region
      $region45: #{_selected_forward_impl.8} parent=43 // pred_check
        %p385 = pneg %p106
      $region46: #{_selected_forward_impl.8} parent=43 // pred_check_branch
        %387 = sbr.rel (%p385) target = $region48
      $region47: #{_selected_forward_impl.8} parent=43 // pred_region
        %p388 = scmp.lt.s32.totalorder %s15, 7
        %s389 = scalar_select %p388, %s15, 7
        %s390 = smul.addr %s389, 2
        %s391 = scalar_lea.vmem %s3, %s390
      $region48: #{_selected_forward_impl.8} parent=43 // pred_fallthru
        _
    $region44: #{_selected_forward_impl.8} parent=5 // pred_fallthru
      _
  $region6: #{_selected_forward_impl.8} parent=0 // loop_footer
    %s13 = sadd.s32 1, %s9
  $region7: #{_selected_forward_impl.8} parent=0 // loop_footer_branch
    %8 = sbr.rel target = $region3
  $region8: #{_selected_forward_impl.8} parent=0 // loop_exit
    _

// kernel: _selected_forward_impl.11
$region0: #{_selected_forward_impl.11}
  #allocation0 [shape = 'u32[]', space=smem, size = 0x4, offset = 0x4, fixed_abs, tag = 'smem constant byte address 0x4 - core index']
  #allocation1 [shape = 'u32[144,128]{1,0:T(1,128)}', space=vmem, size = 0x12000, scoped, tag = 'internal scratch']
  %s0 = inlined_call_operand.vmem [shape: f32[2,8], index: 0, kind: input, shape index: {}]
  %s1 = inlined_call_operand.vmem [shape: f32[2,8], index: 1, kind: input, shape index: {}]
  %s2 = inlined_call_operand.vmem [shape: f32[2,8,32], index: 2, kind: input, shape index: {}]
  %s3 = inlined_call_operand.vmem [shape: f32[32,2], index: 3, kind: input, shape index: {}]
  %s4 = inlined_call_operand.vmem [shape: f32[1,2], index: 4, kind: input, shape index: {}]
  %s5 = inlined_call_operand.hbm [shape: f32[2,2], index: 5, kind: output, shape index: {}]
  %s6 = sld [smem:[#allocation0]]
  $region30: #{_selected_forward_impl.11} parent=0
    _
  %s8 = ssub.s32 1, %s6
  %s9 = scalar_select 0, %s8, %s6
  $region1: #{_selected_forward_impl.11} parent=0
    #allocation2 [shape = 'u8[1024]{0}', space=vmem, size = 0x400, scoped, tag = 'output window, operand 0, single buffered']
    #allocation3 [shape = 's32[1]{0}', space=sflag, size = 0x4, scoped, tag = 'scoped memory for _selected_forward_impl.11']
    %10 = vsyncpa [#allocation3], 0
    // Predicated region
    $region2: #{_selected_forward_impl.11} parent=1 // pred_check
      _
    $region3: #{_selected_forward_impl.11} parent=1 // pred_check_branch
      %12 = sbr.rel (0) target = $region5
    $region4: #{_selected_forward_impl.11} parent=1 // pred_region
      _
    $region5: #{_selected_forward_impl.11} parent=1 // pred_fallthru
      _
    // Predicated region
    $region6: #{_selected_forward_impl.11} parent=1 // pred_check
      _
    $region7: #{_selected_forward_impl.11} parent=1 // pred_check_branch
      %14 = sbr.rel (0) target = $region9
    $region8: #{_selected_forward_impl.11} parent=1 // pred_region
      _
    $region9: #{_selected_forward_impl.11} parent=1 // pred_fallthru
      _
    // Predicated region
    $region10: #{_selected_forward_impl.11} parent=1 // pred_check
      _
    $region11: #{_selected_forward_impl.11} parent=1 // pred_check_branch
      %16 = sbr.rel (0) target = $region13
    $region12: #{_selected_forward_impl.11} parent=1 // pred_region
      _
    $region13: #{_selected_forward_impl.11} parent=1 // pred_fallthru
      _
    // Predicated region
    $region14: #{_selected_forward_impl.11} parent=1 // pred_check
      _
    $region15: #{_selected_forward_impl.11} parent=1 // pred_check_branch
      %18 = sbr.rel (0) target = $region17
    $region16: #{_selected_forward_impl.11} parent=1 // pred_region
      _
    $region17: #{_selected_forward_impl.11} parent=1 // pred_fallthru
      _
    // Predicated region
    $region18: #{_selected_forward_impl.11} parent=1 // pred_check
      _
    $region19: #{_selected_forward_impl.11} parent=1 // pred_check_branch
      %20 = sbr.rel (0) target = $region21
    $region20: #{_selected_forward_impl.11} parent=1 // pred_region
      _
    $region21: #{_selected_forward_impl.11} parent=1 // pred_fallthru
      _
    %v21 = vld [vmem:[%s1] sm:$0x3]
    %vm22 = vcmp.gt.f32.partialorder %v21, 0.0
    %v23 = vld [vmem:[%s0] sm:$0x3]
    %v24 = vsel %vm22, -inf, %v23
    %vm25 = vcmask 58368
    %v26 = vsel %vm25, %v24, -inf
    %27 = vmax.xlane.f32.xlu0 %v26
    %v28 = vpop.xlane.xlu0 %27
    %v29 = vsub.f32 %v24, %v28
    %v30 = vmul.f32 %v29, 1.442695
    %v31 = vpow.pop %v30
    %v32 = vsel %vm25, %v31, 0.0
    %33 = vadd.xlane.f32.xlu0 %v32
    %v34 = vpop.xlane.xlu0 %33
    %v35 = vrcp.pop %v34
    %v36 = vmul.f32 %v31, %v35
    %v37 = vlaneseq
    %v38 = vshrl.u32 %v37, 7
    %v39 = vsub.s32 0, %v38
    %v40 = vrot.slane %v36, %v39
    %42 = vbcast.lane.b32.xlu0 %v40, 256
    %v43 = vpop.permute.xlu0 %42
    %v44 = vlaneseq
    %v45 = vshrl.u32 %v44, 7
    %v46 = vsub.s32 1, %v45
    %v47 = vrot.slane %v36, %v46
    %49 = vbcast.lane.b32.xlu0 %v47, 256
    %v50 = vpop.permute.xlu0 %49
    %v51 = vld [vmem:[%s2] sm:$0xff]
    %v52 = vld [vmem:[%s2 + $0x8] sm:$0xff]
    %v53 = vmul.f32 %v43, %v51
    %v54 = vmul.f32 %v50, %v52
    %vm55 = vcmask 261120
    %v56 = vsel %vm55, %v53, 0.0
    %v57 = vrot.slane %v56, 4
    %v58 = vadd.f32 %v56, %v57
    %v59 = vrot.slane %v58, 2
    %v60 = vadd.f32 %v58, %v59
    %v61 = vrot.slane %v60, 1
    %v62 = vadd.f32 %v60, %v61
    %v63 = vsel %vm55, %v54, 0.0
    %v64 = vrot.slane %v63, 4
    %v65 = vadd.f32 %v63, %v64
    %v66 = vrot.slane %v65, 2
    %v67 = vadd.f32 %v65, %v66
    %v68 = vrot.slane %v67, 1
    %v69 = vadd.f32 %v67, %v68
    %v70 = vld [vmem:[%s3] sm:$0xff]
    %v71 = vld [vmem:[%s3 + $0x8] sm:$0xff]
    %v72 = vld [vmem:[%s3 + $0x10] sm:$0xff]
    %v73 = vld [vmem:[%s3 + $0x18] sm:$0xff]
    %v74 = vld [vmem:[%s4] sm:$0x1]
    %v76 = vlaneseq
    %v77 = vshrl.u32 %v76, 7
    %v78 = vsub.s32 0, %v77
    %v79 = vrot.slane %v74, %v78
    %vm83 = vcmask 1041409
    %v84 = vsel %vm83, %v69, %v62
    %v85 = vsel %vm55, %v84, 0
    %87 = vmatprep.subr.mxu0 0.0
    %88 = vmatpush1.msra.mxu0 0.0
    %89 = vmatprep.subr.mxu0 0.0
    %90 = vmatpush1.msra.mxu0 0.0
    %91 = vmatprep.subr.mxu0 0.0
    %92 = vmatpush1.msra.mxu0 0.0
    %93 = vmatprep.subr.mxu0 0.0
    %94 = vmatpush1.msra.mxu0 0.0
    %95 = vmatprep.subr.mxu0 0.0
    %96 = vmatpush1.msra.mxu0 0.0
    %97 = vmatprep.subr.mxu0 0.0
    %98 = vmatpush1.msra.mxu0 0.0
    %99 = vmatprep.subr.mxu0 0.0
    %100 = vmatpush1.msra.mxu0 0.0
    %101 = vmatprep.subr.mxu0 0.0
    %102 = vmatpush1.msra.mxu0 0.0
    %103 = vmatprep.subr.mxu0 0.0
    %104 = vmatpush1.msra.mxu0 0.0
    %105 = vmatprep.subr.mxu0 0.0
    %106 = vmatpush1.msra.mxu0 0.0
    %107 = vmatprep.subr.mxu0 0.0
    %108 = vmatpush1.msra.mxu0 0.0
    %109 = vmatprep.subr.mxu0 0.0
    %110 = vmatpush1.msra.mxu0 0.0
    %111 = vmatprep.subr.mxu0 0.0
    %112 = vmatpush1.msra.mxu0 %v73
    %113 = vmatprep.subr.mxu0 0.0
    %114 = vmatpush1.msra.mxu0 %v72
    %115 = vmatprep.subr.mxu0 0.0
    %116 = vmatpush1.msra.mxu0 %v71
    %117 = vmatprep.subr.mxu0 0.0
    %118 = vmatpush1.msra.mxu0 %v70
    %119 = vmatprep.subr.mxu0 0.0
    %120 = vmatpush2.msra.mxu0 0.0
    %121 = vmatprep.subr.mxu0 0.0
    %122 = vmatpush2.msra.mxu0 0.0
    %123 = vmatprep.subr.mxu0 0.0
    %124 = vmatpush2.msra.mxu0 0.0
    %125 = vmatprep.subr.mxu0 0.0
    %126 = vmatpush2.msra.mxu0 0.0
    %127 = vmatprep.subr.mxu0 0.0
    %128 = vmatpush2.msra.mxu0 0.0
    %129 = vmatprep.subr.mxu0 0.0
    %130 = vmatpush2.msra.mxu0 0.0
    %131 = vmatprep.subr.mxu0 0.0
    %132 = vmatpush2.msra.mxu0 0.0
    %133 = vmatprep.subr.mxu0 0.0
    %134 = vmatpush2.msra.mxu0 0.0
    %135 = vmatprep.subr.mxu0 0.0
    %136 = vmatpush2.msra.mxu0 0.0
    %137 = vmatprep.subr.mxu0 0.0
    %138 = vmatpush2.msra.mxu0 0.0
    %139 = vmatprep.subr.mxu0 0.0
    %140 = vmatpush2.msra.mxu0 0.0
    %141 = vmatprep.subr.mxu0 0.0
    %142 = vmatpush2.msra.mxu0 0.0
    %143 = vmatprep.subr.mxu0 0.0
    %144 = vmatpush2.msra.mxu0 0.0
    %145 = vmatprep.subr.mxu0 0.0
    %146 = vmatpush2.msra.mxu0 0.0
    %147 = vmatprep.subr.mxu0 0.0
    %148 = vmatpush2.msra.mxu0 0.0
    %149 = vmatprep.subr.mxu0 0.0
    %150 = vmatpush2.msra.mxu0 0.0
    %151 = vmatprep.mubr.f32.mxu0 0.0
    %152 = vmatmul.mubr.f32.gmra.mxu0 %v85
    %v153 = vpop.f32.mrf.mxu0
    %v154 = vadd.f32 %v79, %v153
    %v155 = vpop.f32.mrf.mxu0
    %156 = vdwg.mxu0
    %vm157 = vcmask 9216
    %158 = vst.msk [vmem:[#allocation2] sm:$0x3] %vm157, %v154
    // Predicated region
    $region22: #{_selected_forward_impl.11} parent=1 // pred_check
      _
    $region23: #{_selected_forward_impl.11} parent=1 // pred_check_branch
      %160 = sbr.rel (0) target = $region25
    $region24: #{_selected_forward_impl.11} parent=1 // pred_region
      %s162 = ssub.s32 32, 32
      %163 = vsyncadd [#allocation3], %s162
      %s165 = sshll.u32 [#allocation2], 4
      %s166 = int_to_ptr.vmem [resolvable:$true] %s165
      %168 = dma.vmem_to_hbm [thread:$0]  %s166, 32, %s5, [#allocation3]
    $region25: #{_selected_forward_impl.11} parent=1 // pred_fallthru
      _
    // Predicated region
    $region26: #{_selected_forward_impl.11} parent=1 // pred_check
      _
    $region27: #{_selected_forward_impl.11} parent=1 // pred_check_branch
      %170 = sbr.rel (0) target = $region29
    $region28: #{_selected_forward_impl.11} parent=1 // pred_region
      %171 = dma.done [#allocation3], 32
    $region29: #{_selected_forward_impl.11} parent=1 // pred_fallthru
      _
    %172 = vsyncpa [#allocation3], 1

// kernel: _selected_forward_impl.10
$region0: #{_selected_forward_impl.10}
  #allocation0 [shape = 'u32[]', space=smem, size = 0x4, offset = 0x4, fixed_abs, tag = 'smem constant byte address 0x4 - core index']
  #allocation1 [shape = 'u32[144,128]{1,0:T(1,128)}', space=vmem, size = 0x12000, scoped, tag = 'internal scratch']
  #allocation2 [shape = 'f32[1,1]{1,0:T(1,128)S(1)}', space=vmem, size = 0x200, scoped, tag = 'scoped memory for _selected_forward_impl.10']
  %s0 = inlined_call_operand.vmem [shape: f32[16,32], index: 0, kind: input, shape index: {}]
  %s1 = inlined_call_operand.vmem [shape: f32[16,1], index: 1, kind: input, shape index: {}]
  %s2 = inlined_call_operand.vmem [shape: f32[1,64], index: 2, kind: input, shape index: {}]
  %s3 = inlined_call_operand.vmem [shape: f32[1,64], index: 3, kind: input, shape index: {}]
  %s4 = inlined_call_operand.vmem [shape: f32[32,32], index: 4, kind: input, shape index: {}]
  %s5 = inlined_call_operand.vmem [shape: f32[64,32], index: 5, kind: input, shape index: {}]
  %s6 = inlined_call_operand.vmem [shape: f32[1,32], index: 6, kind: input, shape index: {}]
  %s7 = inlined_call_operand.vmem [shape: f32[1,32], index: 7, kind: input, shape index: {}]
  %s8 = inlined_call_operand.vmem [shape: f32[32,1], index: 8, kind: input, shape index: {}]
  %s9 = inlined_call_operand.<no memory space> [shape: f32[1,1], index: 9, kind: input, shape index: {}]
  %s10 = inlined_call_operand.vmem [shape: f32[16,1], index: 10, kind: output, shape index: {}]
  %s11 = sld [smem:[#allocation0]]
  $region50: #{_selected_forward_impl.10} parent=0
    _
  %s13 = ssub.s32 1, %s11
  %s14 = scalar_select 0, %s13, %s11
  %v15 = vstv %s9
  %16 = vst [vmem:[#allocation2] sm:$0x1] %v15
  // Predicated region
  $region2: #{_selected_forward_impl.10} parent=0 // pred_check
    _
  $region3: #{_selected_forward_impl.10} parent=0 // pred_check_branch
    %18 = sbr.rel (0) target = $region5
  $region4: #{_selected_forward_impl.10} parent=0 // pred_region
    _
  $region5: #{_selected_forward_impl.10} parent=0 // pred_fallthru
    _
  // Predicated region
  $region6: #{_selected_forward_impl.10} parent=0 // pred_check
    _
  $region7: #{_selected_forward_impl.10} parent=0 // pred_check_branch
    %20 = sbr.rel (0) target = $region9
  $region8: #{_selected_forward_impl.10} parent=0 // pred_region
    _
  $region9: #{_selected_forward_impl.10} parent=0 // pred_fallthru
    _
  // Predicated region
  $region10: #{_selected_forward_impl.10} parent=0 // pred_check
    _
  $region11: #{_selected_forward_impl.10} parent=0 // pred_check_branch
    %22 = sbr.rel (0) target = $region13
  $region12: #{_selected_forward_impl.10} parent=0 // pred_region
    _
  $region13: #{_selected_forward_impl.10} parent=0 // pred_fallthru
    _
  // Predicated region
  $region14: #{_selected_forward_impl.10} parent=0 // pred_check
    _
  $region15: #{_selected_forward_impl.10} parent=0 // pred_check_branch
    %24 = sbr.rel (0) target = $region17
  $region16: #{_selected_forward_impl.10} parent=0 // pred_region
    _
  $region17: #{_selected_forward_impl.10} parent=0 // pred_fallthru
    _
  // Predicated region
  $region18: #{_selected_forward_impl.10} parent=0 // pred_check
    _
  $region19: #{_selected_forward_impl.10} parent=0 // pred_check_branch
    %26 = sbr.rel (0) target = $region21
  $region20: #{_selected_forward_impl.10} parent=0 // pred_region
    _
  $region21: #{_selected_forward_impl.10} parent=0 // pred_fallthru
    _
  // Predicated region
  $region22: #{_selected_forward_impl.10} parent=0 // pred_check
    _
  $region23: #{_selected_forward_impl.10} parent=0 // pred_check_branch
    %28 = sbr.rel (0) target = $region25
  $region24: #{_selected_forward_impl.10} parent=0 // pred_region
    _
  $region25: #{_selected_forward_impl.10} parent=0 // pred_fallthru
    _
  // Predicated region
  $region26: #{_selected_forward_impl.10} parent=0 // pred_check
    _
  $region27: #{_selected_forward_impl.10} parent=0 // pred_check_branch
    %30 = sbr.rel (0) target = $region29
  $region28: #{_selected_forward_impl.10} parent=0 // pred_region
    _
  $region29: #{_selected_forward_impl.10} parent=0 // pred_fallthru
    _
  // Predicated region
  $region30: #{_selected_forward_impl.10} parent=0 // pred_check
    _
  $region31: #{_selected_forward_impl.10} parent=0 // pred_check_branch
    %32 = sbr.rel (0) target = $region33
  $region32: #{_selected_forward_impl.10} parent=0 // pred_region
    _
  $region33: #{_selected_forward_impl.10} parent=0 // pred_fallthru
    _
  // Predicated region
  $region34: #{_selected_forward_impl.10} parent=0 // pred_check
    _
  $region35: #{_selected_forward_impl.10} parent=0 // pred_check_branch
    %34 = sbr.rel (0) target = $region37
  $region36: #{_selected_forward_impl.10} parent=0 // pred_region
    _
  $region37: #{_selected_forward_impl.10} parent=0 // pred_fallthru
    _
  // Predicated region
  $region38: #{_selected_forward_impl.10} parent=0 // pred_check
    _
  $region39: #{_selected_forward_impl.10} parent=0 // pred_check_branch
    %36 = sbr.rel (0) target = $region41
  $region40: #{_selected_forward_impl.10} parent=0 // pred_region
    _
  $region41: #{_selected_forward_impl.10} parent=0 // pred_fallthru
    _
  %v37 = vld [vmem:[%s1] sm:$0xff]
  %v38 = vld [vmem:[%s1 + $0x8] sm:$0xff]
  %v39 = vld [vmem:[%s2] sm:$0x1]
  %41 = vset.pattern.permute.xlu0 0
  %42 = vperm.xlu0 %41, %v37
  %v43 = vpop.permute.xlu0 %42
  %46 = vset.pattern.permute.xlu0 0
  %47 = vperm.xlu0 %46, %v38
  %v48 = vpop.permute.xlu0 %47
  %v51 = vlaneseq
  %v52 = vshrl.u32 %v51, 7
  %v53 = vsub.s32 0, %v52
  %v54 = vrot.slane %v39, %v53
  %v56 = vmul.f32 %v43, %v54
  %v57 = vmul.f32 %v48, %v54
  %v58 = vld [vmem:[%s3] sm:$0x1]
  %v60 = vlaneseq
  %v61 = vshrl.u32 %v60, 7
  %v62 = vsub.s32 0, %v61
  %v63 = vrot.slane %v58, %v62
  %v65 = vadd.f32 %v56, %v63
  %v66 = vadd.f32 %v57, %v63
  %v67 = vmul.f32 %v65, %v65
  %v68 = vmul.f32 %v66, %v66
  %v69 = vtanh.pop %v67
  %v70 = vtanh.pop %v68
  %v71 = vsub.f32 1.0, %v69
  %v72 = vsub.f32 1.0, %v70
  %v73 = vld [vmem:[%s0] sm:$0xff]
  %v74 = vld [vmem:[%s0 + $0x8] sm:$0xff]
  %v75 = vld [vmem:[%s4] sm:$0xff]
  %v76 = vld [vmem:[%s4 + $0x8] sm:$0xff]
  %v77 = vld [vmem:[%s4 + $0x10] sm:$0xff]
  %v78 = vld [vmem:[%s4 + $0x18] sm:$0xff]
  %v79 = vld [vmem:[%s5] sm:$0xff]
  %v80 = vld [vmem:[%s5 + $0x8] sm:$0xff]
  %v81 = vld [vmem:[%s5 + $0x10] sm:$0xff]
  %v82 = vld [vmem:[%s5 + $0x18] sm:$0xff]
  %v83 = vld [vmem:[%s5 + $0x20] sm:$0xff]
  %v84 = vld [vmem:[%s5 + $0x28] sm:$0xff]
  %v85 = vld [vmem:[%s5 + $0x30] sm:$0xff]
  %v86 = vld [vmem:[%s5 + $0x38] sm:$0xff]
  %vm87 = vcmask 523264
  %v89 = vsel %vm87, %v71, 0
  %v92 = vsel %vm87, %v72, 0
  %94 = vmatprep.subr.mxu0 0.0
  %95 = vmatpush1.msra.mxu0 0.0
  %96 = vmatprep.subr.mxu0 0.0
  %97 = vmatpush1.msra.mxu0 0.0
  %98 = vmatprep.subr.mxu0 0.0
  %99 = vmatpush1.msra.mxu0 0.0
  %100 = vmatprep.subr.mxu0 0.0
  %101 = vmatpush1.msra.mxu0 0.0
  %102 = vmatprep.subr.mxu0 0.0
  %103 = vmatpush1.msra.mxu0 0.0
  %104 = vmatprep.subr.mxu0 0.0
  %105 = vmatpush1.msra.mxu0 0.0
  %106 = vmatprep.subr.mxu0 0.0
  %107 = vmatpush1.msra.mxu0 0.0
  %108 = vmatprep.subr.mxu0 0.0
  %109 = vmatpush1.msra.mxu0 0.0
  %110 = vmatprep.subr.mxu0 0.0
  %111 = vmatpush1.msra.mxu0 %v86
  %112 = vmatprep.subr.mxu0 0.0
  %113 = vmatpush1.msra.mxu0 %v85
  %114 = vmatprep.subr.mxu0 0.0
  %115 = vmatpush1.msra.mxu0 %v84
  %116 = vmatprep.subr.mxu0 0.0
  %117 = vmatpush1.msra.mxu0 %v83
  %118 = vmatprep.subr.mxu0 0.0
  %119 = vmatpush1.msra.mxu0 %v82
  %120 = vmatprep.subr.mxu0 0.0
  %121 = vmatpush1.msra.mxu0 %v81
  %122 = vmatprep.subr.mxu0 0.0
  %123 = vmatpush1.msra.mxu0 %v80
  %124 = vmatprep.subr.mxu0 0.0
  %125 = vmatpush1.msra.mxu0 %v79
  %126 = vmatprep.subr.mxu0 0.0
  %127 = vmatpush2.msra.mxu0 0.0
  %128 = vmatprep.subr.mxu0 0.0
  %129 = vmatpush2.msra.mxu0 0.0
  %130 = vmatprep.subr.mxu0 0.0
  %131 = vmatpush2.msra.mxu0 0.0
  %132 = vmatprep.subr.mxu0 0.0
  %133 = vmatpush2.msra.mxu0 0.0
  %134 = vmatprep.subr.mxu0 0.0
  %135 = vmatpush2.msra.mxu0 0.0
  %136 = vmatprep.subr.mxu0 0.0
  %137 = vmatpush2.msra.mxu0 0.0
  %138 = vmatprep.subr.mxu0 0.0
  %139 = vmatpush2.msra.mxu0 0.0
  %140 = vmatprep.subr.mxu0 0.0
  %141 = vmatpush2.msra.mxu0 0.0
  %142 = vmatprep.subr.mxu0 0.0
  %143 = vmatpush2.msra.mxu0 0.0
  %144 = vmatprep.subr.mxu0 0.0
  %145 = vmatpush2.msra.mxu0 0.0
  %146 = vmatprep.subr.mxu0 0.0
  %147 = vmatpush2.msra.mxu0 0.0
  %148 = vmatprep.subr.mxu0 0.0
  %149 = vmatpush2.msra.mxu0 0.0
  %150 = vmatprep.subr.mxu0 0.0
  %151 = vmatpush2.msra.mxu0 0.0
  %152 = vmatprep.subr.mxu0 0.0
  %153 = vmatpush2.msra.mxu0 0.0
  %154 = vmatprep.subr.mxu0 0.0
  %155 = vmatpush2.msra.mxu0 0.0
  %156 = vmatprep.subr.mxu0 0.0
  %157 = vmatpush2.msra.mxu0 0.0
  %158 = vmatprep.mubr.f32.mxu0 0.0
  %159 = vmatmul.mubr.f32.gmra.mxu0 %v89
  %v160 = vpop.f32.mrf.mxu0
  %v161 = vadd.f32 0.0, %v160
  %v162 = vpop.f32.mrf.mxu0
  %163 = vmatprep.mubr.f32.mxu0 0.0
  %164 = vmatmul.mubr.f32.gmra.mxu0 %v92
  %v165 = vpop.f32.mrf.mxu0
  %v166 = vadd.f32 0.0, %v165
  %v167 = vpop.f32.mrf.mxu0
  %168 = vdwg.mxu0
  %vm169 = vcmask 261120
  %v171 = vsel %vm169, %v73, 0
  %v174 = vsel %vm169, %v74, 0
  %176 = vmatprep.subr.mxu0 0.0
  %177 = vmatpush1.msra.mxu0 0.0
  %178 = vmatprep.subr.mxu0 0.0
  %179 = vmatpush1.msra.mxu0 0.0
  %180 = vmatprep.subr.mxu0 0.0
  %181 = vmatpush1.msra.mxu0 0.0
  %182 = vmatprep.subr.mxu0 0.0
  %183 = vmatpush1.msra.mxu0 0.0
  %184 = vmatprep.subr.mxu0 0.0
  %185 = vmatpush1.msra.mxu0 0.0
  %186 = vmatprep.subr.mxu0 0.0
  %187 = vmatpush1.msra.mxu0 0.0
  %188 = vmatprep.subr.mxu0 0.0
  %189 = vmatpush1.msra.mxu0 0.0
  %190 = vmatprep.subr.mxu0 0.0
  %191 = vmatpush1.msra.mxu0 0.0
  %192 = vmatprep.subr.mxu0 0.0
  %193 = vmatpush1.msra.mxu0 0.0
  %194 = vmatprep.subr.mxu0 0.0
  %195 = vmatpush1.msra.mxu0 0.0
  %196 = vmatprep.subr.mxu0 0.0
  %197 = vmatpush1.msra.mxu0 0.0
  %198 = vmatprep.subr.mxu0 0.0
  %199 = vmatpush1.msra.mxu0 0.0
  %200 = vmatprep.subr.mxu0 0.0
  %201 = vmatpush1.msra.mxu0 %v78
  %202 = vmatprep.subr.mxu0 0.0
  %203 = vmatpush1.msra.mxu0 %v77
  %204 = vmatprep.subr.mxu0 0.0
  %205 = vmatpush1.msra.mxu0 %v76
  %206 = vmatprep.subr.mxu0 0.0
  %207 = vmatpush1.msra.mxu0 %v75
  %208 = vmatprep.subr.mxu0 0.0
  %209 = vmatpush2.msra.mxu0 0.0
  %210 = vmatprep.subr.mxu0 0.0
  %211 = vmatpush2.msra.mxu0 0.0
  %212 = vmatprep.subr.mxu0 0.0
  %213 = vmatpush2.msra.mxu0 0.0
  %214 = vmatprep.subr.mxu0 0.0
  %215 = vmatpush2.msra.mxu0 0.0
  %216 = vmatprep.subr.mxu0 0.0
  %217 = vmatpush2.msra.mxu0 0.0
  %218 = vmatprep.subr.mxu0 0.0
  %219 = vmatpush2.msra.mxu0 0.0
  %220 = vmatprep.subr.mxu0 0.0
  %221 = vmatpush2.msra.mxu0 0.0
  %222 = vmatprep.subr.mxu0 0.0
  %223 = vmatpush2.msra.mxu0 0.0
  %224 = vmatprep.subr.mxu0 0.0
  %225 = vmatpush2.msra.mxu0 0.0
  %226 = vmatprep.subr.mxu0 0.0
  %227 = vmatpush2.msra.mxu0 0.0
  %228 = vmatprep.subr.mxu0 0.0
  %229 = vmatpush2.msra.mxu0 0.0
  %230 = vmatprep.subr.mxu0 0.0
  %231 = vmatpush2.msra.mxu0 0.0
  %232 = vmatprep.subr.mxu0 0.0
  %233 = vmatpush2.msra.mxu0 0.0
  %234 = vmatprep.subr.mxu0 0.0
  %235 = vmatpush2.msra.mxu0 0.0
  %236 = vmatprep.subr.mxu0 0.0
  %237 = vmatpush2.msra.mxu0 0.0
  %238 = vmatprep.subr.mxu0 0.0
  %239 = vmatpush2.msra.mxu0 0.0
  %240 = vmatprep.mubr.f32.mxu0 0.0
  %241 = vmatmul.mubr.f32.gmra.mxu0 %v171
  %v242 = vpop.f32.mrf.mxu0
  %v243 = vadd.f32 %v161, %v242
  %v244 = vpop.f32.mrf.mxu0
  %245 = vmatprep.mubr.f32.mxu0 0.0
  %246 = vmatmul.mubr.f32.gmra.mxu0 %v174
  %v247 = vpop.f32.mrf.mxu0
  %v248 = vadd.f32 %v166, %v247
  %v249 = vpop.f32.mrf.mxu0
  %250 = vdwg.mxu0
  %v251 = vld [vmem:[%s6] sm:$0x1]
  %v253 = vlaneseq
  %v254 = vshrl.u32 %v253, 7
  %v255 = vsub.s32 0, %v254
  %v256 = vrot.slane %v251, %v255
  %v258 = vadd.f32 %v243, %v256
  %v259 = vadd.f32 %v248, %v256
  %v260 = vld [vmem:[%s7] sm:$0x1]
  %v262 = vlaneseq
  %v263 = vshrl.u32 %v262, 7
  %v264 = vsub.s32 0, %v263
  %v265 = vrot.slane %v260, %v264
  %v267 = vadd.f32 %v258, %v265
  %v268 = vadd.f32 %v259, %v265
  %v269 = vtanh.pop %v267
  %v270 = vtanh.pop %v268
  %v271 = vld [vmem:[%s8] sm:$0xff]
  %v272 = vld [vmem:[%s8 + $0x8] sm:$0xff]
  %v273 = vld [vmem:[%s8 + $0x10] sm:$0xff]
  %v274 = vld [vmem:[%s8 + $0x18] sm:$0xff]
  %v275 = vld [vmem:[#allocation2] sm:$0x1]
  %v277 = vlaneseq
  %v278 = vshrl.u32 %v277, 7
  %v279 = vsub.s32 0, %v278
  %v280 = vrot.slane %v275, %v279
  %v283 = vsel %vm169, %v269, 0
  %v286 = vsel %vm169, %v270, 0
  %288 = vmatprep.subr.mxu0 0.0
  %289 = vmatpush1.msra.mxu0 0.0
  %290 = vmatprep.subr.mxu0 0.0
  %291 = vmatpush1.msra.mxu0 0.0
  %292 = vmatprep.subr.mxu0 0.0
  %293 = vmatpush1.msra.mxu0 0.0
  %294 = vmatprep.subr.mxu0 0.0
  %295 = vmatpush1.msra.mxu0 0.0
  %296 = vmatprep.subr.mxu0 0.0
  %297 = vmatpush1.msra.mxu0 0.0
  %298 = vmatprep.subr.mxu0 0.0
  %299 = vmatpush1.msra.mxu0 0.0
  %300 = vmatprep.subr.mxu0 0.0
  %301 = vmatpush1.msra.mxu0 0.0
  %302 = vmatprep.subr.mxu0 0.0
  %303 = vmatpush1.msra.mxu0 0.0
  %304 = vmatprep.subr.mxu0 0.0
  %305 = vmatpush1.msra.mxu0 0.0
  %306 = vmatprep.subr.mxu0 0.0
  %307 = vmatpush1.msra.mxu0 0.0
  %308 = vmatprep.subr.mxu0 0.0
  %309 = vmatpush1.msra.mxu0 0.0
  %310 = vmatprep.subr.mxu0 0.0
  %311 = vmatpush1.msra.mxu0 0.0
  %312 = vmatprep.subr.mxu0 0.0
  %313 = vmatpush1.msra.mxu0 %v274
  %314 = vmatprep.subr.mxu0 0.0
  %315 = vmatpush1.msra.mxu0 %v273
  %316 = vmatprep.subr.mxu0 0.0
  %317 = vmatpush1.msra.mxu0 %v272
  %318 = vmatprep.subr.mxu0 0.0
  %319 = vmatpush1.msra.mxu0 %v271
  %320 = vmatprep.subr.mxu0 0.0
  %321 = vmatpush2.msra.mxu0 0.0
  %322 = vmatprep.subr.mxu0 0.0
  %323 = vmatpush2.msra.mxu0 0.0
  %324 = vmatprep.subr.mxu0 0.0
  %325 = vmatpush2.msra.mxu0 0.0
  %326 = vmatprep.subr.mxu0 0.0
  %327 = vmatpush2.msra.mxu0 0.0
  %328 = vmatprep.subr.mxu0 0.0
  %329 = vmatpush2.msra.mxu0 0.0
  %330 = vmatprep.subr.mxu0 0.0
  %331 = vmatpush2.msra.mxu0 0.0
  %332 = vmatprep.subr.mxu0 0.0
  %333 = vmatpush2.msra.mxu0 0.0
  %334 = vmatprep.subr.mxu0 0.0
  %335 = vmatpush2.msra.mxu0 0.0
  %336 = vmatprep.subr.mxu0 0.0
  %337 = vmatpush2.msra.mxu0 0.0
  %338 = vmatprep.subr.mxu0 0.0
  %339 = vmatpush2.msra.mxu0 0.0
  %340 = vmatprep.subr.mxu0 0.0
  %341 = vmatpush2.msra.mxu0 0.0
  %342 = vmatprep.subr.mxu0 0.0
  %343 = vmatpush2.msra.mxu0 0.0
  %344 = vmatprep.subr.mxu0 0.0
  %345 = vmatpush2.msra.mxu0 0.0
  %346 = vmatprep.subr.mxu0 0.0
  %347 = vmatpush2.msra.mxu0 0.0
  %348 = vmatprep.subr.mxu0 0.0
  %349 = vmatpush2.msra.mxu0 0.0
  %350 = vmatprep.subr.mxu0 0.0
  %351 = vmatpush2.msra.mxu0 0.0
  %352 = vmatprep.mubr.f32.mxu0 0.0
  %353 = vmatmul.mubr.f32.gmra.mxu0 %v283
  %v354 = vpop.f32.mrf.mxu0
  %v355 = vadd.f32 %v280, %v354
  %v356 = vpop.f32.mrf.mxu0
  %357 = vmatprep.mubr.f32.mxu0 0.0
  %358 = vmatmul.mubr.f32.gmra.mxu0 %v286
  %v359 = vpop.f32.mrf.mxu0
  %v360 = vadd.f32 %v280, %v359
  %v361 = vpop.f32.mrf.mxu0
  %362 = vdwg.mxu0
  %vm363 = vcmask 7168
  %364 = vst.msk [vmem:[%s10] sm:$0xff] %vm363, %v355
  %365 = vst.msk [vmem:[%s10 + $0x8] sm:$0xff] %vm363, %v360
  // Predicated region
  $region42: #{_selected_forward_impl.10} parent=0 // pred_check
    _
  $region43: #{_selected_forward_impl.10} parent=0 // pred_check_branch
    %367 = sbr.rel (0) target = $region45
  $region44: #{_selected_forward_impl.10} parent=0 // pred_region
    _
  $region45: #{_selected_forward_impl.10} parent=0 // pred_fallthru
    _
  // Predicated region
  $region46: #{_selected_forward_impl.10} parent=0 // pred_check
    _
  $region47: #{_selected_forward_impl.10} parent=0 // pred_check_branch
    %369 = sbr.rel (0) target = $region49
  $region48: #{_selected_forward_impl.10} parent=0 // pred_region
    _
  $region49: #{_selected_forward_impl.10} parent=0 // pred_fallthru
    _

// kernel: _selected_forward_impl.9
$region0: #{_selected_forward_impl.9}
  #allocation0 [shape = 'u32[]', space=smem, size = 0x4, offset = 0x4, fixed_abs, tag = 'smem constant byte address 0x4 - core index']
  #allocation1 [shape = 'u32[144,128]{1,0:T(1,128)}', space=vmem, size = 0x12000, scoped, tag = 'internal scratch']
  #allocation2 [shape = 'f32[2,32]{1,0:T(2,128)}', space=vmem, size = 0x400, scoped, tag = 'scratch operand']
  #allocation3 [shape = 'f32[8,2,32]{2,1,0:T(2,128)}', space=vmem, size = 0x2000, scoped, tag = 'scratch operand']
  %s0 = inlined_call_operand.smem [shape: u32[40], index: -1, kind: input, shape index: {}]
  %s1 = sld [smem:[%s0]]
  %s2 = scalar_lea.smem %s0, 1
  %s3 = sld [smem:[%s2]]
  %s4 = scalar_lea.smem %s0, 2
  %s5 = sld [smem:[%s4]]
  %s6 = scalar_lea.smem %s0, 3
  %s7 = sld [smem:[%s6]]
  %s8 = scalar_lea.smem %s0, 4
  %s9 = sld [smem:[%s8]]
  %s10 = scalar_lea.smem %s0, 5
  %s11 = sld [smem:[%s10]]
  %s12 = scalar_lea.smem %s0, 6
  %s13 = sld [smem:[%s12]]
  %s14 = scalar_lea.smem %s0, 7
  %s15 = sld [smem:[%s14]]
  %s16 = scalar_lea.smem %s0, 8
  %s17 = sld [smem:[%s16]]
  %s18 = scalar_lea.smem %s0, 9
  %s19 = sld [smem:[%s18]]
  %s20 = scalar_lea.smem %s0, 10
  %s21 = sld [smem:[%s20]]
  %s22 = scalar_lea.smem %s0, 11
  %s23 = sld [smem:[%s22]]
  %s24 = scalar_lea.smem %s0, 12
  %s25 = sld [smem:[%s24]]
  %s26 = scalar_lea.smem %s0, 13
  %s27 = sld [smem:[%s26]]
  %s28 = scalar_lea.smem %s0, 14
  %s29 = sld [smem:[%s28]]
  %s30 = scalar_lea.smem %s0, 15
  %s31 = sld [smem:[%s30]]
  %s32 = scalar_lea.smem %s0, 16
  %s33 = sld [smem:[%s32]]
  %s34 = scalar_lea.smem %s0, 17
  %s35 = sld [smem:[%s34]]
  %s36 = scalar_lea.smem %s0, 18
  %s37 = sld [smem:[%s36]]
  %s38 = scalar_lea.smem %s0, 19
  %s39 = sld [smem:[%s38]]
  %s40 = scalar_lea.smem %s0, 20
  %s41 = sld [smem:[%s40]]
  %s42 = scalar_lea.smem %s0, 21
  %s43 = sld [smem:[%s42]]
  %s44 = scalar_lea.smem %s0, 22
  %s45 = sld [smem:[%s44]]
  %s46 = scalar_lea.smem %s0, 23
  %s47 = sld [smem:[%s46]]
  %s48 = scalar_lea.smem %s0, 24
  %s49 = sld [smem:[%s48]]
  %s50 = scalar_lea.smem %s0, 25
  %s51 = sld [smem:[%s50]]
  %s52 = scalar_lea.smem %s0, 26
  %s53 = sld [smem:[%s52]]
  %s54 = scalar_lea.smem %s0, 27
  %s55 = sld [smem:[%s54]]
  %s56 = scalar_lea.smem %s0, 28
  %s57 = sld [smem:[%s56]]
  %s58 = scalar_lea.smem %s0, 29
  %s59 = sld [smem:[%s58]]
  %s60 = scalar_lea.smem %s0, 30
  %s61 = sld [smem:[%s60]]
  %s62 = scalar_lea.smem %s0, 31
  %s63 = sld [smem:[%s62]]
  %s64 = scalar_lea.smem %s0, 32
  %s65 = sld [smem:[%s64]]
  %s66 = scalar_lea.smem %s0, 33
  %s67 = sld [smem:[%s66]]
  %s68 = scalar_lea.smem %s0, 34
  %s69 = sld [smem:[%s68]]
  %s70 = scalar_lea.smem %s0, 35
  %s71 = sld [smem:[%s70]]
  %s72 = scalar_lea.smem %s0, 36
  %s73 = sld [smem:[%s72]]
  %s74 = scalar_lea.smem %s0, 37
  %s75 = sld [smem:[%s74]]
  %s76 = scalar_lea.smem %s0, 38
  %s77 = sld [smem:[%s76]]
  %s78 = scalar_lea.smem %s0, 39
  %s79 = sld [smem:[%s78]]
  %80 = xla_tuple %s75, %s77, %s79
  %s81 = sld [smem:[#allocation0]]
  $region201: #{_selected_forward_impl.9} parent=0
    _
  %s83 = ssub.s32 1, %s81
  %s84 = scalar_select 0, %s83, %s81
  loop: start=0, step=1, limit=10
  $region2: #{_selected_forward_impl.9} parent=0 // loop_pre_header
    _
  $region3: #{_selected_forward_impl.9} parent=0 // loop_header
    %s86 = sphi 0, %s90
    %p87 = scmp.ge.s32.totalorder %s86, 10
    %s96 = sphi 0, %s98
    %s99 = sphi 0, %s96
    %s100 = sphi 0, %s99
    %s116 = sphi 0, %s100
    %s122 = sphi 0, %s124
    %s125 = sphi 0, %s122
    %s126 = sphi 0, %s125
    %s142 = sphi 0, %s126
    %s148 = sphi 0, %s150
    %s151 = sphi 0, %s148
    %s152 = sphi 0, %s151
    %s168 = sphi 0, %s152
    %s174 = sphi 0, %s176
    %s177 = sphi 0, %s174
    %s178 = sphi 0, %s177
    %s194 = sphi 0, %s178
    %s200 = sphi 0, %s202
    %s203 = sphi 0, %s200
    %s204 = sphi 0, %s203
    %s220 = sphi 0, %s204
    %s226 = sphi 0, %s228
    %s229 = sphi 0, %s226
    %s230 = sphi 0, %s229
    %s246 = sphi 0, %s230
    %s250 = sphi 0, %s250
    %s252 = sphi 0, %s250
    %s253 = sphi 0, %s252
    %s267 = sphi 0, %s253
    %s271 = sphi 0, %s271
    %s273 = sphi 0, %s271
    %s274 = sphi 0, %s273
    %s288 = sphi 0, %s274
    %s292 = sphi 0, %s292
    %s294 = sphi 0, %s292
    %s295 = sphi 0, %s294
    %s309 = sphi 0, %s295
    %s313 = sphi 0, %s313
    %s315 = sphi 0, %s313
    %s316 = sphi 0, %s315
    %s330 = sphi 0, %s316
    %s334 = sphi 0, %s334
    %s336 = sphi 0, %s334
    %s337 = sphi 0, %s336
    %s351 = sphi 0, %s337
    %s355 = sphi 0, %s355
    %s357 = sphi 0, %s355
    %s358 = sphi 0, %s357
    %s372 = sphi 0, %s358
    %s376 = sphi 0, %s376
    %s378 = sphi 0, %s376
    %s379 = sphi 0, %s378
    %s393 = sphi 0, %s379
    %s397 = sphi 0, %s397
    %s399 = sphi 0, %s397
    %s400 = sphi 0, %s399
    %s414 = sphi 0, %s400
    %s418 = sphi 0, %s418
    %s420 = sphi 0, %s418
    %s421 = sphi 0, %s420
    %s435 = sphi 0, %s421
    %s439 = sphi 0, %s439
    %s441 = sphi 0, %s439
    %s442 = sphi 0, %s441
    %s456 = sphi 0, %s442
    %s460 = sphi 0, %s460
    %s462 = sphi 0, %s460
    %s463 = sphi 0, %s462
    %s477 = sphi 0, %s463
    %s481 = sphi 0, %s481
    %s483 = sphi 0, %s481
    %s484 = sphi 0, %s483
    %s498 = sphi 0, %s484
    %s502 = sphi 0, %s502
    %s504 = sphi 0, %s502
    %s505 = sphi 0, %s504
    %s519 = sphi 0, %s505
    %s523 = sphi 0, %s523
    %s525 = sphi 0, %s523
    %s526 = sphi 0, %s525
    %s540 = sphi 0, %s526
    %s544 = sphi 0, %s544
    %s546 = sphi 0, %s544
    %s547 = sphi 0, %s546
    %s561 = sphi 0, %s547
    %s565 = sphi 0, %s565
    %s567 = sphi 0, %s565
    %s568 = sphi 0, %s567
    %s582 = sphi 0, %s568
    %s586 = sphi 0, %s586
    %s588 = sphi 0, %s586
    %s589 = sphi 0, %s588
    %s603 = sphi 0, %s589
    %s607 = sphi 0, %s607
    %s609 = sphi 0, %s607
    %s610 = sphi 0, %s609
    %s624 = sphi 0, %s610
    %s628 = sphi 0, %s628
    %s630 = sphi 0, %s628
    %s631 = sphi 0, %s630
    %s645 = sphi 0, %s631
    %s649 = sphi 0, %s649
    %s651 = sphi 0, %s649
    %s652 = sphi 0, %s651
    %s666 = sphi 0, %s652
    %s670 = sphi 0, %s670
    %s672 = sphi 0, %s670
    %s673 = sphi 0, %s672
    %s687 = sphi 0, %s673
    %s691 = sphi 0, %s691
    %s693 = sphi 0, %s691
    %s694 = sphi 0, %s693
    %s708 = sphi 0, %s694
    %s712 = sphi 0, %s712
    %s714 = sphi 0, %s712
    %s715 = sphi 0, %s714
    %s729 = sphi 0, %s715
    %s733 = sphi 0, %s733
    %s735 = sphi 0, %s733
    %s736 = sphi 0, %s735
    %s750 = sphi 0, %s736
    %s754 = sphi 0, %s754
    %s756 = sphi 0, %s754
    %s757 = sphi 0, %s756
    %s771 = sphi 0, %s757
    %s775 = sphi 0, %s775
    %s777 = sphi 0, %s775
    %s778 = sphi 0, %s777
    %s792 = sphi 0, %s778
    %s796 = sphi 0, %s796
    %s798 = sphi 0, %s796
    %s799 = sphi 0, %s798
    %s813 = sphi 0, %s799
    %s817 = sphi 0, %s817
    %s819 = sphi 0, %s817
    %s820 = sphi 0, %s819
    %s834 = sphi 0, %s820
    %s838 = sphi 0, %s838
    %s840 = sphi 0, %s838
    %s841 = sphi 0, %s840
    %s855 = sphi 0, %s841
    %s859 = sphi 0, %s859
    %s861 = sphi 0, %s859
    %s862 = sphi 0, %s861
    %s876 = sphi 0, %s862
    %s880 = sphi 0, %s880
    %s882 = sphi 0, %s880
    %s883 = sphi 0, %s882
    %s897 = sphi 0, %s883
    %s903 = sphi 0, %s905
    %s906 = sphi 0, %s903
    %s907 = sphi 0, %s906
    %s923 = sphi 0, %s907
    %s929 = sphi 0, %s931
    %s932 = sphi 0, %s929
    %s933 = sphi 0, %s932
    %s949 = sphi 0, %s933
    %s955 = sphi 0, %s957
    %s958 = sphi 0, %s955
    %s959 = sphi 0, %s958
    %s975 = sphi 0, %s959
  $region4: #{_selected_forward_impl.9} parent=0 // loop_header_branch
    %89 = sbr.rel (%p87) target = $region8
  $region5: #{_selected_forward_impl.9} parent=0 // loop_body
    %s91 = ssub.s32 %s86, 1
    %s92 = ssub.s32 %s86, 2
    %s93 = sadd.s32 %s86, 1
    %s94 = ssub.s32 %s86, %s93
    %p95 = scmp.eq.s32.totalorder %s94, 0
    %s97 = sadd.s32 %s96, 1
    %s98 = scalar_select %p95, %s96, %s97
    %p101 = pneg %p95
    %p102 = scmp.eq.s32.totalorder %s86, 7
    %p103 = por %p101, %p102
    %p104 = scmp.ne.s32.totalorder %s96, %s99
    %p105 = scmp.eq.s32.totalorder %s86, 0
    %p106 = por %p104, %p105
    %p107 = scmp.ne.s32.totalorder %s96, %s99
    %p108 = scmp.eq.s32.totalorder %s91, 7
    %p109 = por %p107, %p108
    %p110 = scmp.ne.s32.totalorder %s99, %s100
    %p111 = scmp.eq.s32.totalorder %s91, 0
    %p112 = por %p110, %p111
    %p113 = scmp.ne.s32.totalorder %s99, %s100
    %p114 = scmp.eq.s32.totalorder %s92, 7
    %p115 = por %p113, %p114
    %p117 = scmp.ne.s32.totalorder %s100, %s116
    %p118 = scmp.eq.s32.totalorder %s92, 0
    %p119 = por %p117, %p118
    %s120 = ssub.s32 %s86, %s93
    %p121 = scmp.eq.s32.totalorder %s120, 0
    %s123 = sadd.s32 %s122, 1
    %s124 = scalar_select %p121, %s122, %s123
    %p127 = pneg %p121
    %p128 = scmp.eq.s32.totalorder %s86, 7
    %p129 = por %p127, %p128
    %p130 = scmp.ne.s32.totalorder %s122, %s125
    %p131 = scmp.eq.s32.totalorder %s86, 0
    %p132 = por %p130, %p131
    %p133 = scmp.ne.s32.totalorder %s122, %s125
    %p134 = scmp.eq.s32.totalorder %s91, 7
    %p135 = por %p133, %p134
    %p136 = scmp.ne.s32.totalorder %s125, %s126
    %p137 = scmp.eq.s32.totalorder %s91, 0
    %p138 = por %p136, %p137
    %p139 = scmp.ne.s32.totalorder %s125, %s126
    %p140 = scmp.eq.s32.totalorder %s92, 7
    %p141 = por %p139, %p140
    %p143 = scmp.ne.s32.totalorder %s126, %s142
    %p144 = scmp.eq.s32.totalorder %s92, 0
    %p145 = por %p143, %p144
    %s146 = ssub.s32 %s86, %s93
    %p147 = scmp.eq.s32.totalorder %s146, 0
    %s149 = sadd.s32 %s148, 1
    %s150 = scalar_select %p147, %s148, %s149
    %p153 = pneg %p147
    %p154 = scmp.eq.s32.totalorder %s86, 7
    %p155 = por %p153, %p154
    %p156 = scmp.ne.s32.totalorder %s148, %s151
    %p157 = scmp.eq.s32.totalorder %s86, 0
    %p158 = por %p156, %p157
    %p159 = scmp.ne.s32.totalorder %s148, %s151
    %p160 = scmp.eq.s32.totalorder %s91, 7
    %p161 = por %p159, %p160
    %p162 = scmp.ne.s32.totalorder %s151, %s152
    %p163 = scmp.eq.s32.totalorder %s91, 0
    %p164 = por %p162, %p163
    %p165 = scmp.ne.s32.totalorder %s151, %s152
    %p166 = scmp.eq.s32.totalorder %s92, 7
    %p167 = por %p165, %p166
    %p169 = scmp.ne.s32.totalorder %s152, %s168
    %p170 = scmp.eq.s32.totalorder %s92, 0
    %p171 = por %p169, %p170
    %s172 = ssub.s32 %s86, %s93
    %p173 = scmp.eq.s32.totalorder %s172, 0
    %s175 = sadd.s32 %s174, 1
    %s176 = scalar_select %p173, %s174, %s175
    %p179 = pneg %p173
    %p180 = scmp.eq.s32.totalorder %s86, 7
    %p181 = por %p179, %p180
    %p182 = scmp.ne.s32.totalorder %s174, %s177
    %p183 = scmp.eq.s32.totalorder %s86, 0
    %p184 = por %p182, %p183
    %p185 = scmp.ne.s32.totalorder %s174, %s177
    %p186 = scmp.eq.s32.totalorder %s91, 7
    %p187 = por %p185, %p186
    %p188 = scmp.ne.s32.totalorder %s177, %s178
    %p189 = scmp.eq.s32.totalorder %s91, 0
    %p190 = por %p188, %p189
    %p191 = scmp.ne.s32.totalorder %s177, %s178
    %p192 = scmp.eq.s32.totalorder %s92, 7
    %p193 = por %p191, %p192
    %p195 = scmp.ne.s32.totalorder %s178, %s194
    %p196 = scmp.eq.s32.totalorder %s92, 0
    %p197 = por %p195, %p196
    %s198 = ssub.s32 %s86, %s93
    %p199 = scmp.eq.s32.totalorder %s198, 0
    %s201 = sadd.s32 %s200, 1
    %s202 = scalar_select %p199, %s200, %s201
    %p205 = pneg %p199
    %p206 = scmp.eq.s32.totalorder %s86, 7
    %p207 = por %p205, %p206
    %p208 = scmp.ne.s32.totalorder %s200, %s203
    %p209 = scmp.eq.s32.totalorder %s86, 0
    %p210 = por %p208, %p209
    %p211 = scmp.ne.s32.totalorder %s200, %s203
    %p212 = scmp.eq.s32.totalorder %s91, 7
    %p213 = por %p211, %p212
    %p214 = scmp.ne.s32.totalorder %s203, %s204
    %p215 = scmp.eq.s32.totalorder %s91, 0
    %p216 = por %p214, %p215
    %p217 = scmp.ne.s32.totalorder %s203, %s204
    %p218 = scmp.eq.s32.totalorder %s92, 7
    %p219 = por %p217, %p218
    %p221 = scmp.ne.s32.totalorder %s204, %s220
    %p222 = scmp.eq.s32.totalorder %s92, 0
    %p223 = por %p221, %p222
    %s224 = ssub.s32 %s86, %s93
    %p225 = scmp.eq.s32.totalorder %s224, 0
    %s227 = sadd.s32 %s226, 1
    %s228 = scalar_select %p225, %s226, %s227
    %p231 = pneg %p225
    %p232 = scmp.eq.s32.totalorder %s86, 7
    %p233 = por %p231, %p232
    %p234 = scmp.ne.s32.totalorder %s226, %s229
    %p235 = scmp.eq.s32.totalorder %s86, 0
    %p236 = por %p234, %p235
    %p237 = scmp.ne.s32.totalorder %s226, %s229
    %p238 = scmp.eq.s32.totalorder %s91, 7
    %p239 = por %p237, %p238
    %p240 = scmp.ne.s32.totalorder %s229, %s230
    %p241 = scmp.eq.s32.totalorder %s91, 0
    %p242 = por %p240, %p241
    %p243 = scmp.ne.s32.totalorder %s229, %s230
    %p244 = scmp.eq.s32.totalorder %s92, 7
    %p245 = por %p243, %p244
    %p247 = scmp.ne.s32.totalorder %s230, %s246
    %p248 = scmp.eq.s32.totalorder %s92, 0
    %p249 = por %p247, %p248
    %s251 = sadd.s32 %s250, 1
    %p254 = scmp.eq.s32.totalorder %s86, 7
    %p255 = scmp.ne.s32.totalorder %s250, %s252
    %p256 = scmp.eq.s32.totalorder %s86, 0
    %p257 = por %p255, %p256
    %p258 = scmp.ne.s32.totalorder %s250, %s252
    %p259 = scmp.eq.s32.totalorder %s91, 7
    %p260 = por %p258, %p259
    %p261 = scmp.ne.s32.totalorder %s252, %s253
    %p262 = scmp.eq.s32.totalorder %s91, 0
    %p263 = por %p261, %p262
    %p264 = scmp.ne.s32.totalorder %s252, %s253
    %p265 = scmp.eq.s32.totalorder %s92, 7
    %p266 = por %p264, %p265
    %p268 = scmp.ne.s32.totalorder %s253, %s267
    %p269 = scmp.eq.s32.totalorder %s92, 0
    %p270 = por %p268, %p269
    %s272 = sadd.s32 %s271, 1
    %p275 = scmp.eq.s32.totalorder %s86, 7
    %p276 = scmp.ne.s32.totalorder %s271, %s273
    %p277 = scmp.eq.s32.totalorder %s86, 0
    %p278 = por %p276, %p277
    %p279 = scmp.ne.s32.totalorder %s271, %s273
    %p280 = scmp.eq.s32.totalorder %s91, 7
    %p281 = por %p279, %p280
    %p282 = scmp.ne.s32.totalorder %s273, %s274
    %p283 = scmp.eq.s32.totalorder %s91, 0
    %p284 = por %p282, %p283
    %p285 = scmp.ne.s32.totalorder %s273, %s274
    %p286 = scmp.eq.s32.totalorder %s92, 7
    %p287 = por %p285, %p286
    %p289 = scmp.ne.s32.totalorder %s274, %s288
    %p290 = scmp.eq.s32.totalorder %s92, 0
    %p291 = por %p289, %p290
    %s293 = sadd.s32 %s292, 1
    %p296 = scmp.eq.s32.totalorder %s86, 7
    %p297 = scmp.ne.s32.totalorder %s292, %s294
    %p298 = scmp.eq.s32.totalorder %s86, 0
    %p299 = por %p297, %p298
    %p300 = scmp.ne.s32.totalorder %s292, %s294
    %p301 = scmp.eq.s32.totalorder %s91, 7
    %p302 = por %p300, %p301
    %p303 = scmp.ne.s32.totalorder %s294, %s295
    %p304 = scmp.eq.s32.totalorder %s91, 0
    %p305 = por %p303, %p304
    %p306 = scmp.ne.s32.totalorder %s294, %s295
    %p307 = scmp.eq.s32.totalorder %s92, 7
    %p308 = por %p306, %p307
    %p310 = scmp.ne.s32.totalorder %s295, %s309
    %p311 = scmp.eq.s32.totalorder %s92, 0
    %p312 = por %p310, %p311
    %s314 = sadd.s32 %s313, 1
    %p317 = scmp.eq.s32.totalorder %s86, 7
    %p318 = scmp.ne.s32.totalorder %s313, %s315
    %p319 = scmp.eq.s32.totalorder %s86, 0
    %p320 = por %p318, %p319
    %p321 = scmp.ne.s32.totalorder %s313, %s315
    %p322 = scmp.eq.s32.totalorder %s91, 7
    %p323 = por %p321, %p322
    %p324 = scmp.ne.s32.totalorder %s315, %s316
    %p325 = scmp.eq.s32.totalorder %s91, 0
    %p326 = por %p324, %p325
    %p327 = scmp.ne.s32.totalorder %s315, %s316
    %p328 = scmp.eq.s32.totalorder %s92, 7
    %p329 = por %p327, %p328
    %p331 = scmp.ne.s32.totalorder %s316, %s330
    %p332 = scmp.eq.s32.totalorder %s92, 0
    %p333 = por %p331, %p332
    %s335 = sadd.s32 %s334, 1
    %p338 = scmp.eq.s32.totalorder %s86, 7
    %p339 = scmp.ne.s32.totalorder %s334, %s336
    %p340 = scmp.eq.s32.totalorder %s86, 0
    %p341 = por %p339, %p340
    %p342 = scmp.ne.s32.totalorder %s334, %s336
    %p343 = scmp.eq.s32.totalorder %s91, 7
    %p344 = por %p342, %p343
    %p345 = scmp.ne.s32.totalorder %s336, %s337
    %p346 = scmp.eq.s32.totalorder %s91, 0
    %p347 = por %p345, %p346
    %p348 = scmp.ne.s32.totalorder %s336, %s337
    %p349 = scmp.eq.s32.totalorder %s92, 7
    %p350 = por %p348, %p349
    %p352 = scmp.ne.s32.totalorder %s337, %s351
    %p353 = scmp.eq.s32.totalorder %s92, 0
    %p354 = por %p352, %p353
    %s356 = sadd.s32 %s355, 1
    %p359 = scmp.eq.s32.totalorder %s86, 7
    %p360 = scmp.ne.s32.totalorder %s355, %s357
    %p361 = scmp.eq.s32.totalorder %s86, 0
    %p362 = por %p360, %p361
    %p363 = scmp.ne.s32.totalorder %s355, %s357
    %p364 = scmp.eq.s32.totalorder %s91, 7
    %p365 = por %p363, %p364
    %p366 = scmp.ne.s32.totalorder %s357, %s358
    %p367 = scmp.eq.s32.totalorder %s91, 0
    %p368 = por %p366, %p367
    %p369 = scmp.ne.s32.totalorder %s357, %s358
    %p370 = scmp.eq.s32.totalorder %s92, 7
    %p371 = por %p369, %p370
    %p373 = scmp.ne.s32.totalorder %s358, %s372
    %p374 = scmp.eq.s32.totalorder %s92, 0
    %p375 = por %p373, %p374
    %s377 = sadd.s32 %s376, 1
    %p380 = scmp.eq.s32.totalorder %s86, 7
    %p381 = scmp.ne.s32.totalorder %s376, %s378
    %p382 = scmp.eq.s32.totalorder %s86, 0
    %p383 = por %p381, %p382
    %p384 = scmp.ne.s32.totalorder %s376, %s378
    %p385 = scmp.eq.s32.totalorder %s91, 7
    %p386 = por %p384, %p385
    %p387 = scmp.ne.s32.totalorder %s378, %s379
    %p388 = scmp.eq.s32.totalorder %s91, 0
    %p389 = por %p387, %p388
    %p390 = scmp.ne.s32.totalorder %s378, %s379
    %p391 = scmp.eq.s32.totalorder %s92, 7
    %p392 = por %p390, %p391
    %p394 = scmp.ne.s32.totalorder %s379, %s393
    %p395 = scmp.eq.s32.totalorder %s92, 0
    %p396 = por %p394, %p395
    %s398 = sadd.s32 %s397, 1
    %p401 = scmp.eq.s32.totalorder %s86, 7
    %p402 = scmp.ne.s32.totalorder %s397, %s399
    %p403 = scmp.eq.s32.totalorder %s86, 0
    %p404 = por %p402, %p403
    %p405 = scmp.ne.s32.totalorder %s397, %s399
    %p406 = scmp.eq.s32.totalorder %s91, 7
    %p407 = por %p405, %p406
    %p408 = scmp.ne.s32.totalorder %s399, %s400
    %p409 = scmp.eq.s32.totalorder %s91, 0
    %p410 = por %p408, %p409
    %p411 = scmp.ne.s32.totalorder %s399, %s400
    %p412 = scmp.eq.s32.totalorder %s92, 7
    %p413 = por %p411, %p412
    %p415 = scmp.ne.s32.totalorder %s400, %s414
    %p416 = scmp.eq.s32.totalorder %s92, 0
    %p417 = por %p415, %p416
    %s419 = sadd.s32 %s418, 1
    %p422 = scmp.eq.s32.totalorder %s86, 7
    %p423 = scmp.ne.s32.totalorder %s418, %s420
    %p424 = scmp.eq.s32.totalorder %s86, 0
    %p425 = por %p423, %p424
    %p426 = scmp.ne.s32.totalorder %s418, %s420
    %p427 = scmp.eq.s32.totalorder %s91, 7
    %p428 = por %p426, %p427
    %p429 = scmp.ne.s32.totalorder %s420, %s421
    %p430 = scmp.eq.s32.totalorder %s91, 0
    %p431 = por %p429, %p430
    %p432 = scmp.ne.s32.totalorder %s420, %s421
    %p433 = scmp.eq.s32.totalorder %s92, 7
    %p434 = por %p432, %p433
    %p436 = scmp.ne.s32.totalorder %s421, %s435
    %p437 = scmp.eq.s32.totalorder %s92, 0
    %p438 = por %p436, %p437
    %s440 = sadd.s32 %s439, 1
    %p443 = scmp.eq.s32.totalorder %s86, 7
    %p444 = scmp.ne.s32.totalorder %s439, %s441
    %p445 = scmp.eq.s32.totalorder %s86, 0
    %p446 = por %p444, %p445
    %p447 = scmp.ne.s32.totalorder %s439, %s441
    %p448 = scmp.eq.s32.totalorder %s91, 7
    %p449 = por %p447, %p448
    %p450 = scmp.ne.s32.totalorder %s441, %s442
    %p451 = scmp.eq.s32.totalorder %s91, 0
    %p452 = por %p450, %p451
    %p453 = scmp.ne.s32.totalorder %s441, %s442
    %p454 = scmp.eq.s32.totalorder %s92, 7
    %p455 = por %p453, %p454
    %p457 = scmp.ne.s32.totalorder %s442, %s456
    %p458 = scmp.eq.s32.totalorder %s92, 0
    %p459 = por %p457, %p458
    %s461 = sadd.s32 %s460, 1
    %p464 = scmp.eq.s32.totalorder %s86, 7
    %p465 = scmp.ne.s32.totalorder %s460, %s462
    %p466 = scmp.eq.s32.totalorder %s86, 0
    %p467 = por %p465, %p466
    %p468 = scmp.ne.s32.totalorder %s460, %s462
    %p469 = scmp.eq.s32.totalorder %s91, 7
    %p470 = por %p468, %p469
    %p471 = scmp.ne.s32.totalorder %s462, %s463
    %p472 = scmp.eq.s32.totalorder %s91, 0
    %p473 = por %p471, %p472
    %p474 = scmp.ne.s32.totalorder %s462, %s463
    %p475 = scmp.eq.s32.totalorder %s92, 7
    %p476 = por %p474, %p475
    %p478 = scmp.ne.s32.totalorder %s463, %s477
    %p479 = scmp.eq.s32.totalorder %s92, 0
    %p480 = por %p478, %p479
    %s482 = sadd.s32 %s481, 1
    %p485 = scmp.eq.s32.totalorder %s86, 7
    %p486 = scmp.ne.s32.totalorder %s481, %s483
    %p487 = scmp.eq.s32.totalorder %s86, 0
    %p488 = por %p486, %p487
    %p489 = scmp.ne.s32.totalorder %s481, %s483
    %p490 = scmp.eq.s32.totalorder %s91, 7
    %p491 = por %p489, %p490
    %p492 = scmp.ne.s32.totalorder %s483, %s484
    %p493 = scmp.eq.s32.totalorder %s91, 0
    %p494 = por %p492, %p493
    %p495 = scmp.ne.s32.totalorder %s483, %s484
    %p496 = scmp.eq.s32.totalorder %s92, 7
    %p497 = por %p495, %p496
    %p499 = scmp.ne.s32.totalorder %s484, %s498
    %p500 = scmp.eq.s32.totalorder %s92, 0
    %p501 = por %p499, %p500
    %s503 = sadd.s32 %s502, 1
    %p506 = scmp.eq.s32.totalorder %s86, 7
    %p507 = scmp.ne.s32.totalorder %s502, %s504
    %p508 = scmp.eq.s32.totalorder %s86, 0
    %p509 = por %p507, %p508
    %p510 = scmp.ne.s32.totalorder %s502, %s504
    %p511 = scmp.eq.s32.totalorder %s91, 7
    %p512 = por %p510, %p511
    %p513 = scmp.ne.s32.totalorder %s504, %s505
    %p514 = scmp.eq.s32.totalorder %s91, 0
    %p515 = por %p513, %p514
    %p516 = scmp.ne.s32.totalorder %s504, %s505
    %p517 = scmp.eq.s32.totalorder %s92, 7
    %p518 = por %p516, %p517
    %p520 = scmp.ne.s32.totalorder %s505, %s519
    %p521 = scmp.eq.s32.totalorder %s92, 0
    %p522 = por %p520, %p521
    %s524 = sadd.s32 %s523, 1
    %p527 = scmp.eq.s32.totalorder %s86, 7
    %p528 = scmp.ne.s32.totalorder %s523, %s525
    %p529 = scmp.eq.s32.totalorder %s86, 0
    %p530 = por %p528, %p529
    %p531 = scmp.ne.s32.totalorder %s523, %s525
    %p532 = scmp.eq.s32.totalorder %s91, 7
    %p533 = por %p531, %p532
    %p534 = scmp.ne.s32.totalorder %s525, %s526
    %p535 = scmp.eq.s32.totalorder %s91, 0
    %p536 = por %p534, %p535
    %p537 = scmp.ne.s32.totalorder %s525, %s526
    %p538 = scmp.eq.s32.totalorder %s92, 7
    %p539 = por %p537, %p538
    %p541 = scmp.ne.s32.totalorder %s526, %s540
    %p542 = scmp.eq.s32.totalorder %s92, 0
    %p543 = por %p541, %p542
    %s545 = sadd.s32 %s544, 1
    %p548 = scmp.eq.s32.totalorder %s86, 7
    %p549 = scmp.ne.s32.totalorder %s544, %s546
    %p550 = scmp.eq.s32.totalorder %s86, 0
    %p551 = por %p549, %p550
    %p552 = scmp.ne.s32.totalorder %s544, %s546
    %p553 = scmp.eq.s32.totalorder %s91, 7
    %p554 = por %p552, %p553
    %p555 = scmp.ne.s32.totalorder %s546, %s547
    %p556 = scmp.eq.s32.totalorder %s91, 0
    %p557 = por %p555, %p556
    %p558 = scmp.ne.s32.totalorder %s546, %s547
    %p559 = scmp.eq.s32.totalorder %s92, 7
    %p560 = por %p558, %p559
    %p562 = scmp.ne.s32.totalorder %s547, %s561
    %p563 = scmp.eq.s32.totalorder %s92, 0
    %p564 = por %p562, %p563
    %s566 = sadd.s32 %s565, 1
    %p569 = scmp.eq.s32.totalorder %s86, 7
    %p570 = scmp.ne.s32.totalorder %s565, %s567
    %p571 = scmp.eq.s32.totalorder %s86, 0
    %p572 = por %p570, %p571
    %p573 = scmp.ne.s32.totalorder %s565, %s567
    %p574 = scmp.eq.s32.totalorder %s91, 7
    %p575 = por %p573, %p574
    %p576 = scmp.ne.s32.totalorder %s567, %s568
    %p577 = scmp.eq.s32.totalorder %s91, 0
    %p578 = por %p576, %p577
    %p579 = scmp.ne.s32.totalorder %s567, %s568
    %p580 = scmp.eq.s32.totalorder %s92, 7
    %p581 = por %p579, %p580
    %p583 = scmp.ne.s32.totalorder %s568, %s582
    %p584 = scmp.eq.s32.totalorder %s92, 0
    %p585 = por %p583, %p584
    %s587 = sadd.s32 %s586, 1
    %p590 = scmp.eq.s32.totalorder %s86, 7
    %p591 = scmp.ne.s32.totalorder %s586, %s588
    %p592 = scmp.eq.s32.totalorder %s86, 0
    %p593 = por %p591, %p592
    %p594 = scmp.ne.s32.totalorder %s586, %s588
    %p595 = scmp.eq.s32.totalorder %s91, 7
    %p596 = por %p594, %p595
    %p597 = scmp.ne.s32.totalorder %s588, %s589
    %p598 = scmp.eq.s32.totalorder %s91, 0
    %p599 = por %p597, %p598
    %p600 = scmp.ne.s32.totalorder %s588, %s589
    %p601 = scmp.eq.s32.totalorder %s92, 7
    %p602 = por %p600, %p601
    %p604 = scmp.ne.s32.totalorder %s589, %s603
    %p605 = scmp.eq.s32.totalorder %s92, 0
    %p606 = por %p604, %p605
    %s608 = sadd.s32 %s607, 1
    %p611 = scmp.eq.s32.totalorder %s86, 7
    %p612 = scmp.ne.s32.totalorder %s607, %s609
    %p613 = scmp.eq.s32.totalorder %s86, 0
    %p614 = por %p612, %p613
    %p615 = scmp.ne.s32.totalorder %s607, %s609
    %p616 = scmp.eq.s32.totalorder %s91, 7
    %p617 = por %p615, %p616
    %p618 = scmp.ne.s32.totalorder %s609, %s610
    %p619 = scmp.eq.s32.totalorder %s91, 0
    %p620 = por %p618, %p619
    %p621 = scmp.ne.s32.totalorder %s609, %s610
    %p622 = scmp.eq.s32.totalorder %s92, 7
    %p623 = por %p621, %p622
    %p625 = scmp.ne.s32.totalorder %s610, %s624
    %p626 = scmp.eq.s32.totalorder %s92, 0
    %p627 = por %p625, %p626
    %s629 = sadd.s32 %s628, 1
    %p632 = scmp.eq.s32.totalorder %s86, 7
    %p633 = scmp.ne.s32.totalorder %s628, %s630
    %p634 = scmp.eq.s32.totalorder %s86, 0
    %p635 = por %p633, %p634
    %p636 = scmp.ne.s32.totalorder %s628, %s630
    %p637 = scmp.eq.s32.totalorder %s91, 7
    %p638 = por %p636, %p637
    %p639 = scmp.ne.s32.totalorder %s630, %s631
    %p640 = scmp.eq.s32.totalorder %s91, 0
    %p641 = por %p639, %p640
    %p642 = scmp.ne.s32.totalorder %s630, %s631
    %p643 = scmp.eq.s32.totalorder %s92, 7
    %p644 = por %p642, %p643
    %p646 = scmp.ne.s32.totalorder %s631, %s645
    %p647 = scmp.eq.s32.totalorder %s92, 0
    %p648 = por %p646, %p647
    %s650 = sadd.s32 %s649, 1
    %p653 = scmp.eq.s32.totalorder %s86, 7
    %p654 = scmp.ne.s32.totalorder %s649, %s651
    %p655 = scmp.eq.s32.totalorder %s86, 0
    %p656 = por %p654, %p655
    %p657 = scmp.ne.s32.totalorder %s649, %s651
    %p658 = scmp.eq.s32.totalorder %s91, 7
    %p659 = por %p657, %p658
    %p660 = scmp.ne.s32.totalorder %s651, %s652
    %p661 = scmp.eq.s32.totalorder %s91, 0
    %p662 = por %p660, %p661
    %p663 = scmp.ne.s32.totalorder %s651, %s652
    %p664 = scmp.eq.s32.totalorder %s92, 7
    %p665 = por %p663, %p664
    %p667 = scmp.ne.s32.totalorder %s652, %s666
    %p668 = scmp.eq.s32.totalorder %s92, 0
    %p669 = por %p667, %p668
    %s671 = sadd.s32 %s670, 1
    %p674 = scmp.eq.s32.totalorder %s86, 7
    %p675 = scmp.ne.s32.totalorder %s670, %s672
    %p676 = scmp.eq.s32.totalorder %s86, 0
    %p677 = por %p675, %p676
    %p678 = scmp.ne.s32.totalorder %s670, %s672
    %p679 = scmp.eq.s32.totalorder %s91, 7
    %p680 = por %p678, %p679
    %p681 = scmp.ne.s32.totalorder %s672, %s673
    %p682 = scmp.eq.s32.totalorder %s91, 0
    %p683 = por %p681, %p682
    %p684 = scmp.ne.s32.totalorder %s672, %s673
    %p685 = scmp.eq.s32.totalorder %s92, 7
    %p686 = por %p684, %p685
    %p688 = scmp.ne.s32.totalorder %s673, %s687
    %p689 = scmp.eq.s32.totalorder %s92, 0
    %p690 = por %p688, %p689
    %s692 = sadd.s32 %s691, 1
    %p695 = scmp.eq.s32.totalorder %s86, 7
    %p696 = scmp.ne.s32.totalorder %s691, %s693
    %p697 = scmp.eq.s32.totalorder %s86, 0
    %p698 = por %p696, %p697
    %p699 = scmp.ne.s32.totalorder %s691, %s693
    %p700 = scmp.eq.s32.totalorder %s91, 7
    %p701 = por %p699, %p700
    %p702 = scmp.ne.s32.totalorder %s693, %s694
    %p703 = scmp.eq.s32.totalorder %s91, 0
    %p704 = por %p702, %p703
    %p705 = scmp.ne.s32.totalorder %s693, %s694
    %p706 = scmp.eq.s32.totalorder %s92, 7
    %p707 = por %p705, %p706
    %p709 = scmp.ne.s32.totalorder %s694, %s708
    %p710 = scmp.eq.s32.totalorder %s92, 0
    %p711 = por %p709, %p710
    %s713 = sadd.s32 %s712, 1
    %p716 = scmp.eq.s32.totalorder %s86, 7
    %p717 = scmp.ne.s32.totalorder %s712, %s714
    %p718 = scmp.eq.s32.totalorder %s86, 0
    %p719 = por %p717, %p718
    %p720 = scmp.ne.s32.totalorder %s712, %s714
    %p721 = scmp.eq.s32.totalorder %s91, 7
    %p722 = por %p720, %p721
    %p723 = scmp.ne.s32.totalorder %s714, %s715
    %p724 = scmp.eq.s32.totalorder %s91, 0
    %p725 = por %p723, %p724
    %p726 = scmp.ne.s32.totalorder %s714, %s715
    %p727 = scmp.eq.s32.totalorder %s92, 7
    %p728 = por %p726, %p727
    %p730 = scmp.ne.s32.totalorder %s715, %s729
    %p731 = scmp.eq.s32.totalorder %s92, 0
    %p732 = por %p730, %p731
    %s734 = sadd.s32 %s733, 1
    %p737 = scmp.eq.s32.totalorder %s86, 7
    %p738 = scmp.ne.s32.totalorder %s733, %s735
    %p739 = scmp.eq.s32.totalorder %s86, 0
    %p740 = por %p738, %p739
    %p741 = scmp.ne.s32.totalorder %s733, %s735
    %p742 = scmp.eq.s32.totalorder %s91, 7
    %p743 = por %p741, %p742
    %p744 = scmp.ne.s32.totalorder %s735, %s736
    %p745 = scmp.eq.s32.totalorder %s91, 0
    %p746 = por %p744, %p745
    %p747 = scmp.ne.s32.totalorder %s735, %s736
    %p748 = scmp.eq.s32.totalorder %s92, 7
    %p749 = por %p747, %p748
    %p751 = scmp.ne.s32.totalorder %s736, %s750
    %p752 = scmp.eq.s32.totalorder %s92, 0
    %p753 = por %p751, %p752
    %s755 = sadd.s32 %s754, 1
    %p758 = scmp.eq.s32.totalorder %s86, 7
    %p759 = scmp.ne.s32.totalorder %s754, %s756
    %p760 = scmp.eq.s32.totalorder %s86, 0
    %p761 = por %p759, %p760
    %p762 = scmp.ne.s32.totalorder %s754, %s756
    %p763 = scmp.eq.s32.totalorder %s91, 7
    %p764 = por %p762, %p763
    %p765 = scmp.ne.s32.totalorder %s756, %s757
    %p766 = scmp.eq.s32.totalorder %s91, 0
    %p767 = por %p765, %p766
    %p768 = scmp.ne.s32.totalorder %s756, %s757
    %p769 = scmp.eq.s32.totalorder %s92, 7
    %p770 = por %p768, %p769
    %p772 = scmp.ne.s32.totalorder %s757, %s771
    %p773 = scmp.eq.s32.totalorder %s92, 0
    %p774 = por %p772, %p773
    %s776 = sadd.s32 %s775, 1
    %p779 = scmp.eq.s32.totalorder %s86, 7
    %p780 = scmp.ne.s32.totalorder %s775, %s777
    %p781 = scmp.eq.s32.totalorder %s86, 0
    %p782 = por %p780, %p781
    %p783 = scmp.ne.s32.totalorder %s775, %s777
    %p784 = scmp.eq.s32.totalorder %s91, 7
    %p785 = por %p783, %p784
    %p786 = scmp.ne.s32.totalorder %s777, %s778
    %p787 = scmp.eq.s32.totalorder %s91, 0
    %p788 = por %p786, %p787
    %p789 = scmp.ne.s32.totalorder %s777, %s778
    %p790 = scmp.eq.s32.totalorder %s92, 7
    %p791 = por %p789, %p790
    %p793 = scmp.ne.s32.totalorder %s778, %s792
    %p794 = scmp.eq.s32.totalorder %s92, 0
    %p795 = por %p793, %p794
    %s797 = sadd.s32 %s796, 1
    %p800 = scmp.eq.s32.totalorder %s86, 7
    %p801 = scmp.ne.s32.totalorder %s796, %s798
    %p802 = scmp.eq.s32.totalorder %s86, 0
    %p803 = por %p801, %p802
    %p804 = scmp.ne.s32.totalorder %s796, %s798
    %p805 = scmp.eq.s32.totalorder %s91, 7
    %p806 = por %p804, %p805
    %p807 = scmp.ne.s32.totalorder %s798, %s799
    %p808 = scmp.eq.s32.totalorder %s91, 0
    %p809 = por %p807, %p808
    %p810 = scmp.ne.s32.totalorder %s798, %s799
    %p811 = scmp.eq.s32.totalorder %s92, 7
    %p812 = por %p810, %p811
    %p814 = scmp.ne.s32.totalorder %s799, %s813
    %p815 = scmp.eq.s32.totalorder %s92, 0
    %p816 = por %p814, %p815
    %s818 = sadd.s32 %s817, 1
    %p821 = scmp.eq.s32.totalorder %s86, 7
    %p822 = scmp.ne.s32.totalorder %s817, %s819
    %p823 = scmp.eq.s32.totalorder %s86, 0
    %p824 = por %p822, %p823
    %p825 = scmp.ne.s32.totalorder %s817, %s819
    %p826 = scmp.eq.s32.totalorder %s91, 7
    %p827 = por %p825, %p826
    %p828 = scmp.ne.s32.totalorder %s819, %s820
    %p829 = scmp.eq.s32.totalorder %s91, 0
    %p830 = por %p828, %p829
    %p831 = scmp.ne.s32.totalorder %s819, %s820
    %p832 = scmp.eq.s32.totalorder %s92, 7
    %p833 = por %p831, %p832
    %p835 = scmp.ne.s32.totalorder %s820, %s834
    %p836 = scmp.eq.s32.totalorder %s92, 0
    %p837 = por %p835, %p836
    %s839 = sadd.s32 %s838, 1
    %p842 = scmp.eq.s32.totalorder %s86, 7
    %p843 = scmp.ne.s32.totalorder %s838, %s840
    %p844 = scmp.eq.s32.totalorder %s86, 0
    %p845 = por %p843, %p844
    %p846 = scmp.ne.s32.totalorder %s838, %s840
    %p847 = scmp.eq.s32.totalorder %s91, 7
    %p848 = por %p846, %p847
    %p849 = scmp.ne.s32.totalorder %s840, %s841
    %p850 = scmp.eq.s32.totalorder %s91, 0
    %p851 = por %p849, %p850
    %p852 = scmp.ne.s32.totalorder %s840, %s841
    %p853 = scmp.eq.s32.totalorder %s92, 7
    %p854 = por %p852, %p853
    %p856 = scmp.ne.s32.totalorder %s841, %s855
    %p857 = scmp.eq.s32.totalorder %s92, 0
    %p858 = por %p856, %p857
    %s860 = sadd.s32 %s859, 1
    %p863 = scmp.eq.s32.totalorder %s86, 7
    %p864 = scmp.ne.s32.totalorder %s859, %s861
    %p865 = scmp.eq.s32.totalorder %s86, 0
    %p866 = por %p864, %p865
    %p867 = scmp.ne.s32.totalorder %s859, %s861
    %p868 = scmp.eq.s32.totalorder %s91, 7
    %p869 = por %p867, %p868
    %p870 = scmp.ne.s32.totalorder %s861, %s862
    %p871 = scmp.eq.s32.totalorder %s91, 0
    %p872 = por %p870, %p871
    %p873 = scmp.ne.s32.totalorder %s861, %s862
    %p874 = scmp.eq.s32.totalorder %s92, 7
    %p875 = por %p873, %p874
    %p877 = scmp.ne.s32.totalorder %s862, %s876
    %p878 = scmp.eq.s32.totalorder %s92, 0
    %p879 = por %p877, %p878
    %s881 = sadd.s32 %s880, 1
    %p884 = scmp.eq.s32.totalorder %s86, 7
    %p885 = scmp.ne.s32.totalorder %s880, %s882
    %p886 = scmp.eq.s32.totalorder %s86, 0
    %p887 = por %p885, %p886
    %p888 = scmp.ne.s32.totalorder %s880, %s882
    %p889 = scmp.eq.s32.totalorder %s91, 7
    %p890 = por %p888, %p889
    %p891 = scmp.ne.s32.totalorder %s882, %s883
    %p892 = scmp.eq.s32.totalorder %s91, 0
    %p893 = por %p891, %p892
    %p894 = scmp.ne.s32.totalorder %s882, %s883
    %p895 = scmp.eq.s32.totalorder %s92, 7
    %p896 = por %p894, %p895
    %p898 = scmp.ne.s32.totalorder %s883, %s897
    %p899 = scmp.eq.s32.totalorder %s92, 0
    %p900 = por %p898, %p899
    %s901 = ssub.s32 %s86, %s93
    %p902 = scmp.eq.s32.totalorder %s901, 0
    %s904 = sadd.s32 %s903, 1
    %s905 = scalar_select %p902, %s903, %s904
    %p908 = pneg %p902
    %p909 = scmp.eq.s32.totalorder %s86, 7
    %p910 = por %p908, %p909
    %p911 = scmp.ne.s32.totalorder %s903, %s906
    %p912 = scmp.eq.s32.totalorder %s86, 0
    %p913 = por %p911, %p912
    %p914 = scmp.ne.s32.totalorder %s903, %s906
    %p915 = scmp.eq.s32.totalorder %s91, 7
    %p916 = por %p914, %p915
    %p917 = scmp.ne.s32.totalorder %s906, %s907
    %p918 = scmp.eq.s32.totalorder %s91, 0
    %p919 = por %p917, %p918
    %p920 = scmp.ne.s32.totalorder %s906, %s907
    %p921 = scmp.eq.s32.totalorder %s92, 7
    %p922 = por %p920, %p921
    %p924 = scmp.ne.s32.totalorder %s907, %s923
    %p925 = scmp.eq.s32.totalorder %s92, 0
    %p926 = por %p924, %p925
    %s927 = ssub.s32 %s86, %s93
    %p928 = scmp.eq.s32.totalorder %s927, 0
    %s930 = sadd.s32 %s929, 1
    %s931 = scalar_select %p928, %s929, %s930
    %p934 = pneg %p928
    %p935 = scmp.eq.s32.totalorder %s86, 7
    %p936 = por %p934, %p935
    %p937 = scmp.ne.s32.totalorder %s929, %s932
    %p938 = scmp.eq.s32.totalorder %s86, 0
    %p939 = por %p937, %p938
    %p940 = scmp.ne.s32.totalorder %s929, %s932
    %p941 = scmp.eq.s32.totalorder %s91, 7
    %p942 = por %p940, %p941
    %p943 = scmp.ne.s32.totalorder %s932, %s933
    %p944 = scmp.eq.s32.totalorder %s91, 0
    %p945 = por %p943, %p944
    %p946 = scmp.ne.s32.totalorder %s932, %s933
    %p947 = scmp.eq.s32.totalorder %s92, 7
    %p948 = por %p946, %p947
    %p950 = scmp.ne.s32.totalorder %s933, %s949
    %p951 = scmp.eq.s32.totalorder %s92, 0
    %p952 = por %p950, %p951
    %s953 = ssub.s32 %s86, %s93
    %p954 = scmp.eq.s32.totalorder %s953, 0
    %s956 = sadd.s32 %s955, 1
    %s957 = scalar_select %p954, %s955, %s956
    %p960 = pneg %p954
    %p961 = scmp.eq.s32.totalorder %s86, 7
    %p962 = por %p960, %p961
    %p963 = scmp.ne.s32.totalorder %s955, %s958
    %p964 = scmp.eq.s32.totalorder %s86, 0
    %p965 = por %p963, %p964
    %p966 = scmp.ne.s32.totalorder %s955, %s958
    %p967 = scmp.eq.s32.totalorder %s91, 7
    %p968 = por %p966, %p967
    %p969 = scmp.ne.s32.totalorder %s958, %s959
    %p970 = scmp.eq.s32.totalorder %s91, 0
    %p971 = por %p969, %p970
    %p972 = scmp.ne.s32.totalorder %s958, %s959
    %p973 = scmp.eq.s32.totalorder %s92, 7
    %p974 = por %p972, %p973
    %p976 = scmp.ne.s32.totalorder %s959, %s975
    %p977 = scmp.eq.s32.totalorder %s92, 0
    %p978 = por %p976, %p977
    %p979 = scmp.le.s32.totalorder 1, %s86
    %p980 = scmp.lt.s32.totalorder %s86, 9
    %p981 = pnand %p979, %p980
    %p982 = pneg %p981
    // Predicated region
    $region9: #{_selected_forward_impl.9} parent=5 // pred_check
      _
    $region10: #{_selected_forward_impl.9} parent=5 // pred_check_branch
      %984 = sbr.rel (%p981) target = $region12
    $region11: #{_selected_forward_impl.9} parent=5 // pred_region
      %s985 = ssub.s32 %s86, 1
      // Predicated region
      $region13: #{_selected_forward_impl.9} parent=11 // pred_check
        %p986 = pneg %p263
      $region14: #{_selected_forward_impl.9} parent=11 // pred_check_branch
        %988 = sbr.rel (%p986) target = $region16
      $region15: #{_selected_forward_impl.9} parent=11 // pred_region
        _
      $region16: #{_selected_forward_impl.9} parent=11 // pred_fallthru
        _
      // Predicated region
      $region17: #{_selected_forward_impl.9} parent=11 // pred_check
        %p989 = pneg %p284
      $region18: #{_selected_forward_impl.9} parent=11 // pred_check_branch
        %991 = sbr.rel (%p989) target = $region20
      $region19: #{_selected_forward_impl.9} parent=11 // pred_region
        _
      $region20: #{_selected_forward_impl.9} parent=11 // pred_fallthru
        _
      // Predicated region
      $region21: #{_selected_forward_impl.9} parent=11 // pred_check
        %p992 = pneg %p305
      $region22: #{_selected_forward_impl.9} parent=11 // pred_check_branch
        %994 = sbr.rel (%p992) target = $region24
      $region23: #{_selected_forward_impl.9} parent=11 // pred_region
        _
      $region24: #{_selected_forward_impl.9} parent=11 // pred_fallthru
        _
      // Predicated region
      $region25: #{_selected_forward_impl.9} parent=11 // pred_check
        %p995 = pneg %p326
      $region26: #{_selected_forward_impl.9} parent=11 // pred_check_branch
        %997 = sbr.rel (%p995) target = $region28
      $region27: #{_selected_forward_impl.9} parent=11 // pred_region
        _
      $region28: #{_selected_forward_impl.9} parent=11 // pred_fallthru
        _
      // Predicated region
      $region29: #{_selected_forward_impl.9} parent=11 // pred_check
        %p998 = pneg %p347
      $region30: #{_selected_forward_impl.9} parent=11 // pred_check_branch
        %1000 = sbr.rel (%p998) target = $region32
      $region31: #{_selected_forward_impl.9} parent=11 // pred_region
        _
      $region32: #{_selected_forward_impl.9} parent=11 // pred_fallthru
        _
      // Predicated region
      $region33: #{_selected_forward_impl.9} parent=11 // pred_check
        %p1001 = pneg %p368
      $region34: #{_selected_forward_impl.9} parent=11 // pred_check_branch
        %1003 = sbr.rel (%p1001) target = $region36
      $region35: #{_selected_forward_impl.9} parent=11 // pred_region
        _
      $region36: #{_selected_forward_impl.9} parent=11 // pred_fallthru
        _
      // Predicated region
      $region37: #{_selected_forward_impl.9} parent=11 // pred_check
        %p1004 = pneg %p389
      $region38: #{_selected_forward_impl.9} parent=11 // pred_check_branch
        %1006 = sbr.rel (%p1004) target = $region40
      $region39: #{_selected_forward_impl.9} parent=11 // pred_region
        _
      $region40: #{_selected_forward_impl.9} parent=11 // pred_fallthru
        _
      // Predicated region
      $region41: #{_selected_forward_impl.9} parent=11 // pred_check
        %p1007 = pneg %p410
      $region42: #{_selected_forward_impl.9} parent=11 // pred_check_branch
        %1009 = sbr.rel (%p1007) target = $region44
      $region43: #{_selected_forward_impl.9} parent=11 // pred_region
        _
      $region44: #{_selected_forward_impl.9} parent=11 // pred_fallthru
        _
      // Predicated region
      $region45: #{_selected_forward_impl.9} parent=11 // pred_check
        %p1010 = pneg %p431
      $region46: #{_selected_forward_impl.9} parent=11 // pred_check_branch
        %1012 = sbr.rel (%p1010) target = $region48
      $region47: #{_selected_forward_impl.9} parent=11 // pred_region
        _
      $region48: #{_selected_forward_impl.9} parent=11 // pred_fallthru
        _
      // Predicated region
      $region49: #{_selected_forward_impl.9} parent=11 // pred_check
        %p1013 = pneg %p452
      $region50: #{_selected_forward_impl.9} parent=11 // pred_check_branch
        %1015 = sbr.rel (%p1013) target = $region52
      $region51: #{_selected_forward_impl.9} parent=11 // pred_region
        _
      $region52: #{_selected_forward_impl.9} parent=11 // pred_fallthru
        _
      // Predicated region
      $region53: #{_selected_forward_impl.9} parent=11 // pred_check
        %p1016 = pneg %p473
      $region54: #{_selected_forward_impl.9} parent=11 // pred_check_branch
        %1018 = sbr.rel (%p1016) target = $region56
      $region55: #{_selected_forward_impl.9} parent=11 // pred_region
        _
      $region56: #{_selected_forward_impl.9} parent=11 // pred_fallthru
        _
      // Predicated region
      $region57: #{_selected_forward_impl.9} parent=11 // pred_check
        %p1019 = pneg %p494
      $region58: #{_selected_forward_impl.9} parent=11 // pred_check_branch
        %1021 = sbr.rel (%p1019) target = $region60
      $region59: #{_selected_forward_impl.9} parent=11 // pred_region
        _
      $region60: #{_selected_forward_impl.9} parent=11 // pred_fallthru
        _
      // Predicated region
      $region61: #{_selected_forward_impl.9} parent=11 // pred_check
        %p1022 = pneg %p515
      $region62: #{_selected_forward_impl.9} parent=11 // pred_check_branch
        %1024 = sbr.rel (%p1022) target = $region64
      $region63: #{_selected_forward_impl.9} parent=11 // pred_region
        _
      $region64: #{_selected_forward_impl.9} parent=11 // pred_fallthru
        _
      // Predicated region
      $region65: #{_selected_forward_impl.9} parent=11 // pred_check
        %p1025 = pneg %p536
      $region66: #{_selected_forward_impl.9} parent=11 // pred_check_branch
        %1027 = sbr.rel (%p1025) target = $region68
      $region67: #{_selected_forward_impl.9} parent=11 // pred_region
        _
      $region68: #{_selected_forward_impl.9} parent=11 // pred_fallthru
        _
      // Predicated region
      $region69: #{_selected_forward_impl.9} parent=11 // pred_check
        %p1028 = pneg %p557
      $region70: #{_selected_forward_impl.9} parent=11 // pred_check_branch
        %1030 = sbr.rel (%p1028) target = $region72
      $region71: #{_selected_forward_impl.9} parent=11 // pred_region
        _
      $region72: #{_selected_forward_impl.9} parent=11 // pred_fallthru
        _
      // Predicated region
      $region73: #{_selected_forward_impl.9} parent=11 // pred_check
        %p1031 = pneg %p578
      $region74: #{_selected_forward_impl.9} parent=11 // pred_check_branch
        %1033 = sbr.rel (%p1031) target = $region76
      $region75: #{_selected_forward_impl.9} parent=11 // pred_region
        _
      $region76: #{_selected_forward_impl.9} parent=11 // pred_fallthru
        _
      // Predicated region
      $region77: #{_selected_forward_impl.9} parent=11 // pred_check
        %p1034 = pneg %p599
      $region78: #{_selected_forward_impl.9} parent=11 // pred_check_branch
        %1036 = sbr.rel (%p1034) target = $region80
      $region79: #{_selected_forward_impl.9} parent=11 // pred_region
        _
      $region80: #{_selected_forward_impl.9} parent=11 // pred_fallthru
        _
      // Predicated region
      $region81: #{_selected_forward_impl.9} parent=11 // pred_check
        %p1037 = pneg %p620
      $region82: #{_selected_forward_impl.9} parent=11 // pred_check_branch
        %1039 = sbr.rel (%p1037) target = $region84
      $region83: #{_selected_forward_impl.9} parent=11 // pred_region
        _
      $region84: #{_selected_forward_impl.9} parent=11 // pred_fallthru
        _
      // Predicated region
      $region85: #{_selected_forward_impl.9} parent=11 // pred_check
        %p1040 = pneg %p641
      $region86: #{_selected_forward_impl.9} parent=11 // pred_check_branch
        %1042 = sbr.rel (%p1040) target = $region88
      $region87: #{_selected_forward_impl.9} parent=11 // pred_region
        _
      $region88: #{_selected_forward_impl.9} parent=11 // pred_fallthru
        _
      // Predicated region
      $region89: #{_selected_forward_impl.9} parent=11 // pred_check
        %p1043 = pneg %p662
      $region90: #{_selected_forward_impl.9} parent=11 // pred_check_branch
        %1045 = sbr.rel (%p1043) target = $region92
      $region91: #{_selected_forward_impl.9} parent=11 // pred_region
        _
      $region92: #{_selected_forward_impl.9} parent=11 // pred_fallthru
        _
      // Predicated region
      $region93: #{_selected_forward_impl.9} parent=11 // pred_check
        %p1046 = pneg %p683
      $region94: #{_selected_forward_impl.9} parent=11 // pred_check_branch
        %1048 = sbr.rel (%p1046) target = $region96
      $region95: #{_selected_forward_impl.9} parent=11 // pred_region
        _
      $region96: #{_selected_forward_impl.9} parent=11 // pred_fallthru
        _
      // Predicated region
      $region97: #{_selected_forward_impl.9} parent=11 // pred_check
        %p1049 = pneg %p704
      $region98: #{_selected_forward_impl.9} parent=11 // pred_check_branch
        %1051 = sbr.rel (%p1049) target = $region100
      $region99: #{_selected_forward_impl.9} parent=11 // pred_region
        _
      $region100: #{_selected_forward_impl.9} parent=11 // pred_fallthru
        _
      // Predicated region
      $region101: #{_selected_forward_impl.9} parent=11 // pred_check
        %p1052 = pneg %p725
      $region102: #{_selected_forward_impl.9} parent=11 // pred_check_branch
        %1054 = sbr.rel (%p1052) target = $region104
      $region103: #{_selected_forward_impl.9} parent=11 // pred_region
        _
      $region104: #{_selected_forward_impl.9} parent=11 // pred_fallthru
        _
      // Predicated region
      $region105: #{_selected_forward_impl.9} parent=11 // pred_check
        %p1055 = pneg %p746
      $region106: #{_selected_forward_impl.9} parent=11 // pred_check_branch
        %1057 = sbr.rel (%p1055) target = $region108
      $region107: #{_selected_forward_impl.9} parent=11 // pred_region
        _
      $region108: #{_selected_forward_impl.9} parent=11 // pred_fallthru
        _
      // Predicated region
      $region109: #{_selected_forward_impl.9} parent=11 // pred_check
        %p1058 = pneg %p767
      $region110: #{_selected_forward_impl.9} parent=11 // pred_check_branch
        %1060 = sbr.rel (%p1058) target = $region112
      $region111: #{_selected_forward_impl.9} parent=11 // pred_region
        _
      $region112: #{_selected_forward_impl.9} parent=11 // pred_fallthru
        _
      // Predicated region
      $region113: #{_selected_forward_impl.9} parent=11 // pred_check
        %p1061 = pneg %p788
      $region114: #{_selected_forward_impl.9} parent=11 // pred_check_branch
        %1063 = sbr.rel (%p1061) target = $region116
      $region115: #{_selected_forward_impl.9} parent=11 // pred_region
        _
      $region116: #{_selected_forward_impl.9} parent=11 // pred_fallthru
        _
      // Predicated region
      $region117: #{_selected_forward_impl.9} parent=11 // pred_check
        %p1064 = pneg %p809
      $region118: #{_selected_forward_impl.9} parent=11 // pred_check_branch
        %1066 = sbr.rel (%p1064) target = $region120
      $region119: #{_selected_forward_impl.9} parent=11 // pred_region
        _
      $region120: #{_selected_forward_impl.9} parent=11 // pred_fallthru
        _
      // Predicated region
      $region121: #{_selected_forward_impl.9} parent=11 // pred_check
        %p1067 = pneg %p830
      $region122: #{_selected_forward_impl.9} parent=11 // pred_check_branch
        %1069 = sbr.rel (%p1067) target = $region124
      $region123: #{_selected_forward_impl.9} parent=11 // pred_region
        _
      $region124: #{_selected_forward_impl.9} parent=11 // pred_fallthru
        _
      // Predicated region
      $region125: #{_selected_forward_impl.9} parent=11 // pred_check
        %p1070 = pneg %p851
      $region126: #{_selected_forward_impl.9} parent=11 // pred_check_branch
        %1072 = sbr.rel (%p1070) target = $region128
      $region127: #{_selected_forward_impl.9} parent=11 // pred_region
        _
      $region128: #{_selected_forward_impl.9} parent=11 // pred_fallthru
        _
      // Predicated region
      $region129: #{_selected_forward_impl.9} parent=11 // pred_check
        %p1073 = pneg %p872
      $region130: #{_selected_forward_impl.9} parent=11 // pred_check_branch
        %1075 = sbr.rel (%p1073) target = $region132
      $region131: #{_selected_forward_impl.9} parent=11 // pred_region
        _
      $region132: #{_selected_forward_impl.9} parent=11 // pred_fallthru
        _
      // Predicated region
      $region133: #{_selected_forward_impl.9} parent=11 // pred_check
        %p1076 = pneg %p893
      $region134: #{_selected_forward_impl.9} parent=11 // pred_check_branch
        %1078 = sbr.rel (%p1076) target = $region136
      $region135: #{_selected_forward_impl.9} parent=11 // pred_region
        _
      $region136: #{_selected_forward_impl.9} parent=11 // pred_fallthru
        _
    $region12: #{_selected_forward_impl.9} parent=5 // pred_fallthru
      _
    %p1079 = scmp.lt.s32.totalorder %s86, 8
    // Predicated region
    $region137: #{_selected_forward_impl.9} parent=5 // pred_check
      %p1080 = pneg %p1079
    $region138: #{_selected_forward_impl.9} parent=5 // pred_check_branch
      %1082 = sbr.rel (%p1080) target = $region140
    $region139: #{_selected_forward_impl.9} parent=5 // pred_region
      // Predicated region
      $region141: #{_selected_forward_impl.9} parent=139 // pred_check
        %p1083 = pneg %p106
      $region142: #{_selected_forward_impl.9} parent=139 // pred_check_branch
        %1085 = sbr.rel (%p1083) target = $region144
      $region143: #{_selected_forward_impl.9} parent=139 // pred_region
        %p1086 = scmp.lt.s32.totalorder %s86, 7
        %s1087 = scalar_select %p1086, %s86, 7
        %s1088 = smul.addr %s1087, 2
        %s1089 = scalar_lea.vmem %s1, %s1088
      $region144: #{_selected_forward_impl.9} parent=139 // pred_fallthru
        _
      // Predicated region
      $region145: #{_selected_forward_impl.9} parent=139 // pred_check
        %p1090 = pneg %p132
      $region146: #{_selected_forward_impl.9} parent=139 // pred_check_branch
        %1092 = sbr.rel (%p1090) target = $region148
      $region147: #{_selected_forward_impl.9} parent=139 // pred_region
        %p1093 = scmp.lt.s32.totalorder %s86, 7
        %s1094 = scalar_select %p1093, %s86, 7
        %s1095 = smul.addr %s1094, 2
        %s1096 = scalar_lea.vmem %s3, %s1095
      $region148: #{_selected_forward_impl.9} parent=139 // pred_fallthru
        _
      // Predicated region
      $region149: #{_selected_forward_impl.9} parent=139 // pred_check
        %p1097 = pneg %p158
      $region150: #{_selected_forward_impl.9} parent=139 // pred_check_branch
        %1099 = sbr.rel (%p1097) target = $region152
      $region151: #{_selected_forward_impl.9} parent=139 // pred_region
        %p1100 = scmp.lt.s32.totalorder %s86, 7
        %s1101 = scalar_select %p1100, %s86, 7
        %s1102 = smul.addr %s1101, 2
        %s1103 = smul.addr %s1102, 8
        %s1104 = scalar_lea.vmem %s5, %s1103
      $region152: #{_selected_forward_impl.9} parent=139 // pred_fallthru
        _
      // Predicated region
      $region153: #{_selected_forward_impl.9} parent=139 // pred_check
        %p1105 = pneg %p184
      $region154: #{_selected_forward_impl.9} parent=139 // pred_check_branch
        %1107 = sbr.rel (%p1105) target = $region156
      $region155: #{_selected_forward_impl.9} parent=139 // pred_region
        %p1108 = scmp.lt.s32.totalorder %s86, 7
        %s1109 = scalar_select %p1108, %s86, 7
        %s1110 = smul.addr %s1109, 2
        %s1111 = scalar_lea.vmem %s7, %s1110
      $region156: #{_selected_forward_impl.9} parent=139 // pred_fallthru
        _
      // Predicated region
      $region157: #{_selected_forward_impl.9} parent=139 // pred_check
        %p1112 = pneg %p210
      $region158: #{_selected_forward_impl.9} parent=139 // pred_check_branch
        %1114 = sbr.rel (%p1112) target = $region160
      $region159: #{_selected_forward_impl.9} parent=139 // pred_region
        %p1115 = scmp.lt.s32.totalorder %s86, 7
        %s1116 = scalar_select %p1115, %s86, 7
        %s1117 = smul.addr %s1116, 2
        %s1118 = scalar_lea.vmem %s9, %s1117
      $region160: #{_selected_forward_impl.9} parent=139 // pred_fallthru
        _
      // Predicated region
      $region161: #{_selected_forward_impl.9} parent=139 // pred_check
        %p1119 = pneg %p236
      $region162: #{_selected_forward_impl.9} parent=139 // pred_check_branch
        %1121 = sbr.rel (%p1119) target = $region164
      $region163: #{_selected_forward_impl.9} parent=139 // pred_region
        %p1122 = scmp.lt.s32.totalorder %s86, 7
        %s1123 = scalar_select %p1122, %s86, 7
        %s1124 = smul.addr %s1123, 2
        %s1125 = scalar_lea.vmem %s11, %s1124
      $region164: #{_selected_forward_impl.9} parent=139 // pred_fallthru
        _
    $region140: #{_selected_forward_impl.9} parent=5 // pred_fallthru
      _
    %p1126 = scmp.le.s32.totalorder 1, %s86
    %p1127 = scmp.lt.s32.totalorder %s86, 9
    %p1128 = pnand %p1126, %p1127
    %p1129 = pneg %p1128
    // Predicated region
    $region165: #{_selected_forward_impl.9} parent=5 // pred_check
      _
    $region166: #{_selected_forward_impl.9} parent=5 // pred_check_branch
      %1131 = sbr.rel (%p1128) target = $region168
    $region167: #{_selected_forward_impl.9} parent=5 // pred_region
      %s1132 = ssub.s32 %s86, 1
      %p1133 = scmp.lt.s32.totalorder %s91, 7
      %s1134 = scalar_select %p1133, %s91, 7
      %s1135 = smul.addr %s1134, 2
      %s1136 = scalar_lea.vmem %s1, %s1135
      %p1137 = pneg %p112
      %p1138 = pneg %p109
      %p1139 = scmp.lt.s32.totalorder %s91, 7
      %s1140 = scalar_select %p1139, %s91, 7
      %s1141 = smul.addr %s1140, 2
      %s1142 = scalar_lea.vmem %s3, %s1141
      %p1143 = pneg %p138
      %p1144 = pneg %p135
      %p1145 = scmp.lt.s32.totalorder %s91, 7
      %s1146 = scalar_select %p1145, %s91, 7
      %s1147 = smul.addr %s1146, 2
      %s1148 = smul.addr %s1147, 8
      %s1149 = scalar_lea.vmem %s5, %s1148
      %p1150 = pneg %p164
      %p1151 = pneg %p161
      %p1152 = scmp.lt.s32.totalorder %s91, 7
      %s1153 = scalar_select %p1152, %s91, 7
      %s1154 = smul.addr %s1153, 2
      %s1155 = scalar_lea.vmem %s7, %s1154
      %p1156 = pneg %p190
      %p1157 = pneg %p187
      %p1158 = scmp.lt.s32.totalorder %s91, 7
      %s1159 = scalar_select %p1158, %s91, 7
      %s1160 = smul.addr %s1159, 2
      %s1161 = scalar_lea.vmem %s9, %s1160
      %p1162 = pneg %p216
      %p1163 = pneg %p213
      %p1164 = scmp.lt.s32.totalorder %s91, 7
      %s1165 = scalar_select %p1164, %s91, 7
      %s1166 = smul.addr %s1165, 2
      %s1167 = scalar_lea.vmem %s11, %s1166
      %p1168 = pneg %p242
      %p1169 = pneg %p239
      %p1170 = pneg %p263
      %p1171 = pneg %p260
      %p1172 = pneg %p284
      %p1173 = pneg %p281
      %p1174 = pneg %p305
      %p1175 = pneg %p302
      %p1176 = pneg %p326
      %p1177 = pneg %p323
      %p1178 = pneg %p347
      %p1179 = pneg %p344
      %p1180 = pneg %p368
      %p1181 = pneg %p365
      %p1182 = pneg %p389
      %p1183 = pneg %p386
      %p1184 = pneg %p410
      %p1185 = pneg %p407
      %p1186 = pneg %p431
      %p1187 = pneg %p428
      %p1188 = pneg %p452
      %p1189 = pneg %p449
      %p1190 = pneg %p473
      %p1191 = pneg %p470
      %p1192 = pneg %p494
      %p1193 = pneg %p491
      %p1194 = pneg %p515
      %p1195 = pneg %p512
      %p1196 = pneg %p536
      %p1197 = pneg %p533
      %p1198 = pneg %p557
      %p1199 = pneg %p554
      %p1200 = pneg %p578
      %p1201 = pneg %p575
      %p1202 = pneg %p599
      %p1203 = pneg %p596
      %p1204 = pneg %p620
      %p1205 = pneg %p617
      %p1206 = pneg %p641
      %p1207 = pneg %p638
      %p1208 = pneg %p662
      %p1209 = pneg %p659
      %p1210 = pneg %p683
      %p1211 = pneg %p680
      %p1212 = pneg %p704
      %p1213 = pneg %p701
      %p1214 = pneg %p725
      %p1215 = pneg %p722
      %p1216 = pneg %p746
      %p1217 = pneg %p743
      %p1218 = pneg %p767
      %p1219 = pneg %p764
      %p1220 = pneg %p788
      %p1221 = pneg %p785
      %p1222 = pneg %p809
      %p1223 = pneg %p806
      %p1224 = pneg %p830
      %p1225 = pneg %p827
      %p1226 = pneg %p851
      %p1227 = pneg %p848
      %p1228 = pneg %p872
      %p1229 = pneg %p869
      %p1230 = pneg %p893
      %p1231 = pneg %p890
      %p1232 = pneg %p919
      %p1233 = pneg %p916
      %p1234 = scmp.lt.s32.totalorder %s91, 7
      %s1235 = scalar_select %p1234, %s91, 7
      %s1236 = smul.addr %s1235, 2
      %s1237 = scalar_lea.vmem %s75, %s1236
      %p1238 = pneg %p945
      %p1239 = pneg %p942
      %p1240 = scmp.lt.s32.totalorder %s91, 7
      %s1241 = scalar_select %p1240, %s91, 7
      %s1242 = smul.addr %s1241, 2
      %s1243 = scalar_lea.vmem %s77, %s1242
      %p1244 = pneg %p971
      %p1245 = pneg %p968
      %p1246 = scmp.lt.s32.totalorder %s91, 7
      %s1247 = scalar_select %p1246, %s91, 7
      %s1248 = smul.addr %s1247, 2
      %s1249 = scalar_lea.vmem %s79, %s1248
      %p1250 = scmp.lt.s32.totalorder %s91, 7
      %s1251 = scalar_select %p1250, %s91, 7
      %s1252 = smul.addr %s1251, 2
      %s1253 = scalar_lea.vmem %s1, %s1252
      %p1254 = scmp.lt.s32.totalorder %s91, 7
      %s1255 = scalar_select %p1254, %s91, 7
      %s1256 = smul.addr %s1255, 2
      %s1257 = scalar_lea.vmem %s3, %s1256
      %p1258 = scmp.lt.s32.totalorder %s91, 7
      %s1259 = scalar_select %p1258, %s91, 7
      %s1260 = smul.addr %s1259, 2
      %s1261 = smul.addr %s1260, 8
      %s1262 = scalar_lea.vmem %s5, %s1261
      %p1263 = scmp.lt.s32.totalorder %s91, 7
      %s1264 = scalar_select %p1263, %s91, 7
      %s1265 = smul.addr %s1264, 2
      %s1266 = scalar_lea.vmem %s7, %s1265
      %p1267 = scmp.lt.s32.totalorder %s91, 7
      %s1268 = scalar_select %p1267, %s91, 7
      %s1269 = smul.addr %s1268, 2
      %s1270 = scalar_lea.vmem %s9, %s1269
      %p1271 = scmp.lt.s32.totalorder %s91, 7
      %s1272 = scalar_select %p1271, %s91, 7
      %s1273 = smul.addr %s1272, 2
      %s1274 = scalar_lea.vmem %s11, %s1273
      %p1275 = scmp.lt.s32.totalorder %s91, 7
      %s1276 = scalar_select %p1275, %s91, 7
      %s1277 = smul.addr %s1276, 2
      %s1278 = scalar_lea.vmem %s75, %s1277
      %p1279 = scmp.lt.s32.totalorder %s91, 7
      %s1280 = scalar_select %p1279, %s91, 7
      %s1281 = smul.addr %s1280, 2
      %s1282 = scalar_lea.vmem %s77, %s1281
      %p1283 = scmp.lt.s32.totalorder %s91, 7
      %s1284 = scalar_select %p1283, %s91, 7
      %s1285 = smul.addr %s1284, 2
      %s1286 = scalar_lea.vmem %s79, %s1285
      %p1287 = scmp.eq.s32.totalorder %s91, 0
      // Predicated region
      $region169: #{_selected_forward_impl.9} parent=167 // pred_check
        %p1288 = pneg %p1287
      $region170: #{_selected_forward_impl.9} parent=167 // pred_check_branch
        %1290 = sbr.rel (%p1288) target = $region172
      $region171: #{_selected_forward_impl.9} parent=167 // pred_region
        %vm1291 = vcmask 254976
        %1292 = vst.msk [vmem:[#allocation2] sm:$0x3] %vm1291, 0.0
        %1293 = vst.msk [vmem:[#allocation3] sm:$0x3] %vm1291, 0.0
        %1294 = vst.msk [vmem:[#allocation3 + $0x2] sm:$0x3] %vm1291, 0.0
        %1295 = vst.msk [vmem:[#allocation3 + $0x4] sm:$0x3] %vm1291, 0.0
        %1296 = vst.msk [vmem:[#allocation3 + $0x6] sm:$0x3] %vm1291, 0.0
        %1297 = vst.msk [vmem:[#allocation3 + $0x8] sm:$0x3] %vm1291, 0.0
        %1298 = vst.msk [vmem:[#allocation3 + $0xa] sm:$0x3] %vm1291, 0.0
        %1299 = vst.msk [vmem:[#allocation3 + $0xc] sm:$0x3] %vm1291, 0.0
        %1300 = vst.msk [vmem:[#allocation3 + $0xe] sm:$0x3] %vm1291, 0.0
      $region172: #{_selected_forward_impl.9} parent=167 // pred_fallthru
        _
      %v1301 = vld [vmem:[#allocation2] sm:$0x3]
      %v1302 = vld [vmem:[%s1253] sm:$0x3]
      %v1303 = vld [vmem:[%s1257] sm:$0x3]
      %v1304 = vld [vmem:[%s1262] sm:$0x1f]
      %v1305 = vld [vmem:[%s1262 + $0x8] sm:$0x1f]
      %v1306 = vld [vmem:[%s1266] sm:$0x3]
      %v1307 = vld [vmem:[%s1270] sm:$0x3]
      %v1308 = vld [vmem:[%s1274] sm:$0x3]
      %v1309 = vld [vmem:[%s17] sm:$0xff]
      %v1310 = vld [vmem:[%s17 + $0x8] sm:$0xff]
      %v1311 = vld [vmem:[%s17 + $0x10] sm:$0xff]
      %v1312 = vld [vmem:[%s17 + $0x18] sm:$0xff]
      %v1313 = vld [vmem:[%s19] sm:$0xff]
      %v1314 = vld [vmem:[%s19 + $0x8] sm:$0xff]
      %v1315 = vld [vmem:[%s19 + $0x10] sm:$0xff]
      %v1316 = vld [vmem:[%s19 + $0x18] sm:$0xff]
      %vm1317 = vcmask 261120
      %v1319 = vsel %vm1317, %v1302, 0
      %1321 = vmatprep.subr.mxu0 0.0
      %1322 = vmatpush1.msra.mxu0 0.0
      %1323 = vmatprep.subr.mxu0 0.0
      %1324 = vmatpush1.msra.mxu0 0.0
      %1325 = vmatprep.subr.mxu0 0.0
      %1326 = vmatpush1.msra.mxu0 0.0
      %1327 = vmatprep.subr.mxu0 0.0
      %1328 = vmatpush1.msra.mxu0 0.0
      %1329 = vmatprep.subr.mxu0 0.0
      %1330 = vmatpush1.msra.mxu0 0.0
      %1331 = vmatprep.subr.mxu0 0.0
      %1332 = vmatpush1.msra.mxu0 0.0
      %1333 = vmatprep.subr.mxu0 0.0
      %1334 = vmatpush1.msra.mxu0 0.0
      %1335 = vmatprep.subr.mxu0 0.0
      %1336 = vmatpush1.msra.mxu0 0.0
      %1337 = vmatprep.subr.mxu0 0.0
      %1338 = vmatpush1.msra.mxu0 0.0
      %1339 = vmatprep.subr.mxu0 0.0
      %1340 = vmatpush1.msra.mxu0 0.0
      %1341 = vmatprep.subr.mxu0 0.0
      %1342 = vmatpush1.msra.mxu0 0.0
      %1343 = vmatprep.subr.mxu0 0.0
      %1344 = vmatpush1.msra.mxu0 0.0
      %1345 = vmatprep.subr.mxu0 0.0
      %1346 = vmatpush1.msra.mxu0 %v1316
      %1347 = vmatprep.subr.mxu0 0.0
      %1348 = vmatpush1.msra.mxu0 %v1315
      %1349 = vmatprep.subr.mxu0 0.0
      %1350 = vmatpush1.msra.mxu0 %v1314
      %1351 = vmatprep.subr.mxu0 0.0
      %1352 = vmatpush1.msra.mxu0 %v1313
      %1353 = vmatprep.subr.mxu0 0.0
      %1354 = vmatpush2.msra.mxu0 0.0
      %1355 = vmatprep.subr.mxu0 0.0
      %1356 = vmatpush2.msra.mxu0 0.0
      %1357 = vmatprep.subr.mxu0 0.0
      %1358 = vmatpush2.msra.mxu0 0.0
      %1359 = vmatprep.subr.mxu0 0.0
      %1360 = vmatpush2.msra.mxu0 0.0
      %1361 = vmatprep.subr.mxu0 0.0
      %1362 = vmatpush2.msra.mxu0 0.0
      %1363 = vmatprep.subr.mxu0 0.0
      %1364 = vmatpush2.msra.mxu0 0.0
      %1365 = vmatprep.subr.mxu0 0.0
      %1366 = vmatpush2.msra.mxu0 0.0
      %1367 = vmatprep.subr.mxu0 0.0
      %1368 = vmatpush2.msra.mxu0 0.0
      %1369 = vmatprep.subr.mxu0 0.0
      %1370 = vmatpush2.msra.mxu0 0.0
      %1371 = vmatprep.subr.mxu0 0.0
      %1372 = vmatpush2.msra.mxu0 0.0
      %1373 = vmatprep.subr.mxu0 0.0
      %1374 = vmatpush2.msra.mxu0 0.0
      %1375 = vmatprep.subr.mxu0 0.0
      %1376 = vmatpush2.msra.mxu0 0.0
      %1377 = vmatprep.subr.mxu0 0.0
      %1378 = vmatpush2.msra.mxu0 0.0
      %1379 = vmatprep.subr.mxu0 0.0
      %1380 = vmatpush2.msra.mxu0 0.0
      %1381 = vmatprep.subr.mxu0 0.0
      %1382 = vmatpush2.msra.mxu0 0.0
      %1383 = vmatprep.subr.mxu0 0.0
      %1384 = vmatpush2.msra.mxu0 0.0
      %1385 = vmatprep.mubr.f32.mxu0 0.0
      %1386 = vmatmul.mubr.f32.gmra.mxu0 %v1319
      %v1387 = vpop.f32.mrf.mxu0
      %v1388 = vadd.f32 0.0, %v1387
      %v1389 = vpop.f32.mrf.mxu0
      %1390 = vdwg.mxu0
      %v1392 = vsel %vm1317, %v1301, 0
      %1394 = vmatprep.subr.mxu0 0.0
      %1395 = vmatpush1.msra.mxu0 0.0
      %1396 = vmatprep.subr.mxu0 0.0
      %1397 = vmatpush1.msra.mxu0 0.0
      %1398 = vmatprep.subr.mxu0 0.0
      %1399 = vmatpush1.msra.mxu0 0.0
      %1400 = vmatprep.subr.mxu0 0.0
      %1401 = vmatpush1.msra.mxu0 0.0
      %1402 = vmatprep.subr.mxu0 0.0
      %1403 = vmatpush1.msra.mxu0 0.0
      %1404 = vmatprep.subr.mxu0 0.0
      %1405 = vmatpush1.msra.mxu0 0.0
      %1406 = vmatprep.subr.mxu0 0.0
      %1407 = vmatpush1.msra.mxu0 0.0
      %1408 = vmatprep.subr.mxu0 0.0
      %1409 = vmatpush1.msra.mxu0 0.0
      %1410 = vmatprep.subr.mxu0 0.0
      %1411 = vmatpush1.msra.mxu0 0.0
      %1412 = vmatprep.subr.mxu0 0.0
      %1413 = vmatpush1.msra.mxu0 0.0
      %1414 = vmatprep.subr.mxu0 0.0
      %1415 = vmatpush1.msra.mxu0 0.0
      %1416 = vmatprep.subr.mxu0 0.0
      %1417 = vmatpush1.msra.mxu0 0.0
      %1418 = vmatprep.subr.mxu0 0.0
      %1419 = vmatpush1.msra.mxu0 %v1312
      %1420 = vmatprep.subr.mxu0 0.0
      %1421 = vmatpush1.msra.mxu0 %v1311
      %1422 = vmatprep.subr.mxu0 0.0
      %1423 = vmatpush1.msra.mxu0 %v1310
      %1424 = vmatprep.subr.mxu0 0.0
      %1425 = vmatpush1.msra.mxu0 %v1309
      %1426 = vmatprep.subr.mxu0 0.0
      %1427 = vmatpush2.msra.mxu0 0.0
      %1428 = vmatprep.subr.mxu0 0.0
      %1429 = vmatpush2.msra.mxu0 0.0
      %1430 = vmatprep.subr.mxu0 0.0
      %1431 = vmatpush2.msra.mxu0 0.0
      %1432 = vmatprep.subr.mxu0 0.0
      %1433 = vmatpush2.msra.mxu0 0.0
      %1434 = vmatprep.subr.mxu0 0.0
      %1435 = vmatpush2.msra.mxu0 0.0
      %1436 = vmatprep.subr.mxu0 0.0
      %1437 = vmatpush2.msra.mxu0 0.0
      %1438 = vmatprep.subr.mxu0 0.0
      %1439 = vmatpush2.msra.mxu0 0.0
      %1440 = vmatprep.subr.mxu0 0.0
      %1441 = vmatpush2.msra.mxu0 0.0
      %1442 = vmatprep.subr.mxu0 0.0
      %1443 = vmatpush2.msra.mxu0 0.0
      %1444 = vmatprep.subr.mxu0 0.0
      %1445 = vmatpush2.msra.mxu0 0.0
      %1446 = vmatprep.subr.mxu0 0.0
      %1447 = vmatpush2.msra.mxu0 0.0
      %1448 = vmatprep.subr.mxu0 0.0
      %1449 = vmatpush2.msra.mxu0 0.0
      %1450 = vmatprep.subr.mxu0 0.0
      %1451 = vmatpush2.msra.mxu0 0.0
      %1452 = vmatprep.subr.mxu0 0.0
      %1453 = vmatpush2.msra.mxu0 0.0
      %1454 = vmatprep.subr.mxu0 0.0
      %1455 = vmatpush2.msra.mxu0 0.0
      %1456 = vmatprep.subr.mxu0 0.0
      %1457 = vmatpush2.msra.mxu0 0.0
      %1458 = vmatprep.mubr.f32.mxu0 0.0
      %1459 = vmatmul.mubr.f32.gmra.mxu0 %v1392
      %v1460 = vpop.f32.mrf.mxu0
      %v1461 = vadd.f32 %v1388, %v1460
      %v1462 = vpop.f32.mrf.mxu0
      %1463 = vdwg.mxu0
      %v1464 = vld [vmem:[%s21] sm:$0xf]
      %vm1465 = vcmask 31744
      %v1467 = vsel %vm1465, %v1303, 0
      %vm1469 = vcmask 1043456
      %v1471 = vsel %vm1469, %v1464, 0
      %1473 = vmatprep.subr.mxu0 0.0
      %1474 = vmatpush1.msra.mxu0 0.0
      %1475 = vmatprep.subr.mxu0 0.0
      %1476 = vmatpush1.msra.mxu0 0.0
      %1477 = vmatprep.subr.mxu0 0.0
      %1478 = vmatpush1.msra.mxu0 0.0
      %1479 = vmatprep.subr.mxu0 0.0
      %1480 = vmatpush1.msra.mxu0 0.0
      %1481 = vmatprep.subr.mxu0 0.0
      %1482 = vmatpush1.msra.mxu0 0.0
      %1483 = vmatprep.subr.mxu0 0.0
      %1484 = vmatpush1.msra.mxu0 0.0
      %1485 = vmatprep.subr.mxu0 0.0
      %1486 = vmatpush1.msra.mxu0 0.0
      %1487 = vmatprep.subr.mxu0 0.0
      %1488 = vmatpush1.msra.mxu0 0.0
      %1489 = vmatprep.subr.mxu0 0.0
      %1490 = vmatpush1.msra.mxu0 0.0
      %1491 = vmatprep.subr.mxu0 0.0
      %1492 = vmatpush1.msra.mxu0 0.0
      %1493 = vmatprep.subr.mxu0 0.0
      %1494 = vmatpush1.msra.mxu0 0.0
      %1495 = vmatprep.subr.mxu0 0.0
      %1496 = vmatpush1.msra.mxu0 0.0
      %1497 = vmatprep.subr.mxu0 0.0
      %1498 = vmatpush1.msra.mxu0 0.0
      %1499 = vmatprep.subr.mxu0 0.0
      %1500 = vmatpush1.msra.mxu0 0.0
      %1501 = vmatprep.subr.mxu0 0.0
      %1502 = vmatpush1.msra.mxu0 0.0
      %1503 = vmatprep.subr.mxu0 0.0
      %1504 = vmatpush1.msra.mxu0 %v1471
      %1505 = vmatprep.subr.mxu0 0.0
      %1506 = vmatpush2.msra.mxu0 0.0
      %1507 = vmatprep.subr.mxu0 0.0
      %1508 = vmatpush2.msra.mxu0 0.0
      %1509 = vmatprep.subr.mxu0 0.0
      %1510 = vmatpush2.msra.mxu0 0.0
      %1511 = vmatprep.subr.mxu0 0.0
      %1512 = vmatpush2.msra.mxu0 0.0
      %1513 = vmatprep.subr.mxu0 0.0
      %1514 = vmatpush2.msra.mxu0 0.0
      %1515 = vmatprep.subr.mxu0 0.0
      %1516 = vmatpush2.msra.mxu0 0.0
      %1517 = vmatprep.subr.mxu0 0.0
      %1518 = vmatpush2.msra.mxu0 0.0
      %1519 = vmatprep.subr.mxu0 0.0
      %1520 = vmatpush2.msra.mxu0 0.0
      %1521 = vmatprep.subr.mxu0 0.0
      %1522 = vmatpush2.msra.mxu0 0.0
      %1523 = vmatprep.subr.mxu0 0.0
      %1524 = vmatpush2.msra.mxu0 0.0
      %1525 = vmatprep.subr.mxu0 0.0
      %1526 = vmatpush2.msra.mxu0 0.0
      %1527 = vmatprep.subr.mxu0 0.0
      %1528 = vmatpush2.msra.mxu0 0.0
      %1529 = vmatprep.subr.mxu0 0.0
      %1530 = vmatpush2.msra.mxu0 0.0
      %1531 = vmatprep.subr.mxu0 0.0
      %1532 = vmatpush2.msra.mxu0 0.0
      %1533 = vmatprep.subr.mxu0 0.0
      %1534 = vmatpush2.msra.mxu0 0.0
      %1535 = vmatprep.subr.mxu0 0.0
      %1536 = vmatpush2.msra.mxu0 0.0
      %1537 = vmatprep.mubr.f32.mxu0 0.0
      %1538 = vmatmul.mubr.f32.gmra.mxu0 %v1467
      %v1539 = vpop.f32.mrf.mxu0
      %v1540 = vadd.f32 0.0, %v1539
      %v1541 = vpop.f32.mrf.mxu0
      %1542 = vdwg.mxu0
      %v1543 = vadd.f32 %v1461, %v1540
      %v1544 = vld [vmem:[%s13] sm:$0x1]
      %v1546 = vlaneseq
      %v1547 = vshrl.u32 %v1546, 7
      %v1548 = vsub.s32 0, %v1547
      %v1549 = vrot.slane %v1544, %v1548
      %v1551 = vadd.f32 %v1543, %v1549
      %v1552 = vld [vmem:[%s23] sm:$0x1]
      %v1554 = vlaneseq
      %v1555 = vshrl.u32 %v1554, 7
      %v1556 = vsub.s32 0, %v1555
      %v1557 = vrot.slane %v1552, %v1556
      %v1559 = vadd.f32 %v1551, %v1557
      %v1560 = vtanh.pop %v1559
      %v1561 = vld [vmem:[%s25] sm:$0xff]
      %v1562 = vld [vmem:[%s25 + $0x8] sm:$0xff]
      %v1563 = vld [vmem:[%s25 + $0x10] sm:$0xff]
      %v1564 = vld [vmem:[%s25 + $0x18] sm:$0xff]
      %v1565 = vld [vmem:[%s27] sm:$0x1]
      %v1567 = vlaneseq
      %v1568 = vshrl.u32 %v1567, 7
      %v1569 = vsub.s32 0, %v1568
      %v1570 = vrot.slane %v1565, %v1569
      %v1573 = vsel %vm1317, %v1560, 0
      %1575 = vmatprep.subr.mxu0 0.0
      %1576 = vmatpush1.msra.mxu0 0.0
      %1577 = vmatprep.subr.mxu0 0.0
      %1578 = vmatpush1.msra.mxu0 0.0
      %1579 = vmatprep.subr.mxu0 0.0
      %1580 = vmatpush1.msra.mxu0 0.0
      %1581 = vmatprep.subr.mxu0 0.0
      %1582 = vmatpush1.msra.mxu0 0.0
      %1583 = vmatprep.subr.mxu0 0.0
      %1584 = vmatpush1.msra.mxu0 0.0
      %1585 = vmatprep.subr.mxu0 0.0
      %1586 = vmatpush1.msra.mxu0 0.0
      %1587 = vmatprep.subr.mxu0 0.0
      %1588 = vmatpush1.msra.mxu0 0.0
      %1589 = vmatprep.subr.mxu0 0.0
      %1590 = vmatpush1.msra.mxu0 0.0
      %1591 = vmatprep.subr.mxu0 0.0
      %1592 = vmatpush1.msra.mxu0 0.0
      %1593 = vmatprep.subr.mxu0 0.0
      %1594 = vmatpush1.msra.mxu0 0.0
      %1595 = vmatprep.subr.mxu0 0.0
      %1596 = vmatpush1.msra.mxu0 0.0
      %1597 = vmatprep.subr.mxu0 0.0
      %1598 = vmatpush1.msra.mxu0 0.0
      %1599 = vmatprep.subr.mxu0 0.0
      %1600 = vmatpush1.msra.mxu0 %v1564
      %1601 = vmatprep.subr.mxu0 0.0
      %1602 = vmatpush1.msra.mxu0 %v1563
      %1603 = vmatprep.subr.mxu0 0.0
      %1604 = vmatpush1.msra.mxu0 %v1562
      %1605 = vmatprep.subr.mxu0 0.0
      %1606 = vmatpush1.msra.mxu0 %v1561
      %1607 = vmatprep.subr.mxu0 0.0
      %1608 = vmatpush2.msra.mxu0 0.0
      %1609 = vmatprep.subr.mxu0 0.0
      %1610 = vmatpush2.msra.mxu0 0.0
      %1611 = vmatprep.subr.mxu0 0.0
      %1612 = vmatpush2.msra.mxu0 0.0
      %1613 = vmatprep.subr.mxu0 0.0
      %1614 = vmatpush2.msra.mxu0 0.0
      %1615 = vmatprep.subr.mxu0 0.0
      %1616 = vmatpush2.msra.mxu0 0.0
      %1617 = vmatprep.subr.mxu0 0.0
      %1618 = vmatpush2.msra.mxu0 0.0
      %1619 = vmatprep.subr.mxu0 0.0
      %1620 = vmatpush2.msra.mxu0 0.0
      %1621 = vmatprep.subr.mxu0 0.0
      %1622 = vmatpush2.msra.mxu0 0.0
      %1623 = vmatprep.subr.mxu0 0.0
      %1624 = vmatpush2.msra.mxu0 0.0
      %1625 = vmatprep.subr.mxu0 0.0
      %1626 = vmatpush2.msra.mxu0 0.0
      %1627 = vmatprep.subr.mxu0 0.0
      %1628 = vmatpush2.msra.mxu0 0.0
      %1629 = vmatprep.subr.mxu0 0.0
      %1630 = vmatpush2.msra.mxu0 0.0
      %1631 = vmatprep.subr.mxu0 0.0
      %1632 = vmatpush2.msra.mxu0 0.0
      %1633 = vmatprep.subr.mxu0 0.0
      %1634 = vmatpush2.msra.mxu0 0.0
      %1635 = vmatprep.subr.mxu0 0.0
      %1636 = vmatpush2.msra.mxu0 0.0
      %1637 = vmatprep.subr.mxu0 0.0
      %1638 = vmatpush2.msra.mxu0 0.0
      %1639 = vmatprep.mubr.f32.mxu0 0.0
      %1640 = vmatmul.mubr.f32.gmra.mxu0 %v1573
      %v1641 = vpop.f32.mrf.mxu0
      %v1642 = vadd.f32 %v1570, %v1641
      %v1643 = vpop.f32.mrf.mxu0
      %1644 = vdwg.mxu0
      %v1645 = vadd.f32 %v1642, %v1308
      %1647 = vrot.lane.b32.xlu0 %v1645, 127
      %v1648 = vpop.permute.xlu0 %1647
      %vm1650 = vcmp.ge.f32.partialorder %v1645, %v1648
      %v1651 = vsel %vm1650, 1, 0
      %v1652 = vcvt.s32.f32 %v1651
      %v1653 = vlaneseq
      %v1654 = vand.u32 %v1653, 127
      %vm1655 = vcmp.eq.s32.totalorder %v1654, 0
      %v1656 = vsub.f32 1.0, %v1652
      %1658 = vset.pattern.permute.xlu0 0
      %1659 = vperm.xlu0 %1658, %v1652
      %v1660 = vpop.permute.xlu0 %1659
      %1663 = vset.pattern.permute.xlu0 0
      %1664 = vperm.xlu0 %1663, %v1656
      %v1665 = vpop.permute.xlu0 %1664
      %v1667 = vsel %vm1655, %v1660, %v1665
      %vm1668 = vcmask 9216
      %1669 = vst.msk [vmem:[%s1282] sm:$0x3] %vm1668, %v1667
      %v1670 = vld [vmem:[%s29] sm:$0xff]
      %v1671 = vld [vmem:[%s29 + $0x8] sm:$0xff]
      %v1672 = vld [vmem:[%s29 + $0x10] sm:$0xff]
      %v1673 = vld [vmem:[%s29 + $0x18] sm:$0xff]
      %v1674 = vld [vmem:[%s31] sm:$0xf]
      %v1676 = vsel %vm1469, %v1674, 0
      %1678 = vmatprep.subr.mxu0 0.0
      %1679 = vmatpush1.msra.mxu0 0.0
      %1680 = vmatprep.subr.mxu0 0.0
      %1681 = vmatpush1.msra.mxu0 0.0
      %1682 = vmatprep.subr.mxu0 0.0
      %1683 = vmatpush1.msra.mxu0 0.0
      %1684 = vmatprep.subr.mxu0 0.0
      %1685 = vmatpush1.msra.mxu0 0.0
      %1686 = vmatprep.subr.mxu0 0.0
      %1687 = vmatpush1.msra.mxu0 0.0
      %1688 = vmatprep.subr.mxu0 0.0
      %1689 = vmatpush1.msra.mxu0 0.0
      %1690 = vmatprep.subr.mxu0 0.0
      %1691 = vmatpush1.msra.mxu0 0.0
      %1692 = vmatprep.subr.mxu0 0.0
      %1693 = vmatpush1.msra.mxu0 0.0
      %1694 = vmatprep.subr.mxu0 0.0
      %1695 = vmatpush1.msra.mxu0 0.0
      %1696 = vmatprep.subr.mxu0 0.0
      %1697 = vmatpush1.msra.mxu0 0.0
      %1698 = vmatprep.subr.mxu0 0.0
      %1699 = vmatpush1.msra.mxu0 0.0
      %1700 = vmatprep.subr.mxu0 0.0
      %1701 = vmatpush1.msra.mxu0 0.0
      %1702 = vmatprep.subr.mxu0 0.0
      %1703 = vmatpush1.msra.mxu0 0.0
      %1704 = vmatprep.subr.mxu0 0.0
      %1705 = vmatpush1.msra.mxu0 0.0
      %1706 = vmatprep.subr.mxu0 0.0
      %1707 = vmatpush1.msra.mxu0 0.0
      %1708 = vmatprep.subr.mxu0 0.0
      %1709 = vmatpush1.msra.mxu0 %v1676
      %1710 = vmatprep.subr.mxu0 0.0
      %1711 = vmatpush2.msra.mxu0 0.0
      %1712 = vmatprep.subr.mxu0 0.0
      %1713 = vmatpush2.msra.mxu0 0.0
      %1714 = vmatprep.subr.mxu0 0.0
      %1715 = vmatpush2.msra.mxu0 0.0
      %1716 = vmatprep.subr.mxu0 0.0
      %1717 = vmatpush2.msra.mxu0 0.0
      %1718 = vmatprep.subr.mxu0 0.0
      %1719 = vmatpush2.msra.mxu0 0.0
      %1720 = vmatprep.subr.mxu0 0.0
      %1721 = vmatpush2.msra.mxu0 0.0
      %1722 = vmatprep.subr.mxu0 0.0
      %1723 = vmatpush2.msra.mxu0 0.0
      %1724 = vmatprep.subr.mxu0 0.0
      %1725 = vmatpush2.msra.mxu0 0.0
      %1726 = vmatprep.subr.mxu0 0.0
      %1727 = vmatpush2.msra.mxu0 0.0
      %1728 = vmatprep.subr.mxu0 0.0
      %1729 = vmatpush2.msra.mxu0 0.0
      %1730 = vmatprep.subr.mxu0 0.0
      %1731 = vmatpush2.msra.mxu0 0.0
      %1732 = vmatprep.subr.mxu0 0.0
      %1733 = vmatpush2.msra.mxu0 0.0
      %1734 = vmatprep.subr.mxu0 0.0
      %1735 = vmatpush2.msra.mxu0 0.0
      %1736 = vmatprep.subr.mxu0 0.0
      %1737 = vmatpush2.msra.mxu0 0.0
      %1738 = vmatprep.subr.mxu0 0.0
      %1739 = vmatpush2.msra.mxu0 0.0
      %1740 = vmatprep.subr.mxu0 0.0
      %1741 = vmatpush2.msra.mxu0 0.0
      %1742 = vmatprep.mubr.f32.mxu0 0.0
      %1743 = vmatmul.mubr.f32.gmra.mxu0 %v1467
      %v1744 = vpop.f32.mrf.mxu0
      %v1745 = vadd.f32 0.0, %v1744
      %v1746 = vpop.f32.mrf.mxu0
      %1747 = vdwg.mxu0
      %1748 = vmatprep.subr.mxu0 0.0
      %1749 = vmatpush1.msra.mxu0 0.0
      %1750 = vmatprep.subr.mxu0 0.0
      %1751 = vmatpush1.msra.mxu0 0.0
      %1752 = vmatprep.subr.mxu0 0.0
      %1753 = vmatpush1.msra.mxu0 0.0
      %1754 = vmatprep.subr.mxu0 0.0
      %1755 = vmatpush1.msra.mxu0 0.0
      %1756 = vmatprep.subr.mxu0 0.0
      %1757 = vmatpush1.msra.mxu0 0.0
      %1758 = vmatprep.subr.mxu0 0.0
      %1759 = vmatpush1.msra.mxu0 0.0
      %1760 = vmatprep.subr.mxu0 0.0
      %1761 = vmatpush1.msra.mxu0 0.0
      %1762 = vmatprep.subr.mxu0 0.0
      %1763 = vmatpush1.msra.mxu0 0.0
      %1764 = vmatprep.subr.mxu0 0.0
      %1765 = vmatpush1.msra.mxu0 0.0
      %1766 = vmatprep.subr.mxu0 0.0
      %1767 = vmatpush1.msra.mxu0 0.0
      %1768 = vmatprep.subr.mxu0 0.0
      %1769 = vmatpush1.msra.mxu0 0.0
      %1770 = vmatprep.subr.mxu0 0.0
      %1771 = vmatpush1.msra.mxu0 0.0
      %1772 = vmatprep.subr.mxu0 0.0
      %1773 = vmatpush1.msra.mxu0 %v1673
      %1774 = vmatprep.subr.mxu0 0.0
      %1775 = vmatpush1.msra.mxu0 %v1672
      %1776 = vmatprep.subr.mxu0 0.0
      %1777 = vmatpush1.msra.mxu0 %v1671
      %1778 = vmatprep.subr.mxu0 0.0
      %1779 = vmatpush1.msra.mxu0 %v1670
      %1780 = vmatprep.subr.mxu0 0.0
      %1781 = vmatpush2.msra.mxu0 0.0
      %1782 = vmatprep.subr.mxu0 0.0
      %1783 = vmatpush2.msra.mxu0 0.0
      %1784 = vmatprep.subr.mxu0 0.0
      %1785 = vmatpush2.msra.mxu0 0.0
      %1786 = vmatprep.subr.mxu0 0.0
      %1787 = vmatpush2.msra.mxu0 0.0
      %1788 = vmatprep.subr.mxu0 0.0
      %1789 = vmatpush2.msra.mxu0 0.0
      %1790 = vmatprep.subr.mxu0 0.0
      %1791 = vmatpush2.msra.mxu0 0.0
      %1792 = vmatprep.subr.mxu0 0.0
      %1793 = vmatpush2.msra.mxu0 0.0
      %1794 = vmatprep.subr.mxu0 0.0
      %1795 = vmatpush2.msra.mxu0 0.0
      %1796 = vmatprep.subr.mxu0 0.0
      %1797 = vmatpush2.msra.mxu0 0.0
      %1798 = vmatprep.subr.mxu0 0.0
      %1799 = vmatpush2.msra.mxu0 0.0
      %1800 = vmatprep.subr.mxu0 0.0
      %1801 = vmatpush2.msra.mxu0 0.0
      %1802 = vmatprep.subr.mxu0 0.0
      %1803 = vmatpush2.msra.mxu0 0.0
      %1804 = vmatprep.subr.mxu0 0.0
      %1805 = vmatpush2.msra.mxu0 0.0
      %1806 = vmatprep.subr.mxu0 0.0
      %1807 = vmatpush2.msra.mxu0 0.0
      %1808 = vmatprep.subr.mxu0 0.0
      %1809 = vmatpush2.msra.mxu0 0.0
      %1810 = vmatprep.subr.mxu0 0.0
      %1811 = vmatpush2.msra.mxu0 0.0
      %1812 = vmatprep.mubr.f32.mxu0 0.0
      %1813 = vmatmul.mubr.f32.gmra.mxu0 %v1392
      %v1814 = vpop.f32.mrf.mxu0
      %v1815 = vadd.f32 %v1745, %v1814
      %v1816 = vpop.f32.mrf.mxu0
      %1817 = vdwg.mxu0
      %v1818 = vld [vmem:[%s15] sm:$0x1]
      %v1820 = vlaneseq
      %v1821 = vshrl.u32 %v1820, 7
      %v1822 = vsub.s32 0, %v1821
      %v1823 = vrot.slane %v1818, %v1822
      %v1825 = vadd.f32 %v1815, %v1823
      %v1826 = vld [vmem:[%s33] sm:$0x1]
      %v1828 = vlaneseq
      %v1829 = vshrl.u32 %v1828, 7
      %v1830 = vsub.s32 0, %v1829
      %v1831 = vrot.slane %v1826, %v1830
      %v1833 = vadd.f32 %v1825, %v1831
      %v1834 = vmax.f32 %v1833, 0.0
      %v1837 = vunpack.c.l.s4 1966171168
      %v1838 = vunpack.c.0.s8 %v1837
      %v1839 = vlaneseq
      %v1840 = vshrl.u32 %v1839, 7
      %v1841 = vsub.s32 %v1838, %v1840
      %v1842 = vrot.slane %v1834, %v1841
      %v1843 = vcombine.high %v1842, %v1842
      %v1845 = vunpack.c.l.s4 1966171168
      %v1846 = vunpack.c.0.s8 %v1845
      %v1847 = vlaneseq
      %v1848 = vshrl.u32 %v1847, 7
      %v1849 = vsub.s32 %v1846, %v1848
      %v1850 = vrot.slane %v1842, %v1849
      %v1852 = vunpack.c.l.s4 1966171168
      %v1853 = vunpack.c.0.s8 %v1852
      %v1854 = vlaneseq
      %v1855 = vshrl.u32 %v1854, 7
      %v1856 = vsub.s32 %v1853, %v1855
      %v1857 = vrot.slane %v1843, %v1856
      %v1858 = vlaneseq
      %v1859 = vshrl.u32 %v1858, 7
      %v1860 = vsub.s32 0, %v1859
      %v1861 = vrot.slane %v1850, %v1860
      %v1862 = vlaneseq
      %v1863 = vshrl.u32 %v1862, 7
      %v1864 = vsub.s32 0, %v1863
      %v1865 = vrot.slane %v1857, %v1864
      %v1868 = vmul.f32 %v1861, %v1304
      %v1869 = vmul.f32 %v1865, %v1305
      %vm1870 = vcmask 258048
      %v1871 = vsel %vm1870, %v1868, 0.0
      %1872 = vadd.xlane.f32.xlu0 %v1871
      %v1873 = vpop.xlane.xlu0 %1872
      %v1874 = vsel %vm1870, %v1869, 0.0
      %1875 = vadd.xlane.f32.xlu0 %v1874
      %v1876 = vpop.xlane.xlu0 %1875
      %v1877 = vrcp.pop 5.656854
      %v1878 = vmul.f32 %v1873, %v1877
      %v1879 = vmul.f32 %v1876, %v1877
      %v1882 = vlaneseq
      %v1883 = vshrl.u32 %v1882, 7
      %v1884 = vsub.s32 %v1654, %v1883
      %v1885 = vrot.slane %v1878, %v1884
      %v1886 = vlaneseq
      %v1887 = vshrl.u32 %v1886, 7
      %v1888 = vsub.s32 %v1654, %v1887
      %v1889 = vrot.slane %v1879, %v1888
      %vm1890 = vcmask 1041409
      %v1891 = vsel %vm1890, %v1889, %v1885
      %vm1893 = vcmask 33792
      %v1894 = vsel %vm1893, %v1891, -inf
      %1895 = vmax.xlane.f32.xlu0 %v1894
      %v1896 = vpop.xlane.xlu0 %1895
      %v1898 = vlaneseq
      %v1899 = vshrl.u32 %v1898, 7
      %v1900 = vsub.s32 0, %v1899
      %v1901 = vrot.slane %v1896, %v1900
      %v1902 = vlaneseq
      %v1903 = vshrl.u32 %v1902, 7
      %v1904 = vsub.s32 1, %v1903
      %v1905 = vrot.slane %v1896, %v1904
      %v1908 = vsub.f32 %v1878, %v1901
      %v1909 = vsub.f32 %v1879, %v1905
      %v1910 = vmul.f32 %v1908, 1.442695
      %v1911 = vpow.pop %v1910
      %v1912 = vmul.f32 %v1909, 1.442695
      %v1913 = vpow.pop %v1912
      %1916 = vset.pattern.permute.xlu0 0
      %1917 = vperm.xlu0 %1916, %v1911
      %v1918 = vpop.permute.xlu0 %1917
      %1919 = vset.pattern.permute.xlu0 0
      %1920 = vperm.xlu0 %1919, %v1913
      %v1921 = vpop.permute.xlu0 %1920
      %v1922 = vlaneseq
      %v1923 = vshrl.u32 %v1922, 7
      %v1924 = vsub.s32 %v1654, %v1923
      %v1925 = vrot.slane %v1918, %v1924
      %v1926 = vlaneseq
      %v1927 = vshrl.u32 %v1926, 7
      %v1928 = vsub.s32 %v1654, %v1927
      %v1929 = vrot.slane %v1921, %v1928
      %v1930 = vsel %vm1890, %v1929, %v1925
      %v1932 = vsel %vm1893, %v1930, 0.0
      %1933 = vadd.xlane.f32.xlu0 %v1932
      %v1934 = vpop.xlane.xlu0 %1933
      %v1936 = vlaneseq
      %v1937 = vshrl.u32 %v1936, 7
      %v1938 = vsub.s32 0, %v1937
      %v1939 = vrot.slane %v1934, %v1938
      %v1940 = vlaneseq
      %v1941 = vshrl.u32 %v1940, 7
      %v1942 = vsub.s32 1, %v1941
      %v1943 = vrot.slane %v1934, %v1942
      %v1946 = vrcp.pop %v1939
      %v1947 = vmul.f32 %v1911, %v1946
      %v1948 = vrcp.pop %v1943
      %v1949 = vmul.f32 %v1913, %v1948
      %v1951 = vlaneseq
      %v1952 = vshrl.u32 %v1951, 7
      %v1953 = vsub.s32 0, %v1952
      %v1954 = vrot.slane %v1306, %v1953
      %1956 = vbcast.lane.b32.xlu0 %v1954, 256
      %v1957 = vpop.permute.xlu0 %1956
      %v1958 = vlaneseq
      %v1959 = vshrl.u32 %v1958, 7
      %v1960 = vsub.s32 1, %v1959
      %v1961 = vrot.slane %v1306, %v1960
      %1963 = vbcast.lane.b32.xlu0 %v1961, 256
      %v1964 = vpop.permute.xlu0 %1963
      %v1967 = vmul.f32 %v1947, %v1957
      %v1968 = vmul.f32 %v1949, %v1964
      %1971 = vset.pattern.permute.xlu0 0
      %1972 = vperm.xlu0 %1971, %v1967
      %v1973 = vpop.permute.xlu0 %1972
      %1974 = vset.pattern.permute.xlu0 0
      %1975 = vperm.xlu0 %1974, %v1968
      %v1976 = vpop.permute.xlu0 %1975
      %v1977 = vlaneseq
      %v1978 = vshrl.u32 %v1977, 7
      %v1979 = vsub.s32 %v1654, %v1978
      %v1980 = vrot.slane %v1973, %v1979
      %v1981 = vlaneseq
      %v1982 = vshrl.u32 %v1981, 7
      %v1983 = vsub.s32 %v1654, %v1982
      %v1984 = vrot.slane %v1976, %v1983
      %v1985 = vsel %vm1890, %v1984, %v1980
      %1987 = vst.msk [vmem:[%s1286] sm:$0x3] %vm1893, %v1985
      %v1990 = vmul.f32 %v1973, %v1304
      %v1991 = vmul.f32 %v1976, %v1305
      %v1992 = vsel %vm1870, %v1990, 0.0
      %v1993 = vrot.slane %v1992, 4
      %v1994 = vadd.f32 %v1992, %v1993
      %v1995 = vrot.slane %v1994, 2
      %v1996 = vadd.f32 %v1994, %v1995
      %v1997 = vrot.slane %v1996, 1
      %v1998 = vadd.f32 %v1996, %v1997
      %v1999 = vsel %vm1870, %v1991, 0.0
      %v2000 = vrot.slane %v1999, 4
      %v2001 = vadd.f32 %v1999, %v2000
      %v2002 = vrot.slane %v2001, 2
      %v2003 = vadd.f32 %v2001, %v2002
      %v2004 = vrot.slane %v2003, 1
      %v2005 = vadd.f32 %v2003, %v2004
      %v2006 = vld [vmem:[%s35] sm:$0xff]
      %v2007 = vld [vmem:[%s35 + $0x8] sm:$0xff]
      %v2008 = vld [vmem:[%s35 + $0x10] sm:$0xff]
      %v2009 = vld [vmem:[%s35 + $0x18] sm:$0xff]
      %v2010 = vld [vmem:[%s37] sm:$0x1]
      %v2012 = vlaneseq
      %v2013 = vshrl.u32 %v2012, 7
      %v2014 = vsub.s32 0, %v2013
      %v2015 = vrot.slane %v2010, %v2014
      %v2019 = vsel %vm1890, %v2005, %v1998
      %v2020 = vsel %vm1317, %v2019, 0
      %2022 = vmatprep.subr.mxu0 0.0
      %2023 = vmatpush1.msra.mxu0 0.0
      %2024 = vmatprep.subr.mxu0 0.0
      %2025 = vmatpush1.msra.mxu0 0.0
      %2026 = vmatprep.subr.mxu0 0.0
      %2027 = vmatpush1.msra.mxu0 0.0
      %2028 = vmatprep.subr.mxu0 0.0
      %2029 = vmatpush1.msra.mxu0 0.0
      %2030 = vmatprep.subr.mxu0 0.0
      %2031 = vmatpush1.msra.mxu0 0.0
      %2032 = vmatprep.subr.mxu0 0.0
      %2033 = vmatpush1.msra.mxu0 0.0
      %2034 = vmatprep.subr.mxu0 0.0
      %2035 = vmatpush1.msra.mxu0 0.0
      %2036 = vmatprep.subr.mxu0 0.0
      %2037 = vmatpush1.msra.mxu0 0.0
      %2038 = vmatprep.subr.mxu0 0.0
      %2039 = vmatpush1.msra.mxu0 0.0
      %2040 = vmatprep.subr.mxu0 0.0
      %2041 = vmatpush1.msra.mxu0 0.0
      %2042 = vmatprep.subr.mxu0 0.0
      %2043 = vmatpush1.msra.mxu0 0.0
      %2044 = vmatprep.subr.mxu0 0.0
      %2045 = vmatpush1.msra.mxu0 0.0
      %2046 = vmatprep.subr.mxu0 0.0
      %2047 = vmatpush1.msra.mxu0 %v2009
      %2048 = vmatprep.subr.mxu0 0.0
      %2049 = vmatpush1.msra.mxu0 %v2008
      %2050 = vmatprep.subr.mxu0 0.0
      %2051 = vmatpush1.msra.mxu0 %v2007
      %2052 = vmatprep.subr.mxu0 0.0
      %2053 = vmatpush1.msra.mxu0 %v2006
      %2054 = vmatprep.subr.mxu0 0.0
      %2055 = vmatpush2.msra.mxu0 0.0
      %2056 = vmatprep.subr.mxu0 0.0
      %2057 = vmatpush2.msra.mxu0 0.0
      %2058 = vmatprep.subr.mxu0 0.0
      %2059 = vmatpush2.msra.mxu0 0.0
      %2060 = vmatprep.subr.mxu0 0.0
      %2061 = vmatpush2.msra.mxu0 0.0
      %2062 = vmatprep.subr.mxu0 0.0
      %2063 = vmatpush2.msra.mxu0 0.0
      %2064 = vmatprep.subr.mxu0 0.0
      %2065 = vmatpush2.msra.mxu0 0.0
      %2066 = vmatprep.subr.mxu0 0.0
      %2067 = vmatpush2.msra.mxu0 0.0
      %2068 = vmatprep.subr.mxu0 0.0
      %2069 = vmatpush2.msra.mxu0 0.0
      %2070 = vmatprep.subr.mxu0 0.0
      %2071 = vmatpush2.msra.mxu0 0.0
      %2072 = vmatprep.subr.mxu0 0.0
      %2073 = vmatpush2.msra.mxu0 0.0
      %2074 = vmatprep.subr.mxu0 0.0
      %2075 = vmatpush2.msra.mxu0 0.0
      %2076 = vmatprep.subr.mxu0 0.0
      %2077 = vmatpush2.msra.mxu0 0.0
      %2078 = vmatprep.subr.mxu0 0.0
      %2079 = vmatpush2.msra.mxu0 0.0
      %2080 = vmatprep.subr.mxu0 0.0
      %2081 = vmatpush2.msra.mxu0 0.0
      %2082 = vmatprep.subr.mxu0 0.0
      %2083 = vmatpush2.msra.mxu0 0.0
      %2084 = vmatprep.subr.mxu0 0.0
      %2085 = vmatpush2.msra.mxu0 0.0
      %2086 = vmatprep.mubr.f32.mxu0 0.0
      %2087 = vmatmul.mubr.f32.gmra.mxu0 %v2020
      %v2088 = vpop.f32.mrf.mxu0
      %v2089 = vadd.f32 %v2015, %v2088
      %v2090 = vpop.f32.mrf.mxu0
      %2091 = vdwg.mxu0
      %v2092 = vadd.f32 %v2089, %v1307
      %v2093 = vld [vmem:[%s39] sm:$0xff]
      %v2094 = vld [vmem:[%s39 + $0x8] sm:$0xff]
      %v2095 = vld [vmem:[%s39 + $0x10] sm:$0xff]
      %v2096 = vld [vmem:[%s39 + $0x18] sm:$0xff]
      %v2098 = vsel %vm1317, %v2092, 0
      %2100 = vmatprep.subr.mxu0 0.0
      %2101 = vmatpush1.msra.mxu0 0.0
      %2102 = vmatprep.subr.mxu0 0.0
      %2103 = vmatpush1.msra.mxu0 0.0
      %2104 = vmatprep.subr.mxu0 0.0
      %2105 = vmatpush1.msra.mxu0 0.0
      %2106 = vmatprep.subr.mxu0 0.0
      %2107 = vmatpush1.msra.mxu0 0.0
      %2108 = vmatprep.subr.mxu0 0.0
      %2109 = vmatpush1.msra.mxu0 0.0
      %2110 = vmatprep.subr.mxu0 0.0
      %2111 = vmatpush1.msra.mxu0 0.0
      %2112 = vmatprep.subr.mxu0 0.0
      %2113 = vmatpush1.msra.mxu0 0.0
      %2114 = vmatprep.subr.mxu0 0.0
      %2115 = vmatpush1.msra.mxu0 0.0
      %2116 = vmatprep.subr.mxu0 0.0
      %2117 = vmatpush1.msra.mxu0 0.0
      %2118 = vmatprep.subr.mxu0 0.0
      %2119 = vmatpush1.msra.mxu0 0.0
      %2120 = vmatprep.subr.mxu0 0.0
      %2121 = vmatpush1.msra.mxu0 0.0
      %2122 = vmatprep.subr.mxu0 0.0
      %2123 = vmatpush1.msra.mxu0 0.0
      %2124 = vmatprep.subr.mxu0 0.0
      %2125 = vmatpush1.msra.mxu0 %v2096
      %2126 = vmatprep.subr.mxu0 0.0
      %2127 = vmatpush1.msra.mxu0 %v2095
      %2128 = vmatprep.subr.mxu0 0.0
      %2129 = vmatpush1.msra.mxu0 %v2094
      %2130 = vmatprep.subr.mxu0 0.0
      %2131 = vmatpush1.msra.mxu0 %v2093
      %2132 = vmatprep.subr.mxu0 0.0
      %2133 = vmatpush2.msra.mxu0 0.0
      %2134 = vmatprep.subr.mxu0 0.0
      %2135 = vmatpush2.msra.mxu0 0.0
      %2136 = vmatprep.subr.mxu0 0.0
      %2137 = vmatpush2.msra.mxu0 0.0
      %2138 = vmatprep.subr.mxu0 0.0
      %2139 = vmatpush2.msra.mxu0 0.0
      %2140 = vmatprep.subr.mxu0 0.0
      %2141 = vmatpush2.msra.mxu0 0.0
      %2142 = vmatprep.subr.mxu0 0.0
      %2143 = vmatpush2.msra.mxu0 0.0
      %2144 = vmatprep.subr.mxu0 0.0
      %2145 = vmatpush2.msra.mxu0 0.0
      %2146 = vmatprep.subr.mxu0 0.0
      %2147 = vmatpush2.msra.mxu0 0.0
      %2148 = vmatprep.subr.mxu0 0.0
      %2149 = vmatpush2.msra.mxu0 0.0
      %2150 = vmatprep.subr.mxu0 0.0
      %2151 = vmatpush2.msra.mxu0 0.0
      %2152 = vmatprep.subr.mxu0 0.0
      %2153 = vmatpush2.msra.mxu0 0.0
      %2154 = vmatprep.subr.mxu0 0.0
      %2155 = vmatpush2.msra.mxu0 0.0
      %2156 = vmatprep.subr.mxu0 0.0
      %2157 = vmatpush2.msra.mxu0 0.0
      %2158 = vmatprep.subr.mxu0 0.0
      %2159 = vmatpush2.msra.mxu0 0.0
      %2160 = vmatprep.subr.mxu0 0.0
      %2161 = vmatpush2.msra.mxu0 0.0
      %2162 = vmatprep.subr.mxu0 0.0
      %2163 = vmatpush2.msra.mxu0 0.0
      %2164 = vmatprep.mubr.f32.mxu0 0.0
      %2165 = vmatmul.mubr.f32.gmra.mxu0 %v2098
      %v2166 = vpop.f32.mrf.mxu0
      %v2167 = vadd.f32 0.0, %v2166
      %v2168 = vpop.f32.mrf.mxu0
      %2169 = vdwg.mxu0
      %v2170 = vld [vmem:[%s41] sm:$0xff]
      %v2171 = vld [vmem:[%s41 + $0x8] sm:$0xff]
      %v2172 = vld [vmem:[%s41 + $0x10] sm:$0xff]
      %v2173 = vld [vmem:[%s41 + $0x18] sm:$0xff]
      %2174 = vmatprep.subr.mxu0 0.0
      %2175 = vmatpush1.msra.mxu0 0.0
      %2176 = vmatprep.subr.mxu0 0.0
      %2177 = vmatpush1.msra.mxu0 0.0
      %2178 = vmatprep.subr.mxu0 0.0
      %2179 = vmatpush1.msra.mxu0 0.0
      %2180 = vmatprep.subr.mxu0 0.0
      %2181 = vmatpush1.msra.mxu0 0.0
      %2182 = vmatprep.subr.mxu0 0.0
      %2183 = vmatpush1.msra.mxu0 0.0
      %2184 = vmatprep.subr.mxu0 0.0
      %2185 = vmatpush1.msra.mxu0 0.0
      %2186 = vmatprep.subr.mxu0 0.0
      %2187 = vmatpush1.msra.mxu0 0.0
      %2188 = vmatprep.subr.mxu0 0.0
      %2189 = vmatpush1.msra.mxu0 0.0
      %2190 = vmatprep.subr.mxu0 0.0
      %2191 = vmatpush1.msra.mxu0 0.0
      %2192 = vmatprep.subr.mxu0 0.0
      %2193 = vmatpush1.msra.mxu0 0.0
      %2194 = vmatprep.subr.mxu0 0.0
      %2195 = vmatpush1.msra.mxu0 0.0
      %2196 = vmatprep.subr.mxu0 0.0
      %2197 = vmatpush1.msra.mxu0 0.0
      %2198 = vmatprep.subr.mxu0 0.0
      %2199 = vmatpush1.msra.mxu0 %v2173
      %2200 = vmatprep.subr.mxu0 0.0
      %2201 = vmatpush1.msra.mxu0 %v2172
      %2202 = vmatprep.subr.mxu0 0.0
      %2203 = vmatpush1.msra.mxu0 %v2171
      %2204 = vmatprep.subr.mxu0 0.0
      %2205 = vmatpush1.msra.mxu0 %v2170
      %2206 = vmatprep.subr.mxu0 0.0
      %2207 = vmatpush2.msra.mxu0 0.0
      %2208 = vmatprep.subr.mxu0 0.0
      %2209 = vmatpush2.msra.mxu0 0.0
      %2210 = vmatprep.subr.mxu0 0.0
      %2211 = vmatpush2.msra.mxu0 0.0
      %2212 = vmatprep.subr.mxu0 0.0
      %2213 = vmatpush2.msra.mxu0 0.0
      %2214 = vmatprep.subr.mxu0 0.0
      %2215 = vmatpush2.msra.mxu0 0.0
      %2216 = vmatprep.subr.mxu0 0.0
      %2217 = vmatpush2.msra.mxu0 0.0
      %2218 = vmatprep.subr.mxu0 0.0
      %2219 = vmatpush2.msra.mxu0 0.0
      %2220 = vmatprep.subr.mxu0 0.0
      %2221 = vmatpush2.msra.mxu0 0.0
      %2222 = vmatprep.subr.mxu0 0.0
      %2223 = vmatpush2.msra.mxu0 0.0
      %2224 = vmatprep.subr.mxu0 0.0
      %2225 = vmatpush2.msra.mxu0 0.0
      %2226 = vmatprep.subr.mxu0 0.0
      %2227 = vmatpush2.msra.mxu0 0.0
      %2228 = vmatprep.subr.mxu0 0.0
      %2229 = vmatpush2.msra.mxu0 0.0
      %2230 = vmatprep.subr.mxu0 0.0
      %2231 = vmatpush2.msra.mxu0 0.0
      %2232 = vmatprep.subr.mxu0 0.0
      %2233 = vmatpush2.msra.mxu0 0.0
      %2234 = vmatprep.subr.mxu0 0.0
      %2235 = vmatpush2.msra.mxu0 0.0
      %2236 = vmatprep.subr.mxu0 0.0
      %2237 = vmatpush2.msra.mxu0 0.0
      %2238 = vmatprep.mubr.f32.mxu0 0.0
      %2239 = vmatmul.mubr.f32.gmra.mxu0 %v1392
      %v2240 = vpop.f32.mrf.mxu0
      %v2241 = vadd.f32 0.0, %v2240
      %v2242 = vpop.f32.mrf.mxu0
      %2243 = vdwg.mxu0
      %v2244 = vadd.f32 %v2167, %v2241
      %v2245 = vsub.f32 0.0, %v2244
      %v2246 = vmul.f32 %v2245, 1.442695
      %v2247 = vpow.pop %v2246
      %v2248 = vadd.f32 %v2247, 1.0
      %v2249 = vrcp.pop %v2248
      %v2250 = vmul.f32 1.0, %v2249
      %2252 = vrot.lane.b32.xlu0 %v2241, 64
      %v2253 = vpop.permute.xlu0 %2252
      %v2255 = vmul.f32 %v2250, %v2253
      %2257 = vrot.lane.b32.xlu0 %v2255, 64
      %v2258 = vpop.permute.xlu0 %2257
      %v2260 = vadd.f32 %v2167, %v2258
      %v2261 = vtanh.pop %v2260
      %v2262 = vsub.f32 1.0, %v2250
      %2264 = vrot.lane.b32.xlu0 %v2261, 96
      %v2265 = vpop.permute.xlu0 %2264
      %v2267 = vmul.f32 %v2262, %v2265
      %2268 = vrot.lane.b32.xlu0 %v1301, 32
      %v2269 = vpop.permute.xlu0 %2268
      %v2271 = vmul.f32 %v2250, %v2269
      %v2272 = vadd.f32 %v2267, %v2271
      %v2273 = vmul.f32 %v1301, %v1665
      %v2274 = vmul.f32 %v2272, %v1660
      %2276 = vrot.lane.b32.xlu0 %v2274, 96
      %v2277 = vpop.permute.xlu0 %2276
      %v2279 = vadd.f32 %v2273, %v2277
      %v2280 = vld [vmem:[%s51] sm:$0xff]
      %v2281 = vld [vmem:[%s51 + $0x8] sm:$0xff]
      %v2282 = vld [vmem:[%s51 + $0x10] sm:$0xff]
      %v2283 = vld [vmem:[%s51 + $0x18] sm:$0xff]
      %v2284 = vld [vmem:[%s53] sm:$0x1]
      %v2286 = vlaneseq
      %v2287 = vshrl.u32 %v2286, 7
      %v2288 = vsub.s32 0, %v2287
      %v2289 = vrot.slane %v2284, %v2288
      %v2292 = vsel %vm1317, %v2279, 0
      %2294 = vmatprep.subr.mxu0 0.0
      %2295 = vmatpush1.msra.mxu0 0.0
      %2296 = vmatprep.subr.mxu0 0.0
      %2297 = vmatpush1.msra.mxu0 0.0
      %2298 = vmatprep.subr.mxu0 0.0
      %2299 = vmatpush1.msra.mxu0 0.0
      %2300 = vmatprep.subr.mxu0 0.0
      %2301 = vmatpush1.msra.mxu0 0.0
      %2302 = vmatprep.subr.mxu0 0.0
      %2303 = vmatpush1.msra.mxu0 0.0
      %2304 = vmatprep.subr.mxu0 0.0
      %2305 = vmatpush1.msra.mxu0 0.0
      %2306 = vmatprep.subr.mxu0 0.0
      %2307 = vmatpush1.msra.mxu0 0.0
      %2308 = vmatprep.subr.mxu0 0.0
      %2309 = vmatpush1.msra.mxu0 0.0
      %2310 = vmatprep.subr.mxu0 0.0
      %2311 = vmatpush1.msra.mxu0 0.0
      %2312 = vmatprep.subr.mxu0 0.0
      %2313 = vmatpush1.msra.mxu0 0.0
      %2314 = vmatprep.subr.mxu0 0.0
      %2315 = vmatpush1.msra.mxu0 0.0
      %2316 = vmatprep.subr.mxu0 0.0
      %2317 = vmatpush1.msra.mxu0 0.0
      %2318 = vmatprep.subr.mxu0 0.0
      %2319 = vmatpush1.msra.mxu0 %v2283
      %2320 = vmatprep.subr.mxu0 0.0
      %2321 = vmatpush1.msra.mxu0 %v2282
      %2322 = vmatprep.subr.mxu0 0.0
      %2323 = vmatpush1.msra.mxu0 %v2281
      %2324 = vmatprep.subr.mxu0 0.0
      %2325 = vmatpush1.msra.mxu0 %v2280
      %2326 = vmatprep.subr.mxu0 0.0
      %2327 = vmatpush2.msra.mxu0 0.0
      %2328 = vmatprep.subr.mxu0 0.0
      %2329 = vmatpush2.msra.mxu0 0.0
      %2330 = vmatprep.subr.mxu0 0.0
      %2331 = vmatpush2.msra.mxu0 0.0
      %2332 = vmatprep.subr.mxu0 0.0
      %2333 = vmatpush2.msra.mxu0 0.0
      %2334 = vmatprep.subr.mxu0 0.0
      %2335 = vmatpush2.msra.mxu0 0.0
      %2336 = vmatprep.subr.mxu0 0.0
      %2337 = vmatpush2.msra.mxu0 0.0
      %2338 = vmatprep.subr.mxu0 0.0
      %2339 = vmatpush2.msra.mxu0 0.0
      %2340 = vmatprep.subr.mxu0 0.0
      %2341 = vmatpush2.msra.mxu0 0.0
      %2342 = vmatprep.subr.mxu0 0.0
      %2343 = vmatpush2.msra.mxu0 0.0
      %2344 = vmatprep.subr.mxu0 0.0
      %2345 = vmatpush2.msra.mxu0 0.0
      %2346 = vmatprep.subr.mxu0 0.0
      %2347 = vmatpush2.msra.mxu0 0.0
      %2348 = vmatprep.subr.mxu0 0.0
      %2349 = vmatpush2.msra.mxu0 0.0
      %2350 = vmatprep.subr.mxu0 0.0
      %2351 = vmatpush2.msra.mxu0 0.0
      %2352 = vmatprep.subr.mxu0 0.0
      %2353 = vmatpush2.msra.mxu0 0.0
      %2354 = vmatprep.subr.mxu0 0.0
      %2355 = vmatpush2.msra.mxu0 0.0
      %2356 = vmatprep.subr.mxu0 0.0
      %2357 = vmatpush2.msra.mxu0 0.0
      %2358 = vmatprep.mubr.f32.mxu0 0.0
      %2359 = vmatmul.mubr.f32.gmra.mxu0 %v2292
      %v2360 = vpop.f32.mrf.mxu0
      %v2361 = vadd.f32 %v2289, %v2360
      %v2362 = vpop.f32.mrf.mxu0
      %2363 = vdwg.mxu0
      %v2364 = vmax.f32 %v2361, 0.0
      %vm2365 = vcmask 254976
      %v2366 = vsel %vm2365, %v2364, 0.0
      %2367 = vadd.xlane.f32.xlu0 %v2366
      %v2368 = vpop.xlane.xlu0 %2367
      %v2369 = vrcp.pop 32.0
      %v2370 = vmul.f32 %v2368, %v2369
      %v2371 = vsub.f32 %v2364, %v2370
      %v2372 = vmul.f32 %v2371, %v2371
      %v2373 = vsel %vm2365, %v2372, 0.0
      %2374 = vadd.xlane.f32.xlu0 %v2373
      %v2375 = vpop.xlane.xlu0 %2374
      %v2376 = vmul.f32 %v2375, %v2369
      %v2377 = vadd.f32 %v2376, 1e-05
      %v2378 = vrsqrt.pop %v2377
      %v2379 = vmul.f32 %v2371, %v2378
      %v2380 = vld [vmem:[%s55] sm:$0x1]
      %v2382 = vlaneseq
      %v2383 = vshrl.u32 %v2382, 7
      %v2384 = vsub.s32 0, %v2383
      %v2385 = vrot.slane %v2380, %v2384
      %v2387 = vmul.f32 %v2379, %v2385
      %v2388 = vld [vmem:[%s57] sm:$0x1]
      %v2390 = vlaneseq
      %v2391 = vshrl.u32 %v2390, 7
      %v2392 = vsub.s32 0, %v2391
      %v2393 = vrot.slane %v2388, %v2392
      %v2395 = vadd.f32 %v2387, %v2393
      %v2396 = vld [vmem:[#allocation3] sm:$0x3]
      %v2397 = vld [vmem:[#allocation3 + $0x2] sm:$0x3]
      %v2398 = vld [vmem:[#allocation3 + $0x4] sm:$0x3]
      %v2399 = vld [vmem:[#allocation3 + $0x6] sm:$0x3]
      %v2400 = vld [vmem:[#allocation3 + $0x8] sm:$0x3]
      %v2401 = vld [vmem:[#allocation3 + $0xa] sm:$0x3]
      %v2402 = vld [vmem:[#allocation3 + $0xc] sm:$0x3]
      %v2403 = vld [vmem:[#allocation3 + $0xe] sm:$0x3]
      %v2404 = vmul.f32 %v2395, %v2396
      %v2405 = vmul.f32 %v2395, %v2397
      %v2406 = vmul.f32 %v2395, %v2398
      %v2407 = vmul.f32 %v2395, %v2399
      %v2408 = vmul.f32 %v2395, %v2400
      %v2409 = vmul.f32 %v2395, %v2401
      %v2410 = vmul.f32 %v2395, %v2402
      %v2411 = vmul.f32 %v2395, %v2403
      %v2412 = vsel %vm2365, %v2404, 0.0
      %2413 = vadd.xlane.f32.xlu0 %v2412
      %v2414 = vpop.xlane.xlu0 %2413
      %v2415 = vsel %vm2365, %v2405, 0.0
      %2416 = vadd.xlane.f32.xlu0 %v2415
      %v2417 = vpop.xlane.xlu0 %2416
      %v2418 = vsel %vm2365, %v2406, 0.0
      %2419 = vadd.xlane.f32.xlu0 %v2418
      %v2420 = vpop.xlane.xlu0 %2419
      %v2421 = vsel %vm2365, %v2407, 0.0
      %2422 = vadd.xlane.f32.xlu0 %v2421
      %v2423 = vpop.xlane.xlu0 %2422
      %v2424 = vsel %vm2365, %v2408, 0.0
      %2425 = vadd.xlane.f32.xlu0 %v2424
      %v2426 = vpop.xlane.xlu0 %2425
      %v2427 = vsel %vm2365, %v2409, 0.0
      %2428 = vadd.xlane.f32.xlu0 %v2427
      %v2429 = vpop.xlane.xlu0 %2428
      %v2430 = vsel %vm2365, %v2410, 0.0
      %2431 = vadd.xlane.f32.xlu0 %v2430
      %v2432 = vpop.xlane.xlu0 %2431
      %v2433 = vsel %vm2365, %v2411, 0.0
      %2434 = vadd.xlane.f32.xlu0 %v2433
      %v2435 = vpop.xlane.xlu0 %2434
      %v2436 = vmul.f32 %v2414, %v1877
      %v2437 = vmul.f32 %v2417, %v1877
      %v2438 = vmul.f32 %v2420, %v1877
      %v2439 = vmul.f32 %v2423, %v1877
      %v2440 = vmul.f32 %v2426, %v1877
      %v2441 = vmul.f32 %v2429, %v1877
      %v2442 = vmul.f32 %v2432, %v1877
      %v2443 = vmul.f32 %v2435, %v1877
      %v2444 = vlaneseq
      %v2445 = vshrl.u32 %v2444, 7
      %v2446 = vstv %s91
      %vm2447 = vcmp.lt.s32.totalorder %v2445, %v2446
      %v2448 = vsel %vm2447, 1, 0
      %vm2449 = vcmp.eq.s32.totalorder %v2448, 1
      %v2458 = vlaneseq
      %v2459 = vshrl.u32 %v2458, 7
      %v2460 = vsub.s32 %v1654, %v2459
      %v2461 = vrot.slane %v2436, %v2460
      %v2462 = vlaneseq
      %v2463 = vshrl.u32 %v2462, 7
      %v2464 = vsub.s32 %v1654, %v2463
      %v2465 = vrot.slane %v2437, %v2464
      %v2466 = vlaneseq
      %v2467 = vshrl.u32 %v2466, 7
      %v2468 = vsub.s32 %v1654, %v2467
      %v2469 = vrot.slane %v2438, %v2468
      %v2470 = vlaneseq
      %v2471 = vshrl.u32 %v2470, 7
      %v2472 = vsub.s32 %v1654, %v2471
      %v2473 = vrot.slane %v2439, %v2472
      %v2474 = vlaneseq
      %v2475 = vshrl.u32 %v2474, 7
      %v2476 = vsub.s32 %v1654, %v2475
      %v2477 = vrot.slane %v2440, %v2476
      %v2478 = vlaneseq
      %v2479 = vshrl.u32 %v2478, 7
      %v2480 = vsub.s32 %v1654, %v2479
      %v2481 = vrot.slane %v2441, %v2480
      %v2482 = vlaneseq
      %v2483 = vshrl.u32 %v2482, 7
      %v2484 = vsub.s32 %v1654, %v2483
      %v2485 = vrot.slane %v2442, %v2484
      %v2486 = vlaneseq
      %v2487 = vshrl.u32 %v2486, 7
      %v2488 = vsub.s32 %v1654, %v2487
      %v2489 = vrot.slane %v2443, %v2488
      %v2490 = vsel %vm1890, %v2465, %v2461
      %vm2491 = vcmask 1042434
      %v2492 = vsel %vm2491, %v2469, %v2490
      %vm2493 = vcmask 1043459
      %v2494 = vsel %vm2493, %v2473, %v2492
      %vm2495 = vcmask 1044484
      %v2496 = vsel %vm2495, %v2477, %v2494
      %vm2497 = vcmask 1045509
      %v2498 = vsel %vm2497, %v2481, %v2496
      %vm2499 = vcmask 1046534
      %v2500 = vsel %vm2499, %v2485, %v2498
      %vm2501 = vcmask 1047559
      %v2502 = vsel %vm2501, %v2489, %v2500
      %v2504 = vsel %vm2449, %v2502, -1e+30
      %vm2505 = vcmask 15360
      %v2506 = vsel %vm2505, %v2504, -inf
      %v2507 = vrot.slane %v2506, 4
      %v2508 = vmax.f32 %v2506, %v2507
      %v2509 = vrot.slane %v2508, 2
      %v2510 = vmax.f32 %v2508, %v2509
      %v2511 = vrot.slane %v2510, 1
      %v2512 = vmax.f32 %v2510, %v2511
      %v2513 = vsub.f32 %v2504, %v2512
      %v2514 = vmul.f32 %v2513, 1.442695
      %v2515 = vpow.pop %v2514
      %v2516 = vsel %vm2505, %v2515, 0.0
      %v2517 = vrot.slane %v2516, 4
      %v2518 = vadd.f32 %v2516, %v2517
      %v2519 = vrot.slane %v2518, 2
      %v2520 = vadd.f32 %v2518, %v2519
      %v2521 = vrot.slane %v2520, 1
      %v2522 = vadd.f32 %v2520, %v2521
      %v2523 = vrcp.pop %v2522
      %v2524 = vmul.f32 %v2515, %v2523
      %v2525 = vlaneseq
      %v2526 = vshrl.u32 %v2525, 7
      %v2527 = vsub.s32 0, %v2526
      %v2528 = vrot.slane %v2524, %v2527
      %2530 = vbcast.lane.b32.xlu0 %v2528, 256
      %v2531 = vpop.permute.xlu0 %2530
      %v2532 = vlaneseq
      %v2533 = vshrl.u32 %v2532, 7
      %v2534 = vsub.s32 1, %v2533
      %v2535 = vrot.slane %v2524, %v2534
      %2537 = vbcast.lane.b32.xlu0 %v2535, 256
      %v2538 = vpop.permute.xlu0 %2537
      %v2539 = vlaneseq
      %v2540 = vshrl.u32 %v2539, 7
      %v2541 = vsub.s32 2, %v2540
      %v2542 = vrot.slane %v2524, %v2541
      %2544 = vbcast.lane.b32.xlu0 %v2542, 256
      %v2545 = vpop.permute.xlu0 %2544
      %v2546 = vlaneseq
      %v2547 = vshrl.u32 %v2546, 7
      %v2548 = vsub.s32 3, %v2547
      %v2549 = vrot.slane %v2524, %v2548
      %2551 = vbcast.lane.b32.xlu0 %v2549, 256
      %v2552 = vpop.permute.xlu0 %2551
      %v2553 = vlaneseq
      %v2554 = vshrl.u32 %v2553, 7
      %v2555 = vsub.s32 4, %v2554
      %v2556 = vrot.slane %v2524, %v2555
      %2558 = vbcast.lane.b32.xlu0 %v2556, 256
      %v2559 = vpop.permute.xlu0 %2558
      %v2560 = vlaneseq
      %v2561 = vshrl.u32 %v2560, 7
      %v2562 = vsub.s32 5, %v2561
      %v2563 = vrot.slane %v2524, %v2562
      %2565 = vbcast.lane.b32.xlu0 %v2563, 256
      %v2566 = vpop.permute.xlu0 %2565
      %v2567 = vlaneseq
      %v2568 = vshrl.u32 %v2567, 7
      %v2569 = vsub.s32 6, %v2568
      %v2570 = vrot.slane %v2524, %v2569
      %2572 = vbcast.lane.b32.xlu0 %v2570, 256
      %v2573 = vpop.permute.xlu0 %2572
      %v2574 = vlaneseq
      %v2575 = vshrl.u32 %v2574, 7
      %v2576 = vsub.s32 7, %v2575
      %v2577 = vrot.slane %v2524, %v2576
      %2579 = vbcast.lane.b32.xlu0 %v2577, 256
      %v2580 = vpop.permute.xlu0 %2579
      %v2581 = vmul.f32 %v2531, %v2396
      %v2582 = vmul.f32 %v2538, %v2397
      %v2583 = vmul.f32 %v2545, %v2398
      %v2584 = vmul.f32 %v2552, %v2399
      %v2585 = vmul.f32 %v2559, %v2400
      %v2586 = vmul.f32 %v2566, %v2401
      %v2587 = vmul.f32 %v2573, %v2402
      %v2588 = vmul.f32 %v2580, %v2403
      %v2589 = vsel %vm2365, %v2581, 0.0
      %v2590 = vsel %vm2365, %v2582, 0.0
      %v2591 = vadd.f32 %v2589, %v2590
      %v2592 = vsel %vm2365, %v2583, 0.0
      %v2593 = vadd.f32 %v2591, %v2592
      %v2594 = vsel %vm2365, %v2584, 0.0
      %v2595 = vadd.f32 %v2593, %v2594
      %v2596 = vsel %vm2365, %v2585, 0.0
      %v2597 = vadd.f32 %v2595, %v2596
      %v2598 = vsel %vm2365, %v2586, 0.0
      %v2599 = vadd.f32 %v2597, %v2598
      %v2600 = vsel %vm2365, %v2587, 0.0
      %v2601 = vadd.f32 %v2599, %v2600
      %v2602 = vsel %vm2365, %v2588, 0.0
      %v2603 = vadd.f32 %v2601, %v2602
      %v2604 = vadd.f32 %v2603, %v2395
      %v2605 = vsel %vm2365, %v2604, 0.0
      %2606 = vadd.xlane.f32.xlu0 %v2605
      %v2607 = vpop.xlane.xlu0 %2606
      %v2608 = vmul.f32 %v2607, %v2369
      %v2609 = vsub.f32 %v2604, %v2608
      %v2610 = vmul.f32 %v2609, %v2609
      %v2611 = vsel %vm2365, %v2610, 0.0
      %2612 = vadd.xlane.f32.xlu0 %v2611
      %v2613 = vpop.xlane.xlu0 %2612
      %v2614 = vmul.f32 %v2613, %v2369
      %v2615 = vadd.f32 %v2614, 1e-05
      %v2616 = vrsqrt.pop %v2615
      %v2617 = vmul.f32 %v2609, %v2616
      %v2618 = vld [vmem:[%s59] sm:$0x1]
      %v2620 = vlaneseq
      %v2621 = vshrl.u32 %v2620, 7
      %v2622 = vsub.s32 0, %v2621
      %v2623 = vrot.slane %v2618, %v2622
      %v2625 = vmul.f32 %v2617, %v2623
      %v2626 = vld [vmem:[%s61] sm:$0x1]
      %v2628 = vlaneseq
      %v2629 = vshrl.u32 %v2628, 7
      %v2630 = vsub.s32 0, %v2629
      %v2631 = vrot.slane %v2626, %v2630
      %v2633 = vadd.f32 %v2625, %v2631
      %v2634 = vld [vmem:[%s63] sm:$0xff]
      %v2635 = vld [vmem:[%s63 + $0x8] sm:$0xff]
      %v2636 = vld [vmem:[%s63 + $0x10] sm:$0xff]
      %v2637 = vld [vmem:[%s63 + $0x18] sm:$0xff]
      %v2638 = vld [vmem:[%s65] sm:$0x1]
      %v2640 = vlaneseq
      %v2641 = vshrl.u32 %v2640, 7
      %v2642 = vsub.s32 0, %v2641
      %v2643 = vrot.slane %v2638, %v2642
      %v2646 = vsel %vm1317, %v2633, 0
      %2648 = vmatprep.subr.mxu0 0.0
      %2649 = vmatpush1.msra.mxu0 0.0
      %2650 = vmatprep.subr.mxu0 0.0
      %2651 = vmatpush1.msra.mxu0 0.0
      %2652 = vmatprep.subr.mxu0 0.0
      %2653 = vmatpush1.msra.mxu0 0.0
      %2654 = vmatprep.subr.mxu0 0.0
      %2655 = vmatpush1.msra.mxu0 0.0
      %2656 = vmatprep.subr.mxu0 0.0
      %2657 = vmatpush1.msra.mxu0 0.0
      %2658 = vmatprep.subr.mxu0 0.0
      %2659 = vmatpush1.msra.mxu0 0.0
      %2660 = vmatprep.subr.mxu0 0.0
      %2661 = vmatpush1.msra.mxu0 0.0
      %2662 = vmatprep.subr.mxu0 0.0
      %2663 = vmatpush1.msra.mxu0 0.0
      %2664 = vmatprep.subr.mxu0 0.0
      %2665 = vmatpush1.msra.mxu0 0.0
      %2666 = vmatprep.subr.mxu0 0.0
      %2667 = vmatpush1.msra.mxu0 0.0
      %2668 = vmatprep.subr.mxu0 0.0
      %2669 = vmatpush1.msra.mxu0 0.0
      %2670 = vmatprep.subr.mxu0 0.0
      %2671 = vmatpush1.msra.mxu0 0.0
      %2672 = vmatprep.subr.mxu0 0.0
      %2673 = vmatpush1.msra.mxu0 %v2637
      %2674 = vmatprep.subr.mxu0 0.0
      %2675 = vmatpush1.msra.mxu0 %v2636
      %2676 = vmatprep.subr.mxu0 0.0
      %2677 = vmatpush1.msra.mxu0 %v2635
      %2678 = vmatprep.subr.mxu0 0.0
      %2679 = vmatpush1.msra.mxu0 %v2634
      %2680 = vmatprep.subr.mxu0 0.0
      %2681 = vmatpush2.msra.mxu0 0.0
      %2682 = vmatprep.subr.mxu0 0.0
      %2683 = vmatpush2.msra.mxu0 0.0
      %2684 = vmatprep.subr.mxu0 0.0
      %2685 = vmatpush2.msra.mxu0 0.0
      %2686 = vmatprep.subr.mxu0 0.0
      %2687 = vmatpush2.msra.mxu0 0.0
      %2688 = vmatprep.subr.mxu0 0.0
      %2689 = vmatpush2.msra.mxu0 0.0
      %2690 = vmatprep.subr.mxu0 0.0
      %2691 = vmatpush2.msra.mxu0 0.0
      %2692 = vmatprep.subr.mxu0 0.0
      %2693 = vmatpush2.msra.mxu0 0.0
      %2694 = vmatprep.subr.mxu0 0.0
      %2695 = vmatpush2.msra.mxu0 0.0
      %2696 = vmatprep.subr.mxu0 0.0
      %2697 = vmatpush2.msra.mxu0 0.0
      %2698 = vmatprep.subr.mxu0 0.0
      %2699 = vmatpush2.msra.mxu0 0.0
      %2700 = vmatprep.subr.mxu0 0.0
      %2701 = vmatpush2.msra.mxu0 0.0
      %2702 = vmatprep.subr.mxu0 0.0
      %2703 = vmatpush2.msra.mxu0 0.0
      %2704 = vmatprep.subr.mxu0 0.0
      %2705 = vmatpush2.msra.mxu0 0.0
      %2706 = vmatprep.subr.mxu0 0.0
      %2707 = vmatpush2.msra.mxu0 0.0
      %2708 = vmatprep.subr.mxu0 0.0
      %2709 = vmatpush2.msra.mxu0 0.0
      %2710 = vmatprep.subr.mxu0 0.0
      %2711 = vmatpush2.msra.mxu0 0.0
      %2712 = vmatprep.mubr.f32.mxu0 0.0
      %2713 = vmatmul.mubr.f32.gmra.mxu0 %v2646
      %v2714 = vpop.f32.mrf.mxu0
      %v2715 = vadd.f32 %v2643, %v2714
      %v2716 = vpop.f32.mrf.mxu0
      %2717 = vdwg.mxu0
      %v2718 = vmax.f32 %v2715, 0.0
      %v2719 = vld [vmem:[%s67] sm:$0xff]
      %v2720 = vld [vmem:[%s67 + $0x8] sm:$0xff]
      %v2721 = vld [vmem:[%s67 + $0x10] sm:$0xff]
      %v2722 = vld [vmem:[%s67 + $0x18] sm:$0xff]
      %v2723 = vld [vmem:[%s67 + $0x20] sm:$0xff]
      %v2724 = vld [vmem:[%s67 + $0x28] sm:$0xff]
      %v2725 = vld [vmem:[%s67 + $0x30] sm:$0xff]
      %v2726 = vld [vmem:[%s67 + $0x38] sm:$0xff]
      %v2727 = vld [vmem:[%s67 + $0x40] sm:$0xff]
      %v2728 = vld [vmem:[%s67 + $0x48] sm:$0xff]
      %v2729 = vld [vmem:[%s67 + $0x50] sm:$0xff]
      %v2730 = vld [vmem:[%s67 + $0x58] sm:$0xff]
      %v2731 = vld [vmem:[%s67 + $0x60] sm:$0xff]
      %v2732 = vld [vmem:[%s67 + $0x68] sm:$0xff]
      %v2733 = vld [vmem:[%s67 + $0x70] sm:$0xff]
      %v2734 = vld [vmem:[%s67 + $0x78] sm:$0xff]
      %v2735 = vld [vmem:[%s69] sm:$0x1]
      %v2737 = vlaneseq
      %v2738 = vshrl.u32 %v2737, 7
      %v2739 = vsub.s32 0, %v2738
      %v2740 = vrot.slane %v2735, %v2739
      %2742 = vmatprep.subr.mxu0 0.0
      %2743 = vmatpush1.msra.mxu0 %v2734
      %2744 = vmatprep.subr.mxu0 0.0
      %2745 = vmatpush1.msra.mxu0 %v2733
      %2746 = vmatprep.subr.mxu0 0.0
      %2747 = vmatpush1.msra.mxu0 %v2732
      %2748 = vmatprep.subr.mxu0 0.0
      %2749 = vmatpush1.msra.mxu0 %v2731
      %2750 = vmatprep.subr.mxu0 0.0
      %2751 = vmatpush1.msra.mxu0 %v2730
      %2752 = vmatprep.subr.mxu0 0.0
      %2753 = vmatpush1.msra.mxu0 %v2729
      %2754 = vmatprep.subr.mxu0 0.0
      %2755 = vmatpush1.msra.mxu0 %v2728
      %2756 = vmatprep.subr.mxu0 0.0
      %2757 = vmatpush1.msra.mxu0 %v2727
      %2758 = vmatprep.subr.mxu0 0.0
      %2759 = vmatpush1.msra.mxu0 %v2726
      %2760 = vmatprep.subr.mxu0 0.0
      %2761 = vmatpush1.msra.mxu0 %v2725
      %2762 = vmatprep.subr.mxu0 0.0
      %2763 = vmatpush1.msra.mxu0 %v2724
      %2764 = vmatprep.subr.mxu0 0.0
      %2765 = vmatpush1.msra.mxu0 %v2723
      %2766 = vmatprep.subr.mxu0 0.0
      %2767 = vmatpush1.msra.mxu0 %v2722
      %2768 = vmatprep.subr.mxu0 0.0
      %2769 = vmatpush1.msra.mxu0 %v2721
      %2770 = vmatprep.subr.mxu0 0.0
      %2771 = vmatpush1.msra.mxu0 %v2720
      %2772 = vmatprep.subr.mxu0 0.0
      %2773 = vmatpush1.msra.mxu0 %v2719
      %2774 = vmatprep.subr.mxu0 0.0
      %2775 = vmatpush2.msra.mxu0 0.0
      %2776 = vmatprep.subr.mxu0 0.0
      %2777 = vmatpush2.msra.mxu0 0.0
      %2778 = vmatprep.subr.mxu0 0.0
      %2779 = vmatpush2.msra.mxu0 0.0
      %2780 = vmatprep.subr.mxu0 0.0
      %2781 = vmatpush2.msra.mxu0 0.0
      %2782 = vmatprep.subr.mxu0 0.0
      %2783 = vmatpush2.msra.mxu0 0.0
      %2784 = vmatprep.subr.mxu0 0.0
      %2785 = vmatpush2.msra.mxu0 0.0
      %2786 = vmatprep.subr.mxu0 0.0
      %2787 = vmatpush2.msra.mxu0 0.0
      %2788 = vmatprep.subr.mxu0 0.0
      %2789 = vmatpush2.msra.mxu0 0.0
      %2790 = vmatprep.subr.mxu0 0.0
      %2791 = vmatpush2.msra.mxu0 0.0
      %2792 = vmatprep.subr.mxu0 0.0
      %2793 = vmatpush2.msra.mxu0 0.0
      %2794 = vmatprep.subr.mxu0 0.0
      %2795 = vmatpush2.msra.mxu0 0.0
      %2796 = vmatprep.subr.mxu0 0.0
      %2797 = vmatpush2.msra.mxu0 0.0
      %2798 = vmatprep.subr.mxu0 0.0
      %2799 = vmatpush2.msra.mxu0 0.0
      %2800 = vmatprep.subr.mxu0 0.0
      %2801 = vmatpush2.msra.mxu0 0.0
      %2802 = vmatprep.subr.mxu0 0.0
      %2803 = vmatpush2.msra.mxu0 0.0
      %2804 = vmatprep.subr.mxu0 0.0
      %2805 = vmatpush2.msra.mxu0 0.0
      %2806 = vmatprep.mubr.f32.mxu0 0.0
      %2807 = vmatmul.mubr.f32.gmra.mxu0 %v2718
      %v2808 = vpop.f32.mrf.mxu0
      %v2809 = vadd.f32 %v2740, %v2808
      %v2810 = vpop.f32.mrf.mxu0
      %2811 = vdwg.mxu0
      %v2812 = vadd.f32 %v2809, %v2633
      %v2813 = vsel %vm2365, %v2812, 0.0
      %2814 = vadd.xlane.f32.xlu0 %v2813
      %v2815 = vpop.xlane.xlu0 %2814
      %v2816 = vmul.f32 %v2815, %v2369
      %v2817 = vsub.f32 %v2812, %v2816
      %v2818 = vmul.f32 %v2817, %v2817
      %v2819 = vsel %vm2365, %v2818, 0.0
      %2820 = vadd.xlane.f32.xlu0 %v2819
      %v2821 = vpop.xlane.xlu0 %2820
      %v2822 = vmul.f32 %v2821, %v2369
      %v2823 = vadd.f32 %v2822, 1e-05
      %v2824 = vrsqrt.pop %v2823
      %v2825 = vmul.f32 %v2817, %v2824
      %v2826 = vld [vmem:[%s71] sm:$0x1]
      %v2828 = vlaneseq
      %v2829 = vshrl.u32 %v2828, 7
      %v2830 = vsub.s32 0, %v2829
      %v2831 = vrot.slane %v2826, %v2830
      %v2833 = vmul.f32 %v2825, %v2831
      %v2834 = vld [vmem:[%s73] sm:$0x1]
      %v2836 = vlaneseq
      %v2837 = vshrl.u32 %v2836, 7
      %v2838 = vsub.s32 0, %v2837
      %v2839 = vrot.slane %v2834, %v2838
      %v2841 = vadd.f32 %v2833, %v2839
      %s2842 = scalar_select %p1287, 1, 0
      %v2843 = vstv %s2842
      %vm2844 = vcmp.eq.s32.totalorder %v2843, 1
      %v2845 = vsel %vm2844, %v2279, %v2841
      %2846 = vst.msk [vmem:[#allocation2] sm:$0x3] %vm2365, %v2845
      %2847 = vst.msk [vmem:[%s1278] sm:$0x3] %vm2365, %v2845
      %v2848 = vld [vmem:[%s43] sm:$0xff]
      %v2849 = vld [vmem:[%s43 + $0x8] sm:$0xff]
      %v2850 = vld [vmem:[%s43 + $0x10] sm:$0xff]
      %v2851 = vld [vmem:[%s43 + $0x18] sm:$0xff]
      %v2852 = vld [vmem:[%s45] sm:$0x1]
      %v2854 = vlaneseq
      %v2855 = vshrl.u32 %v2854, 7
      %v2856 = vsub.s32 0, %v2855
      %v2857 = vrot.slane %v2852, %v2856
      %v2860 = vsel %vm1317, %v2845, 0
      %2862 = vmatprep.subr.mxu0 0.0
      %2863 = vmatpush1.msra.mxu0 0.0
      %2864 = vmatprep.subr.mxu0 0.0
      %2865 = vmatpush1.msra.mxu0 0.0
      %2866 = vmatprep.subr.mxu0 0.0
      %2867 = vmatpush1.msra.mxu0 0.0
      %2868 = vmatprep.subr.mxu0 0.0
      %2869 = vmatpush1.msra.mxu0 0.0
      %2870 = vmatprep.subr.mxu0 0.0
      %2871 = vmatpush1.msra.mxu0 0.0
      %2872 = vmatprep.subr.mxu0 0.0
      %2873 = vmatpush1.msra.mxu0 0.0
      %2874 = vmatprep.subr.mxu0 0.0
      %2875 = vmatpush1.msra.mxu0 0.0
      %2876 = vmatprep.subr.mxu0 0.0
      %2877 = vmatpush1.msra.mxu0 0.0
      %2878 = vmatprep.subr.mxu0 0.0
      %2879 = vmatpush1.msra.mxu0 0.0
      %2880 = vmatprep.subr.mxu0 0.0
      %2881 = vmatpush1.msra.mxu0 0.0
      %2882 = vmatprep.subr.mxu0 0.0
      %2883 = vmatpush1.msra.mxu0 0.0
      %2884 = vmatprep.subr.mxu0 0.0
      %2885 = vmatpush1.msra.mxu0 0.0
      %2886 = vmatprep.subr.mxu0 0.0
      %2887 = vmatpush1.msra.mxu0 %v2851
      %2888 = vmatprep.subr.mxu0 0.0
      %2889 = vmatpush1.msra.mxu0 %v2850
      %2890 = vmatprep.subr.mxu0 0.0
      %2891 = vmatpush1.msra.mxu0 %v2849
      %2892 = vmatprep.subr.mxu0 0.0
      %2893 = vmatpush1.msra.mxu0 %v2848
      %2894 = vmatprep.subr.mxu0 0.0
      %2895 = vmatpush2.msra.mxu0 0.0
      %2896 = vmatprep.subr.mxu0 0.0
      %2897 = vmatpush2.msra.mxu0 0.0
      %2898 = vmatprep.subr.mxu0 0.0
      %2899 = vmatpush2.msra.mxu0 0.0
      %2900 = vmatprep.subr.mxu0 0.0
      %2901 = vmatpush2.msra.mxu0 0.0
      %2902 = vmatprep.subr.mxu0 0.0
      %2903 = vmatpush2.msra.mxu0 0.0
      %2904 = vmatprep.subr.mxu0 0.0
      %2905 = vmatpush2.msra.mxu0 0.0
      %2906 = vmatprep.subr.mxu0 0.0
      %2907 = vmatpush2.msra.mxu0 0.0
      %2908 = vmatprep.subr.mxu0 0.0
      %2909 = vmatpush2.msra.mxu0 0.0
      %2910 = vmatprep.subr.mxu0 0.0
      %2911 = vmatpush2.msra.mxu0 0.0
      %2912 = vmatprep.subr.mxu0 0.0
      %2913 = vmatpush2.msra.mxu0 0.0
      %2914 = vmatprep.subr.mxu0 0.0
      %2915 = vmatpush2.msra.mxu0 0.0
      %2916 = vmatprep.subr.mxu0 0.0
      %2917 = vmatpush2.msra.mxu0 0.0
      %2918 = vmatprep.subr.mxu0 0.0
      %2919 = vmatpush2.msra.mxu0 0.0
      %2920 = vmatprep.subr.mxu0 0.0
      %2921 = vmatpush2.msra.mxu0 0.0
      %2922 = vmatprep.subr.mxu0 0.0
      %2923 = vmatpush2.msra.mxu0 0.0
      %2924 = vmatprep.subr.mxu0 0.0
      %2925 = vmatpush2.msra.mxu0 0.0
      %2926 = vmatprep.mubr.f32.mxu0 0.0
      %2927 = vmatmul.mubr.f32.gmra.mxu0 %v2860
      %v2928 = vpop.f32.mrf.mxu0
      %v2929 = vadd.f32 %v2857, %v2928
      %v2930 = vpop.f32.mrf.mxu0
      %2931 = vdwg.mxu0
      %v2932 = vmax.f32 %v2929, 0.0
      %v2933 = vsel %vm2365, %v2932, 0.0
      %2934 = vadd.xlane.f32.xlu0 %v2933
      %v2935 = vpop.xlane.xlu0 %2934
      %v2936 = vmul.f32 %v2935, %v2369
      %v2937 = vsub.f32 %v2932, %v2936
      %v2938 = vmul.f32 %v2937, %v2937
      %v2939 = vsel %vm2365, %v2938, 0.0
      %2940 = vadd.xlane.f32.xlu0 %v2939
      %v2941 = vpop.xlane.xlu0 %2940
      %v2942 = vmul.f32 %v2941, %v2369
      %v2943 = vadd.f32 %v2942, 1e-05
      %v2944 = vrsqrt.pop %v2943
      %v2945 = vmul.f32 %v2937, %v2944
      %v2946 = vld [vmem:[%s47] sm:$0x1]
      %v2948 = vlaneseq
      %v2949 = vshrl.u32 %v2948, 7
      %v2950 = vsub.s32 0, %v2949
      %v2951 = vrot.slane %v2946, %v2950
      %v2953 = vmul.f32 %v2945, %v2951
      %v2954 = vld [vmem:[%s49] sm:$0x1]
      %v2956 = vlaneseq
      %v2957 = vshrl.u32 %v2956, 7
      %v2958 = vsub.s32 0, %v2957
      %v2959 = vrot.slane %v2954, %v2958
      %v2961 = vadd.f32 %v2953, %v2959
      %s2962 = smul.u32 %s91, 2
      %s2963 = scalar_lea.vmem [#allocation3], %s2962
      %2964 = vst.msk [vmem:[%s2963] sm:$0x3] %vm2365, %v2961
      %p2965 = scmp.lt.s32.totalorder %s91, 7
      %s2966 = scalar_select %p2965, %s91, 7
      %s2967 = smul.addr %s2966, 2
      %s2968 = scalar_lea.vmem %s75, %s2967
      %p2969 = scmp.lt.s32.totalorder %s91, 7
      %s2970 = scalar_select %p2969, %s91, 7
      %s2971 = smul.addr %s2970, 2
      %s2972 = scalar_lea.vmem %s77, %s2971
      %p2973 = scmp.lt.s32.totalorder %s91, 7
      %s2974 = scalar_select %p2973, %s91, 7
      %s2975 = smul.addr %s2974, 2
      %s2976 = scalar_lea.vmem %s79, %s2975
      // Predicated region
      $region173: #{_selected_forward_impl.9} parent=167 // pred_check
        %p2977 = pneg %p916
      $region174: #{_selected_forward_impl.9} parent=167 // pred_check_branch
        %2979 = sbr.rel (%p2977) target = $region176
      $region175: #{_selected_forward_impl.9} parent=167 // pred_region
        _
      $region176: #{_selected_forward_impl.9} parent=167 // pred_fallthru
        _
      // Predicated region
      $region177: #{_selected_forward_impl.9} parent=167 // pred_check
        %p2980 = pneg %p942
      $region178: #{_selected_forward_impl.9} parent=167 // pred_check_branch
        %2982 = sbr.rel (%p2980) target = $region180
      $region179: #{_selected_forward_impl.9} parent=167 // pred_region
        _
      $region180: #{_selected_forward_impl.9} parent=167 // pred_fallthru
        _
      // Predicated region
      $region181: #{_selected_forward_impl.9} parent=167 // pred_check
        %p2983 = pneg %p968
      $region182: #{_selected_forward_impl.9} parent=167 // pred_check_branch
        %2985 = sbr.rel (%p2983) target = $region184
      $region183: #{_selected_forward_impl.9} parent=167 // pred_region
        _
      $region184: #{_selected_forward_impl.9} parent=167 // pred_fallthru
        _
    $region168: #{_selected_forward_impl.9} parent=5 // pred_fallthru
      _
    %p2986 = scmp.le.s32.totalorder 2, %s86
    // Predicated region
    $region185: #{_selected_forward_impl.9} parent=5 // pred_check
      %p2987 = pneg %p2986
    $region186: #{_selected_forward_impl.9} parent=5 // pred_check_branch
      %2989 = sbr.rel (%p2987) target = $region188
    $region187: #{_selected_forward_impl.9} parent=5 // pred_region
      %s2990 = ssub.s32 %s86, 2
      // Predicated region
      $region189: #{_selected_forward_impl.9} parent=187 // pred_check
        %p2991 = pneg %p922
      $region190: #{_selected_forward_impl.9} parent=187 // pred_check_branch
        %2993 = sbr.rel (%p2991) target = $region192
      $region191: #{_selected_forward_impl.9} parent=187 // pred_region
        %p2994 = scmp.lt.s32.totalorder %s92, 7
        %s2995 = scalar_select %p2994, %s92, 7
        %s2996 = smul.addr %s2995, 2
        %s2997 = scalar_lea.vmem %s75, %s2996
      $region192: #{_selected_forward_impl.9} parent=187 // pred_fallthru
        _
      // Predicated region
      $region193: #{_selected_forward_impl.9} parent=187 // pred_check
        %p2998 = pneg %p948
      $region194: #{_selected_forward_impl.9} parent=187 // pred_check_branch
        %3000 = sbr.rel (%p2998) target = $region196
      $region195: #{_selected_forward_impl.9} parent=187 // pred_region
        %p3001 = scmp.lt.s32.totalorder %s92, 7
        %s3002 = scalar_select %p3001, %s92, 7
        %s3003 = smul.addr %s3002, 2
        %s3004 = scalar_lea.vmem %s77, %s3003
      $region196: #{_selected_forward_impl.9} parent=187 // pred_fallthru
        _
      // Predicated region
      $region197: #{_selected_forward_impl.9} parent=187 // pred_check
        %p3005 = pneg %p974
      $region198: #{_selected_forward_impl.9} parent=187 // pred_check_branch
        %3007 = sbr.rel (%p3005) target = $region200
      $region199: #{_selected_forward_impl.9} parent=187 // pred_region
        %p3008 = scmp.lt.s32.totalorder %s92, 7
        %s3009 = scalar_select %p3008, %s92, 7
        %s3010 = smul.addr %s3009, 2
        %s3011 = scalar_lea.vmem %s79, %s3010
      $region200: #{_selected_forward_impl.9} parent=187 // pred_fallthru
        _
    $region188: #{_selected_forward_impl.9} parent=5 // pred_fallthru
      _
  $region6: #{_selected_forward_impl.9} parent=0 // loop_footer
    %s90 = sadd.s32 1, %s86
  $region7: #{_selected_forward_impl.9} parent=0 // loop_footer_branch
    %85 = sbr.rel target = $region3
  $region8: #{_selected_forward_impl.9} parent=0 // loop_exit
    _

</llo_original>
